<compile_context>
chip_gen: v7x
topology: tpu7x:2x2x1
jax: 0.10.0
libtpu: 0.0.40
codegen_flags: <defaults>
</compile_context>

<pallas_src>
import numpy as np
import jax
import jax.numpy as jnp
from jax import lax
from jax.experimental import pallas as pl
from jax.experimental.pallas import tpu as pltpu


CONV_OPERAND_DTYPE = jnp.bfloat16   # conv matmuls run bf16 x bf16 -> f32 accumulation


def _conv_out(size, k, s):
    return (size - k) // s + 1


# ------------------------------ fused kernel --------------------------------

def _encoder_kernel(x_ref,
                    s1_ref, m1_ref, c1_ref,
                    s2_ref, m2_ref, c2_ref,
                    s3_ref, m3_ref, c3_ref,
                    sl_ref, wl_ref, bl_ref, g_ref, bt_ref,
                    o_ref):
    """One grid step == B_TILE images, batch-stacked along the matmul M dimension."""

    def conv_relu(act_bf16, s_ref, m_ref, bias_ref):
        # act_bf16 : (B_TILE*H_in, W_in*C_in)  bf16   (batch-stacked rows)
        # s_ref    : (kh, B_TILE*oh, B_TILE*H_in)     bf16 block-diag 0/1 row selector
        # m_ref    : (kh, W_in*C_in, ow*C_out)        bf16 horizontally-scattered weight
        # bias_ref : (1, ow*C_out)                    f32
        kh = s_ref.shape[0]
        acc = None
        for i in range(kh):
            rows = jnp.dot(s_ref[i], act_bf16,                     # (B_TILE*oh, W_in*C_in)
                           preferred_element_type=jnp.float32)
            part = jnp.dot(rows.astype(m_ref.dtype), m_ref[i],     # (B_TILE*oh, ow*C_out)
                           preferred_element_type=jnp.float32)
            acc = part if acc is None else acc + part
        return jnp.maximum(acc + bias_ref[...], 0.0)               # f32 elementwise

    x = x_ref[0]                                        # (B_TILE*H, W*C) bf16
    h = conv_relu(x, s1_ref, m1_ref, c1_ref)            # (B_TILE*10, 10*32) f32
    h = conv_relu(h.astype(jnp.bfloat16), s2_ref, m2_ref, c2_ref)   # (B_TILE*4, 4*64)
    h = conv_relu(h.astype(jnp.bfloat16), s3_ref, m3_ref, c3_ref)   # (B_TILE*2, 2*32)
    hb = h.astype(jnp.bfloat16)                         # (B_TILE*oh3, W3*C3)

    # Linear head: the NCHW flatten-order permutation was folded into wl at pack time.
    # For each conv3 output row y, select that row of every image (bf16 selector) and
    # do one batched (B_TILE, W3*C3) @ (W3*C3, latent) matmul.
    z = bl_ref[...]                                     # (1, latent) f32
    for y in range(sl_ref.shape[0]):
        rows_y = jnp.dot(sl_ref[y], hb,                 # (B_TILE, W3*C3) f32
                         preferred_element_type=jnp.float32)
        z = z + jnp.dot(rows_y, wl_ref[y],              # (B_TILE, latent) f32
                        preferred_element_type=jnp.float32)

    # LayerNorm (eps = 1e-5), two-pass statistics (no cancellation).
    n = z.shape[-1]
    mean = jnp.sum(z, axis=-1, keepdims=True) * (1.0 / n)
    zc = z - mean
    var = jnp.sum(zc * zc, axis=-1, keepdims=True) * (1.0 / n)
    z_hat = zc * lax.rsqrt(var + 1e-5)
    o_ref[0] = z_hat * g_ref[...] + bt_ref[...]         # one dense (B_TILE, latent) store


# ----------------------------- forward wrapper -------------------------------

def random_cnn_encoder_forward(obs_nchw, packed):
    b, c, h, w = obs_nchw.shape
    latent = packed["bl"].shape[-1]
    b_tile = packed["sl"].shape[1]          # B_TILE baked into the packed selectors

    b_pad = -(-b // b_tile) * b_tile
    if b_pad != b:
        obs_nchw = jnp.pad(obs_nchw, ((0, b_pad - b), (0, 0), (0, 0), (0, 0)))
    num_tiles = b_pad // b_tile

    # NCHW -> batch-row-stacked (num_tiles, B_TILE*H, W*C) in bf16 (halves input DMA;
    # bit-identical to casting inside the kernel since conv operands are bf16 anyway).
    x = jnp.transpose(obs_nchw.astype(jnp.float32), (0, 2, 3, 1))
    x = x.reshape(num_tiles, b_tile * h, w * c).astype(CONV_OPERAND_DTYPE)

    operands = [x,
                packed["s1"], packed["m1"], packed["c1"],
                packed["s2"], packed["m2"], packed["c2"],
                packed["s3"], packed["m3"], packed["c3"],
                packed["sl"], packed["wl"], packed["bl"],
                packed["gamma"], packed["beta"]]

    def resident(a):                         # grid-invariant (loaded once, stays in VMEM)
        nd = a.ndim
        return pl.BlockSpec(a.shape, lambda i, nd=nd: (0,) * nd)

    in_specs = [pl.BlockSpec((1, b_tile * h, w * c), lambda i: (i, 0, 0))]
    in_specs += [resident(a) for a in operands[1:]]

    # Advisory cost estimate so XLA schedules surrounding ops around the custom call.
    macs = 0
    for idx in (1, 2, 3):
        s = packed[f"s{idx}"]; m = packed[f"m{idx}"]
        kh, rout, rin = s.shape
        _, kk, nn = m.shape
        macs += kh * (rout * rin * kk + rout * kk * nn)
    sl = packed["sl"]; wl = packed["wl"]
    oh3, bt, rin = sl.shape
    _, kk, ll = wl.shape
    macs += oh3 * (bt * rin * kk + bt * kk * ll)
    flops = int(2 * macs * num_tiles)
    bytes_accessed = int(x.size) * 2
    bytes_accessed += sum(int(packed[k].size) * int(packed[k].dtype.itemsize)
                          for k in packed)
    bytes_accessed += int(b_pad * latent * 4)

    out = pl.pallas_call(
        _encoder_kernel,
        out_shape=jax.ShapeDtypeStruct((num_tiles, b_tile, latent), jnp.float32),
        grid=(num_tiles,),
        in_specs=in_specs,
        out_specs=pl.BlockSpec((1, b_tile, latent), lambda i: (i, 0, 0)),
        compiler_params=pltpu.CompilerParams(
            dimension_semantics=("parallel",)),
        cost_estimate=pl.CostEstimate(flops=flops, transcendentals=0,
                                      bytes_accessed=bytes_accessed),
    )(*operands)
    return out.reshape(b_pad, latent)[:b]


# --------------------------- parameters / packing ----------------------------

def init_params(key, obs_shape, latent_dim):
    """Deterministic synthetic params with PyTorch-default-like uniform init."""
    c, h, w = obs_shape
    oh = _conv_out(_conv_out(_conv_out(h, 8, 4), 4, 2), 3, 1)
    ow = _conv_out(_conv_out(_conv_out(w, 8, 4), 4, 2), 3, 1)
    n_flatten = 32 * oh * ow

    keys = jax.random.split(key, 8)

    def u(k, shape, fan_in):
        bound = 1.0 / float(fan_in) ** 0.5
        return jax.random.uniform(k, shape, jnp.float32, -bound, bound)

    params = {
        "w1": u(keys[0], (32, c, 8, 8), c * 8 * 8),
        "b1": u(keys[1], (32,), c * 8 * 8),
        "w2": u(keys[2], (64, 32, 4, 4), 32 * 4 * 4),
        "b2": u(keys[3], (64,), 32 * 4 * 4),
        "w3": u(keys[4], (32, 64, 3, 3), 64 * 3 * 3),
        "b3": u(keys[5], (32,), 64 * 3 * 3),
        "wl": u(keys[6], (latent_dim, n_flatten), n_flatten),
        "bl": u(keys[7], (latent_dim,), n_flatten),
        "gamma": jnp.ones((latent_dim,), jnp.float32),
        "beta": jnp.zeros((latent_dim,), jnp.float32),
    }
    return params, n_flatten


def pack_params(params, obs_shape, latent_dim, b_tile,
                conv_dtype=CONV_OPERAND_DTYPE):
    """One-time packing of PyTorch-layout params into the kernel's operand layout.

    The row-selection matrices are block-diagonal over the B_TILE batch-stacked rows,
    so every conv matmul has M = B_TILE * oh.
    """
    c, h, w = obs_shape
    packed = {}
    H, W, C = h, w, c

    for idx, (wname, bname, stride) in enumerate(
            [("w1", "b1", 4), ("w2", "b2", 2), ("w3", "b3", 1)], start=1):
        wt = np.asarray(params[wname], np.float32)      # (Cout, Cin, kh, kw)
        bias = np.asarray(params[bname], np.float32)
        cout, cin, kh, kw = wt.shape
        oh, ow = _conv_out(H, kh, stride), _conv_out(W, kw, stride)

        # Block-diagonal vertical-stride row selection over the batch-stacked rows:
        # S[i, b*oh + oy, b*H + oy*stride + i] = 1.
        S = np.zeros((kh, b_tile * oh, b_tile * H), np.float32)
        for i in range(kh):
            for bb in range(b_tile):
                for oy in range(oh):
                    S[i, bb * oh + oy, bb * H + oy * stride + i] = 1.0

        # Horizontal window/stride folded into the weight:
        # B[i, wpos*Cin + ci, ox*Cout + co] = w[co, ci, i, wpos - ox*stride]
        B = np.zeros((kh, W * cin, ow * cout), np.float32)
        for i in range(kh):
            for ox in range(ow):
                for j in range(kw):
                    wpos = ox * stride + j
                    B[i, wpos * cin:(wpos + 1) * cin,
                      ox * cout:(ox + 1) * cout] = wt[:, :, i, j].T

        packed[f"s{idx}"] = jnp.asarray(S, dtype=conv_dtype)
        packed[f"m{idx}"] = jnp.asarray(B, dtype=conv_dtype)
        packed[f"c{idx}"] = jnp.asarray(np.tile(bias, ow)[None, :])
        H, W, C = oh, ow, cout

    # Linear-head row selector: SL[y, b, b*oh3 + y] = 1  (picks conv3 row y per image).
    SL = np.zeros((H, b_tile, b_tile * H), np.float32)
    for y in range(H):
        for bb in range(b_tile):
            SL[y, bb, bb * H + y] = 1.0
    packed["sl"] = jnp.asarray(SL, dtype=conv_dtype)

    # Linear weight with PyTorch's (c, y, x) flatten order folded into the columns,
    # reorganised per conv3 output row: wl_packed[y, x*C + c, l] = wl[l, c*H*W + y*W + x]
    L = latent_dim
    wl = np.asarray(params["wl"], np.float32).reshape(L, C, H, W)
    wl_packed = np.transpose(wl, (2, 3, 1, 0)).reshape(H, W * C, L)
    packed["wl"] = jnp.asarray(wl_packed)
    packed["bl"] = jnp.asarray(np.asarray(params["bl"], np.float32)[None, :])
    packed["gamma"] = jnp.asarray(np.asarray(params["gamma"], np.float32)[None, :])
    packed["beta"] = jnp.asarray(np.asarray(params["beta"], np.float32)[None, :])
    return packed


# ------------------------------ pure-JAX reference ---------------------------

def reference_forward(obs_nchw, params):
    x = obs_nchw.astype(jnp.float32)

    def conv(x, w, b, s):
        y = lax.conv_general_dilated(
            x, w, (s, s), "VALID",
            dimension_numbers=("NCHW", "OIHW", "NCHW"),
            precision=lax.Precision.HIGHEST)
        return jax.nn.relu(y + b[None, :, None, None])

    x = conv(x, params["w1"], params["b1"], 4)
    x = conv(x, params["w2"], params["b2"], 2)
    x = conv(x, params["w3"], params["b3"], 1)
    hf = x.reshape(x.shape[0], -1)
    z = jnp.dot(hf, params["wl"].T, precision=lax.Precision.HIGHEST) + params["bl"]
    mean = z.mean(-1, keepdims=True)
    var = ((z - mean) ** 2).mean(-1, keepdims=True)
    z_hat = (z - mean) / jnp.sqrt(var + 1e-5)
    return z_hat * params["gamma"] + params["beta"]


# ----------------------------------- main ------------------------------------

if __name__ == "__main__":
    # 44 is the smallest "nice" spatial size for the 8/4 -> 4/2 -> 3/1 conv chain:
    # 44 -> 10 -> 4 -> 2 spatially; n_flatten = 32*2*2 = 128.
    obs_shape = (4, 44, 44)   # (C, H, W)
    latent_dim = 32
    batch = 8
    b_tile = 4                # grid = 2  ->  both TensorCores busy on v7x

    key = jax.random.PRNGKey(0)
    pkey, xkey = jax.random.split(key)
    params, n_flatten = init_params(pkey, obs_shape, latent_dim)
    packed = pack_params(params, obs_shape, latent_dim, b_tile)

    obs = jax.random.normal(xkey, (batch,) + obs_shape, jnp.float32)

    fwd = jax.jit(random_cnn_encoder_forward)
    out = jax.block_until_ready(fwd(obs, packed))

    assert out.shape == (batch, latent_dim), out.shape
    assert out.dtype == jnp.float32

    # Correctness vs pure-JAX f32 reference (tolerance covers the bf16 conv operands).
    ref = jax.block_until_ready(reference_forward(obs, params))
    np.testing.assert_allclose(np.asarray(out), np.asarray(ref), rtol=0.12, atol=0.06)

    print("KERNEL_OK")
</pallas_src>

<mosaic_0001>
module attributes {stable_mosaic.version = 11 : i64} {
  func.func @_encoder_kernel(%arg0: i32, %arg1: memref<1x176x176xbf16, #tpu.memory_space<vmem>>, %arg2: memref<8x40x176xbf16, #tpu.memory_space<vmem>>, %arg3: memref<8x176x320xbf16, #tpu.memory_space<vmem>>, %arg4: memref<1x320xf32, #tpu.memory_space<vmem>>, %arg5: memref<4x16x40xbf16, #tpu.memory_space<vmem>>, %arg6: memref<4x320x256xbf16, #tpu.memory_space<vmem>>, %arg7: memref<1x256xf32, #tpu.memory_space<vmem>>, %arg8: memref<3x8x16xbf16, #tpu.memory_space<vmem>>, %arg9: memref<3x256x64xbf16, #tpu.memory_space<vmem>>, %arg10: memref<1x64xf32, #tpu.memory_space<vmem>>, %arg11: memref<2x4x8xbf16, #tpu.memory_space<vmem>>, %arg12: memref<2x64x32xf32, #tpu.memory_space<vmem>>, %arg13: memref<1x32xf32, #tpu.memory_space<vmem>>, %arg14: memref<1x32xf32, #tpu.memory_space<vmem>>, %arg15: memref<1x32xf32, #tpu.memory_space<vmem>>, %arg16: memref<1x4x32xf32, #tpu.memory_space<vmem>>) attributes {dimension_semantics = [#tpu.dimension_semantics<parallel>], iteration_bounds = array<i64: 2>, scalar_prefetch = 0 : i64, scratch_operands = 0 : i64, tpu.core_type = #tpu.core_type<tc>, window_params = [{transform_indices = @transform_0, window_bounds = array<i64: 1, 176, 176>}, {pipeline_mode = #tpu.pipeline_mode<synchronous>, transform_indices = @transform_1, window_bounds = array<i64: 8, 40, 176>}, {pipeline_mode = #tpu.pipeline_mode<synchronous>, transform_indices = @transform_2, window_bounds = array<i64: 8, 176, 320>}, {pipeline_mode = #tpu.pipeline_mode<synchronous>, transform_indices = @transform_3, window_bounds = array<i64: 1, 320>}, {pipeline_mode = #tpu.pipeline_mode<synchronous>, transform_indices = @transform_4, window_bounds = array<i64: 4, 16, 40>}, {pipeline_mode = #tpu.pipeline_mode<synchronous>, transform_indices = @transform_5, window_bounds = array<i64: 4, 320, 256>}, {pipeline_mode = #tpu.pipeline_mode<synchronous>, transform_indices = @transform_6, window_bounds = array<i64: 1, 256>}, {pipeline_mode = #tpu.pipeline_mode<synchronous>, transform_indices = @transform_7, window_bounds = array<i64: 3, 8, 16>}, {pipeline_mode = #tpu.pipeline_mode<synchronous>, transform_indices = @transform_8, window_bounds = array<i64: 3, 256, 64>}, {pipeline_mode = #tpu.pipeline_mode<synchronous>, transform_indices = @transform_9, window_bounds = array<i64: 1, 64>}, {pipeline_mode = #tpu.pipeline_mode<synchronous>, transform_indices = @transform_10, window_bounds = array<i64: 2, 4, 8>}, {pipeline_mode = #tpu.pipeline_mode<synchronous>, transform_indices = @transform_11, window_bounds = array<i64: 2, 64, 32>}, {pipeline_mode = #tpu.pipeline_mode<synchronous>, transform_indices = @transform_12, window_bounds = array<i64: 1, 32>}, {pipeline_mode = #tpu.pipeline_mode<synchronous>, transform_indices = @transform_13, window_bounds = array<i64: 1, 32>}, {pipeline_mode = #tpu.pipeline_mode<synchronous>, transform_indices = @transform_14, window_bounds = array<i64: 1, 32>}, {transform_indices = @transform_15, window_bounds = array<i64: 1, 4, 32>}]} {
    %c0 = arith.constant 0 : index
    %c0_0 = arith.constant 0 : index
    %c0_1 = arith.constant 0 : index
    %0 = vector.load %arg1[%c0, %c0_0, %c0_1] : memref<1x176x176xbf16, #tpu.memory_space<vmem>>, vector<1x176x176xbf16>
    %1 = vector.shape_cast %0 : vector<1x176x176xbf16> to vector<176x176xbf16>
    %c0_2 = arith.constant 0 : index
    %c0_3 = arith.constant 0 : index
    %c0_4 = arith.constant 0 : index
    %2 = vector.load %arg2[%c0_2, %c0_3, %c0_4] : memref<8x40x176xbf16, #tpu.memory_space<vmem>>, vector<1x40x176xbf16>
    %3 = vector.shape_cast %2 : vector<1x40x176xbf16> to vector<40x176xbf16>
    %cst = arith.constant dense<0.000000e+00> : vector<40x176xf32>
    %4 = tpu.matmul %3, %1, %cst {dimension_numbers = #tpu.dot_dimension_numbers<[1], [0], [0], [1], [0, 0, 1, 1], [], []>} : vector<40x176xbf16>, vector<176x176xbf16>, vector<40x176xf32> -> vector<40x176xf32>
    %5 = arith.truncf %4 : vector<40x176xf32> to vector<40x176xbf16>
    %c0_5 = arith.constant 0 : index
    %c0_6 = arith.constant 0 : index
    %c0_7 = arith.constant 0 : index
    %6 = vector.load %arg3[%c0_5, %c0_6, %c0_7] : memref<8x176x320xbf16, #tpu.memory_space<vmem>>, vector<1x176x320xbf16>
    %7 = vector.shape_cast %6 : vector<1x176x320xbf16> to vector<176x320xbf16>
    %cst_8 = arith.constant dense<0.000000e+00> : vector<40x320xf32>
    %8 = tpu.matmul %5, %7, %cst_8 {dimension_numbers = #tpu.dot_dimension_numbers<[1], [0], [0], [1], [0, 0, 1, 1], [], []>} : vector<40x176xbf16>, vector<176x320xbf16>, vector<40x320xf32> -> vector<40x320xf32>
    %c1 = arith.constant 1 : index
    %c0_9 = arith.constant 0 : index
    %c0_10 = arith.constant 0 : index
    %9 = vector.load %arg2[%c1, %c0_9, %c0_10] : memref<8x40x176xbf16, #tpu.memory_space<vmem>>, vector<1x40x176xbf16>
    %10 = vector.shape_cast %9 : vector<1x40x176xbf16> to vector<40x176xbf16>
    %cst_11 = arith.constant dense<0.000000e+00> : vector<40x176xf32>
    %11 = tpu.matmul %10, %1, %cst_11 {dimension_numbers = #tpu.dot_dimension_numbers<[1], [0], [0], [1], [0, 0, 1, 1], [], []>} : vector<40x176xbf16>, vector<176x176xbf16>, vector<40x176xf32> -> vector<40x176xf32>
    %12 = arith.truncf %11 : vector<40x176xf32> to vector<40x176xbf16>
    %c1_12 = arith.constant 1 : index
    %c0_13 = arith.constant 0 : index
    %c0_14 = arith.constant 0 : index
    %13 = vector.load %arg3[%c1_12, %c0_13, %c0_14] : memref<8x176x320xbf16, #tpu.memory_space<vmem>>, vector<1x176x320xbf16>
    %14 = vector.shape_cast %13 : vector<1x176x320xbf16> to vector<176x320xbf16>
    %cst_15 = arith.constant dense<0.000000e+00> : vector<40x320xf32>
    %15 = tpu.matmul %12, %14, %cst_15 {dimension_numbers = #tpu.dot_dimension_numbers<[1], [0], [0], [1], [0, 0, 1, 1], [], []>} : vector<40x176xbf16>, vector<176x320xbf16>, vector<40x320xf32> -> vector<40x320xf32>
    %16 = arith.addf %8, %15 : vector<40x320xf32>
    %c2 = arith.constant 2 : index
    %c0_16 = arith.constant 0 : index
    %c0_17 = arith.constant 0 : index
    %17 = vector.load %arg2[%c2, %c0_16, %c0_17] : memref<8x40x176xbf16, #tpu.memory_space<vmem>>, vector<1x40x176xbf16>
    %18 = vector.shape_cast %17 : vector<1x40x176xbf16> to vector<40x176xbf16>
    %cst_18 = arith.constant dense<0.000000e+00> : vector<40x176xf32>
    %19 = tpu.matmul %18, %1, %cst_18 {dimension_numbers = #tpu.dot_dimension_numbers<[1], [0], [0], [1], [0, 0, 1, 1], [], []>} : vector<40x176xbf16>, vector<176x176xbf16>, vector<40x176xf32> -> vector<40x176xf32>
    %20 = arith.truncf %19 : vector<40x176xf32> to vector<40x176xbf16>
    %c2_19 = arith.constant 2 : index
    %c0_20 = arith.constant 0 : index
    %c0_21 = arith.constant 0 : index
    %21 = vector.load %arg3[%c2_19, %c0_20, %c0_21] : memref<8x176x320xbf16, #tpu.memory_space<vmem>>, vector<1x176x320xbf16>
    %22 = vector.shape_cast %21 : vector<1x176x320xbf16> to vector<176x320xbf16>
    %cst_22 = arith.constant dense<0.000000e+00> : vector<40x320xf32>
    %23 = tpu.matmul %20, %22, %cst_22 {dimension_numbers = #tpu.dot_dimension_numbers<[1], [0], [0], [1], [0, 0, 1, 1], [], []>} : vector<40x176xbf16>, vector<176x320xbf16>, vector<40x320xf32> -> vector<40x320xf32>
    %24 = arith.addf %16, %23 : vector<40x320xf32>
    %c3 = arith.constant 3 : index
    %c0_23 = arith.constant 0 : index
    %c0_24 = arith.constant 0 : index
    %25 = vector.load %arg2[%c3, %c0_23, %c0_24] : memref<8x40x176xbf16, #tpu.memory_space<vmem>>, vector<1x40x176xbf16>
    %26 = vector.shape_cast %25 : vector<1x40x176xbf16> to vector<40x176xbf16>
    %cst_25 = arith.constant dense<0.000000e+00> : vector<40x176xf32>
    %27 = tpu.matmul %26, %1, %cst_25 {dimension_numbers = #tpu.dot_dimension_numbers<[1], [0], [0], [1], [0, 0, 1, 1], [], []>} : vector<40x176xbf16>, vector<176x176xbf16>, vector<40x176xf32> -> vector<40x176xf32>
    %28 = arith.truncf %27 : vector<40x176xf32> to vector<40x176xbf16>
    %c3_26 = arith.constant 3 : index
    %c0_27 = arith.constant 0 : index
    %c0_28 = arith.constant 0 : index
    %29 = vector.load %arg3[%c3_26, %c0_27, %c0_28] : memref<8x176x320xbf16, #tpu.memory_space<vmem>>, vector<1x176x320xbf16>
    %30 = vector.shape_cast %29 : vector<1x176x320xbf16> to vector<176x320xbf16>
    %cst_29 = arith.constant dense<0.000000e+00> : vector<40x320xf32>
    %31 = tpu.matmul %28, %30, %cst_29 {dimension_numbers = #tpu.dot_dimension_numbers<[1], [0], [0], [1], [0, 0, 1, 1], [], []>} : vector<40x176xbf16>, vector<176x320xbf16>, vector<40x320xf32> -> vector<40x320xf32>
    %32 = arith.addf %24, %31 : vector<40x320xf32>
    %c4 = arith.constant 4 : index
    %c0_30 = arith.constant 0 : index
    %c0_31 = arith.constant 0 : index
    %33 = vector.load %arg2[%c4, %c0_30, %c0_31] : memref<8x40x176xbf16, #tpu.memory_space<vmem>>, vector<1x40x176xbf16>
    %34 = vector.shape_cast %33 : vector<1x40x176xbf16> to vector<40x176xbf16>
    %cst_32 = arith.constant dense<0.000000e+00> : vector<40x176xf32>
    %35 = tpu.matmul %34, %1, %cst_32 {dimension_numbers = #tpu.dot_dimension_numbers<[1], [0], [0], [1], [0, 0, 1, 1], [], []>} : vector<40x176xbf16>, vector<176x176xbf16>, vector<40x176xf32> -> vector<40x176xf32>
    %36 = arith.truncf %35 : vector<40x176xf32> to vector<40x176xbf16>
    %c4_33 = arith.constant 4 : index
    %c0_34 = arith.constant 0 : index
    %c0_35 = arith.constant 0 : index
    %37 = vector.load %arg3[%c4_33, %c0_34, %c0_35] : memref<8x176x320xbf16, #tpu.memory_space<vmem>>, vector<1x176x320xbf16>
    %38 = vector.shape_cast %37 : vector<1x176x320xbf16> to vector<176x320xbf16>
    %cst_36 = arith.constant dense<0.000000e+00> : vector<40x320xf32>
    %39 = tpu.matmul %36, %38, %cst_36 {dimension_numbers = #tpu.dot_dimension_numbers<[1], [0], [0], [1], [0, 0, 1, 1], [], []>} : vector<40x176xbf16>, vector<176x320xbf16>, vector<40x320xf32> -> vector<40x320xf32>
    %40 = arith.addf %32, %39 : vector<40x320xf32>
    %c5 = arith.constant 5 : index
    %c0_37 = arith.constant 0 : index
    %c0_38 = arith.constant 0 : index
    %41 = vector.load %arg2[%c5, %c0_37, %c0_38] : memref<8x40x176xbf16, #tpu.memory_space<vmem>>, vector<1x40x176xbf16>
    %42 = vector.shape_cast %41 : vector<1x40x176xbf16> to vector<40x176xbf16>
    %cst_39 = arith.constant dense<0.000000e+00> : vector<40x176xf32>
    %43 = tpu.matmul %42, %1, %cst_39 {dimension_numbers = #tpu.dot_dimension_numbers<[1], [0], [0], [1], [0, 0, 1, 1], [], []>} : vector<40x176xbf16>, vector<176x176xbf16>, vector<40x176xf32> -> vector<40x176xf32>
    %44 = arith.truncf %43 : vector<40x176xf32> to vector<40x176xbf16>
    %c5_40 = arith.constant 5 : index
    %c0_41 = arith.constant 0 : index
    %c0_42 = arith.constant 0 : index
    %45 = vector.load %arg3[%c5_40, %c0_41, %c0_42] : memref<8x176x320xbf16, #tpu.memory_space<vmem>>, vector<1x176x320xbf16>
    %46 = vector.shape_cast %45 : vector<1x176x320xbf16> to vector<176x320xbf16>
    %cst_43 = arith.constant dense<0.000000e+00> : vector<40x320xf32>
    %47 = tpu.matmul %44, %46, %cst_43 {dimension_numbers = #tpu.dot_dimension_numbers<[1], [0], [0], [1], [0, 0, 1, 1], [], []>} : vector<40x176xbf16>, vector<176x320xbf16>, vector<40x320xf32> -> vector<40x320xf32>
    %48 = arith.addf %40, %47 : vector<40x320xf32>
    %c6 = arith.constant 6 : index
    %c0_44 = arith.constant 0 : index
    %c0_45 = arith.constant 0 : index
    %49 = vector.load %arg2[%c6, %c0_44, %c0_45] : memref<8x40x176xbf16, #tpu.memory_space<vmem>>, vector<1x40x176xbf16>
    %50 = vector.shape_cast %49 : vector<1x40x176xbf16> to vector<40x176xbf16>
    %cst_46 = arith.constant dense<0.000000e+00> : vector<40x176xf32>
    %51 = tpu.matmul %50, %1, %cst_46 {dimension_numbers = #tpu.dot_dimension_numbers<[1], [0], [0], [1], [0, 0, 1, 1], [], []>} : vector<40x176xbf16>, vector<176x176xbf16>, vector<40x176xf32> -> vector<40x176xf32>
    %52 = arith.truncf %51 : vector<40x176xf32> to vector<40x176xbf16>
    %c6_47 = arith.constant 6 : index
    %c0_48 = arith.constant 0 : index
    %c0_49 = arith.constant 0 : index
    %53 = vector.load %arg3[%c6_47, %c0_48, %c0_49] : memref<8x176x320xbf16, #tpu.memory_space<vmem>>, vector<1x176x320xbf16>
    %54 = vector.shape_cast %53 : vector<1x176x320xbf16> to vector<176x320xbf16>
    %cst_50 = arith.constant dense<0.000000e+00> : vector<40x320xf32>
    %55 = tpu.matmul %52, %54, %cst_50 {dimension_numbers = #tpu.dot_dimension_numbers<[1], [0], [0], [1], [0, 0, 1, 1], [], []>} : vector<40x176xbf16>, vector<176x320xbf16>, vector<40x320xf32> -> vector<40x320xf32>
    %56 = arith.addf %48, %55 : vector<40x320xf32>
    %c7 = arith.constant 7 : index
    %c0_51 = arith.constant 0 : index
    %c0_52 = arith.constant 0 : index
    %57 = vector.load %arg2[%c7, %c0_51, %c0_52] : memref<8x40x176xbf16, #tpu.memory_space<vmem>>, vector<1x40x176xbf16>
    %58 = vector.shape_cast %57 : vector<1x40x176xbf16> to vector<40x176xbf16>
    %cst_53 = arith.constant dense<0.000000e+00> : vector<40x176xf32>
    %59 = tpu.matmul %58, %1, %cst_53 {dimension_numbers = #tpu.dot_dimension_numbers<[1], [0], [0], [1], [0, 0, 1, 1], [], []>} : vector<40x176xbf16>, vector<176x176xbf16>, vector<40x176xf32> -> vector<40x176xf32>
    %60 = arith.truncf %59 : vector<40x176xf32> to vector<40x176xbf16>
    %c7_54 = arith.constant 7 : index
    %c0_55 = arith.constant 0 : index
    %c0_56 = arith.constant 0 : index
    %61 = vector.load %arg3[%c7_54, %c0_55, %c0_56] : memref<8x176x320xbf16, #tpu.memory_space<vmem>>, vector<1x176x320xbf16>
    %62 = vector.shape_cast %61 : vector<1x176x320xbf16> to vector<176x320xbf16>
    %cst_57 = arith.constant dense<0.000000e+00> : vector<40x320xf32>
    %63 = tpu.matmul %60, %62, %cst_57 {dimension_numbers = #tpu.dot_dimension_numbers<[1], [0], [0], [1], [0, 0, 1, 1], [], []>} : vector<40x176xbf16>, vector<176x320xbf16>, vector<40x320xf32> -> vector<40x320xf32>
    %64 = arith.addf %56, %63 : vector<40x320xf32>
    %c0_58 = arith.constant 0 : index
    %c0_59 = arith.constant 0 : index
    %65 = vector.load %arg4[%c0_58, %c0_59] : memref<1x320xf32, #tpu.memory_space<vmem>>, vector<1x320xf32>
    %66 = vector.broadcast %65 : vector<1x320xf32> to vector<40x320xf32>
    %67 = arith.addf %64, %66 : vector<40x320xf32>
    %cst_60 = arith.constant 0.000000e+00 : f32
    %68 = vector.broadcast %cst_60 : f32 to vector<40x320xf32>
    %69 = arith.maximumf %67, %68 : vector<40x320xf32>
    %70 = arith.truncf %69 : vector<40x320xf32> to vector<40x320xbf16>
    %c0_61 = arith.constant 0 : index
    %c0_62 = arith.constant 0 : index
    %c0_63 = arith.constant 0 : index
    %71 = vector.load %arg5[%c0_61, %c0_62, %c0_63] : memref<4x16x40xbf16, #tpu.memory_space<vmem>>, vector<1x16x40xbf16>
    %72 = vector.shape_cast %71 : vector<1x16x40xbf16> to vector<16x40xbf16>
    %cst_64 = arith.constant dense<0.000000e+00> : vector<16x320xf32>
    %73 = tpu.matmul %72, %70, %cst_64 {dimension_numbers = #tpu.dot_dimension_numbers<[1], [0], [0], [1], [0, 0, 1, 1], [], []>} : vector<16x40xbf16>, vector<40x320xbf16>, vector<16x320xf32> -> vector<16x320xf32>
    %74 = arith.truncf %73 : vector<16x320xf32> to vector<16x320xbf16>
    %c0_65 = arith.constant 0 : index
    %c0_66 = arith.constant 0 : index
    %c0_67 = arith.constant 0 : index
    %75 = vector.load %arg6[%c0_65, %c0_66, %c0_67] : memref<4x320x256xbf16, #tpu.memory_space<vmem>>, vector<1x320x256xbf16>
    %76 = vector.shape_cast %75 : vector<1x320x256xbf16> to vector<320x256xbf16>
    %cst_68 = arith.constant dense<0.000000e+00> : vector<16x256xf32>
    %77 = tpu.matmul %74, %76, %cst_68 {dimension_numbers = #tpu.dot_dimension_numbers<[1], [0], [0], [1], [0, 0, 1, 1], [], []>} : vector<16x320xbf16>, vector<320x256xbf16>, vector<16x256xf32> -> vector<16x256xf32>
    %c1_69 = arith.constant 1 : index
    %c0_70 = arith.constant 0 : index
    %c0_71 = arith.constant 0 : index
    %78 = vector.load %arg5[%c1_69, %c0_70, %c0_71] : memref<4x16x40xbf16, #tpu.memory_space<vmem>>, vector<1x16x40xbf16>
    %79 = vector.shape_cast %78 : vector<1x16x40xbf16> to vector<16x40xbf16>
    %cst_72 = arith.constant dense<0.000000e+00> : vector<16x320xf32>
    %80 = tpu.matmul %79, %70, %cst_72 {dimension_numbers = #tpu.dot_dimension_numbers<[1], [0], [0], [1], [0, 0, 1, 1], [], []>} : vector<16x40xbf16>, vector<40x320xbf16>, vector<16x320xf32> -> vector<16x320xf32>
    %81 = arith.truncf %80 : vector<16x320xf32> to vector<16x320xbf16>
    %c1_73 = arith.constant 1 : index
    %c0_74 = arith.constant 0 : index
    %c0_75 = arith.constant 0 : index
    %82 = vector.load %arg6[%c1_73, %c0_74, %c0_75] : memref<4x320x256xbf16, #tpu.memory_space<vmem>>, vector<1x320x256xbf16>
    %83 = vector.shape_cast %82 : vector<1x320x256xbf16> to vector<320x256xbf16>
    %cst_76 = arith.constant dense<0.000000e+00> : vector<16x256xf32>
    %84 = tpu.matmul %81, %83, %cst_76 {dimension_numbers = #tpu.dot_dimension_numbers<[1], [0], [0], [1], [0, 0, 1, 1], [], []>} : vector<16x320xbf16>, vector<320x256xbf16>, vector<16x256xf32> -> vector<16x256xf32>
    %85 = arith.addf %77, %84 : vector<16x256xf32>
    %c2_77 = arith.constant 2 : index
    %c0_78 = arith.constant 0 : index
    %c0_79 = arith.constant 0 : index
    %86 = vector.load %arg5[%c2_77, %c0_78, %c0_79] : memref<4x16x40xbf16, #tpu.memory_space<vmem>>, vector<1x16x40xbf16>
    %87 = vector.shape_cast %86 : vector<1x16x40xbf16> to vector<16x40xbf16>
    %cst_80 = arith.constant dense<0.000000e+00> : vector<16x320xf32>
    %88 = tpu.matmul %87, %70, %cst_80 {dimension_numbers = #tpu.dot_dimension_numbers<[1], [0], [0], [1], [0, 0, 1, 1], [], []>} : vector<16x40xbf16>, vector<40x320xbf16>, vector<16x320xf32> -> vector<16x320xf32>
    %89 = arith.truncf %88 : vector<16x320xf32> to vector<16x320xbf16>
    %c2_81 = arith.constant 2 : index
    %c0_82 = arith.constant 0 : index
    %c0_83 = arith.constant 0 : index
    %90 = vector.load %arg6[%c2_81, %c0_82, %c0_83] : memref<4x320x256xbf16, #tpu.memory_space<vmem>>, vector<1x320x256xbf16>
    %91 = vector.shape_cast %90 : vector<1x320x256xbf16> to vector<320x256xbf16>
    %cst_84 = arith.constant dense<0.000000e+00> : vector<16x256xf32>
    %92 = tpu.matmul %89, %91, %cst_84 {dimension_numbers = #tpu.dot_dimension_numbers<[1], [0], [0], [1], [0, 0, 1, 1], [], []>} : vector<16x320xbf16>, vector<320x256xbf16>, vector<16x256xf32> -> vector<16x256xf32>
    %93 = arith.addf %85, %92 : vector<16x256xf32>
    %c3_85 = arith.constant 3 : index
    %c0_86 = arith.constant 0 : index
    %c0_87 = arith.constant 0 : index
    %94 = vector.load %arg5[%c3_85, %c0_86, %c0_87] : memref<4x16x40xbf16, #tpu.memory_space<vmem>>, vector<1x16x40xbf16>
    %95 = vector.shape_cast %94 : vector<1x16x40xbf16> to vector<16x40xbf16>
    %cst_88 = arith.constant dense<0.000000e+00> : vector<16x320xf32>
    %96 = tpu.matmul %95, %70, %cst_88 {dimension_numbers = #tpu.dot_dimension_numbers<[1], [0], [0], [1], [0, 0, 1, 1], [], []>} : vector<16x40xbf16>, vector<40x320xbf16>, vector<16x320xf32> -> vector<16x320xf32>
    %97 = arith.truncf %96 : vector<16x320xf32> to vector<16x320xbf16>
    %c3_89 = arith.constant 3 : index
    %c0_90 = arith.constant 0 : index
    %c0_91 = arith.constant 0 : index
    %98 = vector.load %arg6[%c3_89, %c0_90, %c0_91] : memref<4x320x256xbf16, #tpu.memory_space<vmem>>, vector<1x320x256xbf16>
    %99 = vector.shape_cast %98 : vector<1x320x256xbf16> to vector<320x256xbf16>
    %cst_92 = arith.constant dense<0.000000e+00> : vector<16x256xf32>
    %100 = tpu.matmul %97, %99, %cst_92 {dimension_numbers = #tpu.dot_dimension_numbers<[1], [0], [0], [1], [0, 0, 1, 1], [], []>} : vector<16x320xbf16>, vector<320x256xbf16>, vector<16x256xf32> -> vector<16x256xf32>
    %101 = arith.addf %93, %100 : vector<16x256xf32>
    %c0_93 = arith.constant 0 : index
    %c0_94 = arith.constant 0 : index
    %102 = vector.load %arg7[%c0_93, %c0_94] : memref<1x256xf32, #tpu.memory_space<vmem>>, vector<1x256xf32>
    %103 = vector.broadcast %102 : vector<1x256xf32> to vector<16x256xf32>
    %104 = arith.addf %101, %103 : vector<16x256xf32>
    %cst_95 = arith.constant 0.000000e+00 : f32
    %105 = vector.broadcast %cst_95 : f32 to vector<16x256xf32>
    %106 = arith.maximumf %104, %105 : vector<16x256xf32>
    %107 = arith.truncf %106 : vector<16x256xf32> to vector<16x256xbf16>
    %c0_96 = arith.constant 0 : index
    %c0_97 = arith.constant 0 : index
    %c0_98 = arith.constant 0 : index
    %108 = vector.load %arg8[%c0_96, %c0_97, %c0_98] : memref<3x8x16xbf16, #tpu.memory_space<vmem>>, vector<1x8x16xbf16>
    %109 = vector.shape_cast %108 : vector<1x8x16xbf16> to vector<8x16xbf16>
    %cst_99 = arith.constant dense<0.000000e+00> : vector<8x256xf32>
    %110 = tpu.matmul %109, %107, %cst_99 {dimension_numbers = #tpu.dot_dimension_numbers<[1], [0], [0], [1], [0, 0, 1, 1], [], []>} : vector<8x16xbf16>, vector<16x256xbf16>, vector<8x256xf32> -> vector<8x256xf32>
    %111 = arith.truncf %110 : vector<8x256xf32> to vector<8x256xbf16>
    %c0_100 = arith.constant 0 : index
    %c0_101 = arith.constant 0 : index
    %c0_102 = arith.constant 0 : index
    %112 = vector.load %arg9[%c0_100, %c0_101, %c0_102] : memref<3x256x64xbf16, #tpu.memory_space<vmem>>, vector<1x256x64xbf16>
    %113 = vector.shape_cast %112 : vector<1x256x64xbf16> to vector<256x64xbf16>
    %cst_103 = arith.constant dense<0.000000e+00> : vector<8x64xf32>
    %114 = tpu.matmul %111, %113, %cst_103 {dimension_numbers = #tpu.dot_dimension_numbers<[1], [0], [0], [1], [0, 0, 1, 1], [], []>} : vector<8x256xbf16>, vector<256x64xbf16>, vector<8x64xf32> -> vector<8x64xf32>
    %c1_104 = arith.constant 1 : index
    %c0_105 = arith.constant 0 : index
    %c0_106 = arith.constant 0 : index
    %115 = vector.load %arg8[%c1_104, %c0_105, %c0_106] : memref<3x8x16xbf16, #tpu.memory_space<vmem>>, vector<1x8x16xbf16>
    %116 = vector.shape_cast %115 : vector<1x8x16xbf16> to vector<8x16xbf16>
    %cst_107 = arith.constant dense<0.000000e+00> : vector<8x256xf32>
    %117 = tpu.matmul %116, %107, %cst_107 {dimension_numbers = #tpu.dot_dimension_numbers<[1], [0], [0], [1], [0, 0, 1, 1], [], []>} : vector<8x16xbf16>, vector<16x256xbf16>, vector<8x256xf32> -> vector<8x256xf32>
    %118 = arith.truncf %117 : vector<8x256xf32> to vector<8x256xbf16>
    %c1_108 = arith.constant 1 : index
    %c0_109 = arith.constant 0 : index
    %c0_110 = arith.constant 0 : index
    %119 = vector.load %arg9[%c1_108, %c0_109, %c0_110] : memref<3x256x64xbf16, #tpu.memory_space<vmem>>, vector<1x256x64xbf16>
    %120 = vector.shape_cast %119 : vector<1x256x64xbf16> to vector<256x64xbf16>
    %cst_111 = arith.constant dense<0.000000e+00> : vector<8x64xf32>
    %121 = tpu.matmul %118, %120, %cst_111 {dimension_numbers = #tpu.dot_dimension_numbers<[1], [0], [0], [1], [0, 0, 1, 1], [], []>} : vector<8x256xbf16>, vector<256x64xbf16>, vector<8x64xf32> -> vector<8x64xf32>
    %122 = arith.addf %114, %121 : vector<8x64xf32>
    %c2_112 = arith.constant 2 : index
    %c0_113 = arith.constant 0 : index
    %c0_114 = arith.constant 0 : index
    %123 = vector.load %arg8[%c2_112, %c0_113, %c0_114] : memref<3x8x16xbf16, #tpu.memory_space<vmem>>, vector<1x8x16xbf16>
    %124 = vector.shape_cast %123 : vector<1x8x16xbf16> to vector<8x16xbf16>
    %cst_115 = arith.constant dense<0.000000e+00> : vector<8x256xf32>
    %125 = tpu.matmul %124, %107, %cst_115 {dimension_numbers = #tpu.dot_dimension_numbers<[1], [0], [0], [1], [0, 0, 1, 1], [], []>} : vector<8x16xbf16>, vector<16x256xbf16>, vector<8x256xf32> -> vector<8x256xf32>
    %126 = arith.truncf %125 : vector<8x256xf32> to vector<8x256xbf16>
    %c2_116 = arith.constant 2 : index
    %c0_117 = arith.constant 0 : index
    %c0_118 = arith.constant 0 : index
    %127 = vector.load %arg9[%c2_116, %c0_117, %c0_118] : memref<3x256x64xbf16, #tpu.memory_space<vmem>>, vector<1x256x64xbf16>
    %128 = vector.shape_cast %127 : vector<1x256x64xbf16> to vector<256x64xbf16>
    %cst_119 = arith.constant dense<0.000000e+00> : vector<8x64xf32>
    %129 = tpu.matmul %126, %128, %cst_119 {dimension_numbers = #tpu.dot_dimension_numbers<[1], [0], [0], [1], [0, 0, 1, 1], [], []>} : vector<8x256xbf16>, vector<256x64xbf16>, vector<8x64xf32> -> vector<8x64xf32>
    %130 = arith.addf %122, %129 : vector<8x64xf32>
    %c0_120 = arith.constant 0 : index
    %c0_121 = arith.constant 0 : index
    %131 = vector.load %arg10[%c0_120, %c0_121] : memref<1x64xf32, #tpu.memory_space<vmem>>, vector<1x64xf32>
    %132 = vector.broadcast %131 : vector<1x64xf32> to vector<8x64xf32>
    %133 = arith.addf %130, %132 : vector<8x64xf32>
    %cst_122 = arith.constant 0.000000e+00 : f32
    %134 = vector.broadcast %cst_122 : f32 to vector<8x64xf32>
    %135 = arith.maximumf %133, %134 : vector<8x64xf32>
    %136 = arith.truncf %135 : vector<8x64xf32> to vector<8x64xbf16>
    %c0_123 = arith.constant 0 : index
    %c0_124 = arith.constant 0 : index
    %137 = vector.load %arg13[%c0_123, %c0_124] : memref<1x32xf32, #tpu.memory_space<vmem>>, vector<1x32xf32>
    %c0_125 = arith.constant 0 : index
    %c0_126 = arith.constant 0 : index
    %c0_127 = arith.constant 0 : index
    %138 = vector.load %arg11[%c0_125, %c0_126, %c0_127] : memref<2x4x8xbf16, #tpu.memory_space<vmem>>, vector<1x4x8xbf16>
    %139 = vector.shape_cast %138 : vector<1x4x8xbf16> to vector<4x8xbf16>
    %cst_128 = arith.constant dense<0.000000e+00> : vector<4x64xf32>
    %140 = tpu.matmul %139, %136, %cst_128 {dimension_numbers = #tpu.dot_dimension_numbers<[1], [0], [0], [1], [0, 0, 1, 1], [], []>} : vector<4x8xbf16>, vector<8x64xbf16>, vector<4x64xf32> -> vector<4x64xf32>
    %c0_129 = arith.constant 0 : index
    %c0_130 = arith.constant 0 : index
    %c0_131 = arith.constant 0 : index
    %141 = vector.load %arg12[%c0_129, %c0_130, %c0_131] : memref<2x64x32xf32, #tpu.memory_space<vmem>>, vector<1x64x32xf32>
    %142 = vector.shape_cast %141 : vector<1x64x32xf32> to vector<64x32xf32>
    %cst_132 = arith.constant dense<0.000000e+00> : vector<4x32xf32>
    %143 = tpu.matmul %140, %142, %cst_132 {dimension_numbers = #tpu.dot_dimension_numbers<[1], [0], [0], [1], [0, 0, 1, 1], [], []>} : vector<4x64xf32>, vector<64x32xf32>, vector<4x32xf32> -> vector<4x32xf32>
    %144 = vector.broadcast %137 : vector<1x32xf32> to vector<4x32xf32>
    %145 = arith.addf %144, %143 : vector<4x32xf32>
    %c1_133 = arith.constant 1 : index
    %c0_134 = arith.constant 0 : index
    %c0_135 = arith.constant 0 : index
    %146 = vector.load %arg11[%c1_133, %c0_134, %c0_135] : memref<2x4x8xbf16, #tpu.memory_space<vmem>>, vector<1x4x8xbf16>
    %147 = vector.shape_cast %146 : vector<1x4x8xbf16> to vector<4x8xbf16>
    %cst_136 = arith.constant dense<0.000000e+00> : vector<4x64xf32>
    %148 = tpu.matmul %147, %136, %cst_136 {dimension_numbers = #tpu.dot_dimension_numbers<[1], [0], [0], [1], [0, 0, 1, 1], [], []>} : vector<4x8xbf16>, vector<8x64xbf16>, vector<4x64xf32> -> vector<4x64xf32>
    %c1_137 = arith.constant 1 : index
    %c0_138 = arith.constant 0 : index
    %c0_139 = arith.constant 0 : index
    %149 = vector.load %arg12[%c1_137, %c0_138, %c0_139] : memref<2x64x32xf32, #tpu.memory_space<vmem>>, vector<1x64x32xf32>
    %150 = vector.shape_cast %149 : vector<1x64x32xf32> to vector<64x32xf32>
    %cst_140 = arith.constant dense<0.000000e+00> : vector<4x32xf32>
    %151 = tpu.matmul %148, %150, %cst_140 {dimension_numbers = #tpu.dot_dimension_numbers<[1], [0], [0], [1], [0, 0, 1, 1], [], []>} : vector<4x64xf32>, vector<64x32xf32>, vector<4x32xf32> -> vector<4x32xf32>
    %152 = arith.addf %145, %151 : vector<4x32xf32>
    %cst_141 = arith.constant dense<0.000000e+00> : vector<4xf32>
    %153 = vector.multi_reduction <add>, %152, %cst_141 [1] : vector<4x32xf32> to vector<4xf32>
    %154 = vector.shape_cast %153 : vector<4xf32> to vector<4x1xf32>
    %cst_142 = arith.constant 3.125000e-02 : f32
    %155 = vector.broadcast %cst_142 : f32 to vector<4x1xf32>
    %156 = arith.mulf %154, %155 : vector<4x1xf32>
    %157 = vector.broadcast %156 : vector<4x1xf32> to vector<4x32xf32>
    %158 = arith.subf %152, %157 : vector<4x32xf32>
    %159 = arith.mulf %158, %158 : vector<4x32xf32>
    %cst_143 = arith.constant dense<0.000000e+00> : vector<4xf32>
    %160 = vector.multi_reduction <add>, %159, %cst_143 [1] : vector<4x32xf32> to vector<4xf32>
    %161 = vector.shape_cast %160 : vector<4xf32> to vector<4x1xf32>
    %cst_144 = arith.constant 3.125000e-02 : f32
    %162 = vector.broadcast %cst_144 : f32 to vector<4x1xf32>
    %163 = arith.mulf %161, %162 : vector<4x1xf32>
    %cst_145 = arith.constant 9.99999974E-6 : f32
    %164 = vector.broadcast %cst_145 : f32 to vector<4x1xf32>
    %165 = arith.addf %163, %164 : vector<4x1xf32>
    %166 = math.rsqrt %165 : vector<4x1xf32>
    %167 = vector.broadcast %166 : vector<4x1xf32> to vector<4x32xf32>
    %168 = arith.mulf %158, %167 : vector<4x32xf32>
    %c0_146 = arith.constant 0 : index
    %c0_147 = arith.constant 0 : index
    %169 = vector.load %arg14[%c0_146, %c0_147] : memref<1x32xf32, #tpu.memory_space<vmem>>, vector<1x32xf32>
    %170 = vector.broadcast %169 : vector<1x32xf32> to vector<4x32xf32>
    %171 = arith.mulf %168, %170 : vector<4x32xf32>
    %c0_148 = arith.constant 0 : index
    %c0_149 = arith.constant 0 : index
    %172 = vector.load %arg15[%c0_148, %c0_149] : memref<1x32xf32, #tpu.memory_space<vmem>>, vector<1x32xf32>
    %173 = vector.broadcast %172 : vector<1x32xf32> to vector<4x32xf32>
    %174 = arith.addf %171, %173 : vector<4x32xf32>
    %c0_150 = arith.constant 0 : index
    %c0_151 = arith.constant 0 : index
    %c0_152 = arith.constant 0 : index
    %175 = vector.load %arg16[%c0_150, %c0_151, %c0_152] : memref<1x4x32xf32, #tpu.memory_space<vmem>>, vector<1x4x32xf32>
    %176 = vector.shape_cast %175 : vector<1x4x32xf32> to vector<4x32xf32>
    %177 = vector.shape_cast %174 : vector<4x32xf32> to vector<1x4x32xf32>
    tpu.vector_store %arg16[%c0_150, %c0_151, %c0_152], %177 {strides = array<i32>} : memref<1x4x32xf32, #tpu.memory_space<vmem>>, vector<1x4x32xf32>,
    return
  }
  func.func @transform_0(%arg0: i32) -> (i32, i32, i32) {
    %c0_i32 = arith.constant 0 : i32
    %c0_i32_0 = arith.constant 0 : i32
    %c0_i32_1 = arith.constant 0 : i32
    return %arg0, %c0_i32, %c0_i32_0 : i32, i32, i32
  }
  func.func @transform_1(%arg0: i32) -> (i32, i32, i32) {
    %c0_i32 = arith.constant 0 : i32
    %c0_i32_0 = arith.constant 0 : i32
    %c0_i32_1 = arith.constant 0 : i32
    %c0_i32_2 = arith.constant 0 : i32
    return %c0_i32, %c0_i32_0, %c0_i32_1 : i32, i32, i32
  }
  func.func @transform_2(%arg0: i32) -> (i32, i32, i32) {
    %c0_i32 = arith.constant 0 : i32
    %c0_i32_0 = arith.constant 0 : i32
    %c0_i32_1 = arith.constant 0 : i32
    %c0_i32_2 = arith.constant 0 : i32
    return %c0_i32, %c0_i32_0, %c0_i32_1 : i32, i32, i32
  }
  func.func @transform_3(%arg0: i32) -> (i32, i32) {
    %c0_i32 = arith.constant 0 : i32
    %c0_i32_0 = arith.constant 0 : i32
    %c0_i32_1 = arith.constant 0 : i32
    return %c0_i32, %c0_i32_0 : i32, i32
  }
  func.func @transform_4(%arg0: i32) -> (i32, i32, i32) {
    %c0_i32 = arith.constant 0 : i32
    %c0_i32_0 = arith.constant 0 : i32
    %c0_i32_1 = arith.constant 0 : i32
    %c0_i32_2 = arith.constant 0 : i32
    return %c0_i32, %c0_i32_0, %c0_i32_1 : i32, i32, i32
  }
  func.func @transform_5(%arg0: i32) -> (i32, i32, i32) {
    %c0_i32 = arith.constant 0 : i32
    %c0_i32_0 = arith.constant 0 : i32
    %c0_i32_1 = arith.constant 0 : i32
    %c0_i32_2 = arith.constant 0 : i32
    return %c0_i32, %c0_i32_0, %c0_i32_1 : i32, i32, i32
  }
  func.func @transform_6(%arg0: i32) -> (i32, i32) {
    %c0_i32 = arith.constant 0 : i32
    %c0_i32_0 = arith.constant 0 : i32
    %c0_i32_1 = arith.constant 0 : i32
    return %c0_i32, %c0_i32_0 : i32, i32
  }
  func.func @transform_7(%arg0: i32) -> (i32, i32, i32) {
    %c0_i32 = arith.constant 0 : i32
    %c0_i32_0 = arith.constant 0 : i32
    %c0_i32_1 = arith.constant 0 : i32
    %c0_i32_2 = arith.constant 0 : i32
    return %c0_i32, %c0_i32_0, %c0_i32_1 : i32, i32, i32
  }
  func.func @transform_8(%arg0: i32) -> (i32, i32, i32) {
    %c0_i32 = arith.constant 0 : i32
    %c0_i32_0 = arith.constant 0 : i32
    %c0_i32_1 = arith.constant 0 : i32
    %c0_i32_2 = arith.constant 0 : i32
    return %c0_i32, %c0_i32_0, %c0_i32_1 : i32, i32, i32
  }
  func.func @transform_9(%arg0: i32) -> (i32, i32) {
    %c0_i32 = arith.constant 0 : i32
    %c0_i32_0 = arith.constant 0 : i32
    %c0_i32_1 = arith.constant 0 : i32
    return %c0_i32, %c0_i32_0 : i32, i32
  }
  func.func @transform_10(%arg0: i32) -> (i32, i32, i32) {
    %c0_i32 = arith.constant 0 : i32
    %c0_i32_0 = arith.constant 0 : i32
    %c0_i32_1 = arith.constant 0 : i32
    %c0_i32_2 = arith.constant 0 : i32
    return %c0_i32, %c0_i32_0, %c0_i32_1 : i32, i32, i32
  }
  func.func @transform_11(%arg0: i32) -> (i32, i32, i32) {
    %c0_i32 = arith.constant 0 : i32
    %c0_i32_0 = arith.constant 0 : i32
    %c0_i32_1 = arith.constant 0 : i32
    %c0_i32_2 = arith.constant 0 : i32
    return %c0_i32, %c0_i32_0, %c0_i32_1 : i32, i32, i32
  }
  func.func @transform_12(%arg0: i32) -> (i32, i32) {
    %c0_i32 = arith.constant 0 : i32
    %c0_i32_0 = arith.constant 0 : i32
    %c0_i32_1 = arith.constant 0 : i32
    return %c0_i32, %c0_i32_0 : i32, i32
  }
  func.func @transform_13(%arg0: i32) -> (i32, i32) {
    %c0_i32 = arith.constant 0 : i32
    %c0_i32_0 = arith.constant 0 : i32
    %c0_i32_1 = arith.constant 0 : i32
    return %c0_i32, %c0_i32_0 : i32, i32
  }
  func.func @transform_14(%arg0: i32) -> (i32, i32) {
    %c0_i32 = arith.constant 0 : i32
    %c0_i32_0 = arith.constant 0 : i32
    %c0_i32_1 = arith.constant 0 : i32
    return %c0_i32, %c0_i32_0 : i32, i32
  }
  func.func @transform_15(%arg0: i32) -> (i32, i32, i32) {
    %c0_i32 = arith.constant 0 : i32
    %c0_i32_0 = arith.constant 0 : i32
    %c0_i32_1 = arith.constant 0 : i32
    return %arg0, %c0_i32, %c0_i32_0 : i32, i32, i32
  }
}

</mosaic_0001>

<llo_original>
// kernel: random_cnn_encoder_forward.1
$region0: #{random_cnn_encoder_forward.1}
  #allocation0 [shape = 'u32[]', space=smem, size = 0x4, offset = 0x4, fixed_abs, tag = 'smem constant byte address 0x4 - core index']
  #allocation1 [shape = 'u32[144,128]{1,0:T(1,128)}', space=vmem, size = 0x12000, scoped, tag = 'internal scratch']
  %s0 = inlined_call_operand.vmem [shape: bf16[2,176,176], index: 0, kind: input, shape index: {}]
  %s1 = inlined_call_operand.vmem [shape: bf16[8,40,176], index: 1, kind: input, shape index: {}]
  %s2 = inlined_call_operand.vmem [shape: bf16[8,176,320], index: 2, kind: input, shape index: {}]
  %s3 = inlined_call_operand.vmem [shape: f32[1,320], index: 3, kind: input, shape index: {}]
  %s4 = inlined_call_operand.vmem [shape: bf16[4,16,40], index: 4, kind: input, shape index: {}]
  %s5 = inlined_call_operand.vmem [shape: bf16[4,320,256], index: 5, kind: input, shape index: {}]
  %s6 = inlined_call_operand.vmem [shape: f32[1,256], index: 6, kind: input, shape index: {}]
  %s7 = inlined_call_operand.vmem [shape: bf16[3,8,16], index: 7, kind: input, shape index: {}]
  %s8 = inlined_call_operand.vmem [shape: bf16[3,256,64], index: 8, kind: input, shape index: {}]
  %s9 = inlined_call_operand.vmem [shape: f32[1,64], index: 9, kind: input, shape index: {}]
  %s10 = inlined_call_operand.vmem [shape: bf16[2,4,8], index: 10, kind: input, shape index: {}]
  %s11 = inlined_call_operand.vmem [shape: f32[2,64,32], index: 11, kind: input, shape index: {}]
  %s12 = inlined_call_operand.vmem [shape: f32[1,32], index: 12, kind: input, shape index: {}]
  %s13 = inlined_call_operand.vmem [shape: f32[1,32], index: 13, kind: input, shape index: {}]
  %s14 = inlined_call_operand.vmem [shape: f32[1,32], index: 14, kind: input, shape index: {}]
  %s15 = inlined_call_operand.hbm [shape: f32[2,4,32], index: 15, kind: output, shape index: {}]
  %s16 = sld [smem:[#allocation0]]
  $region93: #{random_cnn_encoder_forward.1} parent=0
    _
  %s18 = ssub.s32 1, %s16
  %s19 = scalar_select 0, %s18, %s16
  $region1: #{random_cnn_encoder_forward.1} parent=0
    #allocation2 [shape = 'u8[4096]{0}', space=vmem, size = 0x1000, scoped, tag = 'output window, operand 0']
    #allocation3 [shape = 's32[2]{0}', space=sflag, size = 0x8, scoped, tag = 'scoped memory for random_cnn_encoder_forward.1']
    %20 = vsyncpa [#allocation3], 0
    %s21 = scalar_lea.sflag [#allocation3], 1
    %22 = vsyncpa %s21, 0
    loop: start=0, step=1, limit=4
    $region2: #{random_cnn_encoder_forward.1} parent=1 // loop_pre_header
      _
    $region3: #{random_cnn_encoder_forward.1} parent=1 // loop_header
      %s24 = sphi 0, %s28
      %p25 = scmp.ge.s32.totalorder %s24, 4
      %s34 = sphi 0, %s36
      %s37 = sphi 0, %s34
      %s38 = sphi 0, %s37
      %s54 = sphi 0, %s38
      %s58 = sphi 0, %s58
      %s60 = sphi 0, %s58
      %s61 = sphi 0, %s60
      %s75 = sphi 0, %s61
      %s79 = sphi 0, %s79
      %s81 = sphi 0, %s79
      %s82 = sphi 0, %s81
      %s96 = sphi 0, %s82
      %s100 = sphi 0, %s100
      %s102 = sphi 0, %s100
      %s103 = sphi 0, %s102
      %s117 = sphi 0, %s103
      %s121 = sphi 0, %s121
      %s123 = sphi 0, %s121
      %s124 = sphi 0, %s123
      %s138 = sphi 0, %s124
      %s142 = sphi 0, %s142
      %s144 = sphi 0, %s142
      %s145 = sphi 0, %s144
      %s159 = sphi 0, %s145
      %s163 = sphi 0, %s163
      %s165 = sphi 0, %s163
      %s166 = sphi 0, %s165
      %s180 = sphi 0, %s166
      %s184 = sphi 0, %s184
      %s186 = sphi 0, %s184
      %s187 = sphi 0, %s186
      %s201 = sphi 0, %s187
      %s205 = sphi 0, %s205
      %s207 = sphi 0, %s205
      %s208 = sphi 0, %s207
      %s222 = sphi 0, %s208
      %s226 = sphi 0, %s226
      %s228 = sphi 0, %s226
      %s229 = sphi 0, %s228
      %s243 = sphi 0, %s229
      %s247 = sphi 0, %s247
      %s249 = sphi 0, %s247
      %s250 = sphi 0, %s249
      %s264 = sphi 0, %s250
      %s268 = sphi 0, %s268
      %s270 = sphi 0, %s268
      %s271 = sphi 0, %s270
      %s285 = sphi 0, %s271
      %s289 = sphi 0, %s289
      %s291 = sphi 0, %s289
      %s292 = sphi 0, %s291
      %s306 = sphi 0, %s292
      %s310 = sphi 0, %s310
      %s312 = sphi 0, %s310
      %s313 = sphi 0, %s312
      %s327 = sphi 0, %s313
      %s331 = sphi 0, %s331
      %s333 = sphi 0, %s331
      %s334 = sphi 0, %s333
      %s348 = sphi 0, %s334
      %s354 = sphi 0, %s356
      %s357 = sphi 0, %s354
      %s358 = sphi 0, %s357
      %s374 = sphi 0, %s358
    $region4: #{random_cnn_encoder_forward.1} parent=1 // loop_header_branch
      %27 = sbr.rel (%p25) target = $region8
    $region5: #{random_cnn_encoder_forward.1} parent=1 // loop_body
      %s29 = ssub.s32 %s24, 1
      %s30 = ssub.s32 %s24, 2
      %s31 = sadd.s32 %s24, 1
      %s32 = ssub.s32 %s24, %s31
      %p33 = scmp.eq.s32.totalorder %s32, 0
      %s35 = sadd.s32 %s34, 1
      %s36 = scalar_select %p33, %s34, %s35
      %p39 = pneg %p33
      %p40 = scmp.eq.s32.totalorder %s24, 1
      %p41 = por %p39, %p40
      %p42 = scmp.ne.s32.totalorder %s34, %s37
      %p43 = scmp.eq.s32.totalorder %s24, 0
      %p44 = por %p42, %p43
      %p45 = scmp.ne.s32.totalorder %s34, %s37
      %p46 = scmp.eq.s32.totalorder %s29, 1
      %p47 = por %p45, %p46
      %p48 = scmp.ne.s32.totalorder %s37, %s38
      %p49 = scmp.eq.s32.totalorder %s29, 0
      %p50 = por %p48, %p49
      %p51 = scmp.ne.s32.totalorder %s37, %s38
      %p52 = scmp.eq.s32.totalorder %s30, 1
      %p53 = por %p51, %p52
      %p55 = scmp.ne.s32.totalorder %s38, %s54
      %p56 = scmp.eq.s32.totalorder %s30, 0
      %p57 = por %p55, %p56
      %s59 = sadd.s32 %s58, 1
      %p62 = scmp.eq.s32.totalorder %s24, 1
      %p63 = scmp.ne.s32.totalorder %s58, %s60
      %p64 = scmp.eq.s32.totalorder %s24, 0
      %p65 = por %p63, %p64
      %p66 = scmp.ne.s32.totalorder %s58, %s60
      %p67 = scmp.eq.s32.totalorder %s29, 1
      %p68 = por %p66, %p67
      %p69 = scmp.ne.s32.totalorder %s60, %s61
      %p70 = scmp.eq.s32.totalorder %s29, 0
      %p71 = por %p69, %p70
      %p72 = scmp.ne.s32.totalorder %s60, %s61
      %p73 = scmp.eq.s32.totalorder %s30, 1
      %p74 = por %p72, %p73
      %p76 = scmp.ne.s32.totalorder %s61, %s75
      %p77 = scmp.eq.s32.totalorder %s30, 0
      %p78 = por %p76, %p77
      %s80 = sadd.s32 %s79, 1
      %p83 = scmp.eq.s32.totalorder %s24, 1
      %p84 = scmp.ne.s32.totalorder %s79, %s81
      %p85 = scmp.eq.s32.totalorder %s24, 0
      %p86 = por %p84, %p85
      %p87 = scmp.ne.s32.totalorder %s79, %s81
      %p88 = scmp.eq.s32.totalorder %s29, 1
      %p89 = por %p87, %p88
      %p90 = scmp.ne.s32.totalorder %s81, %s82
      %p91 = scmp.eq.s32.totalorder %s29, 0
      %p92 = por %p90, %p91
      %p93 = scmp.ne.s32.totalorder %s81, %s82
      %p94 = scmp.eq.s32.totalorder %s30, 1
      %p95 = por %p93, %p94
      %p97 = scmp.ne.s32.totalorder %s82, %s96
      %p98 = scmp.eq.s32.totalorder %s30, 0
      %p99 = por %p97, %p98
      %s101 = sadd.s32 %s100, 1
      %p104 = scmp.eq.s32.totalorder %s24, 1
      %p105 = scmp.ne.s32.totalorder %s100, %s102
      %p106 = scmp.eq.s32.totalorder %s24, 0
      %p107 = por %p105, %p106
      %p108 = scmp.ne.s32.totalorder %s100, %s102
      %p109 = scmp.eq.s32.totalorder %s29, 1
      %p110 = por %p108, %p109
      %p111 = scmp.ne.s32.totalorder %s102, %s103
      %p112 = scmp.eq.s32.totalorder %s29, 0
      %p113 = por %p111, %p112
      %p114 = scmp.ne.s32.totalorder %s102, %s103
      %p115 = scmp.eq.s32.totalorder %s30, 1
      %p116 = por %p114, %p115
      %p118 = scmp.ne.s32.totalorder %s103, %s117
      %p119 = scmp.eq.s32.totalorder %s30, 0
      %p120 = por %p118, %p119
      %s122 = sadd.s32 %s121, 1
      %p125 = scmp.eq.s32.totalorder %s24, 1
      %p126 = scmp.ne.s32.totalorder %s121, %s123
      %p127 = scmp.eq.s32.totalorder %s24, 0
      %p128 = por %p126, %p127
      %p129 = scmp.ne.s32.totalorder %s121, %s123
      %p130 = scmp.eq.s32.totalorder %s29, 1
      %p131 = por %p129, %p130
      %p132 = scmp.ne.s32.totalorder %s123, %s124
      %p133 = scmp.eq.s32.totalorder %s29, 0
      %p134 = por %p132, %p133
      %p135 = scmp.ne.s32.totalorder %s123, %s124
      %p136 = scmp.eq.s32.totalorder %s30, 1
      %p137 = por %p135, %p136
      %p139 = scmp.ne.s32.totalorder %s124, %s138
      %p140 = scmp.eq.s32.totalorder %s30, 0
      %p141 = por %p139, %p140
      %s143 = sadd.s32 %s142, 1
      %p146 = scmp.eq.s32.totalorder %s24, 1
      %p147 = scmp.ne.s32.totalorder %s142, %s144
      %p148 = scmp.eq.s32.totalorder %s24, 0
      %p149 = por %p147, %p148
      %p150 = scmp.ne.s32.totalorder %s142, %s144
      %p151 = scmp.eq.s32.totalorder %s29, 1
      %p152 = por %p150, %p151
      %p153 = scmp.ne.s32.totalorder %s144, %s145
      %p154 = scmp.eq.s32.totalorder %s29, 0
      %p155 = por %p153, %p154
      %p156 = scmp.ne.s32.totalorder %s144, %s145
      %p157 = scmp.eq.s32.totalorder %s30, 1
      %p158 = por %p156, %p157
      %p160 = scmp.ne.s32.totalorder %s145, %s159
      %p161 = scmp.eq.s32.totalorder %s30, 0
      %p162 = por %p160, %p161
      %s164 = sadd.s32 %s163, 1
      %p167 = scmp.eq.s32.totalorder %s24, 1
      %p168 = scmp.ne.s32.totalorder %s163, %s165
      %p169 = scmp.eq.s32.totalorder %s24, 0
      %p170 = por %p168, %p169
      %p171 = scmp.ne.s32.totalorder %s163, %s165
      %p172 = scmp.eq.s32.totalorder %s29, 1
      %p173 = por %p171, %p172
      %p174 = scmp.ne.s32.totalorder %s165, %s166
      %p175 = scmp.eq.s32.totalorder %s29, 0
      %p176 = por %p174, %p175
      %p177 = scmp.ne.s32.totalorder %s165, %s166
      %p178 = scmp.eq.s32.totalorder %s30, 1
      %p179 = por %p177, %p178
      %p181 = scmp.ne.s32.totalorder %s166, %s180
      %p182 = scmp.eq.s32.totalorder %s30, 0
      %p183 = por %p181, %p182
      %s185 = sadd.s32 %s184, 1
      %p188 = scmp.eq.s32.totalorder %s24, 1
      %p189 = scmp.ne.s32.totalorder %s184, %s186
      %p190 = scmp.eq.s32.totalorder %s24, 0
      %p191 = por %p189, %p190
      %p192 = scmp.ne.s32.totalorder %s184, %s186
      %p193 = scmp.eq.s32.totalorder %s29, 1
      %p194 = por %p192, %p193
      %p195 = scmp.ne.s32.totalorder %s186, %s187
      %p196 = scmp.eq.s32.totalorder %s29, 0
      %p197 = por %p195, %p196
      %p198 = scmp.ne.s32.totalorder %s186, %s187
      %p199 = scmp.eq.s32.totalorder %s30, 1
      %p200 = por %p198, %p199
      %p202 = scmp.ne.s32.totalorder %s187, %s201
      %p203 = scmp.eq.s32.totalorder %s30, 0
      %p204 = por %p202, %p203
      %s206 = sadd.s32 %s205, 1
      %p209 = scmp.eq.s32.totalorder %s24, 1
      %p210 = scmp.ne.s32.totalorder %s205, %s207
      %p211 = scmp.eq.s32.totalorder %s24, 0
      %p212 = por %p210, %p211
      %p213 = scmp.ne.s32.totalorder %s205, %s207
      %p214 = scmp.eq.s32.totalorder %s29, 1
      %p215 = por %p213, %p214
      %p216 = scmp.ne.s32.totalorder %s207, %s208
      %p217 = scmp.eq.s32.totalorder %s29, 0
      %p218 = por %p216, %p217
      %p219 = scmp.ne.s32.totalorder %s207, %s208
      %p220 = scmp.eq.s32.totalorder %s30, 1
      %p221 = por %p219, %p220
      %p223 = scmp.ne.s32.totalorder %s208, %s222
      %p224 = scmp.eq.s32.totalorder %s30, 0
      %p225 = por %p223, %p224
      %s227 = sadd.s32 %s226, 1
      %p230 = scmp.eq.s32.totalorder %s24, 1
      %p231 = scmp.ne.s32.totalorder %s226, %s228
      %p232 = scmp.eq.s32.totalorder %s24, 0
      %p233 = por %p231, %p232
      %p234 = scmp.ne.s32.totalorder %s226, %s228
      %p235 = scmp.eq.s32.totalorder %s29, 1
      %p236 = por %p234, %p235
      %p237 = scmp.ne.s32.totalorder %s228, %s229
      %p238 = scmp.eq.s32.totalorder %s29, 0
      %p239 = por %p237, %p238
      %p240 = scmp.ne.s32.totalorder %s228, %s229
      %p241 = scmp.eq.s32.totalorder %s30, 1
      %p242 = por %p240, %p241
      %p244 = scmp.ne.s32.totalorder %s229, %s243
      %p245 = scmp.eq.s32.totalorder %s30, 0
      %p246 = por %p244, %p245
      %s248 = sadd.s32 %s247, 1
      %p251 = scmp.eq.s32.totalorder %s24, 1
      %p252 = scmp.ne.s32.totalorder %s247, %s249
      %p253 = scmp.eq.s32.totalorder %s24, 0
      %p254 = por %p252, %p253
      %p255 = scmp.ne.s32.totalorder %s247, %s249
      %p256 = scmp.eq.s32.totalorder %s29, 1
      %p257 = por %p255, %p256
      %p258 = scmp.ne.s32.totalorder %s249, %s250
      %p259 = scmp.eq.s32.totalorder %s29, 0
      %p260 = por %p258, %p259
      %p261 = scmp.ne.s32.totalorder %s249, %s250
      %p262 = scmp.eq.s32.totalorder %s30, 1
      %p263 = por %p261, %p262
      %p265 = scmp.ne.s32.totalorder %s250, %s264
      %p266 = scmp.eq.s32.totalorder %s30, 0
      %p267 = por %p265, %p266
      %s269 = sadd.s32 %s268, 1
      %p272 = scmp.eq.s32.totalorder %s24, 1
      %p273 = scmp.ne.s32.totalorder %s268, %s270
      %p274 = scmp.eq.s32.totalorder %s24, 0
      %p275 = por %p273, %p274
      %p276 = scmp.ne.s32.totalorder %s268, %s270
      %p277 = scmp.eq.s32.totalorder %s29, 1
      %p278 = por %p276, %p277
      %p279 = scmp.ne.s32.totalorder %s270, %s271
      %p280 = scmp.eq.s32.totalorder %s29, 0
      %p281 = por %p279, %p280
      %p282 = scmp.ne.s32.totalorder %s270, %s271
      %p283 = scmp.eq.s32.totalorder %s30, 1
      %p284 = por %p282, %p283
      %p286 = scmp.ne.s32.totalorder %s271, %s285
      %p287 = scmp.eq.s32.totalorder %s30, 0
      %p288 = por %p286, %p287
      %s290 = sadd.s32 %s289, 1
      %p293 = scmp.eq.s32.totalorder %s24, 1
      %p294 = scmp.ne.s32.totalorder %s289, %s291
      %p295 = scmp.eq.s32.totalorder %s24, 0
      %p296 = por %p294, %p295
      %p297 = scmp.ne.s32.totalorder %s289, %s291
      %p298 = scmp.eq.s32.totalorder %s29, 1
      %p299 = por %p297, %p298
      %p300 = scmp.ne.s32.totalorder %s291, %s292
      %p301 = scmp.eq.s32.totalorder %s29, 0
      %p302 = por %p300, %p301
      %p303 = scmp.ne.s32.totalorder %s291, %s292
      %p304 = scmp.eq.s32.totalorder %s30, 1
      %p305 = por %p303, %p304
      %p307 = scmp.ne.s32.totalorder %s292, %s306
      %p308 = scmp.eq.s32.totalorder %s30, 0
      %p309 = por %p307, %p308
      %s311 = sadd.s32 %s310, 1
      %p314 = scmp.eq.s32.totalorder %s24, 1
      %p315 = scmp.ne.s32.totalorder %s310, %s312
      %p316 = scmp.eq.s32.totalorder %s24, 0
      %p317 = por %p315, %p316
      %p318 = scmp.ne.s32.totalorder %s310, %s312
      %p319 = scmp.eq.s32.totalorder %s29, 1
      %p320 = por %p318, %p319
      %p321 = scmp.ne.s32.totalorder %s312, %s313
      %p322 = scmp.eq.s32.totalorder %s29, 0
      %p323 = por %p321, %p322
      %p324 = scmp.ne.s32.totalorder %s312, %s313
      %p325 = scmp.eq.s32.totalorder %s30, 1
      %p326 = por %p324, %p325
      %p328 = scmp.ne.s32.totalorder %s313, %s327
      %p329 = scmp.eq.s32.totalorder %s30, 0
      %p330 = por %p328, %p329
      %s332 = sadd.s32 %s331, 1
      %p335 = scmp.eq.s32.totalorder %s24, 1
      %p336 = scmp.ne.s32.totalorder %s331, %s333
      %p337 = scmp.eq.s32.totalorder %s24, 0
      %p338 = por %p336, %p337
      %p339 = scmp.ne.s32.totalorder %s331, %s333
      %p340 = scmp.eq.s32.totalorder %s29, 1
      %p341 = por %p339, %p340
      %p342 = scmp.ne.s32.totalorder %s333, %s334
      %p343 = scmp.eq.s32.totalorder %s29, 0
      %p344 = por %p342, %p343
      %p345 = scmp.ne.s32.totalorder %s333, %s334
      %p346 = scmp.eq.s32.totalorder %s30, 1
      %p347 = por %p345, %p346
      %p349 = scmp.ne.s32.totalorder %s334, %s348
      %p350 = scmp.eq.s32.totalorder %s30, 0
      %p351 = por %p349, %p350
      %s352 = ssub.s32 %s24, %s31
      %p353 = scmp.eq.s32.totalorder %s352, 0
      %s355 = sadd.s32 %s354, 1
      %s356 = scalar_select %p353, %s354, %s355
      %p359 = pneg %p353
      %p360 = scmp.eq.s32.totalorder %s24, 1
      %p361 = por %p359, %p360
      %p362 = scmp.ne.s32.totalorder %s354, %s357
      %p363 = scmp.eq.s32.totalorder %s24, 0
      %p364 = por %p362, %p363
      %p365 = scmp.ne.s32.totalorder %s354, %s357
      %p366 = scmp.eq.s32.totalorder %s29, 1
      %p367 = por %p365, %p366
      %p368 = scmp.ne.s32.totalorder %s357, %s358
      %p369 = scmp.eq.s32.totalorder %s29, 0
      %p370 = por %p368, %p369
      %p371 = scmp.ne.s32.totalorder %s357, %s358
      %p372 = scmp.eq.s32.totalorder %s30, 1
      %p373 = por %p371, %p372
      %p375 = scmp.ne.s32.totalorder %s358, %s374
      %p376 = scmp.eq.s32.totalorder %s30, 0
      %p377 = por %p375, %p376
      %p378 = scmp.le.s32.totalorder 1, %s24
      %p379 = scmp.lt.s32.totalorder %s24, 3
      %p380 = pnand %p378, %p379
      %p381 = pneg %p380
      // Predicated region
      $region9: #{random_cnn_encoder_forward.1} parent=5 // pred_check
        _
      $region10: #{random_cnn_encoder_forward.1} parent=5 // pred_check_branch
        %383 = sbr.rel (%p380) target = $region12
      $region11: #{random_cnn_encoder_forward.1} parent=5 // pred_region
        %s384 = ssub.s32 %s24, 1
        // Predicated region
        $region13: #{random_cnn_encoder_forward.1} parent=11 // pred_check
          %p385 = pneg %p71
        $region14: #{random_cnn_encoder_forward.1} parent=11 // pred_check_branch
          %387 = sbr.rel (%p385) target = $region16
        $region15: #{random_cnn_encoder_forward.1} parent=11 // pred_region
          _
        $region16: #{random_cnn_encoder_forward.1} parent=11 // pred_fallthru
          _
        // Predicated region
        $region17: #{random_cnn_encoder_forward.1} parent=11 // pred_check
          %p388 = pneg %p92
        $region18: #{random_cnn_encoder_forward.1} parent=11 // pred_check_branch
          %390 = sbr.rel (%p388) target = $region20
        $region19: #{random_cnn_encoder_forward.1} parent=11 // pred_region
          _
        $region20: #{random_cnn_encoder_forward.1} parent=11 // pred_fallthru
          _
        // Predicated region
        $region21: #{random_cnn_encoder_forward.1} parent=11 // pred_check
          %p391 = pneg %p113
        $region22: #{random_cnn_encoder_forward.1} parent=11 // pred_check_branch
          %393 = sbr.rel (%p391) target = $region24
        $region23: #{random_cnn_encoder_forward.1} parent=11 // pred_region
          _
        $region24: #{random_cnn_encoder_forward.1} parent=11 // pred_fallthru
          _
        // Predicated region
        $region25: #{random_cnn_encoder_forward.1} parent=11 // pred_check
          %p394 = pneg %p134
        $region26: #{random_cnn_encoder_forward.1} parent=11 // pred_check_branch
          %396 = sbr.rel (%p394) target = $region28
        $region27: #{random_cnn_encoder_forward.1} parent=11 // pred_region
          _
        $region28: #{random_cnn_encoder_forward.1} parent=11 // pred_fallthru
          _
        // Predicated region
        $region29: #{random_cnn_encoder_forward.1} parent=11 // pred_check
          %p397 = pneg %p155
        $region30: #{random_cnn_encoder_forward.1} parent=11 // pred_check_branch
          %399 = sbr.rel (%p397) target = $region32
        $region31: #{random_cnn_encoder_forward.1} parent=11 // pred_region
          _
        $region32: #{random_cnn_encoder_forward.1} parent=11 // pred_fallthru
          _
        // Predicated region
        $region33: #{random_cnn_encoder_forward.1} parent=11 // pred_check
          %p400 = pneg %p176
        $region34: #{random_cnn_encoder_forward.1} parent=11 // pred_check_branch
          %402 = sbr.rel (%p400) target = $region36
        $region35: #{random_cnn_encoder_forward.1} parent=11 // pred_region
          _
        $region36: #{random_cnn_encoder_forward.1} parent=11 // pred_fallthru
          _
        // Predicated region
        $region37: #{random_cnn_encoder_forward.1} parent=11 // pred_check
          %p403 = pneg %p197
        $region38: #{random_cnn_encoder_forward.1} parent=11 // pred_check_branch
          %405 = sbr.rel (%p403) target = $region40
        $region39: #{random_cnn_encoder_forward.1} parent=11 // pred_region
          _
        $region40: #{random_cnn_encoder_forward.1} parent=11 // pred_fallthru
          _
        // Predicated region
        $region41: #{random_cnn_encoder_forward.1} parent=11 // pred_check
          %p406 = pneg %p218
        $region42: #{random_cnn_encoder_forward.1} parent=11 // pred_check_branch
          %408 = sbr.rel (%p406) target = $region44
        $region43: #{random_cnn_encoder_forward.1} parent=11 // pred_region
          _
        $region44: #{random_cnn_encoder_forward.1} parent=11 // pred_fallthru
          _
        // Predicated region
        $region45: #{random_cnn_encoder_forward.1} parent=11 // pred_check
          %p409 = pneg %p239
        $region46: #{random_cnn_encoder_forward.1} parent=11 // pred_check_branch
          %411 = sbr.rel (%p409) target = $region48
        $region47: #{random_cnn_encoder_forward.1} parent=11 // pred_region
          _
        $region48: #{random_cnn_encoder_forward.1} parent=11 // pred_fallthru
          _
        // Predicated region
        $region49: #{random_cnn_encoder_forward.1} parent=11 // pred_check
          %p412 = pneg %p260
        $region50: #{random_cnn_encoder_forward.1} parent=11 // pred_check_branch
          %414 = sbr.rel (%p412) target = $region52
        $region51: #{random_cnn_encoder_forward.1} parent=11 // pred_region
          _
        $region52: #{random_cnn_encoder_forward.1} parent=11 // pred_fallthru
          _
        // Predicated region
        $region53: #{random_cnn_encoder_forward.1} parent=11 // pred_check
          %p415 = pneg %p281
        $region54: #{random_cnn_encoder_forward.1} parent=11 // pred_check_branch
          %417 = sbr.rel (%p415) target = $region56
        $region55: #{random_cnn_encoder_forward.1} parent=11 // pred_region
          _
        $region56: #{random_cnn_encoder_forward.1} parent=11 // pred_fallthru
          _
        // Predicated region
        $region57: #{random_cnn_encoder_forward.1} parent=11 // pred_check
          %p418 = pneg %p302
        $region58: #{random_cnn_encoder_forward.1} parent=11 // pred_check_branch
          %420 = sbr.rel (%p418) target = $region60
        $region59: #{random_cnn_encoder_forward.1} parent=11 // pred_region
          _
        $region60: #{random_cnn_encoder_forward.1} parent=11 // pred_fallthru
          _
        // Predicated region
        $region61: #{random_cnn_encoder_forward.1} parent=11 // pred_check
          %p421 = pneg %p323
        $region62: #{random_cnn_encoder_forward.1} parent=11 // pred_check_branch
          %423 = sbr.rel (%p421) target = $region64
        $region63: #{random_cnn_encoder_forward.1} parent=11 // pred_region
          _
        $region64: #{random_cnn_encoder_forward.1} parent=11 // pred_fallthru
          _
        // Predicated region
        $region65: #{random_cnn_encoder_forward.1} parent=11 // pred_check
          %p424 = pneg %p344
        $region66: #{random_cnn_encoder_forward.1} parent=11 // pred_check_branch
          %426 = sbr.rel (%p424) target = $region68
        $region67: #{random_cnn_encoder_forward.1} parent=11 // pred_region
          _
        $region68: #{random_cnn_encoder_forward.1} parent=11 // pred_fallthru
          _
      $region12: #{random_cnn_encoder_forward.1} parent=5 // pred_fallthru
        _
      %p427 = scmp.lt.s32.totalorder %s24, 2
      // Predicated region
      $region69: #{random_cnn_encoder_forward.1} parent=5 // pred_check
        %p428 = pneg %p427
      $region70: #{random_cnn_encoder_forward.1} parent=5 // pred_check_branch
        %430 = sbr.rel (%p428) target = $region72
      $region71: #{random_cnn_encoder_forward.1} parent=5 // pred_region
        // Predicated region
        $region73: #{random_cnn_encoder_forward.1} parent=71 // pred_check
          %p431 = pneg %p44
        $region74: #{random_cnn_encoder_forward.1} parent=71 // pred_check_branch
          %433 = sbr.rel (%p431) target = $region76
        $region75: #{random_cnn_encoder_forward.1} parent=71 // pred_region
          %p434 = scmp.lt.s32.totalorder %s24, 1
          %s435 = scalar_select %p434, %s24, 1
          %s436 = smul.addr %s435, 44
          %s437 = smul.addr %s436, 4
          %s438 = scalar_lea.vmem %s0, %s437
        $region76: #{random_cnn_encoder_forward.1} parent=71 // pred_fallthru
          _
      $region72: #{random_cnn_encoder_forward.1} parent=5 // pred_fallthru
        _
      %p439 = scmp.le.s32.totalorder 1, %s24
      %p440 = scmp.lt.s32.totalorder %s24, 3
      %p441 = pnand %p439, %p440
      %p442 = pneg %p441
      // Predicated region
      $region77: #{random_cnn_encoder_forward.1} parent=5 // pred_check
        _
      $region78: #{random_cnn_encoder_forward.1} parent=5 // pred_check_branch
        %444 = sbr.rel (%p441) target = $region80
      $region79: #{random_cnn_encoder_forward.1} parent=5 // pred_region
        %s445 = ssub.s32 %s24, 1
        %p446 = scmp.lt.s32.totalorder %s29, 1
        %s447 = scalar_select %p446, %s29, 1
        %s448 = smul.addr %s447, 44
        %s449 = smul.addr %s448, 4
        %s450 = scalar_lea.vmem %s0, %s449
        %p451 = pneg %p50
        %p452 = pneg %p47
        %p453 = pneg %p71
        %p454 = pneg %p68
        %p455 = pneg %p92
        %p456 = pneg %p89
        %p457 = pneg %p113
        %p458 = pneg %p110
        %p459 = pneg %p134
        %p460 = pneg %p131
        %p461 = pneg %p155
        %p462 = pneg %p152
        %p463 = pneg %p176
        %p464 = pneg %p173
        %p465 = pneg %p197
        %p466 = pneg %p194
        %p467 = pneg %p218
        %p468 = pneg %p215
        %p469 = pneg %p239
        %p470 = pneg %p236
        %p471 = pneg %p260
        %p472 = pneg %p257
        %p473 = pneg %p281
        %p474 = pneg %p278
        %p475 = pneg %p302
        %p476 = pneg %p299
        %p477 = pneg %p323
        %p478 = pneg %p320
        %p479 = pneg %p344
        %p480 = pneg %p341
        %p481 = pneg %p370
        %p482 = pneg %p367
        %s483 = sand.u32 %s357, 1
        %s484 = scalar_lea.sflag [#allocation3], %s483
        %s485 = sand.u32 %s357, 1
        %s486 = smul.addr %s485, 4
        %s487 = scalar_lea.vmem [#allocation2], %s486
        %p488 = scmp.lt.s32.totalorder %s29, 1
        %s489 = scalar_select %p488, %s29, 1
        %s490 = smul.addr %s489, 44
        %s491 = smul.addr %s490, 4
        %s492 = scalar_lea.vmem %s0, %s491
        %v494 = vld [vmem:[%s492] sm:$0xff]
        %v495 = vld [vmem:[%s492 + $0x8] sm:$0xff]
        %v496 = vld [vmem:[%s492 + $0x10] sm:$0xff]
        %v497 = vld [vmem:[%s492 + $0x18] sm:$0xff]
        %v498 = vld [vmem:[%s492 + $0x20] sm:$0xff]
        %v499 = vld [vmem:[%s492 + $0x28] sm:$0xff]
        %v500 = vld [vmem:[%s492 + $0x30] sm:$0xff]
        %v501 = vld [vmem:[%s492 + $0x38] sm:$0xff]
        %v502 = vld [vmem:[%s492 + $0x40] sm:$0xff]
        %v503 = vld [vmem:[%s492 + $0x48] sm:$0xff]
        %v504 = vld [vmem:[%s492 + $0x50] sm:$0xff]
        %v505 = vld [vmem:[%s492 + $0x58] sm:$0xff]
        %v506 = vld [vmem:[%s492 + $0x60] sm:$0xff]
        %v507 = vld [vmem:[%s492 + $0x68] sm:$0xff]
        %v508 = vld [vmem:[%s492 + $0x70] sm:$0xff]
        %v509 = vld [vmem:[%s492 + $0x78] sm:$0xff]
        %v510 = vld [vmem:[%s492 + $0x80] sm:$0xff]
        %v511 = vld [vmem:[%s492 + $0x88] sm:$0xff]
        %v512 = vld [vmem:[%s492 + $0x90] sm:$0xff]
        %v513 = vld [vmem:[%s492 + $0x98] sm:$0xff]
        %v514 = vld [vmem:[%s492 + $0xa0] sm:$0xff]
        %v515 = vld [vmem:[%s492 + $0xa8] sm:$0xff]
        %v516 = vld [vmem:[%s1] sm:$0xff]
        %v517 = vld [vmem:[%s1 + $0x8] sm:$0xff]
        %v518 = vld [vmem:[%s1 + $0x10] sm:$0xff]
        %v519 = vld [vmem:[%s1 + $0x18] sm:$0xff]
        %v520 = vld [vmem:[%s1 + $0x20] sm:$0xff]
        %v526 = vunpack.c.l.b16 %v516
        %v527 = vunpack.c.h.b16 %v516
        %v528 = vunpack.c.l.b16 %v517
        %v529 = vunpack.c.h.b16 %v517
        %v530 = vunpack.c.l.b16 %v518
        %v531 = vunpack.c.h.b16 %v518
        %v532 = vunpack.c.l.b16 %v519
        %v533 = vunpack.c.h.b16 %v519
        %v534 = vunpack.c.l.b16 %v520
        %v535 = vunpack.c.h.b16 %v520
        %v536 = vpack.c.b16 %v528, %v526
        %v537 = vpack.c.b16 %v529, %v527
        %v538 = vpack.c.b16 %v532, %v530
        %v539 = vpack.c.b16 %v533, %v531
        %v540 = vpack.c.b16 %v534, %v534
        %v541 = vpack.c.b16 %v535, %v535
        %v567 = vunpack.c.l.b16 %v494
        %v568 = vunpack.c.h.b16 %v494
        %v569 = vunpack.c.l.b16 %v495
        %v570 = vunpack.c.h.b16 %v495
        %v571 = vunpack.c.l.b16 %v496
        %v572 = vunpack.c.h.b16 %v496
        %v573 = vunpack.c.l.b16 %v497
        %v574 = vunpack.c.h.b16 %v497
        %v575 = vunpack.c.l.b16 %v498
        %v576 = vunpack.c.h.b16 %v498
        %v577 = vunpack.c.l.b16 %v499
        %v578 = vunpack.c.h.b16 %v499
        %v579 = vunpack.c.l.b16 %v500
        %v580 = vunpack.c.h.b16 %v500
        %v581 = vunpack.c.l.b16 %v501
        %v582 = vunpack.c.h.b16 %v501
        %v583 = vunpack.c.l.b16 %v502
        %v584 = vunpack.c.h.b16 %v502
        %v585 = vunpack.c.l.b16 %v503
        %v586 = vunpack.c.h.b16 %v503
        %v587 = vunpack.c.l.b16 %v504
        %v588 = vunpack.c.h.b16 %v504
        %v589 = vunpack.c.l.b16 %v505
        %v590 = vunpack.c.h.b16 %v505
        %v591 = vunpack.c.l.b16 %v506
        %v592 = vunpack.c.h.b16 %v506
        %v593 = vunpack.c.l.b16 %v507
        %v594 = vunpack.c.h.b16 %v507
        %v595 = vunpack.c.l.b16 %v508
        %v596 = vunpack.c.h.b16 %v508
        %v597 = vunpack.c.l.b16 %v509
        %v598 = vunpack.c.h.b16 %v509
        %v599 = vunpack.c.l.b16 %v510
        %v600 = vunpack.c.h.b16 %v510
        %v601 = vunpack.c.l.b16 %v511
        %v602 = vunpack.c.h.b16 %v511
        %v603 = vunpack.c.l.b16 %v512
        %v604 = vunpack.c.h.b16 %v512
        %v605 = vunpack.c.l.b16 %v513
        %v606 = vunpack.c.h.b16 %v513
        %v607 = vunpack.c.l.b16 %v514
        %v608 = vunpack.c.h.b16 %v514
        %v609 = vunpack.c.l.b16 %v515
        %v610 = vunpack.c.h.b16 %v515
        %v611 = vpack.c.b16 %v569, %v567
        %v612 = vpack.c.b16 %v570, %v568
        %v613 = vpack.c.b16 %v573, %v571
        %v614 = vpack.c.b16 %v574, %v572
        %v615 = vpack.c.b16 %v577, %v575
        %v616 = vpack.c.b16 %v578, %v576
        %v617 = vpack.c.b16 %v581, %v579
        %v618 = vpack.c.b16 %v582, %v580
        %v619 = vpack.c.b16 %v585, %v583
        %v620 = vpack.c.b16 %v586, %v584
        %v621 = vpack.c.b16 %v589, %v587
        %v622 = vpack.c.b16 %v590, %v588
        %v623 = vpack.c.b16 %v593, %v591
        %v624 = vpack.c.b16 %v594, %v592
        %v625 = vpack.c.b16 %v597, %v595
        %v626 = vpack.c.b16 %v598, %v596
        %v627 = vpack.c.b16 %v601, %v599
        %v628 = vpack.c.b16 %v602, %v600
        %v629 = vpack.c.b16 %v605, %v603
        %v630 = vpack.c.b16 %v606, %v604
        %v631 = vpack.c.b16 %v609, %v607
        %v632 = vpack.c.b16 %v610, %v608
        %vm655 = vcmask 392192
        %v657 = vsel %vm655, %v537, 0
        %v660 = vsel %vm655, %v539, 0
        %v663 = vsel %vm655, %v541, 0
        %665 = vmatprep.subr.bf16.mxu0 %v612
        %666 = vmatpush1.bf16.msra.mxu0 %v611
        %667 = vmatprep.subr.bf16.mxu0 %v614
        %668 = vmatpush1.bf16.msra.mxu0 %v613
        %669 = vmatprep.subr.bf16.mxu0 %v616
        %670 = vmatpush1.bf16.msra.mxu0 %v615
        %671 = vmatprep.subr.bf16.mxu0 %v618
        %672 = vmatpush1.bf16.msra.mxu0 %v617
        %673 = vmatprep.subr.bf16.mxu0 %v620
        %674 = vmatpush1.bf16.msra.mxu0 %v619
        %675 = vmatprep.subr.bf16.mxu0 %v622
        %676 = vmatpush1.bf16.msra.mxu0 %v621
        %677 = vmatprep.subr.bf16.mxu0 %v624
        %678 = vmatpush1.bf16.msra.mxu0 %v623
        %679 = vmatprep.subr.bf16.mxu0 %v626
        %680 = vmatpush1.bf16.msra.mxu0 %v625
        %681 = vmatprep.subr.bf16.mxu0 %v628
        %682 = vmatpush1.bf16.msra.mxu0 %v627
        %683 = vmatprep.subr.bf16.mxu0 %v630
        %684 = vmatpush1.bf16.msra.mxu0 %v629
        %685 = vmatprep.subr.bf16.mxu0 %v632
        %686 = vmatpush1.bf16.msra.mxu0 %v631
        %687 = vmatprep.subr.bf16.mxu0 0
        %688 = vmatpush1.bf16.msra.mxu0 0
        %689 = vmatprep.subr.bf16.mxu0 0
        %690 = vmatpush1.bf16.msra.mxu0 0
        %691 = vmatprep.subr.bf16.mxu0 0
        %692 = vmatpush1.bf16.msra.mxu0 0
        %693 = vmatprep.subr.bf16.mxu0 0
        %694 = vmatpush1.bf16.msra.mxu0 0
        %695 = vmatprep.subr.bf16.mxu0 0
        %696 = vmatpush1.bf16.msra.mxu0 0
        %697 = vmatprep.mubr.bf16.mxu0 %v657
        %698 = vmatmul.mubr.bf16.gmra.mrb[0].mxu0 %v536
        %v699 = vpop.f32.mrb[0].mxu0
        %v700 = vadd.f32 0.0, %v699
        %v701 = vpop.f32.mrb[0].mxu0
        %v702 = vadd.f32 0.0, %v701
        %v703 = vpop.f32.mrb[0].mxu0
        %v704 = vadd.f32 0.0, %v703
        %v705 = vpop.f32.mrb[0].mxu0
        %v706 = vadd.f32 0.0, %v705
        %707 = vmatprep.mubr.bf16.mxu0 %v660
        %708 = vmatmul.mubr.bf16.gmra.mrb[0].mxu0 %v538
        %v709 = vpop.f32.mrb[0].mxu0
        %v710 = vadd.f32 0.0, %v709
        %v711 = vpop.f32.mrb[0].mxu0
        %v712 = vadd.f32 0.0, %v711
        %v713 = vpop.f32.mrb[0].mxu0
        %v714 = vadd.f32 0.0, %v713
        %v715 = vpop.f32.mrb[0].mxu0
        %v716 = vadd.f32 0.0, %v715
        %717 = vmatprep.mubr.bf16.mxu0 %v663
        %718 = vmatmul.mubr.bf16.gmra.mrb[0].mxu0 %v540
        %v719 = vpop.f32.mrb[0].mxu0
        %v720 = vadd.f32 0.0, %v719
        %v721 = vpop.f32.mrb[0].mxu0
        %v722 = vadd.f32 0.0, %v721
        %v723 = vpop.f32.mrb[0].mxu0
        %v724 = vpop.f32.mrb[0].mxu0
        %725 = vdwg.mxu0
        %v726 = vpack.c.bf16 %v704, %v700
        %v727 = vpack.c.bf16 %v706, %v702
        %v728 = vpack.c.bf16 %v714, %v710
        %v729 = vpack.c.bf16 %v716, %v712
        %v730 = vpack.c.bf16 %v720, %v720
        %v731 = vpack.c.bf16 %v722, %v722
        %v732 = vld [vmem:[%s2] sm:$0xff]
        %v733 = vld [vmem:[%s2 + $0x8] sm:$0xf]
        %v734 = vld [vmem:[%s2 + $0xc] sm:$0xff]
        %v735 = vld [vmem:[%s2 + $0x14] sm:$0xf]
        %v736 = vld [vmem:[%s2 + $0x18] sm:$0xff]
        %v737 = vld [vmem:[%s2 + $0x20] sm:$0xf]
        %v738 = vld [vmem:[%s2 + $0x24] sm:$0xff]
        %v739 = vld [vmem:[%s2 + $0x2c] sm:$0xf]
        %v740 = vld [vmem:[%s2 + $0x30] sm:$0xff]
        %v741 = vld [vmem:[%s2 + $0x38] sm:$0xf]
        %v742 = vld [vmem:[%s2 + $0x3c] sm:$0xff]
        %v743 = vld [vmem:[%s2 + $0x44] sm:$0xf]
        %v744 = vld [vmem:[%s2 + $0x48] sm:$0xff]
        %v745 = vld [vmem:[%s2 + $0x50] sm:$0xf]
        %v746 = vld [vmem:[%s2 + $0x54] sm:$0xff]
        %v747 = vld [vmem:[%s2 + $0x5c] sm:$0xf]
        %v748 = vld [vmem:[%s2 + $0x60] sm:$0xff]
        %v749 = vld [vmem:[%s2 + $0x68] sm:$0xf]
        %v750 = vld [vmem:[%s2 + $0x6c] sm:$0xff]
        %v751 = vld [vmem:[%s2 + $0x74] sm:$0xf]
        %v752 = vld [vmem:[%s2 + $0x78] sm:$0xff]
        %v753 = vld [vmem:[%s2 + $0x80] sm:$0xf]
        %v754 = vld [vmem:[%s2 + $0x84] sm:$0xff]
        %v755 = vld [vmem:[%s2 + $0x8c] sm:$0xf]
        %v756 = vld [vmem:[%s2 + $0x90] sm:$0xff]
        %v757 = vld [vmem:[%s2 + $0x98] sm:$0xf]
        %v758 = vld [vmem:[%s2 + $0x9c] sm:$0xff]
        %v759 = vld [vmem:[%s2 + $0xa4] sm:$0xf]
        %v760 = vld [vmem:[%s2 + $0xa8] sm:$0xff]
        %v761 = vld [vmem:[%s2 + $0xb0] sm:$0xf]
        %v762 = vld [vmem:[%s2 + $0xb4] sm:$0xff]
        %v763 = vld [vmem:[%s2 + $0xbc] sm:$0xf]
        %v764 = vld [vmem:[%s2 + $0xc0] sm:$0xff]
        %v765 = vld [vmem:[%s2 + $0xc8] sm:$0xf]
        %v766 = vld [vmem:[%s2 + $0xcc] sm:$0xff]
        %v767 = vld [vmem:[%s2 + $0xd4] sm:$0xf]
        %v768 = vld [vmem:[%s2 + $0xd8] sm:$0xff]
        %v769 = vld [vmem:[%s2 + $0xe0] sm:$0xf]
        %v770 = vld [vmem:[%s2 + $0xe4] sm:$0xff]
        %v771 = vld [vmem:[%s2 + $0xec] sm:$0xf]
        %v772 = vld [vmem:[%s2 + $0xf0] sm:$0xff]
        %v773 = vld [vmem:[%s2 + $0xf8] sm:$0xf]
        %v774 = vld [vmem:[%s2 + $0xfc] sm:$0xff]
        %v775 = vld [vmem:[%s2 + $0x104] sm:$0xf]
        %s776 = scalar_lea.vmem %s1, 40
        %v777 = vld [vmem:[%s776] sm:$0xff]
        %v778 = vld [vmem:[%s776 + $0x8] sm:$0xff]
        %v779 = vld [vmem:[%s776 + $0x10] sm:$0xff]
        %v780 = vld [vmem:[%s776 + $0x18] sm:$0xff]
        %v781 = vld [vmem:[%s776 + $0x20] sm:$0xff]
        %v787 = vunpack.c.l.b16 %v777
        %v788 = vunpack.c.h.b16 %v777
        %v789 = vunpack.c.l.b16 %v778
        %v790 = vunpack.c.h.b16 %v778
        %v791 = vunpack.c.l.b16 %v779
        %v792 = vunpack.c.h.b16 %v779
        %v793 = vunpack.c.l.b16 %v780
        %v794 = vunpack.c.h.b16 %v780
        %v795 = vunpack.c.l.b16 %v781
        %v796 = vunpack.c.h.b16 %v781
        %v797 = vpack.c.b16 %v789, %v787
        %v798 = vpack.c.b16 %v790, %v788
        %v799 = vpack.c.b16 %v793, %v791
        %v800 = vpack.c.b16 %v794, %v792
        %v801 = vpack.c.b16 %v795, %v795
        %v802 = vpack.c.b16 %v796, %v796
        %v807 = vsel %vm655, %v798, 0
        %v810 = vsel %vm655, %v800, 0
        %v813 = vsel %vm655, %v802, 0
        %815 = vmatprep.subr.bf16.mxu0 %v612
        %816 = vmatpush1.bf16.msra.mxu0 %v611
        %817 = vmatprep.subr.bf16.mxu0 %v614
        %818 = vmatpush1.bf16.msra.mxu0 %v613
        %819 = vmatprep.subr.bf16.mxu0 %v616
        %820 = vmatpush1.bf16.msra.mxu0 %v615
        %821 = vmatprep.subr.bf16.mxu0 %v618
        %822 = vmatpush1.bf16.msra.mxu0 %v617
        %823 = vmatprep.subr.bf16.mxu0 %v620
        %824 = vmatpush1.bf16.msra.mxu0 %v619
        %825 = vmatprep.subr.bf16.mxu0 %v622
        %826 = vmatpush1.bf16.msra.mxu0 %v621
        %827 = vmatprep.subr.bf16.mxu0 %v624
        %828 = vmatpush1.bf16.msra.mxu0 %v623
        %829 = vmatprep.subr.bf16.mxu0 %v626
        %830 = vmatpush1.bf16.msra.mxu0 %v625
        %831 = vmatprep.subr.bf16.mxu0 %v628
        %832 = vmatpush1.bf16.msra.mxu0 %v627
        %833 = vmatprep.subr.bf16.mxu0 %v630
        %834 = vmatpush1.bf16.msra.mxu0 %v629
        %835 = vmatprep.subr.bf16.mxu0 %v632
        %836 = vmatpush1.bf16.msra.mxu0 %v631
        %837 = vmatprep.subr.bf16.mxu0 0
        %838 = vmatpush1.bf16.msra.mxu0 0
        %839 = vmatprep.subr.bf16.mxu0 0
        %840 = vmatpush1.bf16.msra.mxu0 0
        %841 = vmatprep.subr.bf16.mxu0 0
        %842 = vmatpush1.bf16.msra.mxu0 0
        %843 = vmatprep.subr.bf16.mxu0 0
        %844 = vmatpush1.bf16.msra.mxu0 0
        %845 = vmatprep.subr.bf16.mxu0 0
        %846 = vmatpush1.bf16.msra.mxu0 0
        %847 = vmatprep.mubr.bf16.mxu0 %v807
        %848 = vmatmul.mubr.bf16.gmra.mrb[0].mxu0 %v797
        %v849 = vpop.f32.mrb[0].mxu0
        %v850 = vadd.f32 0.0, %v849
        %v851 = vpop.f32.mrb[0].mxu0
        %v852 = vadd.f32 0.0, %v851
        %v853 = vpop.f32.mrb[0].mxu0
        %v854 = vadd.f32 0.0, %v853
        %v855 = vpop.f32.mrb[0].mxu0
        %v856 = vadd.f32 0.0, %v855
        %857 = vmatprep.mubr.bf16.mxu0 %v810
        %858 = vmatmul.mubr.bf16.gmra.mrb[0].mxu0 %v799
        %v859 = vpop.f32.mrb[0].mxu0
        %v860 = vadd.f32 0.0, %v859
        %v861 = vpop.f32.mrb[0].mxu0
        %v862 = vadd.f32 0.0, %v861
        %v863 = vpop.f32.mrb[0].mxu0
        %v864 = vadd.f32 0.0, %v863
        %v865 = vpop.f32.mrb[0].mxu0
        %v866 = vadd.f32 0.0, %v865
        %867 = vmatprep.mubr.bf16.mxu0 %v813
        %868 = vmatmul.mubr.bf16.gmra.mrb[0].mxu0 %v801
        %v869 = vpop.f32.mrb[0].mxu0
        %v870 = vadd.f32 0.0, %v869
        %v871 = vpop.f32.mrb[0].mxu0
        %v872 = vadd.f32 0.0, %v871
        %v873 = vpop.f32.mrb[0].mxu0
        %v874 = vpop.f32.mrb[0].mxu0
        %875 = vdwg.mxu0
        %v876 = vpack.c.bf16 %v854, %v850
        %v877 = vpack.c.bf16 %v856, %v852
        %v878 = vpack.c.bf16 %v864, %v860
        %v879 = vpack.c.bf16 %v866, %v862
        %v880 = vpack.c.bf16 %v870, %v870
        %v881 = vpack.c.bf16 %v872, %v872
        %s882 = scalar_lea.vmem %s2, 264
        %v883 = vld [vmem:[%s882] sm:$0xff]
        %v884 = vld [vmem:[%s882 + $0x8] sm:$0xf]
        %v885 = vld [vmem:[%s882 + $0xc] sm:$0xff]
        %v886 = vld [vmem:[%s882 + $0x14] sm:$0xf]
        %v887 = vld [vmem:[%s882 + $0x18] sm:$0xff]
        %v888 = vld [vmem:[%s882 + $0x20] sm:$0xf]
        %v889 = vld [vmem:[%s882 + $0x24] sm:$0xff]
        %v890 = vld [vmem:[%s882 + $0x2c] sm:$0xf]
        %v891 = vld [vmem:[%s882 + $0x30] sm:$0xff]
        %v892 = vld [vmem:[%s882 + $0x38] sm:$0xf]
        %v893 = vld [vmem:[%s882 + $0x3c] sm:$0xff]
        %v894 = vld [vmem:[%s882 + $0x44] sm:$0xf]
        %v895 = vld [vmem:[%s882 + $0x48] sm:$0xff]
        %v896 = vld [vmem:[%s882 + $0x50] sm:$0xf]
        %v897 = vld [vmem:[%s882 + $0x54] sm:$0xff]
        %v898 = vld [vmem:[%s882 + $0x5c] sm:$0xf]
        %v899 = vld [vmem:[%s882 + $0x60] sm:$0xff]
        %v900 = vld [vmem:[%s882 + $0x68] sm:$0xf]
        %v901 = vld [vmem:[%s882 + $0x6c] sm:$0xff]
        %v902 = vld [vmem:[%s882 + $0x74] sm:$0xf]
        %v903 = vld [vmem:[%s882 + $0x78] sm:$0xff]
        %v904 = vld [vmem:[%s882 + $0x80] sm:$0xf]
        %v905 = vld [vmem:[%s882 + $0x84] sm:$0xff]
        %v906 = vld [vmem:[%s882 + $0x8c] sm:$0xf]
        %v907 = vld [vmem:[%s882 + $0x90] sm:$0xff]
        %v908 = vld [vmem:[%s882 + $0x98] sm:$0xf]
        %v909 = vld [vmem:[%s882 + $0x9c] sm:$0xff]
        %v910 = vld [vmem:[%s882 + $0xa4] sm:$0xf]
        %v911 = vld [vmem:[%s882 + $0xa8] sm:$0xff]
        %v912 = vld [vmem:[%s882 + $0xb0] sm:$0xf]
        %v913 = vld [vmem:[%s882 + $0xb4] sm:$0xff]
        %v914 = vld [vmem:[%s882 + $0xbc] sm:$0xf]
        %v915 = vld [vmem:[%s882 + $0xc0] sm:$0xff]
        %v916 = vld [vmem:[%s882 + $0xc8] sm:$0xf]
        %v917 = vld [vmem:[%s882 + $0xcc] sm:$0xff]
        %v918 = vld [vmem:[%s882 + $0xd4] sm:$0xf]
        %v919 = vld [vmem:[%s882 + $0xd8] sm:$0xff]
        %v920 = vld [vmem:[%s882 + $0xe0] sm:$0xf]
        %v921 = vld [vmem:[%s882 + $0xe4] sm:$0xff]
        %v922 = vld [vmem:[%s882 + $0xec] sm:$0xf]
        %v923 = vld [vmem:[%s882 + $0xf0] sm:$0xff]
        %v924 = vld [vmem:[%s882 + $0xf8] sm:$0xf]
        %v925 = vld [vmem:[%s882 + $0xfc] sm:$0xff]
        %v926 = vld [vmem:[%s882 + $0x104] sm:$0xf]
        %v971 = vunpack.c.l.b16 %v883
        %v972 = vunpack.c.h.b16 %v883
        %v973 = vunpack.c.l.b16 %v884
        %v974 = vunpack.c.l.b16 %v885
        %v975 = vunpack.c.h.b16 %v885
        %v976 = vunpack.c.l.b16 %v886
        %v977 = vunpack.c.l.b16 %v887
        %v978 = vunpack.c.h.b16 %v887
        %v979 = vunpack.c.l.b16 %v888
        %v980 = vunpack.c.l.b16 %v889
        %v981 = vunpack.c.h.b16 %v889
        %v982 = vunpack.c.l.b16 %v890
        %v983 = vunpack.c.l.b16 %v891
        %v984 = vunpack.c.h.b16 %v891
        %v985 = vunpack.c.l.b16 %v892
        %v986 = vunpack.c.l.b16 %v893
        %v987 = vunpack.c.h.b16 %v893
        %v988 = vunpack.c.l.b16 %v894
        %v989 = vunpack.c.l.b16 %v895
        %v990 = vunpack.c.h.b16 %v895
        %v991 = vunpack.c.l.b16 %v896
        %v992 = vunpack.c.l.b16 %v897
        %v993 = vunpack.c.h.b16 %v897
        %v994 = vunpack.c.l.b16 %v898
        %v995 = vunpack.c.l.b16 %v899
        %v996 = vunpack.c.h.b16 %v899
        %v997 = vunpack.c.l.b16 %v900
        %v998 = vunpack.c.l.b16 %v901
        %v999 = vunpack.c.h.b16 %v901
        %v1000 = vunpack.c.l.b16 %v902
        %v1001 = vunpack.c.l.b16 %v903
        %v1002 = vunpack.c.h.b16 %v903
        %v1003 = vunpack.c.l.b16 %v904
        %v1004 = vunpack.c.l.b16 %v905
        %v1005 = vunpack.c.h.b16 %v905
        %v1006 = vunpack.c.l.b16 %v906
        %v1007 = vunpack.c.l.b16 %v907
        %v1008 = vunpack.c.h.b16 %v907
        %v1009 = vunpack.c.l.b16 %v908
        %v1010 = vunpack.c.l.b16 %v909
        %v1011 = vunpack.c.h.b16 %v909
        %v1012 = vunpack.c.l.b16 %v910
        %v1013 = vunpack.c.l.b16 %v911
        %v1014 = vunpack.c.h.b16 %v911
        %v1015 = vunpack.c.l.b16 %v912
        %v1016 = vunpack.c.l.b16 %v913
        %v1017 = vunpack.c.h.b16 %v913
        %v1018 = vunpack.c.l.b16 %v914
        %v1019 = vunpack.c.l.b16 %v915
        %v1020 = vunpack.c.h.b16 %v915
        %v1021 = vunpack.c.l.b16 %v916
        %v1022 = vunpack.c.l.b16 %v917
        %v1023 = vunpack.c.h.b16 %v917
        %v1024 = vunpack.c.l.b16 %v918
        %v1025 = vunpack.c.l.b16 %v919
        %v1026 = vunpack.c.h.b16 %v919
        %v1027 = vunpack.c.l.b16 %v920
        %v1028 = vunpack.c.l.b16 %v921
        %v1029 = vunpack.c.h.b16 %v921
        %v1030 = vunpack.c.l.b16 %v922
        %v1031 = vunpack.c.l.b16 %v923
        %v1032 = vunpack.c.h.b16 %v923
        %v1033 = vunpack.c.l.b16 %v924
        %v1034 = vunpack.c.l.b16 %v925
        %v1035 = vunpack.c.h.b16 %v925
        %v1036 = vunpack.c.l.b16 %v926
        %v1037 = vpack.c.b16 %v974, %v971
        %v1038 = vpack.c.b16 %v975, %v972
        %v1039 = vpack.c.b16 %v976, %v973
        %v1040 = vpack.c.b16 %v980, %v977
        %v1041 = vpack.c.b16 %v981, %v978
        %v1042 = vpack.c.b16 %v982, %v979
        %v1043 = vpack.c.b16 %v986, %v983
        %v1044 = vpack.c.b16 %v987, %v984
        %v1045 = vpack.c.b16 %v988, %v985
        %v1046 = vpack.c.b16 %v992, %v989
        %v1047 = vpack.c.b16 %v993, %v990
        %v1048 = vpack.c.b16 %v994, %v991
        %v1049 = vpack.c.b16 %v998, %v995
        %v1050 = vpack.c.b16 %v999, %v996
        %v1051 = vpack.c.b16 %v1000, %v997
        %v1052 = vpack.c.b16 %v1004, %v1001
        %v1053 = vpack.c.b16 %v1005, %v1002
        %v1054 = vpack.c.b16 %v1006, %v1003
        %v1055 = vpack.c.b16 %v1010, %v1007
        %v1056 = vpack.c.b16 %v1011, %v1008
        %v1057 = vpack.c.b16 %v1012, %v1009
        %v1058 = vpack.c.b16 %v1016, %v1013
        %v1059 = vpack.c.b16 %v1017, %v1014
        %v1060 = vpack.c.b16 %v1018, %v1015
        %v1061 = vpack.c.b16 %v1022, %v1019
        %v1062 = vpack.c.b16 %v1023, %v1020
        %v1063 = vpack.c.b16 %v1024, %v1021
        %v1064 = vpack.c.b16 %v1028, %v1025
        %v1065 = vpack.c.b16 %v1029, %v1026
        %v1066 = vpack.c.b16 %v1030, %v1027
        %v1067 = vpack.c.b16 %v1034, %v1031
        %v1068 = vpack.c.b16 %v1035, %v1032
        %v1069 = vpack.c.b16 %v1036, %v1033
        %v1104 = vsel %vm655, %v877, 0
        %v1107 = vsel %vm655, %v879, 0
        %v1110 = vsel %vm655, %v881, 0
        %1112 = vmatprep.subr.bf16.mxu0 %v1038
        %1113 = vmatpush1.bf16.msra.mxu0 %v1037
        %1114 = vmatprep.subr.bf16.mxu0 %v1041
        %1115 = vmatpush1.bf16.msra.mxu0 %v1040
        %1116 = vmatprep.subr.bf16.mxu0 %v1044
        %1117 = vmatpush1.bf16.msra.mxu0 %v1043
        %1118 = vmatprep.subr.bf16.mxu0 %v1047
        %1119 = vmatpush1.bf16.msra.mxu0 %v1046
        %1120 = vmatprep.subr.bf16.mxu0 %v1050
        %1121 = vmatpush1.bf16.msra.mxu0 %v1049
        %1122 = vmatprep.subr.bf16.mxu0 %v1053
        %1123 = vmatpush1.bf16.msra.mxu0 %v1052
        %1124 = vmatprep.subr.bf16.mxu0 %v1056
        %1125 = vmatpush1.bf16.msra.mxu0 %v1055
        %1126 = vmatprep.subr.bf16.mxu0 %v1059
        %1127 = vmatpush1.bf16.msra.mxu0 %v1058
        %1128 = vmatprep.subr.bf16.mxu0 %v1062
        %1129 = vmatpush1.bf16.msra.mxu0 %v1061
        %1130 = vmatprep.subr.bf16.mxu0 %v1065
        %1131 = vmatpush1.bf16.msra.mxu0 %v1064
        %1132 = vmatprep.subr.bf16.mxu0 %v1068
        %1133 = vmatpush1.bf16.msra.mxu0 %v1067
        %1134 = vmatprep.subr.bf16.mxu0 0
        %1135 = vmatpush1.bf16.msra.mxu0 0
        %1136 = vmatprep.subr.bf16.mxu0 0
        %1137 = vmatpush1.bf16.msra.mxu0 0
        %1138 = vmatprep.subr.bf16.mxu0 0
        %1139 = vmatpush1.bf16.msra.mxu0 0
        %1140 = vmatprep.subr.bf16.mxu0 0
        %1141 = vmatpush1.bf16.msra.mxu0 0
        %1142 = vmatprep.subr.bf16.mxu0 0
        %1143 = vmatpush1.bf16.msra.mxu0 0
        %1144 = vmatprep.mubr.bf16.mxu0 %v1104
        %1145 = vmatmul.mubr.bf16.gmra.mrb[0].mxu0 %v876
        %v1146 = vpop.f32.mrb[0].mxu0
        %v1147 = vadd.f32 0.0, %v1146
        %v1148 = vpop.f32.mrb[0].mxu0
        %v1149 = vadd.f32 0.0, %v1148
        %v1150 = vpop.f32.mrb[0].mxu0
        %v1151 = vadd.f32 0.0, %v1150
        %v1152 = vpop.f32.mrb[0].mxu0
        %v1153 = vadd.f32 0.0, %v1152
        %1154 = vmatprep.mubr.bf16.mxu0 %v1107
        %1155 = vmatmul.mubr.bf16.gmra.mrb[0].mxu0 %v878
        %v1156 = vpop.f32.mrb[0].mxu0
        %v1157 = vadd.f32 0.0, %v1156
        %v1158 = vpop.f32.mrb[0].mxu0
        %v1159 = vadd.f32 0.0, %v1158
        %v1160 = vpop.f32.mrb[0].mxu0
        %v1161 = vadd.f32 0.0, %v1160
        %v1162 = vpop.f32.mrb[0].mxu0
        %v1163 = vadd.f32 0.0, %v1162
        %1164 = vmatprep.mubr.bf16.mxu0 %v1110
        %1165 = vmatmul.mubr.bf16.gmra.mrb[0].mxu0 %v880
        %v1166 = vpop.f32.mrb[0].mxu0
        %v1167 = vadd.f32 0.0, %v1166
        %v1168 = vpop.f32.mrb[0].mxu0
        %v1169 = vadd.f32 0.0, %v1168
        %v1170 = vpop.f32.mrb[0].mxu0
        %v1171 = vpop.f32.mrb[0].mxu0
        %1172 = vdwg.mxu0
        %1173 = vmatprep.subr.bf16.mxu0 0
        %1174 = vmatpush1.bf16.msra.mxu0 %v1039
        %1175 = vmatprep.subr.bf16.mxu0 0
        %1176 = vmatpush1.bf16.msra.mxu0 %v1042
        %1177 = vmatprep.subr.bf16.mxu0 0
        %1178 = vmatpush1.bf16.msra.mxu0 %v1045
        %1179 = vmatprep.subr.bf16.mxu0 0
        %1180 = vmatpush1.bf16.msra.mxu0 %v1048
        %1181 = vmatprep.subr.bf16.mxu0 0
        %1182 = vmatpush1.bf16.msra.mxu0 %v1051
        %1183 = vmatprep.subr.bf16.mxu0 0
        %1184 = vmatpush1.bf16.msra.mxu0 %v1054
        %1185 = vmatprep.subr.bf16.mxu0 0
        %1186 = vmatpush1.bf16.msra.mxu0 %v1057
        %1187 = vmatprep.subr.bf16.mxu0 0
        %1188 = vmatpush1.bf16.msra.mxu0 %v1060
        %1189 = vmatprep.subr.bf16.mxu0 0
        %1190 = vmatpush1.bf16.msra.mxu0 %v1063
        %1191 = vmatprep.subr.bf16.mxu0 0
        %1192 = vmatpush1.bf16.msra.mxu0 %v1066
        %1193 = vmatprep.subr.bf16.mxu0 0
        %1194 = vmatpush1.bf16.msra.mxu0 %v1069
        %1195 = vmatprep.subr.bf16.mxu0 0
        %1196 = vmatpush1.bf16.msra.mxu0 0
        %1197 = vmatprep.subr.bf16.mxu0 0
        %1198 = vmatpush1.bf16.msra.mxu0 0
        %1199 = vmatprep.subr.bf16.mxu0 0
        %1200 = vmatpush1.bf16.msra.mxu0 0
        %1201 = vmatprep.subr.bf16.mxu0 0
        %1202 = vmatpush1.bf16.msra.mxu0 0
        %1203 = vmatprep.subr.bf16.mxu0 0
        %1204 = vmatpush1.bf16.msra.mxu0 0
        %1205 = vmatprep.mubr.bf16.mxu0 %v1104
        %1206 = vmatmul.mubr.bf16.gmra.mrb[0].mxu0 %v876
        %v1207 = vpop.f32.mrb[0].mxu0
        %v1208 = vadd.f32 0.0, %v1207
        %v1209 = vpop.f32.mrb[0].mxu0
        %v1210 = vpop.f32.mrb[0].mxu0
        %v1211 = vadd.f32 0.0, %v1210
        %v1212 = vpop.f32.mrb[0].mxu0
        %1213 = vmatprep.mubr.bf16.mxu0 %v1107
        %1214 = vmatmul.mubr.bf16.gmra.mrb[0].mxu0 %v878
        %v1215 = vpop.f32.mrb[0].mxu0
        %v1216 = vadd.f32 0.0, %v1215
        %v1217 = vpop.f32.mrb[0].mxu0
        %v1218 = vpop.f32.mrb[0].mxu0
        %v1219 = vadd.f32 0.0, %v1218
        %v1220 = vpop.f32.mrb[0].mxu0
        %1221 = vmatprep.mubr.bf16.mxu0 %v1110
        %1222 = vmatmul.mubr.bf16.gmra.mrb[0].mxu0 %v880
        %v1223 = vpop.f32.mrb[0].mxu0
        %v1224 = vadd.f32 0.0, %v1223
        %v1225 = vpop.f32.mrb[0].mxu0
        %v1226 = vpop.f32.mrb[0].mxu0
        %v1227 = vpop.f32.mrb[0].mxu0
        %1228 = vdwg.mxu0
        %v1273 = vunpack.c.l.b16 %v732
        %v1274 = vunpack.c.h.b16 %v732
        %v1275 = vunpack.c.l.b16 %v733
        %v1276 = vunpack.c.l.b16 %v734
        %v1277 = vunpack.c.h.b16 %v734
        %v1278 = vunpack.c.l.b16 %v735
        %v1279 = vunpack.c.l.b16 %v736
        %v1280 = vunpack.c.h.b16 %v736
        %v1281 = vunpack.c.l.b16 %v737
        %v1282 = vunpack.c.l.b16 %v738
        %v1283 = vunpack.c.h.b16 %v738
        %v1284 = vunpack.c.l.b16 %v739
        %v1285 = vunpack.c.l.b16 %v740
        %v1286 = vunpack.c.h.b16 %v740
        %v1287 = vunpack.c.l.b16 %v741
        %v1288 = vunpack.c.l.b16 %v742
        %v1289 = vunpack.c.h.b16 %v742
        %v1290 = vunpack.c.l.b16 %v743
        %v1291 = vunpack.c.l.b16 %v744
        %v1292 = vunpack.c.h.b16 %v744
        %v1293 = vunpack.c.l.b16 %v745
        %v1294 = vunpack.c.l.b16 %v746
        %v1295 = vunpack.c.h.b16 %v746
        %v1296 = vunpack.c.l.b16 %v747
        %v1297 = vunpack.c.l.b16 %v748
        %v1298 = vunpack.c.h.b16 %v748
        %v1299 = vunpack.c.l.b16 %v749
        %v1300 = vunpack.c.l.b16 %v750
        %v1301 = vunpack.c.h.b16 %v750
        %v1302 = vunpack.c.l.b16 %v751
        %v1303 = vunpack.c.l.b16 %v752
        %v1304 = vunpack.c.h.b16 %v752
        %v1305 = vunpack.c.l.b16 %v753
        %v1306 = vunpack.c.l.b16 %v754
        %v1307 = vunpack.c.h.b16 %v754
        %v1308 = vunpack.c.l.b16 %v755
        %v1309 = vunpack.c.l.b16 %v756
        %v1310 = vunpack.c.h.b16 %v756
        %v1311 = vunpack.c.l.b16 %v757
        %v1312 = vunpack.c.l.b16 %v758
        %v1313 = vunpack.c.h.b16 %v758
        %v1314 = vunpack.c.l.b16 %v759
        %v1315 = vunpack.c.l.b16 %v760
        %v1316 = vunpack.c.h.b16 %v760
        %v1317 = vunpack.c.l.b16 %v761
        %v1318 = vunpack.c.l.b16 %v762
        %v1319 = vunpack.c.h.b16 %v762
        %v1320 = vunpack.c.l.b16 %v763
        %v1321 = vunpack.c.l.b16 %v764
        %v1322 = vunpack.c.h.b16 %v764
        %v1323 = vunpack.c.l.b16 %v765
        %v1324 = vunpack.c.l.b16 %v766
        %v1325 = vunpack.c.h.b16 %v766
        %v1326 = vunpack.c.l.b16 %v767
        %v1327 = vunpack.c.l.b16 %v768
        %v1328 = vunpack.c.h.b16 %v768
        %v1329 = vunpack.c.l.b16 %v769
        %v1330 = vunpack.c.l.b16 %v770
        %v1331 = vunpack.c.h.b16 %v770
        %v1332 = vunpack.c.l.b16 %v771
        %v1333 = vunpack.c.l.b16 %v772
        %v1334 = vunpack.c.h.b16 %v772
        %v1335 = vunpack.c.l.b16 %v773
        %v1336 = vunpack.c.l.b16 %v774
        %v1337 = vunpack.c.h.b16 %v774
        %v1338 = vunpack.c.l.b16 %v775
        %v1339 = vpack.c.b16 %v1276, %v1273
        %v1340 = vpack.c.b16 %v1277, %v1274
        %v1341 = vpack.c.b16 %v1278, %v1275
        %v1342 = vpack.c.b16 %v1282, %v1279
        %v1343 = vpack.c.b16 %v1283, %v1280
        %v1344 = vpack.c.b16 %v1284, %v1281
        %v1345 = vpack.c.b16 %v1288, %v1285
        %v1346 = vpack.c.b16 %v1289, %v1286
        %v1347 = vpack.c.b16 %v1290, %v1287
        %v1348 = vpack.c.b16 %v1294, %v1291
        %v1349 = vpack.c.b16 %v1295, %v1292
        %v1350 = vpack.c.b16 %v1296, %v1293
        %v1351 = vpack.c.b16 %v1300, %v1297
        %v1352 = vpack.c.b16 %v1301, %v1298
        %v1353 = vpack.c.b16 %v1302, %v1299
        %v1354 = vpack.c.b16 %v1306, %v1303
        %v1355 = vpack.c.b16 %v1307, %v1304
        %v1356 = vpack.c.b16 %v1308, %v1305
        %v1357 = vpack.c.b16 %v1312, %v1309
        %v1358 = vpack.c.b16 %v1313, %v1310
        %v1359 = vpack.c.b16 %v1314, %v1311
        %v1360 = vpack.c.b16 %v1318, %v1315
        %v1361 = vpack.c.b16 %v1319, %v1316
        %v1362 = vpack.c.b16 %v1320, %v1317
        %v1363 = vpack.c.b16 %v1324, %v1321
        %v1364 = vpack.c.b16 %v1325, %v1322
        %v1365 = vpack.c.b16 %v1326, %v1323
        %v1366 = vpack.c.b16 %v1330, %v1327
        %v1367 = vpack.c.b16 %v1331, %v1328
        %v1368 = vpack.c.b16 %v1332, %v1329
        %v1369 = vpack.c.b16 %v1336, %v1333
        %v1370 = vpack.c.b16 %v1337, %v1334
        %v1371 = vpack.c.b16 %v1338, %v1335
        %v1406 = vsel %vm655, %v727, 0
        %v1409 = vsel %vm655, %v729, 0
        %v1412 = vsel %vm655, %v731, 0
        %1414 = vmatprep.subr.bf16.mxu0 %v1340
        %1415 = vmatpush1.bf16.msra.mxu0 %v1339
        %1416 = vmatprep.subr.bf16.mxu0 %v1343
        %1417 = vmatpush1.bf16.msra.mxu0 %v1342
        %1418 = vmatprep.subr.bf16.mxu0 %v1346
        %1419 = vmatpush1.bf16.msra.mxu0 %v1345
        %1420 = vmatprep.subr.bf16.mxu0 %v1349
        %1421 = vmatpush1.bf16.msra.mxu0 %v1348
        %1422 = vmatprep.subr.bf16.mxu0 %v1352
        %1423 = vmatpush1.bf16.msra.mxu0 %v1351
        %1424 = vmatprep.subr.bf16.mxu0 %v1355
        %1425 = vmatpush1.bf16.msra.mxu0 %v1354
        %1426 = vmatprep.subr.bf16.mxu0 %v1358
        %1427 = vmatpush1.bf16.msra.mxu0 %v1357
        %1428 = vmatprep.subr.bf16.mxu0 %v1361
        %1429 = vmatpush1.bf16.msra.mxu0 %v1360
        %1430 = vmatprep.subr.bf16.mxu0 %v1364
        %1431 = vmatpush1.bf16.msra.mxu0 %v1363
        %1432 = vmatprep.subr.bf16.mxu0 %v1367
        %1433 = vmatpush1.bf16.msra.mxu0 %v1366
        %1434 = vmatprep.subr.bf16.mxu0 %v1370
        %1435 = vmatpush1.bf16.msra.mxu0 %v1369
        %1436 = vmatprep.subr.bf16.mxu0 0
        %1437 = vmatpush1.bf16.msra.mxu0 0
        %1438 = vmatprep.subr.bf16.mxu0 0
        %1439 = vmatpush1.bf16.msra.mxu0 0
        %1440 = vmatprep.subr.bf16.mxu0 0
        %1441 = vmatpush1.bf16.msra.mxu0 0
        %1442 = vmatprep.subr.bf16.mxu0 0
        %1443 = vmatpush1.bf16.msra.mxu0 0
        %1444 = vmatprep.subr.bf16.mxu0 0
        %1445 = vmatpush1.bf16.msra.mxu0 0
        %1446 = vmatprep.mubr.bf16.mxu0 %v1406
        %1447 = vmatmul.mubr.bf16.gmra.mrb[0].mxu0 %v726
        %v1448 = vpop.f32.mrb[0].mxu0
        %v1449 = vadd.f32 %v1147, %v1448
        %v1450 = vpop.f32.mrb[0].mxu0
        %v1451 = vadd.f32 %v1149, %v1450
        %v1452 = vpop.f32.mrb[0].mxu0
        %v1453 = vadd.f32 %v1151, %v1452
        %v1454 = vpop.f32.mrb[0].mxu0
        %v1455 = vadd.f32 %v1153, %v1454
        %1456 = vmatprep.mubr.bf16.mxu0 %v1409
        %1457 = vmatmul.mubr.bf16.gmra.mrb[0].mxu0 %v728
        %v1458 = vpop.f32.mrb[0].mxu0
        %v1459 = vadd.f32 %v1157, %v1458
        %v1460 = vpop.f32.mrb[0].mxu0
        %v1461 = vadd.f32 %v1159, %v1460
        %v1462 = vpop.f32.mrb[0].mxu0
        %v1463 = vadd.f32 %v1161, %v1462
        %v1464 = vpop.f32.mrb[0].mxu0
        %v1465 = vadd.f32 %v1163, %v1464
        %1466 = vmatprep.mubr.bf16.mxu0 %v1412
        %1467 = vmatmul.mubr.bf16.gmra.mrb[0].mxu0 %v730
        %v1468 = vpop.f32.mrb[0].mxu0
        %v1469 = vadd.f32 %v1167, %v1468
        %v1470 = vpop.f32.mrb[0].mxu0
        %v1471 = vadd.f32 %v1169, %v1470
        %v1472 = vpop.f32.mrb[0].mxu0
        %v1473 = vpop.f32.mrb[0].mxu0
        %1474 = vdwg.mxu0
        %1475 = vmatprep.subr.bf16.mxu0 0
        %1476 = vmatpush1.bf16.msra.mxu0 %v1341
        %1477 = vmatprep.subr.bf16.mxu0 0
        %1478 = vmatpush1.bf16.msra.mxu0 %v1344
        %1479 = vmatprep.subr.bf16.mxu0 0
        %1480 = vmatpush1.bf16.msra.mxu0 %v1347
        %1481 = vmatprep.subr.bf16.mxu0 0
        %1482 = vmatpush1.bf16.msra.mxu0 %v1350
        %1483 = vmatprep.subr.bf16.mxu0 0
        %1484 = vmatpush1.bf16.msra.mxu0 %v1353
        %1485 = vmatprep.subr.bf16.mxu0 0
        %1486 = vmatpush1.bf16.msra.mxu0 %v1356
        %1487 = vmatprep.subr.bf16.mxu0 0
        %1488 = vmatpush1.bf16.msra.mxu0 %v1359
        %1489 = vmatprep.subr.bf16.mxu0 0
        %1490 = vmatpush1.bf16.msra.mxu0 %v1362
        %1491 = vmatprep.subr.bf16.mxu0 0
        %1492 = vmatpush1.bf16.msra.mxu0 %v1365
        %1493 = vmatprep.subr.bf16.mxu0 0
        %1494 = vmatpush1.bf16.msra.mxu0 %v1368
        %1495 = vmatprep.subr.bf16.mxu0 0
        %1496 = vmatpush1.bf16.msra.mxu0 %v1371
        %1497 = vmatprep.subr.bf16.mxu0 0
        %1498 = vmatpush1.bf16.msra.mxu0 0
        %1499 = vmatprep.subr.bf16.mxu0 0
        %1500 = vmatpush1.bf16.msra.mxu0 0
        %1501 = vmatprep.subr.bf16.mxu0 0
        %1502 = vmatpush1.bf16.msra.mxu0 0
        %1503 = vmatprep.subr.bf16.mxu0 0
        %1504 = vmatpush1.bf16.msra.mxu0 0
        %1505 = vmatprep.subr.bf16.mxu0 0
        %1506 = vmatpush1.bf16.msra.mxu0 0
        %1507 = vmatprep.mubr.bf16.mxu0 %v1406
        %1508 = vmatmul.mubr.bf16.gmra.mrb[0].mxu0 %v726
        %v1509 = vpop.f32.mrb[0].mxu0
        %v1510 = vadd.f32 %v1208, %v1509
        %v1511 = vpop.f32.mrb[0].mxu0
        %v1512 = vpop.f32.mrb[0].mxu0
        %v1513 = vadd.f32 %v1211, %v1512
        %v1514 = vpop.f32.mrb[0].mxu0
        %1515 = vmatprep.mubr.bf16.mxu0 %v1409
        %1516 = vmatmul.mubr.bf16.gmra.mrb[0].mxu0 %v728
        %v1517 = vpop.f32.mrb[0].mxu0
        %v1518 = vadd.f32 %v1216, %v1517
        %v1519 = vpop.f32.mrb[0].mxu0
        %v1520 = vpop.f32.mrb[0].mxu0
        %v1521 = vadd.f32 %v1219, %v1520
        %v1522 = vpop.f32.mrb[0].mxu0
        %1523 = vmatprep.mubr.bf16.mxu0 %v1412
        %1524 = vmatmul.mubr.bf16.gmra.mrb[0].mxu0 %v730
        %v1525 = vpop.f32.mrb[0].mxu0
        %v1526 = vadd.f32 %v1224, %v1525
        %v1527 = vpop.f32.mrb[0].mxu0
        %v1528 = vpop.f32.mrb[0].mxu0
        %v1529 = vpop.f32.mrb[0].mxu0
        %1530 = vdwg.mxu0
        %s1531 = scalar_lea.vmem %s1, 80
        %v1532 = vld [vmem:[%s1531] sm:$0xff]
        %v1533 = vld [vmem:[%s1531 + $0x8] sm:$0xff]
        %v1534 = vld [vmem:[%s1531 + $0x10] sm:$0xff]
        %v1535 = vld [vmem:[%s1531 + $0x18] sm:$0xff]
        %v1536 = vld [vmem:[%s1531 + $0x20] sm:$0xff]
        %v1542 = vunpack.c.l.b16 %v1532
        %v1543 = vunpack.c.h.b16 %v1532
        %v1544 = vunpack.c.l.b16 %v1533
        %v1545 = vunpack.c.h.b16 %v1533
        %v1546 = vunpack.c.l.b16 %v1534
        %v1547 = vunpack.c.h.b16 %v1534
        %v1548 = vunpack.c.l.b16 %v1535
        %v1549 = vunpack.c.h.b16 %v1535
        %v1550 = vunpack.c.l.b16 %v1536
        %v1551 = vunpack.c.h.b16 %v1536
        %v1552 = vpack.c.b16 %v1544, %v1542
        %v1553 = vpack.c.b16 %v1545, %v1543
        %v1554 = vpack.c.b16 %v1548, %v1546
        %v1555 = vpack.c.b16 %v1549, %v1547
        %v1556 = vpack.c.b16 %v1550, %v1550
        %v1557 = vpack.c.b16 %v1551, %v1551
        %v1562 = vsel %vm655, %v1553, 0
        %v1565 = vsel %vm655, %v1555, 0
        %v1568 = vsel %vm655, %v1557, 0
        %1570 = vmatprep.subr.bf16.mxu0 %v612
        %1571 = vmatpush1.bf16.msra.mxu0 %v611
        %1572 = vmatprep.subr.bf16.mxu0 %v614
        %1573 = vmatpush1.bf16.msra.mxu0 %v613
        %1574 = vmatprep.subr.bf16.mxu0 %v616
        %1575 = vmatpush1.bf16.msra.mxu0 %v615
        %1576 = vmatprep.subr.bf16.mxu0 %v618
        %1577 = vmatpush1.bf16.msra.mxu0 %v617
        %1578 = vmatprep.subr.bf16.mxu0 %v620
        %1579 = vmatpush1.bf16.msra.mxu0 %v619
        %1580 = vmatprep.subr.bf16.mxu0 %v622
        %1581 = vmatpush1.bf16.msra.mxu0 %v621
        %1582 = vmatprep.subr.bf16.mxu0 %v624
        %1583 = vmatpush1.bf16.msra.mxu0 %v623
        %1584 = vmatprep.subr.bf16.mxu0 %v626
        %1585 = vmatpush1.bf16.msra.mxu0 %v625
        %1586 = vmatprep.subr.bf16.mxu0 %v628
        %1587 = vmatpush1.bf16.msra.mxu0 %v627
        %1588 = vmatprep.subr.bf16.mxu0 %v630
        %1589 = vmatpush1.bf16.msra.mxu0 %v629
        %1590 = vmatprep.subr.bf16.mxu0 %v632
        %1591 = vmatpush1.bf16.msra.mxu0 %v631
        %1592 = vmatprep.subr.bf16.mxu0 0
        %1593 = vmatpush1.bf16.msra.mxu0 0
        %1594 = vmatprep.subr.bf16.mxu0 0
        %1595 = vmatpush1.bf16.msra.mxu0 0
        %1596 = vmatprep.subr.bf16.mxu0 0
        %1597 = vmatpush1.bf16.msra.mxu0 0
        %1598 = vmatprep.subr.bf16.mxu0 0
        %1599 = vmatpush1.bf16.msra.mxu0 0
        %1600 = vmatprep.subr.bf16.mxu0 0
        %1601 = vmatpush1.bf16.msra.mxu0 0
        %1602 = vmatprep.mubr.bf16.mxu0 %v1562
        %1603 = vmatmul.mubr.bf16.gmra.mrb[0].mxu0 %v1552
        %v1604 = vpop.f32.mrb[0].mxu0
        %v1605 = vadd.f32 0.0, %v1604
        %v1606 = vpop.f32.mrb[0].mxu0
        %v1607 = vadd.f32 0.0, %v1606
        %v1608 = vpop.f32.mrb[0].mxu0
        %v1609 = vadd.f32 0.0, %v1608
        %v1610 = vpop.f32.mrb[0].mxu0
        %v1611 = vadd.f32 0.0, %v1610
        %1612 = vmatprep.mubr.bf16.mxu0 %v1565
        %1613 = vmatmul.mubr.bf16.gmra.mrb[0].mxu0 %v1554
        %v1614 = vpop.f32.mrb[0].mxu0
        %v1615 = vadd.f32 0.0, %v1614
        %v1616 = vpop.f32.mrb[0].mxu0
        %v1617 = vadd.f32 0.0, %v1616
        %v1618 = vpop.f32.mrb[0].mxu0
        %v1619 = vadd.f32 0.0, %v1618
        %v1620 = vpop.f32.mrb[0].mxu0
        %v1621 = vadd.f32 0.0, %v1620
        %1622 = vmatprep.mubr.bf16.mxu0 %v1568
        %1623 = vmatmul.mubr.bf16.gmra.mrb[0].mxu0 %v1556
        %v1624 = vpop.f32.mrb[0].mxu0
        %v1625 = vadd.f32 0.0, %v1624
        %v1626 = vpop.f32.mrb[0].mxu0
        %v1627 = vadd.f32 0.0, %v1626
        %v1628 = vpop.f32.mrb[0].mxu0
        %v1629 = vpop.f32.mrb[0].mxu0
        %1630 = vdwg.mxu0
        %v1631 = vpack.c.bf16 %v1609, %v1605
        %v1632 = vpack.c.bf16 %v1611, %v1607
        %v1633 = vpack.c.bf16 %v1619, %v1615
        %v1634 = vpack.c.bf16 %v1621, %v1617
        %v1635 = vpack.c.bf16 %v1625, %v1625
        %v1636 = vpack.c.bf16 %v1627, %v1627
        %s1637 = scalar_lea.vmem %s2, 528
        %v1638 = vld [vmem:[%s1637] sm:$0xff]
        %v1639 = vld [vmem:[%s1637 + $0x8] sm:$0xf]
        %v1640 = vld [vmem:[%s1637 + $0xc] sm:$0xff]
        %v1641 = vld [vmem:[%s1637 + $0x14] sm:$0xf]
        %v1642 = vld [vmem:[%s1637 + $0x18] sm:$0xff]
        %v1643 = vld [vmem:[%s1637 + $0x20] sm:$0xf]
        %v1644 = vld [vmem:[%s1637 + $0x24] sm:$0xff]
        %v1645 = vld [vmem:[%s1637 + $0x2c] sm:$0xf]
        %v1646 = vld [vmem:[%s1637 + $0x30] sm:$0xff]
        %v1647 = vld [vmem:[%s1637 + $0x38] sm:$0xf]
        %v1648 = vld [vmem:[%s1637 + $0x3c] sm:$0xff]
        %v1649 = vld [vmem:[%s1637 + $0x44] sm:$0xf]
        %v1650 = vld [vmem:[%s1637 + $0x48] sm:$0xff]
        %v1651 = vld [vmem:[%s1637 + $0x50] sm:$0xf]
        %v1652 = vld [vmem:[%s1637 + $0x54] sm:$0xff]
        %v1653 = vld [vmem:[%s1637 + $0x5c] sm:$0xf]
        %v1654 = vld [vmem:[%s1637 + $0x60] sm:$0xff]
        %v1655 = vld [vmem:[%s1637 + $0x68] sm:$0xf]
        %v1656 = vld [vmem:[%s1637 + $0x6c] sm:$0xff]
        %v1657 = vld [vmem:[%s1637 + $0x74] sm:$0xf]
        %v1658 = vld [vmem:[%s1637 + $0x78] sm:$0xff]
        %v1659 = vld [vmem:[%s1637 + $0x80] sm:$0xf]
        %v1660 = vld [vmem:[%s1637 + $0x84] sm:$0xff]
        %v1661 = vld [vmem:[%s1637 + $0x8c] sm:$0xf]
        %v1662 = vld [vmem:[%s1637 + $0x90] sm:$0xff]
        %v1663 = vld [vmem:[%s1637 + $0x98] sm:$0xf]
        %v1664 = vld [vmem:[%s1637 + $0x9c] sm:$0xff]
        %v1665 = vld [vmem:[%s1637 + $0xa4] sm:$0xf]
        %v1666 = vld [vmem:[%s1637 + $0xa8] sm:$0xff]
        %v1667 = vld [vmem:[%s1637 + $0xb0] sm:$0xf]
        %v1668 = vld [vmem:[%s1637 + $0xb4] sm:$0xff]
        %v1669 = vld [vmem:[%s1637 + $0xbc] sm:$0xf]
        %v1670 = vld [vmem:[%s1637 + $0xc0] sm:$0xff]
        %v1671 = vld [vmem:[%s1637 + $0xc8] sm:$0xf]
        %v1672 = vld [vmem:[%s1637 + $0xcc] sm:$0xff]
        %v1673 = vld [vmem:[%s1637 + $0xd4] sm:$0xf]
        %v1674 = vld [vmem:[%s1637 + $0xd8] sm:$0xff]
        %v1675 = vld [vmem:[%s1637 + $0xe0] sm:$0xf]
        %v1676 = vld [vmem:[%s1637 + $0xe4] sm:$0xff]
        %v1677 = vld [vmem:[%s1637 + $0xec] sm:$0xf]
        %v1678 = vld [vmem:[%s1637 + $0xf0] sm:$0xff]
        %v1679 = vld [vmem:[%s1637 + $0xf8] sm:$0xf]
        %v1680 = vld [vmem:[%s1637 + $0xfc] sm:$0xff]
        %v1681 = vld [vmem:[%s1637 + $0x104] sm:$0xf]
        %v1726 = vunpack.c.l.b16 %v1638
        %v1727 = vunpack.c.h.b16 %v1638
        %v1728 = vunpack.c.l.b16 %v1639
        %v1729 = vunpack.c.l.b16 %v1640
        %v1730 = vunpack.c.h.b16 %v1640
        %v1731 = vunpack.c.l.b16 %v1641
        %v1732 = vunpack.c.l.b16 %v1642
        %v1733 = vunpack.c.h.b16 %v1642
        %v1734 = vunpack.c.l.b16 %v1643
        %v1735 = vunpack.c.l.b16 %v1644
        %v1736 = vunpack.c.h.b16 %v1644
        %v1737 = vunpack.c.l.b16 %v1645
        %v1738 = vunpack.c.l.b16 %v1646
        %v1739 = vunpack.c.h.b16 %v1646
        %v1740 = vunpack.c.l.b16 %v1647
        %v1741 = vunpack.c.l.b16 %v1648
        %v1742 = vunpack.c.h.b16 %v1648
        %v1743 = vunpack.c.l.b16 %v1649
        %v1744 = vunpack.c.l.b16 %v1650
        %v1745 = vunpack.c.h.b16 %v1650
        %v1746 = vunpack.c.l.b16 %v1651
        %v1747 = vunpack.c.l.b16 %v1652
        %v1748 = vunpack.c.h.b16 %v1652
        %v1749 = vunpack.c.l.b16 %v1653
        %v1750 = vunpack.c.l.b16 %v1654
        %v1751 = vunpack.c.h.b16 %v1654
        %v1752 = vunpack.c.l.b16 %v1655
        %v1753 = vunpack.c.l.b16 %v1656
        %v1754 = vunpack.c.h.b16 %v1656
        %v1755 = vunpack.c.l.b16 %v1657
        %v1756 = vunpack.c.l.b16 %v1658
        %v1757 = vunpack.c.h.b16 %v1658
        %v1758 = vunpack.c.l.b16 %v1659
        %v1759 = vunpack.c.l.b16 %v1660
        %v1760 = vunpack.c.h.b16 %v1660
        %v1761 = vunpack.c.l.b16 %v1661
        %v1762 = vunpack.c.l.b16 %v1662
        %v1763 = vunpack.c.h.b16 %v1662
        %v1764 = vunpack.c.l.b16 %v1663
        %v1765 = vunpack.c.l.b16 %v1664
        %v1766 = vunpack.c.h.b16 %v1664
        %v1767 = vunpack.c.l.b16 %v1665
        %v1768 = vunpack.c.l.b16 %v1666
        %v1769 = vunpack.c.h.b16 %v1666
        %v1770 = vunpack.c.l.b16 %v1667
        %v1771 = vunpack.c.l.b16 %v1668
        %v1772 = vunpack.c.h.b16 %v1668
        %v1773 = vunpack.c.l.b16 %v1669
        %v1774 = vunpack.c.l.b16 %v1670
        %v1775 = vunpack.c.h.b16 %v1670
        %v1776 = vunpack.c.l.b16 %v1671
        %v1777 = vunpack.c.l.b16 %v1672
        %v1778 = vunpack.c.h.b16 %v1672
        %v1779 = vunpack.c.l.b16 %v1673
        %v1780 = vunpack.c.l.b16 %v1674
        %v1781 = vunpack.c.h.b16 %v1674
        %v1782 = vunpack.c.l.b16 %v1675
        %v1783 = vunpack.c.l.b16 %v1676
        %v1784 = vunpack.c.h.b16 %v1676
        %v1785 = vunpack.c.l.b16 %v1677
        %v1786 = vunpack.c.l.b16 %v1678
        %v1787 = vunpack.c.h.b16 %v1678
        %v1788 = vunpack.c.l.b16 %v1679
        %v1789 = vunpack.c.l.b16 %v1680
        %v1790 = vunpack.c.h.b16 %v1680
        %v1791 = vunpack.c.l.b16 %v1681
        %v1792 = vpack.c.b16 %v1729, %v1726
        %v1793 = vpack.c.b16 %v1730, %v1727
        %v1794 = vpack.c.b16 %v1731, %v1728
        %v1795 = vpack.c.b16 %v1735, %v1732
        %v1796 = vpack.c.b16 %v1736, %v1733
        %v1797 = vpack.c.b16 %v1737, %v1734
        %v1798 = vpack.c.b16 %v1741, %v1738
        %v1799 = vpack.c.b16 %v1742, %v1739
        %v1800 = vpack.c.b16 %v1743, %v1740
        %v1801 = vpack.c.b16 %v1747, %v1744
        %v1802 = vpack.c.b16 %v1748, %v1745
        %v1803 = vpack.c.b16 %v1749, %v1746
        %v1804 = vpack.c.b16 %v1753, %v1750
        %v1805 = vpack.c.b16 %v1754, %v1751
        %v1806 = vpack.c.b16 %v1755, %v1752
        %v1807 = vpack.c.b16 %v1759, %v1756
        %v1808 = vpack.c.b16 %v1760, %v1757
        %v1809 = vpack.c.b16 %v1761, %v1758
        %v1810 = vpack.c.b16 %v1765, %v1762
        %v1811 = vpack.c.b16 %v1766, %v1763
        %v1812 = vpack.c.b16 %v1767, %v1764
        %v1813 = vpack.c.b16 %v1771, %v1768
        %v1814 = vpack.c.b16 %v1772, %v1769
        %v1815 = vpack.c.b16 %v1773, %v1770
        %v1816 = vpack.c.b16 %v1777, %v1774
        %v1817 = vpack.c.b16 %v1778, %v1775
        %v1818 = vpack.c.b16 %v1779, %v1776
        %v1819 = vpack.c.b16 %v1783, %v1780
        %v1820 = vpack.c.b16 %v1784, %v1781
        %v1821 = vpack.c.b16 %v1785, %v1782
        %v1822 = vpack.c.b16 %v1789, %v1786
        %v1823 = vpack.c.b16 %v1790, %v1787
        %v1824 = vpack.c.b16 %v1791, %v1788
        %v1859 = vsel %vm655, %v1632, 0
        %v1862 = vsel %vm655, %v1634, 0
        %v1865 = vsel %vm655, %v1636, 0
        %1867 = vmatprep.subr.bf16.mxu0 %v1793
        %1868 = vmatpush1.bf16.msra.mxu0 %v1792
        %1869 = vmatprep.subr.bf16.mxu0 %v1796
        %1870 = vmatpush1.bf16.msra.mxu0 %v1795
        %1871 = vmatprep.subr.bf16.mxu0 %v1799
        %1872 = vmatpush1.bf16.msra.mxu0 %v1798
        %1873 = vmatprep.subr.bf16.mxu0 %v1802
        %1874 = vmatpush1.bf16.msra.mxu0 %v1801
        %1875 = vmatprep.subr.bf16.mxu0 %v1805
        %1876 = vmatpush1.bf16.msra.mxu0 %v1804
        %1877 = vmatprep.subr.bf16.mxu0 %v1808
        %1878 = vmatpush1.bf16.msra.mxu0 %v1807
        %1879 = vmatprep.subr.bf16.mxu0 %v1811
        %1880 = vmatpush1.bf16.msra.mxu0 %v1810
        %1881 = vmatprep.subr.bf16.mxu0 %v1814
        %1882 = vmatpush1.bf16.msra.mxu0 %v1813
        %1883 = vmatprep.subr.bf16.mxu0 %v1817
        %1884 = vmatpush1.bf16.msra.mxu0 %v1816
        %1885 = vmatprep.subr.bf16.mxu0 %v1820
        %1886 = vmatpush1.bf16.msra.mxu0 %v1819
        %1887 = vmatprep.subr.bf16.mxu0 %v1823
        %1888 = vmatpush1.bf16.msra.mxu0 %v1822
        %1889 = vmatprep.subr.bf16.mxu0 0
        %1890 = vmatpush1.bf16.msra.mxu0 0
        %1891 = vmatprep.subr.bf16.mxu0 0
        %1892 = vmatpush1.bf16.msra.mxu0 0
        %1893 = vmatprep.subr.bf16.mxu0 0
        %1894 = vmatpush1.bf16.msra.mxu0 0
        %1895 = vmatprep.subr.bf16.mxu0 0
        %1896 = vmatpush1.bf16.msra.mxu0 0
        %1897 = vmatprep.subr.bf16.mxu0 0
        %1898 = vmatpush1.bf16.msra.mxu0 0
        %1899 = vmatprep.mubr.bf16.mxu0 %v1859
        %1900 = vmatmul.mubr.bf16.gmra.mrb[0].mxu0 %v1631
        %v1901 = vpop.f32.mrb[0].mxu0
        %v1902 = vadd.f32 0.0, %v1901
        %v1903 = vpop.f32.mrb[0].mxu0
        %v1904 = vadd.f32 0.0, %v1903
        %v1905 = vpop.f32.mrb[0].mxu0
        %v1906 = vadd.f32 0.0, %v1905
        %v1907 = vpop.f32.mrb[0].mxu0
        %v1908 = vadd.f32 0.0, %v1907
        %1909 = vmatprep.mubr.bf16.mxu0 %v1862
        %1910 = vmatmul.mubr.bf16.gmra.mrb[0].mxu0 %v1633
        %v1911 = vpop.f32.mrb[0].mxu0
        %v1912 = vadd.f32 0.0, %v1911
        %v1913 = vpop.f32.mrb[0].mxu0
        %v1914 = vadd.f32 0.0, %v1913
        %v1915 = vpop.f32.mrb[0].mxu0
        %v1916 = vadd.f32 0.0, %v1915
        %v1917 = vpop.f32.mrb[0].mxu0
        %v1918 = vadd.f32 0.0, %v1917
        %1919 = vmatprep.mubr.bf16.mxu0 %v1865
        %1920 = vmatmul.mubr.bf16.gmra.mrb[0].mxu0 %v1635
        %v1921 = vpop.f32.mrb[0].mxu0
        %v1922 = vadd.f32 0.0, %v1921
        %v1923 = vpop.f32.mrb[0].mxu0
        %v1924 = vadd.f32 0.0, %v1923
        %v1925 = vpop.f32.mrb[0].mxu0
        %v1926 = vpop.f32.mrb[0].mxu0
        %1927 = vdwg.mxu0
        %1928 = vmatprep.subr.bf16.mxu0 0
        %1929 = vmatpush1.bf16.msra.mxu0 %v1794
        %1930 = vmatprep.subr.bf16.mxu0 0
        %1931 = vmatpush1.bf16.msra.mxu0 %v1797
        %1932 = vmatprep.subr.bf16.mxu0 0
        %1933 = vmatpush1.bf16.msra.mxu0 %v1800
        %1934 = vmatprep.subr.bf16.mxu0 0
        %1935 = vmatpush1.bf16.msra.mxu0 %v1803
        %1936 = vmatprep.subr.bf16.mxu0 0
        %1937 = vmatpush1.bf16.msra.mxu0 %v1806
        %1938 = vmatprep.subr.bf16.mxu0 0
        %1939 = vmatpush1.bf16.msra.mxu0 %v1809
        %1940 = vmatprep.subr.bf16.mxu0 0
        %1941 = vmatpush1.bf16.msra.mxu0 %v1812
        %1942 = vmatprep.subr.bf16.mxu0 0
        %1943 = vmatpush1.bf16.msra.mxu0 %v1815
        %1944 = vmatprep.subr.bf16.mxu0 0
        %1945 = vmatpush1.bf16.msra.mxu0 %v1818
        %1946 = vmatprep.subr.bf16.mxu0 0
        %1947 = vmatpush1.bf16.msra.mxu0 %v1821
        %1948 = vmatprep.subr.bf16.mxu0 0
        %1949 = vmatpush1.bf16.msra.mxu0 %v1824
        %1950 = vmatprep.subr.bf16.mxu0 0
        %1951 = vmatpush1.bf16.msra.mxu0 0
        %1952 = vmatprep.subr.bf16.mxu0 0
        %1953 = vmatpush1.bf16.msra.mxu0 0
        %1954 = vmatprep.subr.bf16.mxu0 0
        %1955 = vmatpush1.bf16.msra.mxu0 0
        %1956 = vmatprep.subr.bf16.mxu0 0
        %1957 = vmatpush1.bf16.msra.mxu0 0
        %1958 = vmatprep.subr.bf16.mxu0 0
        %1959 = vmatpush1.bf16.msra.mxu0 0
        %1960 = vmatprep.mubr.bf16.mxu0 %v1859
        %1961 = vmatmul.mubr.bf16.gmra.mrb[0].mxu0 %v1631
        %v1962 = vpop.f32.mrb[0].mxu0
        %v1963 = vadd.f32 0.0, %v1962
        %v1964 = vpop.f32.mrb[0].mxu0
        %v1965 = vpop.f32.mrb[0].mxu0
        %v1966 = vadd.f32 0.0, %v1965
        %v1967 = vpop.f32.mrb[0].mxu0
        %1968 = vmatprep.mubr.bf16.mxu0 %v1862
        %1969 = vmatmul.mubr.bf16.gmra.mrb[0].mxu0 %v1633
        %v1970 = vpop.f32.mrb[0].mxu0
        %v1971 = vadd.f32 0.0, %v1970
        %v1972 = vpop.f32.mrb[0].mxu0
        %v1973 = vpop.f32.mrb[0].mxu0
        %v1974 = vadd.f32 0.0, %v1973
        %v1975 = vpop.f32.mrb[0].mxu0
        %1976 = vmatprep.mubr.bf16.mxu0 %v1865
        %1977 = vmatmul.mubr.bf16.gmra.mrb[0].mxu0 %v1635
        %v1978 = vpop.f32.mrb[0].mxu0
        %v1979 = vadd.f32 0.0, %v1978
        %v1980 = vpop.f32.mrb[0].mxu0
        %v1981 = vpop.f32.mrb[0].mxu0
        %v1982 = vpop.f32.mrb[0].mxu0
        %1983 = vdwg.mxu0
        %v1984 = vadd.f32 %v1449, %v1902
        %v1985 = vadd.f32 %v1451, %v1904
        %v1986 = vadd.f32 %v1510, %v1963
        %v1987 = vadd.f32 %v1453, %v1906
        %v1988 = vadd.f32 %v1455, %v1908
        %v1989 = vadd.f32 %v1513, %v1966
        %v1990 = vadd.f32 %v1459, %v1912
        %v1991 = vadd.f32 %v1461, %v1914
        %v1992 = vadd.f32 %v1518, %v1971
        %v1993 = vadd.f32 %v1463, %v1916
        %v1994 = vadd.f32 %v1465, %v1918
        %v1995 = vadd.f32 %v1521, %v1974
        %v1996 = vadd.f32 %v1469, %v1922
        %v1997 = vadd.f32 %v1471, %v1924
        %v1998 = vadd.f32 %v1526, %v1979
        %s1999 = scalar_lea.vmem %s1, 120
        %v2000 = vld [vmem:[%s1999] sm:$0xff]
        %v2001 = vld [vmem:[%s1999 + $0x8] sm:$0xff]
        %v2002 = vld [vmem:[%s1999 + $0x10] sm:$0xff]
        %v2003 = vld [vmem:[%s1999 + $0x18] sm:$0xff]
        %v2004 = vld [vmem:[%s1999 + $0x20] sm:$0xff]
        %v2010 = vunpack.c.l.b16 %v2000
        %v2011 = vunpack.c.h.b16 %v2000
        %v2012 = vunpack.c.l.b16 %v2001
        %v2013 = vunpack.c.h.b16 %v2001
        %v2014 = vunpack.c.l.b16 %v2002
        %v2015 = vunpack.c.h.b16 %v2002
        %v2016 = vunpack.c.l.b16 %v2003
        %v2017 = vunpack.c.h.b16 %v2003
        %v2018 = vunpack.c.l.b16 %v2004
        %v2019 = vunpack.c.h.b16 %v2004
        %v2020 = vpack.c.b16 %v2012, %v2010
        %v2021 = vpack.c.b16 %v2013, %v2011
        %v2022 = vpack.c.b16 %v2016, %v2014
        %v2023 = vpack.c.b16 %v2017, %v2015
        %v2024 = vpack.c.b16 %v2018, %v2018
        %v2025 = vpack.c.b16 %v2019, %v2019
        %v2030 = vsel %vm655, %v2021, 0
        %v2033 = vsel %vm655, %v2023, 0
        %v2036 = vsel %vm655, %v2025, 0
        %2038 = vmatprep.subr.bf16.mxu0 %v612
        %2039 = vmatpush1.bf16.msra.mxu0 %v611
        %2040 = vmatprep.subr.bf16.mxu0 %v614
        %2041 = vmatpush1.bf16.msra.mxu0 %v613
        %2042 = vmatprep.subr.bf16.mxu0 %v616
        %2043 = vmatpush1.bf16.msra.mxu0 %v615
        %2044 = vmatprep.subr.bf16.mxu0 %v618
        %2045 = vmatpush1.bf16.msra.mxu0 %v617
        %2046 = vmatprep.subr.bf16.mxu0 %v620
        %2047 = vmatpush1.bf16.msra.mxu0 %v619
        %2048 = vmatprep.subr.bf16.mxu0 %v622
        %2049 = vmatpush1.bf16.msra.mxu0 %v621
        %2050 = vmatprep.subr.bf16.mxu0 %v624
        %2051 = vmatpush1.bf16.msra.mxu0 %v623
        %2052 = vmatprep.subr.bf16.mxu0 %v626
        %2053 = vmatpush1.bf16.msra.mxu0 %v625
        %2054 = vmatprep.subr.bf16.mxu0 %v628
        %2055 = vmatpush1.bf16.msra.mxu0 %v627
        %2056 = vmatprep.subr.bf16.mxu0 %v630
        %2057 = vmatpush1.bf16.msra.mxu0 %v629
        %2058 = vmatprep.subr.bf16.mxu0 %v632
        %2059 = vmatpush1.bf16.msra.mxu0 %v631
        %2060 = vmatprep.subr.bf16.mxu0 0
        %2061 = vmatpush1.bf16.msra.mxu0 0
        %2062 = vmatprep.subr.bf16.mxu0 0
        %2063 = vmatpush1.bf16.msra.mxu0 0
        %2064 = vmatprep.subr.bf16.mxu0 0
        %2065 = vmatpush1.bf16.msra.mxu0 0
        %2066 = vmatprep.subr.bf16.mxu0 0
        %2067 = vmatpush1.bf16.msra.mxu0 0
        %2068 = vmatprep.subr.bf16.mxu0 0
        %2069 = vmatpush1.bf16.msra.mxu0 0
        %2070 = vmatprep.mubr.bf16.mxu0 %v2030
        %2071 = vmatmul.mubr.bf16.gmra.mrb[0].mxu0 %v2020
        %v2072 = vpop.f32.mrb[0].mxu0
        %v2073 = vadd.f32 0.0, %v2072
        %v2074 = vpop.f32.mrb[0].mxu0
        %v2075 = vadd.f32 0.0, %v2074
        %v2076 = vpop.f32.mrb[0].mxu0
        %v2077 = vadd.f32 0.0, %v2076
        %v2078 = vpop.f32.mrb[0].mxu0
        %v2079 = vadd.f32 0.0, %v2078
        %2080 = vmatprep.mubr.bf16.mxu0 %v2033
        %2081 = vmatmul.mubr.bf16.gmra.mrb[0].mxu0 %v2022
        %v2082 = vpop.f32.mrb[0].mxu0
        %v2083 = vadd.f32 0.0, %v2082
        %v2084 = vpop.f32.mrb[0].mxu0
        %v2085 = vadd.f32 0.0, %v2084
        %v2086 = vpop.f32.mrb[0].mxu0
        %v2087 = vadd.f32 0.0, %v2086
        %v2088 = vpop.f32.mrb[0].mxu0
        %v2089 = vadd.f32 0.0, %v2088
        %2090 = vmatprep.mubr.bf16.mxu0 %v2036
        %2091 = vmatmul.mubr.bf16.gmra.mrb[0].mxu0 %v2024
        %v2092 = vpop.f32.mrb[0].mxu0
        %v2093 = vadd.f32 0.0, %v2092
        %v2094 = vpop.f32.mrb[0].mxu0
        %v2095 = vadd.f32 0.0, %v2094
        %v2096 = vpop.f32.mrb[0].mxu0
        %v2097 = vpop.f32.mrb[0].mxu0
        %2098 = vdwg.mxu0
        %v2099 = vpack.c.bf16 %v2077, %v2073
        %v2100 = vpack.c.bf16 %v2079, %v2075
        %v2101 = vpack.c.bf16 %v2087, %v2083
        %v2102 = vpack.c.bf16 %v2089, %v2085
        %v2103 = vpack.c.bf16 %v2093, %v2093
        %v2104 = vpack.c.bf16 %v2095, %v2095
        %s2105 = scalar_lea.vmem %s2, 792
        %v2106 = vld [vmem:[%s2105] sm:$0xff]
        %v2107 = vld [vmem:[%s2105 + $0x8] sm:$0xf]
        %v2108 = vld [vmem:[%s2105 + $0xc] sm:$0xff]
        %v2109 = vld [vmem:[%s2105 + $0x14] sm:$0xf]
        %v2110 = vld [vmem:[%s2105 + $0x18] sm:$0xff]
        %v2111 = vld [vmem:[%s2105 + $0x20] sm:$0xf]
        %v2112 = vld [vmem:[%s2105 + $0x24] sm:$0xff]
        %v2113 = vld [vmem:[%s2105 + $0x2c] sm:$0xf]
        %v2114 = vld [vmem:[%s2105 + $0x30] sm:$0xff]
        %v2115 = vld [vmem:[%s2105 + $0x38] sm:$0xf]
        %v2116 = vld [vmem:[%s2105 + $0x3c] sm:$0xff]
        %v2117 = vld [vmem:[%s2105 + $0x44] sm:$0xf]
        %v2118 = vld [vmem:[%s2105 + $0x48] sm:$0xff]
        %v2119 = vld [vmem:[%s2105 + $0x50] sm:$0xf]
        %v2120 = vld [vmem:[%s2105 + $0x54] sm:$0xff]
        %v2121 = vld [vmem:[%s2105 + $0x5c] sm:$0xf]
        %v2122 = vld [vmem:[%s2105 + $0x60] sm:$0xff]
        %v2123 = vld [vmem:[%s2105 + $0x68] sm:$0xf]
        %v2124 = vld [vmem:[%s2105 + $0x6c] sm:$0xff]
        %v2125 = vld [vmem:[%s2105 + $0x74] sm:$0xf]
        %v2126 = vld [vmem:[%s2105 + $0x78] sm:$0xff]
        %v2127 = vld [vmem:[%s2105 + $0x80] sm:$0xf]
        %v2128 = vld [vmem:[%s2105 + $0x84] sm:$0xff]
        %v2129 = vld [vmem:[%s2105 + $0x8c] sm:$0xf]
        %v2130 = vld [vmem:[%s2105 + $0x90] sm:$0xff]
        %v2131 = vld [vmem:[%s2105 + $0x98] sm:$0xf]
        %v2132 = vld [vmem:[%s2105 + $0x9c] sm:$0xff]
        %v2133 = vld [vmem:[%s2105 + $0xa4] sm:$0xf]
        %v2134 = vld [vmem:[%s2105 + $0xa8] sm:$0xff]
        %v2135 = vld [vmem:[%s2105 + $0xb0] sm:$0xf]
        %v2136 = vld [vmem:[%s2105 + $0xb4] sm:$0xff]
        %v2137 = vld [vmem:[%s2105 + $0xbc] sm:$0xf]
        %v2138 = vld [vmem:[%s2105 + $0xc0] sm:$0xff]
        %v2139 = vld [vmem:[%s2105 + $0xc8] sm:$0xf]
        %v2140 = vld [vmem:[%s2105 + $0xcc] sm:$0xff]
        %v2141 = vld [vmem:[%s2105 + $0xd4] sm:$0xf]
        %v2142 = vld [vmem:[%s2105 + $0xd8] sm:$0xff]
        %v2143 = vld [vmem:[%s2105 + $0xe0] sm:$0xf]
        %v2144 = vld [vmem:[%s2105 + $0xe4] sm:$0xff]
        %v2145 = vld [vmem:[%s2105 + $0xec] sm:$0xf]
        %v2146 = vld [vmem:[%s2105 + $0xf0] sm:$0xff]
        %v2147 = vld [vmem:[%s2105 + $0xf8] sm:$0xf]
        %v2148 = vld [vmem:[%s2105 + $0xfc] sm:$0xff]
        %v2149 = vld [vmem:[%s2105 + $0x104] sm:$0xf]
        %v2194 = vunpack.c.l.b16 %v2106
        %v2195 = vunpack.c.h.b16 %v2106
        %v2196 = vunpack.c.l.b16 %v2107
        %v2197 = vunpack.c.l.b16 %v2108
        %v2198 = vunpack.c.h.b16 %v2108
        %v2199 = vunpack.c.l.b16 %v2109
        %v2200 = vunpack.c.l.b16 %v2110
        %v2201 = vunpack.c.h.b16 %v2110
        %v2202 = vunpack.c.l.b16 %v2111
        %v2203 = vunpack.c.l.b16 %v2112
        %v2204 = vunpack.c.h.b16 %v2112
        %v2205 = vunpack.c.l.b16 %v2113
        %v2206 = vunpack.c.l.b16 %v2114
        %v2207 = vunpack.c.h.b16 %v2114
        %v2208 = vunpack.c.l.b16 %v2115
        %v2209 = vunpack.c.l.b16 %v2116
        %v2210 = vunpack.c.h.b16 %v2116
        %v2211 = vunpack.c.l.b16 %v2117
        %v2212 = vunpack.c.l.b16 %v2118
        %v2213 = vunpack.c.h.b16 %v2118
        %v2214 = vunpack.c.l.b16 %v2119
        %v2215 = vunpack.c.l.b16 %v2120
        %v2216 = vunpack.c.h.b16 %v2120
        %v2217 = vunpack.c.l.b16 %v2121
        %v2218 = vunpack.c.l.b16 %v2122
        %v2219 = vunpack.c.h.b16 %v2122
        %v2220 = vunpack.c.l.b16 %v2123
        %v2221 = vunpack.c.l.b16 %v2124
        %v2222 = vunpack.c.h.b16 %v2124
        %v2223 = vunpack.c.l.b16 %v2125
        %v2224 = vunpack.c.l.b16 %v2126
        %v2225 = vunpack.c.h.b16 %v2126
        %v2226 = vunpack.c.l.b16 %v2127
        %v2227 = vunpack.c.l.b16 %v2128
        %v2228 = vunpack.c.h.b16 %v2128
        %v2229 = vunpack.c.l.b16 %v2129
        %v2230 = vunpack.c.l.b16 %v2130
        %v2231 = vunpack.c.h.b16 %v2130
        %v2232 = vunpack.c.l.b16 %v2131
        %v2233 = vunpack.c.l.b16 %v2132
        %v2234 = vunpack.c.h.b16 %v2132
        %v2235 = vunpack.c.l.b16 %v2133
        %v2236 = vunpack.c.l.b16 %v2134
        %v2237 = vunpack.c.h.b16 %v2134
        %v2238 = vunpack.c.l.b16 %v2135
        %v2239 = vunpack.c.l.b16 %v2136
        %v2240 = vunpack.c.h.b16 %v2136
        %v2241 = vunpack.c.l.b16 %v2137
        %v2242 = vunpack.c.l.b16 %v2138
        %v2243 = vunpack.c.h.b16 %v2138
        %v2244 = vunpack.c.l.b16 %v2139
        %v2245 = vunpack.c.l.b16 %v2140
        %v2246 = vunpack.c.h.b16 %v2140
        %v2247 = vunpack.c.l.b16 %v2141
        %v2248 = vunpack.c.l.b16 %v2142
        %v2249 = vunpack.c.h.b16 %v2142
        %v2250 = vunpack.c.l.b16 %v2143
        %v2251 = vunpack.c.l.b16 %v2144
        %v2252 = vunpack.c.h.b16 %v2144
        %v2253 = vunpack.c.l.b16 %v2145
        %v2254 = vunpack.c.l.b16 %v2146
        %v2255 = vunpack.c.h.b16 %v2146
        %v2256 = vunpack.c.l.b16 %v2147
        %v2257 = vunpack.c.l.b16 %v2148
        %v2258 = vunpack.c.h.b16 %v2148
        %v2259 = vunpack.c.l.b16 %v2149
        %v2260 = vpack.c.b16 %v2197, %v2194
        %v2261 = vpack.c.b16 %v2198, %v2195
        %v2262 = vpack.c.b16 %v2199, %v2196
        %v2263 = vpack.c.b16 %v2203, %v2200
        %v2264 = vpack.c.b16 %v2204, %v2201
        %v2265 = vpack.c.b16 %v2205, %v2202
        %v2266 = vpack.c.b16 %v2209, %v2206
        %v2267 = vpack.c.b16 %v2210, %v2207
        %v2268 = vpack.c.b16 %v2211, %v2208
        %v2269 = vpack.c.b16 %v2215, %v2212
        %v2270 = vpack.c.b16 %v2216, %v2213
        %v2271 = vpack.c.b16 %v2217, %v2214
        %v2272 = vpack.c.b16 %v2221, %v2218
        %v2273 = vpack.c.b16 %v2222, %v2219
        %v2274 = vpack.c.b16 %v2223, %v2220
        %v2275 = vpack.c.b16 %v2227, %v2224
        %v2276 = vpack.c.b16 %v2228, %v2225
        %v2277 = vpack.c.b16 %v2229, %v2226
        %v2278 = vpack.c.b16 %v2233, %v2230
        %v2279 = vpack.c.b16 %v2234, %v2231
        %v2280 = vpack.c.b16 %v2235, %v2232
        %v2281 = vpack.c.b16 %v2239, %v2236
        %v2282 = vpack.c.b16 %v2240, %v2237
        %v2283 = vpack.c.b16 %v2241, %v2238
        %v2284 = vpack.c.b16 %v2245, %v2242
        %v2285 = vpack.c.b16 %v2246, %v2243
        %v2286 = vpack.c.b16 %v2247, %v2244
        %v2287 = vpack.c.b16 %v2251, %v2248
        %v2288 = vpack.c.b16 %v2252, %v2249
        %v2289 = vpack.c.b16 %v2253, %v2250
        %v2290 = vpack.c.b16 %v2257, %v2254
        %v2291 = vpack.c.b16 %v2258, %v2255
        %v2292 = vpack.c.b16 %v2259, %v2256
        %v2327 = vsel %vm655, %v2100, 0
        %v2330 = vsel %vm655, %v2102, 0
        %v2333 = vsel %vm655, %v2104, 0
        %2335 = vmatprep.subr.bf16.mxu0 %v2261
        %2336 = vmatpush1.bf16.msra.mxu0 %v2260
        %2337 = vmatprep.subr.bf16.mxu0 %v2264
        %2338 = vmatpush1.bf16.msra.mxu0 %v2263
        %2339 = vmatprep.subr.bf16.mxu0 %v2267
        %2340 = vmatpush1.bf16.msra.mxu0 %v2266
        %2341 = vmatprep.subr.bf16.mxu0 %v2270
        %2342 = vmatpush1.bf16.msra.mxu0 %v2269
        %2343 = vmatprep.subr.bf16.mxu0 %v2273
        %2344 = vmatpush1.bf16.msra.mxu0 %v2272
        %2345 = vmatprep.subr.bf16.mxu0 %v2276
        %2346 = vmatpush1.bf16.msra.mxu0 %v2275
        %2347 = vmatprep.subr.bf16.mxu0 %v2279
        %2348 = vmatpush1.bf16.msra.mxu0 %v2278
        %2349 = vmatprep.subr.bf16.mxu0 %v2282
        %2350 = vmatpush1.bf16.msra.mxu0 %v2281
        %2351 = vmatprep.subr.bf16.mxu0 %v2285
        %2352 = vmatpush1.bf16.msra.mxu0 %v2284
        %2353 = vmatprep.subr.bf16.mxu0 %v2288
        %2354 = vmatpush1.bf16.msra.mxu0 %v2287
        %2355 = vmatprep.subr.bf16.mxu0 %v2291
        %2356 = vmatpush1.bf16.msra.mxu0 %v2290
        %2357 = vmatprep.subr.bf16.mxu0 0
        %2358 = vmatpush1.bf16.msra.mxu0 0
        %2359 = vmatprep.subr.bf16.mxu0 0
        %2360 = vmatpush1.bf16.msra.mxu0 0
        %2361 = vmatprep.subr.bf16.mxu0 0
        %2362 = vmatpush1.bf16.msra.mxu0 0
        %2363 = vmatprep.subr.bf16.mxu0 0
        %2364 = vmatpush1.bf16.msra.mxu0 0
        %2365 = vmatprep.subr.bf16.mxu0 0
        %2366 = vmatpush1.bf16.msra.mxu0 0
        %2367 = vmatprep.mubr.bf16.mxu0 %v2327
        %2368 = vmatmul.mubr.bf16.gmra.mrb[0].mxu0 %v2099
        %v2369 = vpop.f32.mrb[0].mxu0
        %v2370 = vadd.f32 0.0, %v2369
        %v2371 = vpop.f32.mrb[0].mxu0
        %v2372 = vadd.f32 0.0, %v2371
        %v2373 = vpop.f32.mrb[0].mxu0
        %v2374 = vadd.f32 0.0, %v2373
        %v2375 = vpop.f32.mrb[0].mxu0
        %v2376 = vadd.f32 0.0, %v2375
        %2377 = vmatprep.mubr.bf16.mxu0 %v2330
        %2378 = vmatmul.mubr.bf16.gmra.mrb[0].mxu0 %v2101
        %v2379 = vpop.f32.mrb[0].mxu0
        %v2380 = vadd.f32 0.0, %v2379
        %v2381 = vpop.f32.mrb[0].mxu0
        %v2382 = vadd.f32 0.0, %v2381
        %v2383 = vpop.f32.mrb[0].mxu0
        %v2384 = vadd.f32 0.0, %v2383
        %v2385 = vpop.f32.mrb[0].mxu0
        %v2386 = vadd.f32 0.0, %v2385
        %2387 = vmatprep.mubr.bf16.mxu0 %v2333
        %2388 = vmatmul.mubr.bf16.gmra.mrb[0].mxu0 %v2103
        %v2389 = vpop.f32.mrb[0].mxu0
        %v2390 = vadd.f32 0.0, %v2389
        %v2391 = vpop.f32.mrb[0].mxu0
        %v2392 = vadd.f32 0.0, %v2391
        %v2393 = vpop.f32.mrb[0].mxu0
        %v2394 = vpop.f32.mrb[0].mxu0
        %2395 = vdwg.mxu0
        %2396 = vmatprep.subr.bf16.mxu0 0
        %2397 = vmatpush1.bf16.msra.mxu0 %v2262
        %2398 = vmatprep.subr.bf16.mxu0 0
        %2399 = vmatpush1.bf16.msra.mxu0 %v2265
        %2400 = vmatprep.subr.bf16.mxu0 0
        %2401 = vmatpush1.bf16.msra.mxu0 %v2268
        %2402 = vmatprep.subr.bf16.mxu0 0
        %2403 = vmatpush1.bf16.msra.mxu0 %v2271
        %2404 = vmatprep.subr.bf16.mxu0 0
        %2405 = vmatpush1.bf16.msra.mxu0 %v2274
        %2406 = vmatprep.subr.bf16.mxu0 0
        %2407 = vmatpush1.bf16.msra.mxu0 %v2277
        %2408 = vmatprep.subr.bf16.mxu0 0
        %2409 = vmatpush1.bf16.msra.mxu0 %v2280
        %2410 = vmatprep.subr.bf16.mxu0 0
        %2411 = vmatpush1.bf16.msra.mxu0 %v2283
        %2412 = vmatprep.subr.bf16.mxu0 0
        %2413 = vmatpush1.bf16.msra.mxu0 %v2286
        %2414 = vmatprep.subr.bf16.mxu0 0
        %2415 = vmatpush1.bf16.msra.mxu0 %v2289
        %2416 = vmatprep.subr.bf16.mxu0 0
        %2417 = vmatpush1.bf16.msra.mxu0 %v2292
        %2418 = vmatprep.subr.bf16.mxu0 0
        %2419 = vmatpush1.bf16.msra.mxu0 0
        %2420 = vmatprep.subr.bf16.mxu0 0
        %2421 = vmatpush1.bf16.msra.mxu0 0
        %2422 = vmatprep.subr.bf16.mxu0 0
        %2423 = vmatpush1.bf16.msra.mxu0 0
        %2424 = vmatprep.subr.bf16.mxu0 0
        %2425 = vmatpush1.bf16.msra.mxu0 0
        %2426 = vmatprep.subr.bf16.mxu0 0
        %2427 = vmatpush1.bf16.msra.mxu0 0
        %2428 = vmatprep.mubr.bf16.mxu0 %v2327
        %2429 = vmatmul.mubr.bf16.gmra.mrb[0].mxu0 %v2099
        %v2430 = vpop.f32.mrb[0].mxu0
        %v2431 = vadd.f32 0.0, %v2430
        %v2432 = vpop.f32.mrb[0].mxu0
        %v2433 = vpop.f32.mrb[0].mxu0
        %v2434 = vadd.f32 0.0, %v2433
        %v2435 = vpop.f32.mrb[0].mxu0
        %2436 = vmatprep.mubr.bf16.mxu0 %v2330
        %2437 = vmatmul.mubr.bf16.gmra.mrb[0].mxu0 %v2101
        %v2438 = vpop.f32.mrb[0].mxu0
        %v2439 = vadd.f32 0.0, %v2438
        %v2440 = vpop.f32.mrb[0].mxu0
        %v2441 = vpop.f32.mrb[0].mxu0
        %v2442 = vadd.f32 0.0, %v2441
        %v2443 = vpop.f32.mrb[0].mxu0
        %2444 = vmatprep.mubr.bf16.mxu0 %v2333
        %2445 = vmatmul.mubr.bf16.gmra.mrb[0].mxu0 %v2103
        %v2446 = vpop.f32.mrb[0].mxu0
        %v2447 = vadd.f32 0.0, %v2446
        %v2448 = vpop.f32.mrb[0].mxu0
        %v2449 = vpop.f32.mrb[0].mxu0
        %v2450 = vpop.f32.mrb[0].mxu0
        %2451 = vdwg.mxu0
        %v2452 = vadd.f32 %v1984, %v2370
        %v2453 = vadd.f32 %v1985, %v2372
        %v2454 = vadd.f32 %v1986, %v2431
        %v2455 = vadd.f32 %v1987, %v2374
        %v2456 = vadd.f32 %v1988, %v2376
        %v2457 = vadd.f32 %v1989, %v2434
        %v2458 = vadd.f32 %v1990, %v2380
        %v2459 = vadd.f32 %v1991, %v2382
        %v2460 = vadd.f32 %v1992, %v2439
        %v2461 = vadd.f32 %v1993, %v2384
        %v2462 = vadd.f32 %v1994, %v2386
        %v2463 = vadd.f32 %v1995, %v2442
        %v2464 = vadd.f32 %v1996, %v2390
        %v2465 = vadd.f32 %v1997, %v2392
        %v2466 = vadd.f32 %v1998, %v2447
        %s2467 = scalar_lea.vmem %s1, 160
        %v2468 = vld [vmem:[%s2467] sm:$0xff]
        %v2469 = vld [vmem:[%s2467 + $0x8] sm:$0xff]
        %v2470 = vld [vmem:[%s2467 + $0x10] sm:$0xff]
        %v2471 = vld [vmem:[%s2467 + $0x18] sm:$0xff]
        %v2472 = vld [vmem:[%s2467 + $0x20] sm:$0xff]
        %v2478 = vunpack.c.l.b16 %v2468
        %v2479 = vunpack.c.h.b16 %v2468
        %v2480 = vunpack.c.l.b16 %v2469
        %v2481 = vunpack.c.h.b16 %v2469
        %v2482 = vunpack.c.l.b16 %v2470
        %v2483 = vunpack.c.h.b16 %v2470
        %v2484 = vunpack.c.l.b16 %v2471
        %v2485 = vunpack.c.h.b16 %v2471
        %v2486 = vunpack.c.l.b16 %v2472
        %v2487 = vunpack.c.h.b16 %v2472
        %v2488 = vpack.c.b16 %v2480, %v2478
        %v2489 = vpack.c.b16 %v2481, %v2479
        %v2490 = vpack.c.b16 %v2484, %v2482
        %v2491 = vpack.c.b16 %v2485, %v2483
        %v2492 = vpack.c.b16 %v2486, %v2486
        %v2493 = vpack.c.b16 %v2487, %v2487
        %v2498 = vsel %vm655, %v2489, 0
        %v2501 = vsel %vm655, %v2491, 0
        %v2504 = vsel %vm655, %v2493, 0
        %2506 = vmatprep.subr.bf16.mxu0 %v612
        %2507 = vmatpush1.bf16.msra.mxu0 %v611
        %2508 = vmatprep.subr.bf16.mxu0 %v614
        %2509 = vmatpush1.bf16.msra.mxu0 %v613
        %2510 = vmatprep.subr.bf16.mxu0 %v616
        %2511 = vmatpush1.bf16.msra.mxu0 %v615
        %2512 = vmatprep.subr.bf16.mxu0 %v618
        %2513 = vmatpush1.bf16.msra.mxu0 %v617
        %2514 = vmatprep.subr.bf16.mxu0 %v620
        %2515 = vmatpush1.bf16.msra.mxu0 %v619
        %2516 = vmatprep.subr.bf16.mxu0 %v622
        %2517 = vmatpush1.bf16.msra.mxu0 %v621
        %2518 = vmatprep.subr.bf16.mxu0 %v624
        %2519 = vmatpush1.bf16.msra.mxu0 %v623
        %2520 = vmatprep.subr.bf16.mxu0 %v626
        %2521 = vmatpush1.bf16.msra.mxu0 %v625
        %2522 = vmatprep.subr.bf16.mxu0 %v628
        %2523 = vmatpush1.bf16.msra.mxu0 %v627
        %2524 = vmatprep.subr.bf16.mxu0 %v630
        %2525 = vmatpush1.bf16.msra.mxu0 %v629
        %2526 = vmatprep.subr.bf16.mxu0 %v632
        %2527 = vmatpush1.bf16.msra.mxu0 %v631
        %2528 = vmatprep.subr.bf16.mxu0 0
        %2529 = vmatpush1.bf16.msra.mxu0 0
        %2530 = vmatprep.subr.bf16.mxu0 0
        %2531 = vmatpush1.bf16.msra.mxu0 0
        %2532 = vmatprep.subr.bf16.mxu0 0
        %2533 = vmatpush1.bf16.msra.mxu0 0
        %2534 = vmatprep.subr.bf16.mxu0 0
        %2535 = vmatpush1.bf16.msra.mxu0 0
        %2536 = vmatprep.subr.bf16.mxu0 0
        %2537 = vmatpush1.bf16.msra.mxu0 0
        %2538 = vmatprep.mubr.bf16.mxu0 %v2498
        %2539 = vmatmul.mubr.bf16.gmra.mrb[0].mxu0 %v2488
        %v2540 = vpop.f32.mrb[0].mxu0
        %v2541 = vadd.f32 0.0, %v2540
        %v2542 = vpop.f32.mrb[0].mxu0
        %v2543 = vadd.f32 0.0, %v2542
        %v2544 = vpop.f32.mrb[0].mxu0
        %v2545 = vadd.f32 0.0, %v2544
        %v2546 = vpop.f32.mrb[0].mxu0
        %v2547 = vadd.f32 0.0, %v2546
        %2548 = vmatprep.mubr.bf16.mxu0 %v2501
        %2549 = vmatmul.mubr.bf16.gmra.mrb[0].mxu0 %v2490
        %v2550 = vpop.f32.mrb[0].mxu0
        %v2551 = vadd.f32 0.0, %v2550
        %v2552 = vpop.f32.mrb[0].mxu0
        %v2553 = vadd.f32 0.0, %v2552
        %v2554 = vpop.f32.mrb[0].mxu0
        %v2555 = vadd.f32 0.0, %v2554
        %v2556 = vpop.f32.mrb[0].mxu0
        %v2557 = vadd.f32 0.0, %v2556
        %2558 = vmatprep.mubr.bf16.mxu0 %v2504
        %2559 = vmatmul.mubr.bf16.gmra.mrb[0].mxu0 %v2492
        %v2560 = vpop.f32.mrb[0].mxu0
        %v2561 = vadd.f32 0.0, %v2560
        %v2562 = vpop.f32.mrb[0].mxu0
        %v2563 = vadd.f32 0.0, %v2562
        %v2564 = vpop.f32.mrb[0].mxu0
        %v2565 = vpop.f32.mrb[0].mxu0
        %2566 = vdwg.mxu0
        %v2567 = vpack.c.bf16 %v2545, %v2541
        %v2568 = vpack.c.bf16 %v2547, %v2543
        %v2569 = vpack.c.bf16 %v2555, %v2551
        %v2570 = vpack.c.bf16 %v2557, %v2553
        %v2571 = vpack.c.bf16 %v2561, %v2561
        %v2572 = vpack.c.bf16 %v2563, %v2563
        %s2573 = scalar_lea.vmem %s2, 1056
        %v2574 = vld [vmem:[%s2573] sm:$0xff]
        %v2575 = vld [vmem:[%s2573 + $0x8] sm:$0xf]
        %v2576 = vld [vmem:[%s2573 + $0xc] sm:$0xff]
        %v2577 = vld [vmem:[%s2573 + $0x14] sm:$0xf]
        %v2578 = vld [vmem:[%s2573 + $0x18] sm:$0xff]
        %v2579 = vld [vmem:[%s2573 + $0x20] sm:$0xf]
        %v2580 = vld [vmem:[%s2573 + $0x24] sm:$0xff]
        %v2581 = vld [vmem:[%s2573 + $0x2c] sm:$0xf]
        %v2582 = vld [vmem:[%s2573 + $0x30] sm:$0xff]
        %v2583 = vld [vmem:[%s2573 + $0x38] sm:$0xf]
        %v2584 = vld [vmem:[%s2573 + $0x3c] sm:$0xff]
        %v2585 = vld [vmem:[%s2573 + $0x44] sm:$0xf]
        %v2586 = vld [vmem:[%s2573 + $0x48] sm:$0xff]
        %v2587 = vld [vmem:[%s2573 + $0x50] sm:$0xf]
        %v2588 = vld [vmem:[%s2573 + $0x54] sm:$0xff]
        %v2589 = vld [vmem:[%s2573 + $0x5c] sm:$0xf]
        %v2590 = vld [vmem:[%s2573 + $0x60] sm:$0xff]
        %v2591 = vld [vmem:[%s2573 + $0x68] sm:$0xf]
        %v2592 = vld [vmem:[%s2573 + $0x6c] sm:$0xff]
        %v2593 = vld [vmem:[%s2573 + $0x74] sm:$0xf]
        %v2594 = vld [vmem:[%s2573 + $0x78] sm:$0xff]
        %v2595 = vld [vmem:[%s2573 + $0x80] sm:$0xf]
        %v2596 = vld [vmem:[%s2573 + $0x84] sm:$0xff]
        %v2597 = vld [vmem:[%s2573 + $0x8c] sm:$0xf]
        %v2598 = vld [vmem:[%s2573 + $0x90] sm:$0xff]
        %v2599 = vld [vmem:[%s2573 + $0x98] sm:$0xf]
        %v2600 = vld [vmem:[%s2573 + $0x9c] sm:$0xff]
        %v2601 = vld [vmem:[%s2573 + $0xa4] sm:$0xf]
        %v2602 = vld [vmem:[%s2573 + $0xa8] sm:$0xff]
        %v2603 = vld [vmem:[%s2573 + $0xb0] sm:$0xf]
        %v2604 = vld [vmem:[%s2573 + $0xb4] sm:$0xff]
        %v2605 = vld [vmem:[%s2573 + $0xbc] sm:$0xf]
        %v2606 = vld [vmem:[%s2573 + $0xc0] sm:$0xff]
        %v2607 = vld [vmem:[%s2573 + $0xc8] sm:$0xf]
        %v2608 = vld [vmem:[%s2573 + $0xcc] sm:$0xff]
        %v2609 = vld [vmem:[%s2573 + $0xd4] sm:$0xf]
        %v2610 = vld [vmem:[%s2573 + $0xd8] sm:$0xff]
        %v2611 = vld [vmem:[%s2573 + $0xe0] sm:$0xf]
        %v2612 = vld [vmem:[%s2573 + $0xe4] sm:$0xff]
        %v2613 = vld [vmem:[%s2573 + $0xec] sm:$0xf]
        %v2614 = vld [vmem:[%s2573 + $0xf0] sm:$0xff]
        %v2615 = vld [vmem:[%s2573 + $0xf8] sm:$0xf]
        %v2616 = vld [vmem:[%s2573 + $0xfc] sm:$0xff]
        %v2617 = vld [vmem:[%s2573 + $0x104] sm:$0xf]
        %v2662 = vunpack.c.l.b16 %v2574
        %v2663 = vunpack.c.h.b16 %v2574
        %v2664 = vunpack.c.l.b16 %v2575
        %v2665 = vunpack.c.l.b16 %v2576
        %v2666 = vunpack.c.h.b16 %v2576
        %v2667 = vunpack.c.l.b16 %v2577
        %v2668 = vunpack.c.l.b16 %v2578
        %v2669 = vunpack.c.h.b16 %v2578
        %v2670 = vunpack.c.l.b16 %v2579
        %v2671 = vunpack.c.l.b16 %v2580
        %v2672 = vunpack.c.h.b16 %v2580
        %v2673 = vunpack.c.l.b16 %v2581
        %v2674 = vunpack.c.l.b16 %v2582
        %v2675 = vunpack.c.h.b16 %v2582
        %v2676 = vunpack.c.l.b16 %v2583
        %v2677 = vunpack.c.l.b16 %v2584
        %v2678 = vunpack.c.h.b16 %v2584
        %v2679 = vunpack.c.l.b16 %v2585
        %v2680 = vunpack.c.l.b16 %v2586
        %v2681 = vunpack.c.h.b16 %v2586
        %v2682 = vunpack.c.l.b16 %v2587
        %v2683 = vunpack.c.l.b16 %v2588
        %v2684 = vunpack.c.h.b16 %v2588
        %v2685 = vunpack.c.l.b16 %v2589
        %v2686 = vunpack.c.l.b16 %v2590
        %v2687 = vunpack.c.h.b16 %v2590
        %v2688 = vunpack.c.l.b16 %v2591
        %v2689 = vunpack.c.l.b16 %v2592
        %v2690 = vunpack.c.h.b16 %v2592
        %v2691 = vunpack.c.l.b16 %v2593
        %v2692 = vunpack.c.l.b16 %v2594
        %v2693 = vunpack.c.h.b16 %v2594
        %v2694 = vunpack.c.l.b16 %v2595
        %v2695 = vunpack.c.l.b16 %v2596
        %v2696 = vunpack.c.h.b16 %v2596
        %v2697 = vunpack.c.l.b16 %v2597
        %v2698 = vunpack.c.l.b16 %v2598
        %v2699 = vunpack.c.h.b16 %v2598
        %v2700 = vunpack.c.l.b16 %v2599
        %v2701 = vunpack.c.l.b16 %v2600
        %v2702 = vunpack.c.h.b16 %v2600
        %v2703 = vunpack.c.l.b16 %v2601
        %v2704 = vunpack.c.l.b16 %v2602
        %v2705 = vunpack.c.h.b16 %v2602
        %v2706 = vunpack.c.l.b16 %v2603
        %v2707 = vunpack.c.l.b16 %v2604
        %v2708 = vunpack.c.h.b16 %v2604
        %v2709 = vunpack.c.l.b16 %v2605
        %v2710 = vunpack.c.l.b16 %v2606
        %v2711 = vunpack.c.h.b16 %v2606
        %v2712 = vunpack.c.l.b16 %v2607
        %v2713 = vunpack.c.l.b16 %v2608
        %v2714 = vunpack.c.h.b16 %v2608
        %v2715 = vunpack.c.l.b16 %v2609
        %v2716 = vunpack.c.l.b16 %v2610
        %v2717 = vunpack.c.h.b16 %v2610
        %v2718 = vunpack.c.l.b16 %v2611
        %v2719 = vunpack.c.l.b16 %v2612
        %v2720 = vunpack.c.h.b16 %v2612
        %v2721 = vunpack.c.l.b16 %v2613
        %v2722 = vunpack.c.l.b16 %v2614
        %v2723 = vunpack.c.h.b16 %v2614
        %v2724 = vunpack.c.l.b16 %v2615
        %v2725 = vunpack.c.l.b16 %v2616
        %v2726 = vunpack.c.h.b16 %v2616
        %v2727 = vunpack.c.l.b16 %v2617
        %v2728 = vpack.c.b16 %v2665, %v2662
        %v2729 = vpack.c.b16 %v2666, %v2663
        %v2730 = vpack.c.b16 %v2667, %v2664
        %v2731 = vpack.c.b16 %v2671, %v2668
        %v2732 = vpack.c.b16 %v2672, %v2669
        %v2733 = vpack.c.b16 %v2673, %v2670
        %v2734 = vpack.c.b16 %v2677, %v2674
        %v2735 = vpack.c.b16 %v2678, %v2675
        %v2736 = vpack.c.b16 %v2679, %v2676
        %v2737 = vpack.c.b16 %v2683, %v2680
        %v2738 = vpack.c.b16 %v2684, %v2681
        %v2739 = vpack.c.b16 %v2685, %v2682
        %v2740 = vpack.c.b16 %v2689, %v2686
        %v2741 = vpack.c.b16 %v2690, %v2687
        %v2742 = vpack.c.b16 %v2691, %v2688
        %v2743 = vpack.c.b16 %v2695, %v2692
        %v2744 = vpack.c.b16 %v2696, %v2693
        %v2745 = vpack.c.b16 %v2697, %v2694
        %v2746 = vpack.c.b16 %v2701, %v2698
        %v2747 = vpack.c.b16 %v2702, %v2699
        %v2748 = vpack.c.b16 %v2703, %v2700
        %v2749 = vpack.c.b16 %v2707, %v2704
        %v2750 = vpack.c.b16 %v2708, %v2705
        %v2751 = vpack.c.b16 %v2709, %v2706
        %v2752 = vpack.c.b16 %v2713, %v2710
        %v2753 = vpack.c.b16 %v2714, %v2711
        %v2754 = vpack.c.b16 %v2715, %v2712
        %v2755 = vpack.c.b16 %v2719, %v2716
        %v2756 = vpack.c.b16 %v2720, %v2717
        %v2757 = vpack.c.b16 %v2721, %v2718
        %v2758 = vpack.c.b16 %v2725, %v2722
        %v2759 = vpack.c.b16 %v2726, %v2723
        %v2760 = vpack.c.b16 %v2727, %v2724
        %v2795 = vsel %vm655, %v2568, 0
        %v2798 = vsel %vm655, %v2570, 0
        %v2801 = vsel %vm655, %v2572, 0
        %2803 = vmatprep.subr.bf16.mxu0 %v2729
        %2804 = vmatpush1.bf16.msra.mxu0 %v2728
        %2805 = vmatprep.subr.bf16.mxu0 %v2732
        %2806 = vmatpush1.bf16.msra.mxu0 %v2731
        %2807 = vmatprep.subr.bf16.mxu0 %v2735
        %2808 = vmatpush1.bf16.msra.mxu0 %v2734
        %2809 = vmatprep.subr.bf16.mxu0 %v2738
        %2810 = vmatpush1.bf16.msra.mxu0 %v2737
        %2811 = vmatprep.subr.bf16.mxu0 %v2741
        %2812 = vmatpush1.bf16.msra.mxu0 %v2740
        %2813 = vmatprep.subr.bf16.mxu0 %v2744
        %2814 = vmatpush1.bf16.msra.mxu0 %v2743
        %2815 = vmatprep.subr.bf16.mxu0 %v2747
        %2816 = vmatpush1.bf16.msra.mxu0 %v2746
        %2817 = vmatprep.subr.bf16.mxu0 %v2750
        %2818 = vmatpush1.bf16.msra.mxu0 %v2749
        %2819 = vmatprep.subr.bf16.mxu0 %v2753
        %2820 = vmatpush1.bf16.msra.mxu0 %v2752
        %2821 = vmatprep.subr.bf16.mxu0 %v2756
        %2822 = vmatpush1.bf16.msra.mxu0 %v2755
        %2823 = vmatprep.subr.bf16.mxu0 %v2759
        %2824 = vmatpush1.bf16.msra.mxu0 %v2758
        %2825 = vmatprep.subr.bf16.mxu0 0
        %2826 = vmatpush1.bf16.msra.mxu0 0
        %2827 = vmatprep.subr.bf16.mxu0 0
        %2828 = vmatpush1.bf16.msra.mxu0 0
        %2829 = vmatprep.subr.bf16.mxu0 0
        %2830 = vmatpush1.bf16.msra.mxu0 0
        %2831 = vmatprep.subr.bf16.mxu0 0
        %2832 = vmatpush1.bf16.msra.mxu0 0
        %2833 = vmatprep.subr.bf16.mxu0 0
        %2834 = vmatpush1.bf16.msra.mxu0 0
        %2835 = vmatprep.mubr.bf16.mxu0 %v2795
        %2836 = vmatmul.mubr.bf16.gmra.mrb[0].mxu0 %v2567
        %v2837 = vpop.f32.mrb[0].mxu0
        %v2838 = vadd.f32 0.0, %v2837
        %v2839 = vpop.f32.mrb[0].mxu0
        %v2840 = vadd.f32 0.0, %v2839
        %v2841 = vpop.f32.mrb[0].mxu0
        %v2842 = vadd.f32 0.0, %v2841
        %v2843 = vpop.f32.mrb[0].mxu0
        %v2844 = vadd.f32 0.0, %v2843
        %2845 = vmatprep.mubr.bf16.mxu0 %v2798
        %2846 = vmatmul.mubr.bf16.gmra.mrb[0].mxu0 %v2569
        %v2847 = vpop.f32.mrb[0].mxu0
        %v2848 = vadd.f32 0.0, %v2847
        %v2849 = vpop.f32.mrb[0].mxu0
        %v2850 = vadd.f32 0.0, %v2849
        %v2851 = vpop.f32.mrb[0].mxu0
        %v2852 = vadd.f32 0.0, %v2851
        %v2853 = vpop.f32.mrb[0].mxu0
        %v2854 = vadd.f32 0.0, %v2853
        %2855 = vmatprep.mubr.bf16.mxu0 %v2801
        %2856 = vmatmul.mubr.bf16.gmra.mrb[0].mxu0 %v2571
        %v2857 = vpop.f32.mrb[0].mxu0
        %v2858 = vadd.f32 0.0, %v2857
        %v2859 = vpop.f32.mrb[0].mxu0
        %v2860 = vadd.f32 0.0, %v2859
        %v2861 = vpop.f32.mrb[0].mxu0
        %v2862 = vpop.f32.mrb[0].mxu0
        %2863 = vdwg.mxu0
        %2864 = vmatprep.subr.bf16.mxu0 0
        %2865 = vmatpush1.bf16.msra.mxu0 %v2730
        %2866 = vmatprep.subr.bf16.mxu0 0
        %2867 = vmatpush1.bf16.msra.mxu0 %v2733
        %2868 = vmatprep.subr.bf16.mxu0 0
        %2869 = vmatpush1.bf16.msra.mxu0 %v2736
        %2870 = vmatprep.subr.bf16.mxu0 0
        %2871 = vmatpush1.bf16.msra.mxu0 %v2739
        %2872 = vmatprep.subr.bf16.mxu0 0
        %2873 = vmatpush1.bf16.msra.mxu0 %v2742
        %2874 = vmatprep.subr.bf16.mxu0 0
        %2875 = vmatpush1.bf16.msra.mxu0 %v2745
        %2876 = vmatprep.subr.bf16.mxu0 0
        %2877 = vmatpush1.bf16.msra.mxu0 %v2748
        %2878 = vmatprep.subr.bf16.mxu0 0
        %2879 = vmatpush1.bf16.msra.mxu0 %v2751
        %2880 = vmatprep.subr.bf16.mxu0 0
        %2881 = vmatpush1.bf16.msra.mxu0 %v2754
        %2882 = vmatprep.subr.bf16.mxu0 0
        %2883 = vmatpush1.bf16.msra.mxu0 %v2757
        %2884 = vmatprep.subr.bf16.mxu0 0
        %2885 = vmatpush1.bf16.msra.mxu0 %v2760
        %2886 = vmatprep.subr.bf16.mxu0 0
        %2887 = vmatpush1.bf16.msra.mxu0 0
        %2888 = vmatprep.subr.bf16.mxu0 0
        %2889 = vmatpush1.bf16.msra.mxu0 0
        %2890 = vmatprep.subr.bf16.mxu0 0
        %2891 = vmatpush1.bf16.msra.mxu0 0
        %2892 = vmatprep.subr.bf16.mxu0 0
        %2893 = vmatpush1.bf16.msra.mxu0 0
        %2894 = vmatprep.subr.bf16.mxu0 0
        %2895 = vmatpush1.bf16.msra.mxu0 0
        %2896 = vmatprep.mubr.bf16.mxu0 %v2795
        %2897 = vmatmul.mubr.bf16.gmra.mrb[0].mxu0 %v2567
        %v2898 = vpop.f32.mrb[0].mxu0
        %v2899 = vadd.f32 0.0, %v2898
        %v2900 = vpop.f32.mrb[0].mxu0
        %v2901 = vpop.f32.mrb[0].mxu0
        %v2902 = vadd.f32 0.0, %v2901
        %v2903 = vpop.f32.mrb[0].mxu0
        %2904 = vmatprep.mubr.bf16.mxu0 %v2798
        %2905 = vmatmul.mubr.bf16.gmra.mrb[0].mxu0 %v2569
        %v2906 = vpop.f32.mrb[0].mxu0
        %v2907 = vadd.f32 0.0, %v2906
        %v2908 = vpop.f32.mrb[0].mxu0
        %v2909 = vpop.f32.mrb[0].mxu0
        %v2910 = vadd.f32 0.0, %v2909
        %v2911 = vpop.f32.mrb[0].mxu0
        %2912 = vmatprep.mubr.bf16.mxu0 %v2801
        %2913 = vmatmul.mubr.bf16.gmra.mrb[0].mxu0 %v2571
        %v2914 = vpop.f32.mrb[0].mxu0
        %v2915 = vadd.f32 0.0, %v2914
        %v2916 = vpop.f32.mrb[0].mxu0
        %v2917 = vpop.f32.mrb[0].mxu0
        %v2918 = vpop.f32.mrb[0].mxu0
        %2919 = vdwg.mxu0
        %v2920 = vadd.f32 %v2452, %v2838
        %v2921 = vadd.f32 %v2453, %v2840
        %v2922 = vadd.f32 %v2454, %v2899
        %v2923 = vadd.f32 %v2455, %v2842
        %v2924 = vadd.f32 %v2456, %v2844
        %v2925 = vadd.f32 %v2457, %v2902
        %v2926 = vadd.f32 %v2458, %v2848
        %v2927 = vadd.f32 %v2459, %v2850
        %v2928 = vadd.f32 %v2460, %v2907
        %v2929 = vadd.f32 %v2461, %v2852
        %v2930 = vadd.f32 %v2462, %v2854
        %v2931 = vadd.f32 %v2463, %v2910
        %v2932 = vadd.f32 %v2464, %v2858
        %v2933 = vadd.f32 %v2465, %v2860
        %v2934 = vadd.f32 %v2466, %v2915
        %s2935 = scalar_lea.vmem %s1, 200
        %v2936 = vld [vmem:[%s2935] sm:$0xff]
        %v2937 = vld [vmem:[%s2935 + $0x8] sm:$0xff]
        %v2938 = vld [vmem:[%s2935 + $0x10] sm:$0xff]
        %v2939 = vld [vmem:[%s2935 + $0x18] sm:$0xff]
        %v2940 = vld [vmem:[%s2935 + $0x20] sm:$0xff]
        %v2946 = vunpack.c.l.b16 %v2936
        %v2947 = vunpack.c.h.b16 %v2936
        %v2948 = vunpack.c.l.b16 %v2937
        %v2949 = vunpack.c.h.b16 %v2937
        %v2950 = vunpack.c.l.b16 %v2938
        %v2951 = vunpack.c.h.b16 %v2938
        %v2952 = vunpack.c.l.b16 %v2939
        %v2953 = vunpack.c.h.b16 %v2939
        %v2954 = vunpack.c.l.b16 %v2940
        %v2955 = vunpack.c.h.b16 %v2940
        %v2956 = vpack.c.b16 %v2948, %v2946
        %v2957 = vpack.c.b16 %v2949, %v2947
        %v2958 = vpack.c.b16 %v2952, %v2950
        %v2959 = vpack.c.b16 %v2953, %v2951
        %v2960 = vpack.c.b16 %v2954, %v2954
        %v2961 = vpack.c.b16 %v2955, %v2955
        %v2966 = vsel %vm655, %v2957, 0
        %v2969 = vsel %vm655, %v2959, 0
        %v2972 = vsel %vm655, %v2961, 0
        %2974 = vmatprep.subr.bf16.mxu0 %v612
        %2975 = vmatpush1.bf16.msra.mxu0 %v611
        %2976 = vmatprep.subr.bf16.mxu0 %v614
        %2977 = vmatpush1.bf16.msra.mxu0 %v613
        %2978 = vmatprep.subr.bf16.mxu0 %v616
        %2979 = vmatpush1.bf16.msra.mxu0 %v615
        %2980 = vmatprep.subr.bf16.mxu0 %v618
        %2981 = vmatpush1.bf16.msra.mxu0 %v617
        %2982 = vmatprep.subr.bf16.mxu0 %v620
        %2983 = vmatpush1.bf16.msra.mxu0 %v619
        %2984 = vmatprep.subr.bf16.mxu0 %v622
        %2985 = vmatpush1.bf16.msra.mxu0 %v621
        %2986 = vmatprep.subr.bf16.mxu0 %v624
        %2987 = vmatpush1.bf16.msra.mxu0 %v623
        %2988 = vmatprep.subr.bf16.mxu0 %v626
        %2989 = vmatpush1.bf16.msra.mxu0 %v625
        %2990 = vmatprep.subr.bf16.mxu0 %v628
        %2991 = vmatpush1.bf16.msra.mxu0 %v627
        %2992 = vmatprep.subr.bf16.mxu0 %v630
        %2993 = vmatpush1.bf16.msra.mxu0 %v629
        %2994 = vmatprep.subr.bf16.mxu0 %v632
        %2995 = vmatpush1.bf16.msra.mxu0 %v631
        %2996 = vmatprep.subr.bf16.mxu0 0
        %2997 = vmatpush1.bf16.msra.mxu0 0
        %2998 = vmatprep.subr.bf16.mxu0 0
        %2999 = vmatpush1.bf16.msra.mxu0 0
        %3000 = vmatprep.subr.bf16.mxu0 0
        %3001 = vmatpush1.bf16.msra.mxu0 0
        %3002 = vmatprep.subr.bf16.mxu0 0
        %3003 = vmatpush1.bf16.msra.mxu0 0
        %3004 = vmatprep.subr.bf16.mxu0 0
        %3005 = vmatpush1.bf16.msra.mxu0 0
        %3006 = vmatprep.mubr.bf16.mxu0 %v2966
        %3007 = vmatmul.mubr.bf16.gmra.mrb[0].mxu0 %v2956
        %v3008 = vpop.f32.mrb[0].mxu0
        %v3009 = vadd.f32 0.0, %v3008
        %v3010 = vpop.f32.mrb[0].mxu0
        %v3011 = vadd.f32 0.0, %v3010
        %v3012 = vpop.f32.mrb[0].mxu0
        %v3013 = vadd.f32 0.0, %v3012
        %v3014 = vpop.f32.mrb[0].mxu0
        %v3015 = vadd.f32 0.0, %v3014
        %3016 = vmatprep.mubr.bf16.mxu0 %v2969
        %3017 = vmatmul.mubr.bf16.gmra.mrb[0].mxu0 %v2958
        %v3018 = vpop.f32.mrb[0].mxu0
        %v3019 = vadd.f32 0.0, %v3018
        %v3020 = vpop.f32.mrb[0].mxu0
        %v3021 = vadd.f32 0.0, %v3020
        %v3022 = vpop.f32.mrb[0].mxu0
        %v3023 = vadd.f32 0.0, %v3022
        %v3024 = vpop.f32.mrb[0].mxu0
        %v3025 = vadd.f32 0.0, %v3024
        %3026 = vmatprep.mubr.bf16.mxu0 %v2972
        %3027 = vmatmul.mubr.bf16.gmra.mrb[0].mxu0 %v2960
        %v3028 = vpop.f32.mrb[0].mxu0
        %v3029 = vadd.f32 0.0, %v3028
        %v3030 = vpop.f32.mrb[0].mxu0
        %v3031 = vadd.f32 0.0, %v3030
        %v3032 = vpop.f32.mrb[0].mxu0
        %v3033 = vpop.f32.mrb[0].mxu0
        %3034 = vdwg.mxu0
        %v3035 = vpack.c.bf16 %v3013, %v3009
        %v3036 = vpack.c.bf16 %v3015, %v3011
        %v3037 = vpack.c.bf16 %v3023, %v3019
        %v3038 = vpack.c.bf16 %v3025, %v3021
        %v3039 = vpack.c.bf16 %v3029, %v3029
        %v3040 = vpack.c.bf16 %v3031, %v3031
        %s3041 = scalar_lea.vmem %s2, 1320
        %v3042 = vld [vmem:[%s3041] sm:$0xff]
        %v3043 = vld [vmem:[%s3041 + $0x8] sm:$0xf]
        %v3044 = vld [vmem:[%s3041 + $0xc] sm:$0xff]
        %v3045 = vld [vmem:[%s3041 + $0x14] sm:$0xf]
        %v3046 = vld [vmem:[%s3041 + $0x18] sm:$0xff]
        %v3047 = vld [vmem:[%s3041 + $0x20] sm:$0xf]
        %v3048 = vld [vmem:[%s3041 + $0x24] sm:$0xff]
        %v3049 = vld [vmem:[%s3041 + $0x2c] sm:$0xf]
        %v3050 = vld [vmem:[%s3041 + $0x30] sm:$0xff]
        %v3051 = vld [vmem:[%s3041 + $0x38] sm:$0xf]
        %v3052 = vld [vmem:[%s3041 + $0x3c] sm:$0xff]
        %v3053 = vld [vmem:[%s3041 + $0x44] sm:$0xf]
        %v3054 = vld [vmem:[%s3041 + $0x48] sm:$0xff]
        %v3055 = vld [vmem:[%s3041 + $0x50] sm:$0xf]
        %v3056 = vld [vmem:[%s3041 + $0x54] sm:$0xff]
        %v3057 = vld [vmem:[%s3041 + $0x5c] sm:$0xf]
        %v3058 = vld [vmem:[%s3041 + $0x60] sm:$0xff]
        %v3059 = vld [vmem:[%s3041 + $0x68] sm:$0xf]
        %v3060 = vld [vmem:[%s3041 + $0x6c] sm:$0xff]
        %v3061 = vld [vmem:[%s3041 + $0x74] sm:$0xf]
        %v3062 = vld [vmem:[%s3041 + $0x78] sm:$0xff]
        %v3063 = vld [vmem:[%s3041 + $0x80] sm:$0xf]
        %v3064 = vld [vmem:[%s3041 + $0x84] sm:$0xff]
        %v3065 = vld [vmem:[%s3041 + $0x8c] sm:$0xf]
        %v3066 = vld [vmem:[%s3041 + $0x90] sm:$0xff]
        %v3067 = vld [vmem:[%s3041 + $0x98] sm:$0xf]
        %v3068 = vld [vmem:[%s3041 + $0x9c] sm:$0xff]
        %v3069 = vld [vmem:[%s3041 + $0xa4] sm:$0xf]
        %v3070 = vld [vmem:[%s3041 + $0xa8] sm:$0xff]
        %v3071 = vld [vmem:[%s3041 + $0xb0] sm:$0xf]
        %v3072 = vld [vmem:[%s3041 + $0xb4] sm:$0xff]
        %v3073 = vld [vmem:[%s3041 + $0xbc] sm:$0xf]
        %v3074 = vld [vmem:[%s3041 + $0xc0] sm:$0xff]
        %v3075 = vld [vmem:[%s3041 + $0xc8] sm:$0xf]
        %v3076 = vld [vmem:[%s3041 + $0xcc] sm:$0xff]
        %v3077 = vld [vmem:[%s3041 + $0xd4] sm:$0xf]
        %v3078 = vld [vmem:[%s3041 + $0xd8] sm:$0xff]
        %v3079 = vld [vmem:[%s3041 + $0xe0] sm:$0xf]
        %v3080 = vld [vmem:[%s3041 + $0xe4] sm:$0xff]
        %v3081 = vld [vmem:[%s3041 + $0xec] sm:$0xf]
        %v3082 = vld [vmem:[%s3041 + $0xf0] sm:$0xff]
        %v3083 = vld [vmem:[%s3041 + $0xf8] sm:$0xf]
        %v3084 = vld [vmem:[%s3041 + $0xfc] sm:$0xff]
        %v3085 = vld [vmem:[%s3041 + $0x104] sm:$0xf]
        %v3130 = vunpack.c.l.b16 %v3042
        %v3131 = vunpack.c.h.b16 %v3042
        %v3132 = vunpack.c.l.b16 %v3043
        %v3133 = vunpack.c.l.b16 %v3044
        %v3134 = vunpack.c.h.b16 %v3044
        %v3135 = vunpack.c.l.b16 %v3045
        %v3136 = vunpack.c.l.b16 %v3046
        %v3137 = vunpack.c.h.b16 %v3046
        %v3138 = vunpack.c.l.b16 %v3047
        %v3139 = vunpack.c.l.b16 %v3048
        %v3140 = vunpack.c.h.b16 %v3048
        %v3141 = vunpack.c.l.b16 %v3049
        %v3142 = vunpack.c.l.b16 %v3050
        %v3143 = vunpack.c.h.b16 %v3050
        %v3144 = vunpack.c.l.b16 %v3051
        %v3145 = vunpack.c.l.b16 %v3052
        %v3146 = vunpack.c.h.b16 %v3052
        %v3147 = vunpack.c.l.b16 %v3053
        %v3148 = vunpack.c.l.b16 %v3054
        %v3149 = vunpack.c.h.b16 %v3054
        %v3150 = vunpack.c.l.b16 %v3055
        %v3151 = vunpack.c.l.b16 %v3056
        %v3152 = vunpack.c.h.b16 %v3056
        %v3153 = vunpack.c.l.b16 %v3057
        %v3154 = vunpack.c.l.b16 %v3058
        %v3155 = vunpack.c.h.b16 %v3058
        %v3156 = vunpack.c.l.b16 %v3059
        %v3157 = vunpack.c.l.b16 %v3060
        %v3158 = vunpack.c.h.b16 %v3060
        %v3159 = vunpack.c.l.b16 %v3061
        %v3160 = vunpack.c.l.b16 %v3062
        %v3161 = vunpack.c.h.b16 %v3062
        %v3162 = vunpack.c.l.b16 %v3063
        %v3163 = vunpack.c.l.b16 %v3064
        %v3164 = vunpack.c.h.b16 %v3064
        %v3165 = vunpack.c.l.b16 %v3065
        %v3166 = vunpack.c.l.b16 %v3066
        %v3167 = vunpack.c.h.b16 %v3066
        %v3168 = vunpack.c.l.b16 %v3067
        %v3169 = vunpack.c.l.b16 %v3068
        %v3170 = vunpack.c.h.b16 %v3068
        %v3171 = vunpack.c.l.b16 %v3069
        %v3172 = vunpack.c.l.b16 %v3070
        %v3173 = vunpack.c.h.b16 %v3070
        %v3174 = vunpack.c.l.b16 %v3071
        %v3175 = vunpack.c.l.b16 %v3072
        %v3176 = vunpack.c.h.b16 %v3072
        %v3177 = vunpack.c.l.b16 %v3073
        %v3178 = vunpack.c.l.b16 %v3074
        %v3179 = vunpack.c.h.b16 %v3074
        %v3180 = vunpack.c.l.b16 %v3075
        %v3181 = vunpack.c.l.b16 %v3076
        %v3182 = vunpack.c.h.b16 %v3076
        %v3183 = vunpack.c.l.b16 %v3077
        %v3184 = vunpack.c.l.b16 %v3078
        %v3185 = vunpack.c.h.b16 %v3078
        %v3186 = vunpack.c.l.b16 %v3079
        %v3187 = vunpack.c.l.b16 %v3080
        %v3188 = vunpack.c.h.b16 %v3080
        %v3189 = vunpack.c.l.b16 %v3081
        %v3190 = vunpack.c.l.b16 %v3082
        %v3191 = vunpack.c.h.b16 %v3082
        %v3192 = vunpack.c.l.b16 %v3083
        %v3193 = vunpack.c.l.b16 %v3084
        %v3194 = vunpack.c.h.b16 %v3084
        %v3195 = vunpack.c.l.b16 %v3085
        %v3196 = vpack.c.b16 %v3133, %v3130
        %v3197 = vpack.c.b16 %v3134, %v3131
        %v3198 = vpack.c.b16 %v3135, %v3132
        %v3199 = vpack.c.b16 %v3139, %v3136
        %v3200 = vpack.c.b16 %v3140, %v3137
        %v3201 = vpack.c.b16 %v3141, %v3138
        %v3202 = vpack.c.b16 %v3145, %v3142
        %v3203 = vpack.c.b16 %v3146, %v3143
        %v3204 = vpack.c.b16 %v3147, %v3144
        %v3205 = vpack.c.b16 %v3151, %v3148
        %v3206 = vpack.c.b16 %v3152, %v3149
        %v3207 = vpack.c.b16 %v3153, %v3150
        %v3208 = vpack.c.b16 %v3157, %v3154
        %v3209 = vpack.c.b16 %v3158, %v3155
        %v3210 = vpack.c.b16 %v3159, %v3156
        %v3211 = vpack.c.b16 %v3163, %v3160
        %v3212 = vpack.c.b16 %v3164, %v3161
        %v3213 = vpack.c.b16 %v3165, %v3162
        %v3214 = vpack.c.b16 %v3169, %v3166
        %v3215 = vpack.c.b16 %v3170, %v3167
        %v3216 = vpack.c.b16 %v3171, %v3168
        %v3217 = vpack.c.b16 %v3175, %v3172
        %v3218 = vpack.c.b16 %v3176, %v3173
        %v3219 = vpack.c.b16 %v3177, %v3174
        %v3220 = vpack.c.b16 %v3181, %v3178
        %v3221 = vpack.c.b16 %v3182, %v3179
        %v3222 = vpack.c.b16 %v3183, %v3180
        %v3223 = vpack.c.b16 %v3187, %v3184
        %v3224 = vpack.c.b16 %v3188, %v3185
        %v3225 = vpack.c.b16 %v3189, %v3186
        %v3226 = vpack.c.b16 %v3193, %v3190
        %v3227 = vpack.c.b16 %v3194, %v3191
        %v3228 = vpack.c.b16 %v3195, %v3192
        %v3263 = vsel %vm655, %v3036, 0
        %v3266 = vsel %vm655, %v3038, 0
        %v3269 = vsel %vm655, %v3040, 0
        %3271 = vmatprep.subr.bf16.mxu0 %v3197
        %3272 = vmatpush1.bf16.msra.mxu0 %v3196
        %3273 = vmatprep.subr.bf16.mxu0 %v3200
        %3274 = vmatpush1.bf16.msra.mxu0 %v3199
        %3275 = vmatprep.subr.bf16.mxu0 %v3203
        %3276 = vmatpush1.bf16.msra.mxu0 %v3202
        %3277 = vmatprep.subr.bf16.mxu0 %v3206
        %3278 = vmatpush1.bf16.msra.mxu0 %v3205
        %3279 = vmatprep.subr.bf16.mxu0 %v3209
        %3280 = vmatpush1.bf16.msra.mxu0 %v3208
        %3281 = vmatprep.subr.bf16.mxu0 %v3212
        %3282 = vmatpush1.bf16.msra.mxu0 %v3211
        %3283 = vmatprep.subr.bf16.mxu0 %v3215
        %3284 = vmatpush1.bf16.msra.mxu0 %v3214
        %3285 = vmatprep.subr.bf16.mxu0 %v3218
        %3286 = vmatpush1.bf16.msra.mxu0 %v3217
        %3287 = vmatprep.subr.bf16.mxu0 %v3221
        %3288 = vmatpush1.bf16.msra.mxu0 %v3220
        %3289 = vmatprep.subr.bf16.mxu0 %v3224
        %3290 = vmatpush1.bf16.msra.mxu0 %v3223
        %3291 = vmatprep.subr.bf16.mxu0 %v3227
        %3292 = vmatpush1.bf16.msra.mxu0 %v3226
        %3293 = vmatprep.subr.bf16.mxu0 0
        %3294 = vmatpush1.bf16.msra.mxu0 0
        %3295 = vmatprep.subr.bf16.mxu0 0
        %3296 = vmatpush1.bf16.msra.mxu0 0
        %3297 = vmatprep.subr.bf16.mxu0 0
        %3298 = vmatpush1.bf16.msra.mxu0 0
        %3299 = vmatprep.subr.bf16.mxu0 0
        %3300 = vmatpush1.bf16.msra.mxu0 0
        %3301 = vmatprep.subr.bf16.mxu0 0
        %3302 = vmatpush1.bf16.msra.mxu0 0
        %3303 = vmatprep.mubr.bf16.mxu0 %v3263
        %3304 = vmatmul.mubr.bf16.gmra.mrb[0].mxu0 %v3035
        %v3305 = vpop.f32.mrb[0].mxu0
        %v3306 = vadd.f32 0.0, %v3305
        %v3307 = vpop.f32.mrb[0].mxu0
        %v3308 = vadd.f32 0.0, %v3307
        %v3309 = vpop.f32.mrb[0].mxu0
        %v3310 = vadd.f32 0.0, %v3309
        %v3311 = vpop.f32.mrb[0].mxu0
        %v3312 = vadd.f32 0.0, %v3311
        %3313 = vmatprep.mubr.bf16.mxu0 %v3266
        %3314 = vmatmul.mubr.bf16.gmra.mrb[0].mxu0 %v3037
        %v3315 = vpop.f32.mrb[0].mxu0
        %v3316 = vadd.f32 0.0, %v3315
        %v3317 = vpop.f32.mrb[0].mxu0
        %v3318 = vadd.f32 0.0, %v3317
        %v3319 = vpop.f32.mrb[0].mxu0
        %v3320 = vadd.f32 0.0, %v3319
        %v3321 = vpop.f32.mrb[0].mxu0
        %v3322 = vadd.f32 0.0, %v3321
        %3323 = vmatprep.mubr.bf16.mxu0 %v3269
        %3324 = vmatmul.mubr.bf16.gmra.mrb[0].mxu0 %v3039
        %v3325 = vpop.f32.mrb[0].mxu0
        %v3326 = vadd.f32 0.0, %v3325
        %v3327 = vpop.f32.mrb[0].mxu0
        %v3328 = vadd.f32 0.0, %v3327
        %v3329 = vpop.f32.mrb[0].mxu0
        %v3330 = vpop.f32.mrb[0].mxu0
        %3331 = vdwg.mxu0
        %3332 = vmatprep.subr.bf16.mxu0 0
        %3333 = vmatpush1.bf16.msra.mxu0 %v3198
        %3334 = vmatprep.subr.bf16.mxu0 0
        %3335 = vmatpush1.bf16.msra.mxu0 %v3201
        %3336 = vmatprep.subr.bf16.mxu0 0
        %3337 = vmatpush1.bf16.msra.mxu0 %v3204
        %3338 = vmatprep.subr.bf16.mxu0 0
        %3339 = vmatpush1.bf16.msra.mxu0 %v3207
        %3340 = vmatprep.subr.bf16.mxu0 0
        %3341 = vmatpush1.bf16.msra.mxu0 %v3210
        %3342 = vmatprep.subr.bf16.mxu0 0
        %3343 = vmatpush1.bf16.msra.mxu0 %v3213
        %3344 = vmatprep.subr.bf16.mxu0 0
        %3345 = vmatpush1.bf16.msra.mxu0 %v3216
        %3346 = vmatprep.subr.bf16.mxu0 0
        %3347 = vmatpush1.bf16.msra.mxu0 %v3219
        %3348 = vmatprep.subr.bf16.mxu0 0
        %3349 = vmatpush1.bf16.msra.mxu0 %v3222
        %3350 = vmatprep.subr.bf16.mxu0 0
        %3351 = vmatpush1.bf16.msra.mxu0 %v3225
        %3352 = vmatprep.subr.bf16.mxu0 0
        %3353 = vmatpush1.bf16.msra.mxu0 %v3228
        %3354 = vmatprep.subr.bf16.mxu0 0
        %3355 = vmatpush1.bf16.msra.mxu0 0
        %3356 = vmatprep.subr.bf16.mxu0 0
        %3357 = vmatpush1.bf16.msra.mxu0 0
        %3358 = vmatprep.subr.bf16.mxu0 0
        %3359 = vmatpush1.bf16.msra.mxu0 0
        %3360 = vmatprep.subr.bf16.mxu0 0
        %3361 = vmatpush1.bf16.msra.mxu0 0
        %3362 = vmatprep.subr.bf16.mxu0 0
        %3363 = vmatpush1.bf16.msra.mxu0 0
        %3364 = vmatprep.mubr.bf16.mxu0 %v3263
        %3365 = vmatmul.mubr.bf16.gmra.mrb[0].mxu0 %v3035
        %v3366 = vpop.f32.mrb[0].mxu0
        %v3367 = vadd.f32 0.0, %v3366
        %v3368 = vpop.f32.mrb[0].mxu0
        %v3369 = vpop.f32.mrb[0].mxu0
        %v3370 = vadd.f32 0.0, %v3369
        %v3371 = vpop.f32.mrb[0].mxu0
        %3372 = vmatprep.mubr.bf16.mxu0 %v3266
        %3373 = vmatmul.mubr.bf16.gmra.mrb[0].mxu0 %v3037
        %v3374 = vpop.f32.mrb[0].mxu0
        %v3375 = vadd.f32 0.0, %v3374
        %v3376 = vpop.f32.mrb[0].mxu0
        %v3377 = vpop.f32.mrb[0].mxu0
        %v3378 = vadd.f32 0.0, %v3377
        %v3379 = vpop.f32.mrb[0].mxu0
        %3380 = vmatprep.mubr.bf16.mxu0 %v3269
        %3381 = vmatmul.mubr.bf16.gmra.mrb[0].mxu0 %v3039
        %v3382 = vpop.f32.mrb[0].mxu0
        %v3383 = vadd.f32 0.0, %v3382
        %v3384 = vpop.f32.mrb[0].mxu0
        %v3385 = vpop.f32.mrb[0].mxu0
        %v3386 = vpop.f32.mrb[0].mxu0
        %3387 = vdwg.mxu0
        %v3388 = vadd.f32 %v2920, %v3306
        %v3389 = vadd.f32 %v2921, %v3308
        %v3390 = vadd.f32 %v2922, %v3367
        %v3391 = vadd.f32 %v2923, %v3310
        %v3392 = vadd.f32 %v2924, %v3312
        %v3393 = vadd.f32 %v2925, %v3370
        %v3394 = vadd.f32 %v2926, %v3316
        %v3395 = vadd.f32 %v2927, %v3318
        %v3396 = vadd.f32 %v2928, %v3375
        %v3397 = vadd.f32 %v2929, %v3320
        %v3398 = vadd.f32 %v2930, %v3322
        %v3399 = vadd.f32 %v2931, %v3378
        %v3400 = vadd.f32 %v2932, %v3326
        %v3401 = vadd.f32 %v2933, %v3328
        %v3402 = vadd.f32 %v2934, %v3383
        %s3403 = scalar_lea.vmem %s1, 240
        %v3404 = vld [vmem:[%s3403] sm:$0xff]
        %v3405 = vld [vmem:[%s3403 + $0x8] sm:$0xff]
        %v3406 = vld [vmem:[%s3403 + $0x10] sm:$0xff]
        %v3407 = vld [vmem:[%s3403 + $0x18] sm:$0xff]
        %v3408 = vld [vmem:[%s3403 + $0x20] sm:$0xff]
        %v3414 = vunpack.c.l.b16 %v3404
        %v3415 = vunpack.c.h.b16 %v3404
        %v3416 = vunpack.c.l.b16 %v3405
        %v3417 = vunpack.c.h.b16 %v3405
        %v3418 = vunpack.c.l.b16 %v3406
        %v3419 = vunpack.c.h.b16 %v3406
        %v3420 = vunpack.c.l.b16 %v3407
        %v3421 = vunpack.c.h.b16 %v3407
        %v3422 = vunpack.c.l.b16 %v3408
        %v3423 = vunpack.c.h.b16 %v3408
        %v3424 = vpack.c.b16 %v3416, %v3414
        %v3425 = vpack.c.b16 %v3417, %v3415
        %v3426 = vpack.c.b16 %v3420, %v3418
        %v3427 = vpack.c.b16 %v3421, %v3419
        %v3428 = vpack.c.b16 %v3422, %v3422
        %v3429 = vpack.c.b16 %v3423, %v3423
        %v3434 = vsel %vm655, %v3425, 0
        %v3437 = vsel %vm655, %v3427, 0
        %v3440 = vsel %vm655, %v3429, 0
        %3442 = vmatprep.subr.bf16.mxu0 %v612
        %3443 = vmatpush1.bf16.msra.mxu0 %v611
        %3444 = vmatprep.subr.bf16.mxu0 %v614
        %3445 = vmatpush1.bf16.msra.mxu0 %v613
        %3446 = vmatprep.subr.bf16.mxu0 %v616
        %3447 = vmatpush1.bf16.msra.mxu0 %v615
        %3448 = vmatprep.subr.bf16.mxu0 %v618
        %3449 = vmatpush1.bf16.msra.mxu0 %v617
        %3450 = vmatprep.subr.bf16.mxu0 %v620
        %3451 = vmatpush1.bf16.msra.mxu0 %v619
        %3452 = vmatprep.subr.bf16.mxu0 %v622
        %3453 = vmatpush1.bf16.msra.mxu0 %v621
        %3454 = vmatprep.subr.bf16.mxu0 %v624
        %3455 = vmatpush1.bf16.msra.mxu0 %v623
        %3456 = vmatprep.subr.bf16.mxu0 %v626
        %3457 = vmatpush1.bf16.msra.mxu0 %v625
        %3458 = vmatprep.subr.bf16.mxu0 %v628
        %3459 = vmatpush1.bf16.msra.mxu0 %v627
        %3460 = vmatprep.subr.bf16.mxu0 %v630
        %3461 = vmatpush1.bf16.msra.mxu0 %v629
        %3462 = vmatprep.subr.bf16.mxu0 %v632
        %3463 = vmatpush1.bf16.msra.mxu0 %v631
        %3464 = vmatprep.subr.bf16.mxu0 0
        %3465 = vmatpush1.bf16.msra.mxu0 0
        %3466 = vmatprep.subr.bf16.mxu0 0
        %3467 = vmatpush1.bf16.msra.mxu0 0
        %3468 = vmatprep.subr.bf16.mxu0 0
        %3469 = vmatpush1.bf16.msra.mxu0 0
        %3470 = vmatprep.subr.bf16.mxu0 0
        %3471 = vmatpush1.bf16.msra.mxu0 0
        %3472 = vmatprep.subr.bf16.mxu0 0
        %3473 = vmatpush1.bf16.msra.mxu0 0
        %3474 = vmatprep.mubr.bf16.mxu0 %v3434
        %3475 = vmatmul.mubr.bf16.gmra.mrb[0].mxu0 %v3424
        %v3476 = vpop.f32.mrb[0].mxu0
        %v3477 = vadd.f32 0.0, %v3476
        %v3478 = vpop.f32.mrb[0].mxu0
        %v3479 = vadd.f32 0.0, %v3478
        %v3480 = vpop.f32.mrb[0].mxu0
        %v3481 = vadd.f32 0.0, %v3480
        %v3482 = vpop.f32.mrb[0].mxu0
        %v3483 = vadd.f32 0.0, %v3482
        %3484 = vmatprep.mubr.bf16.mxu0 %v3437
        %3485 = vmatmul.mubr.bf16.gmra.mrb[0].mxu0 %v3426
        %v3486 = vpop.f32.mrb[0].mxu0
        %v3487 = vadd.f32 0.0, %v3486
        %v3488 = vpop.f32.mrb[0].mxu0
        %v3489 = vadd.f32 0.0, %v3488
        %v3490 = vpop.f32.mrb[0].mxu0
        %v3491 = vadd.f32 0.0, %v3490
        %v3492 = vpop.f32.mrb[0].mxu0
        %v3493 = vadd.f32 0.0, %v3492
        %3494 = vmatprep.mubr.bf16.mxu0 %v3440
        %3495 = vmatmul.mubr.bf16.gmra.mrb[0].mxu0 %v3428
        %v3496 = vpop.f32.mrb[0].mxu0
        %v3497 = vadd.f32 0.0, %v3496
        %v3498 = vpop.f32.mrb[0].mxu0
        %v3499 = vadd.f32 0.0, %v3498
        %v3500 = vpop.f32.mrb[0].mxu0
        %v3501 = vpop.f32.mrb[0].mxu0
        %3502 = vdwg.mxu0
        %v3503 = vpack.c.bf16 %v3481, %v3477
        %v3504 = vpack.c.bf16 %v3483, %v3479
        %v3505 = vpack.c.bf16 %v3491, %v3487
        %v3506 = vpack.c.bf16 %v3493, %v3489
        %v3507 = vpack.c.bf16 %v3497, %v3497
        %v3508 = vpack.c.bf16 %v3499, %v3499
        %s3509 = scalar_lea.vmem %s2, 1584
        %v3510 = vld [vmem:[%s3509] sm:$0xff]
        %v3511 = vld [vmem:[%s3509 + $0x8] sm:$0xf]
        %v3512 = vld [vmem:[%s3509 + $0xc] sm:$0xff]
        %v3513 = vld [vmem:[%s3509 + $0x14] sm:$0xf]
        %v3514 = vld [vmem:[%s3509 + $0x18] sm:$0xff]
        %v3515 = vld [vmem:[%s3509 + $0x20] sm:$0xf]
        %v3516 = vld [vmem:[%s3509 + $0x24] sm:$0xff]
        %v3517 = vld [vmem:[%s3509 + $0x2c] sm:$0xf]
        %v3518 = vld [vmem:[%s3509 + $0x30] sm:$0xff]
        %v3519 = vld [vmem:[%s3509 + $0x38] sm:$0xf]
        %v3520 = vld [vmem:[%s3509 + $0x3c] sm:$0xff]
        %v3521 = vld [vmem:[%s3509 + $0x44] sm:$0xf]
        %v3522 = vld [vmem:[%s3509 + $0x48] sm:$0xff]
        %v3523 = vld [vmem:[%s3509 + $0x50] sm:$0xf]
        %v3524 = vld [vmem:[%s3509 + $0x54] sm:$0xff]
        %v3525 = vld [vmem:[%s3509 + $0x5c] sm:$0xf]
        %v3526 = vld [vmem:[%s3509 + $0x60] sm:$0xff]
        %v3527 = vld [vmem:[%s3509 + $0x68] sm:$0xf]
        %v3528 = vld [vmem:[%s3509 + $0x6c] sm:$0xff]
        %v3529 = vld [vmem:[%s3509 + $0x74] sm:$0xf]
        %v3530 = vld [vmem:[%s3509 + $0x78] sm:$0xff]
        %v3531 = vld [vmem:[%s3509 + $0x80] sm:$0xf]
        %v3532 = vld [vmem:[%s3509 + $0x84] sm:$0xff]
        %v3533 = vld [vmem:[%s3509 + $0x8c] sm:$0xf]
        %v3534 = vld [vmem:[%s3509 + $0x90] sm:$0xff]
        %v3535 = vld [vmem:[%s3509 + $0x98] sm:$0xf]
        %v3536 = vld [vmem:[%s3509 + $0x9c] sm:$0xff]
        %v3537 = vld [vmem:[%s3509 + $0xa4] sm:$0xf]
        %v3538 = vld [vmem:[%s3509 + $0xa8] sm:$0xff]
        %v3539 = vld [vmem:[%s3509 + $0xb0] sm:$0xf]
        %v3540 = vld [vmem:[%s3509 + $0xb4] sm:$0xff]
        %v3541 = vld [vmem:[%s3509 + $0xbc] sm:$0xf]
        %v3542 = vld [vmem:[%s3509 + $0xc0] sm:$0xff]
        %v3543 = vld [vmem:[%s3509 + $0xc8] sm:$0xf]
        %v3544 = vld [vmem:[%s3509 + $0xcc] sm:$0xff]
        %v3545 = vld [vmem:[%s3509 + $0xd4] sm:$0xf]
        %v3546 = vld [vmem:[%s3509 + $0xd8] sm:$0xff]
        %v3547 = vld [vmem:[%s3509 + $0xe0] sm:$0xf]
        %v3548 = vld [vmem:[%s3509 + $0xe4] sm:$0xff]
        %v3549 = vld [vmem:[%s3509 + $0xec] sm:$0xf]
        %v3550 = vld [vmem:[%s3509 + $0xf0] sm:$0xff]
        %v3551 = vld [vmem:[%s3509 + $0xf8] sm:$0xf]
        %v3552 = vld [vmem:[%s3509 + $0xfc] sm:$0xff]
        %v3553 = vld [vmem:[%s3509 + $0x104] sm:$0xf]
        %v3598 = vunpack.c.l.b16 %v3510
        %v3599 = vunpack.c.h.b16 %v3510
        %v3600 = vunpack.c.l.b16 %v3511
        %v3601 = vunpack.c.l.b16 %v3512
        %v3602 = vunpack.c.h.b16 %v3512
        %v3603 = vunpack.c.l.b16 %v3513
        %v3604 = vunpack.c.l.b16 %v3514
        %v3605 = vunpack.c.h.b16 %v3514
        %v3606 = vunpack.c.l.b16 %v3515
        %v3607 = vunpack.c.l.b16 %v3516
        %v3608 = vunpack.c.h.b16 %v3516
        %v3609 = vunpack.c.l.b16 %v3517
        %v3610 = vunpack.c.l.b16 %v3518
        %v3611 = vunpack.c.h.b16 %v3518
        %v3612 = vunpack.c.l.b16 %v3519
        %v3613 = vunpack.c.l.b16 %v3520
        %v3614 = vunpack.c.h.b16 %v3520
        %v3615 = vunpack.c.l.b16 %v3521
        %v3616 = vunpack.c.l.b16 %v3522
        %v3617 = vunpack.c.h.b16 %v3522
        %v3618 = vunpack.c.l.b16 %v3523
        %v3619 = vunpack.c.l.b16 %v3524
        %v3620 = vunpack.c.h.b16 %v3524
        %v3621 = vunpack.c.l.b16 %v3525
        %v3622 = vunpack.c.l.b16 %v3526
        %v3623 = vunpack.c.h.b16 %v3526
        %v3624 = vunpack.c.l.b16 %v3527
        %v3625 = vunpack.c.l.b16 %v3528
        %v3626 = vunpack.c.h.b16 %v3528
        %v3627 = vunpack.c.l.b16 %v3529
        %v3628 = vunpack.c.l.b16 %v3530
        %v3629 = vunpack.c.h.b16 %v3530
        %v3630 = vunpack.c.l.b16 %v3531
        %v3631 = vunpack.c.l.b16 %v3532
        %v3632 = vunpack.c.h.b16 %v3532
        %v3633 = vunpack.c.l.b16 %v3533
        %v3634 = vunpack.c.l.b16 %v3534
        %v3635 = vunpack.c.h.b16 %v3534
        %v3636 = vunpack.c.l.b16 %v3535
        %v3637 = vunpack.c.l.b16 %v3536
        %v3638 = vunpack.c.h.b16 %v3536
        %v3639 = vunpack.c.l.b16 %v3537
        %v3640 = vunpack.c.l.b16 %v3538
        %v3641 = vunpack.c.h.b16 %v3538
        %v3642 = vunpack.c.l.b16 %v3539
        %v3643 = vunpack.c.l.b16 %v3540
        %v3644 = vunpack.c.h.b16 %v3540
        %v3645 = vunpack.c.l.b16 %v3541
        %v3646 = vunpack.c.l.b16 %v3542
        %v3647 = vunpack.c.h.b16 %v3542
        %v3648 = vunpack.c.l.b16 %v3543
        %v3649 = vunpack.c.l.b16 %v3544
        %v3650 = vunpack.c.h.b16 %v3544
        %v3651 = vunpack.c.l.b16 %v3545
        %v3652 = vunpack.c.l.b16 %v3546
        %v3653 = vunpack.c.h.b16 %v3546
        %v3654 = vunpack.c.l.b16 %v3547
        %v3655 = vunpack.c.l.b16 %v3548
        %v3656 = vunpack.c.h.b16 %v3548
        %v3657 = vunpack.c.l.b16 %v3549
        %v3658 = vunpack.c.l.b16 %v3550
        %v3659 = vunpack.c.h.b16 %v3550
        %v3660 = vunpack.c.l.b16 %v3551
        %v3661 = vunpack.c.l.b16 %v3552
        %v3662 = vunpack.c.h.b16 %v3552
        %v3663 = vunpack.c.l.b16 %v3553
        %v3664 = vpack.c.b16 %v3601, %v3598
        %v3665 = vpack.c.b16 %v3602, %v3599
        %v3666 = vpack.c.b16 %v3603, %v3600
        %v3667 = vpack.c.b16 %v3607, %v3604
        %v3668 = vpack.c.b16 %v3608, %v3605
        %v3669 = vpack.c.b16 %v3609, %v3606
        %v3670 = vpack.c.b16 %v3613, %v3610
        %v3671 = vpack.c.b16 %v3614, %v3611
        %v3672 = vpack.c.b16 %v3615, %v3612
        %v3673 = vpack.c.b16 %v3619, %v3616
        %v3674 = vpack.c.b16 %v3620, %v3617
        %v3675 = vpack.c.b16 %v3621, %v3618
        %v3676 = vpack.c.b16 %v3625, %v3622
        %v3677 = vpack.c.b16 %v3626, %v3623
        %v3678 = vpack.c.b16 %v3627, %v3624
        %v3679 = vpack.c.b16 %v3631, %v3628
        %v3680 = vpack.c.b16 %v3632, %v3629
        %v3681 = vpack.c.b16 %v3633, %v3630
        %v3682 = vpack.c.b16 %v3637, %v3634
        %v3683 = vpack.c.b16 %v3638, %v3635
        %v3684 = vpack.c.b16 %v3639, %v3636
        %v3685 = vpack.c.b16 %v3643, %v3640
        %v3686 = vpack.c.b16 %v3644, %v3641
        %v3687 = vpack.c.b16 %v3645, %v3642
        %v3688 = vpack.c.b16 %v3649, %v3646
        %v3689 = vpack.c.b16 %v3650, %v3647
        %v3690 = vpack.c.b16 %v3651, %v3648
        %v3691 = vpack.c.b16 %v3655, %v3652
        %v3692 = vpack.c.b16 %v3656, %v3653
        %v3693 = vpack.c.b16 %v3657, %v3654
        %v3694 = vpack.c.b16 %v3661, %v3658
        %v3695 = vpack.c.b16 %v3662, %v3659
        %v3696 = vpack.c.b16 %v3663, %v3660
        %v3731 = vsel %vm655, %v3504, 0
        %v3734 = vsel %vm655, %v3506, 0
        %v3737 = vsel %vm655, %v3508, 0
        %3739 = vmatprep.subr.bf16.mxu0 %v3665
        %3740 = vmatpush1.bf16.msra.mxu0 %v3664
        %3741 = vmatprep.subr.bf16.mxu0 %v3668
        %3742 = vmatpush1.bf16.msra.mxu0 %v3667
        %3743 = vmatprep.subr.bf16.mxu0 %v3671
        %3744 = vmatpush1.bf16.msra.mxu0 %v3670
        %3745 = vmatprep.subr.bf16.mxu0 %v3674
        %3746 = vmatpush1.bf16.msra.mxu0 %v3673
        %3747 = vmatprep.subr.bf16.mxu0 %v3677
        %3748 = vmatpush1.bf16.msra.mxu0 %v3676
        %3749 = vmatprep.subr.bf16.mxu0 %v3680
        %3750 = vmatpush1.bf16.msra.mxu0 %v3679
        %3751 = vmatprep.subr.bf16.mxu0 %v3683
        %3752 = vmatpush1.bf16.msra.mxu0 %v3682
        %3753 = vmatprep.subr.bf16.mxu0 %v3686
        %3754 = vmatpush1.bf16.msra.mxu0 %v3685
        %3755 = vmatprep.subr.bf16.mxu0 %v3689
        %3756 = vmatpush1.bf16.msra.mxu0 %v3688
        %3757 = vmatprep.subr.bf16.mxu0 %v3692
        %3758 = vmatpush1.bf16.msra.mxu0 %v3691
        %3759 = vmatprep.subr.bf16.mxu0 %v3695
        %3760 = vmatpush1.bf16.msra.mxu0 %v3694
        %3761 = vmatprep.subr.bf16.mxu0 0
        %3762 = vmatpush1.bf16.msra.mxu0 0
        %3763 = vmatprep.subr.bf16.mxu0 0
        %3764 = vmatpush1.bf16.msra.mxu0 0
        %3765 = vmatprep.subr.bf16.mxu0 0
        %3766 = vmatpush1.bf16.msra.mxu0 0
        %3767 = vmatprep.subr.bf16.mxu0 0
        %3768 = vmatpush1.bf16.msra.mxu0 0
        %3769 = vmatprep.subr.bf16.mxu0 0
        %3770 = vmatpush1.bf16.msra.mxu0 0
        %3771 = vmatprep.mubr.bf16.mxu0 %v3731
        %3772 = vmatmul.mubr.bf16.gmra.mrb[0].mxu0 %v3503
        %v3773 = vpop.f32.mrb[0].mxu0
        %v3774 = vadd.f32 0.0, %v3773
        %v3775 = vpop.f32.mrb[0].mxu0
        %v3776 = vadd.f32 0.0, %v3775
        %v3777 = vpop.f32.mrb[0].mxu0
        %v3778 = vadd.f32 0.0, %v3777
        %v3779 = vpop.f32.mrb[0].mxu0
        %v3780 = vadd.f32 0.0, %v3779
        %3781 = vmatprep.mubr.bf16.mxu0 %v3734
        %3782 = vmatmul.mubr.bf16.gmra.mrb[0].mxu0 %v3505
        %v3783 = vpop.f32.mrb[0].mxu0
        %v3784 = vadd.f32 0.0, %v3783
        %v3785 = vpop.f32.mrb[0].mxu0
        %v3786 = vadd.f32 0.0, %v3785
        %v3787 = vpop.f32.mrb[0].mxu0
        %v3788 = vadd.f32 0.0, %v3787
        %v3789 = vpop.f32.mrb[0].mxu0
        %v3790 = vadd.f32 0.0, %v3789
        %3791 = vmatprep.mubr.bf16.mxu0 %v3737
        %3792 = vmatmul.mubr.bf16.gmra.mrb[0].mxu0 %v3507
        %v3793 = vpop.f32.mrb[0].mxu0
        %v3794 = vadd.f32 0.0, %v3793
        %v3795 = vpop.f32.mrb[0].mxu0
        %v3796 = vadd.f32 0.0, %v3795
        %v3797 = vpop.f32.mrb[0].mxu0
        %v3798 = vpop.f32.mrb[0].mxu0
        %3799 = vdwg.mxu0
        %3800 = vmatprep.subr.bf16.mxu0 0
        %3801 = vmatpush1.bf16.msra.mxu0 %v3666
        %3802 = vmatprep.subr.bf16.mxu0 0
        %3803 = vmatpush1.bf16.msra.mxu0 %v3669
        %3804 = vmatprep.subr.bf16.mxu0 0
        %3805 = vmatpush1.bf16.msra.mxu0 %v3672
        %3806 = vmatprep.subr.bf16.mxu0 0
        %3807 = vmatpush1.bf16.msra.mxu0 %v3675
        %3808 = vmatprep.subr.bf16.mxu0 0
        %3809 = vmatpush1.bf16.msra.mxu0 %v3678
        %3810 = vmatprep.subr.bf16.mxu0 0
        %3811 = vmatpush1.bf16.msra.mxu0 %v3681
        %3812 = vmatprep.subr.bf16.mxu0 0
        %3813 = vmatpush1.bf16.msra.mxu0 %v3684
        %3814 = vmatprep.subr.bf16.mxu0 0
        %3815 = vmatpush1.bf16.msra.mxu0 %v3687
        %3816 = vmatprep.subr.bf16.mxu0 0
        %3817 = vmatpush1.bf16.msra.mxu0 %v3690
        %3818 = vmatprep.subr.bf16.mxu0 0
        %3819 = vmatpush1.bf16.msra.mxu0 %v3693
        %3820 = vmatprep.subr.bf16.mxu0 0
        %3821 = vmatpush1.bf16.msra.mxu0 %v3696
        %3822 = vmatprep.subr.bf16.mxu0 0
        %3823 = vmatpush1.bf16.msra.mxu0 0
        %3824 = vmatprep.subr.bf16.mxu0 0
        %3825 = vmatpush1.bf16.msra.mxu0 0
        %3826 = vmatprep.subr.bf16.mxu0 0
        %3827 = vmatpush1.bf16.msra.mxu0 0
        %3828 = vmatprep.subr.bf16.mxu0 0
        %3829 = vmatpush1.bf16.msra.mxu0 0
        %3830 = vmatprep.subr.bf16.mxu0 0
        %3831 = vmatpush1.bf16.msra.mxu0 0
        %3832 = vmatprep.mubr.bf16.mxu0 %v3731
        %3833 = vmatmul.mubr.bf16.gmra.mrb[0].mxu0 %v3503
        %v3834 = vpop.f32.mrb[0].mxu0
        %v3835 = vadd.f32 0.0, %v3834
        %v3836 = vpop.f32.mrb[0].mxu0
        %v3837 = vpop.f32.mrb[0].mxu0
        %v3838 = vadd.f32 0.0, %v3837
        %v3839 = vpop.f32.mrb[0].mxu0
        %3840 = vmatprep.mubr.bf16.mxu0 %v3734
        %3841 = vmatmul.mubr.bf16.gmra.mrb[0].mxu0 %v3505
        %v3842 = vpop.f32.mrb[0].mxu0
        %v3843 = vadd.f32 0.0, %v3842
        %v3844 = vpop.f32.mrb[0].mxu0
        %v3845 = vpop.f32.mrb[0].mxu0
        %v3846 = vadd.f32 0.0, %v3845
        %v3847 = vpop.f32.mrb[0].mxu0
        %3848 = vmatprep.mubr.bf16.mxu0 %v3737
        %3849 = vmatmul.mubr.bf16.gmra.mrb[0].mxu0 %v3507
        %v3850 = vpop.f32.mrb[0].mxu0
        %v3851 = vadd.f32 0.0, %v3850
        %v3852 = vpop.f32.mrb[0].mxu0
        %v3853 = vpop.f32.mrb[0].mxu0
        %v3854 = vpop.f32.mrb[0].mxu0
        %3855 = vdwg.mxu0
        %v3856 = vadd.f32 %v3388, %v3774
        %v3857 = vadd.f32 %v3389, %v3776
        %v3858 = vadd.f32 %v3390, %v3835
        %v3859 = vadd.f32 %v3391, %v3778
        %v3860 = vadd.f32 %v3392, %v3780
        %v3861 = vadd.f32 %v3393, %v3838
        %v3862 = vadd.f32 %v3394, %v3784
        %v3863 = vadd.f32 %v3395, %v3786
        %v3864 = vadd.f32 %v3396, %v3843
        %v3865 = vadd.f32 %v3397, %v3788
        %v3866 = vadd.f32 %v3398, %v3790
        %v3867 = vadd.f32 %v3399, %v3846
        %v3868 = vadd.f32 %v3400, %v3794
        %v3869 = vadd.f32 %v3401, %v3796
        %v3870 = vadd.f32 %v3402, %v3851
        %s3871 = scalar_lea.vmem %s1, 280
        %v3872 = vld [vmem:[%s3871] sm:$0xff]
        %v3873 = vld [vmem:[%s3871 + $0x8] sm:$0xff]
        %v3874 = vld [vmem:[%s3871 + $0x10] sm:$0xff]
        %v3875 = vld [vmem:[%s3871 + $0x18] sm:$0xff]
        %v3876 = vld [vmem:[%s3871 + $0x20] sm:$0xff]
        %v3882 = vunpack.c.l.b16 %v3872
        %v3883 = vunpack.c.h.b16 %v3872
        %v3884 = vunpack.c.l.b16 %v3873
        %v3885 = vunpack.c.h.b16 %v3873
        %v3886 = vunpack.c.l.b16 %v3874
        %v3887 = vunpack.c.h.b16 %v3874
        %v3888 = vunpack.c.l.b16 %v3875
        %v3889 = vunpack.c.h.b16 %v3875
        %v3890 = vunpack.c.l.b16 %v3876
        %v3891 = vunpack.c.h.b16 %v3876
        %v3892 = vpack.c.b16 %v3884, %v3882
        %v3893 = vpack.c.b16 %v3885, %v3883
        %v3894 = vpack.c.b16 %v3888, %v3886
        %v3895 = vpack.c.b16 %v3889, %v3887
        %v3896 = vpack.c.b16 %v3890, %v3890
        %v3897 = vpack.c.b16 %v3891, %v3891
        %v3902 = vsel %vm655, %v3893, 0
        %v3905 = vsel %vm655, %v3895, 0
        %v3908 = vsel %vm655, %v3897, 0
        %3910 = vmatprep.subr.bf16.mxu0 %v612
        %3911 = vmatpush1.bf16.msra.mxu0 %v611
        %3912 = vmatprep.subr.bf16.mxu0 %v614
        %3913 = vmatpush1.bf16.msra.mxu0 %v613
        %3914 = vmatprep.subr.bf16.mxu0 %v616
        %3915 = vmatpush1.bf16.msra.mxu0 %v615
        %3916 = vmatprep.subr.bf16.mxu0 %v618
        %3917 = vmatpush1.bf16.msra.mxu0 %v617
        %3918 = vmatprep.subr.bf16.mxu0 %v620
        %3919 = vmatpush1.bf16.msra.mxu0 %v619
        %3920 = vmatprep.subr.bf16.mxu0 %v622
        %3921 = vmatpush1.bf16.msra.mxu0 %v621
        %3922 = vmatprep.subr.bf16.mxu0 %v624
        %3923 = vmatpush1.bf16.msra.mxu0 %v623
        %3924 = vmatprep.subr.bf16.mxu0 %v626
        %3925 = vmatpush1.bf16.msra.mxu0 %v625
        %3926 = vmatprep.subr.bf16.mxu0 %v628
        %3927 = vmatpush1.bf16.msra.mxu0 %v627
        %3928 = vmatprep.subr.bf16.mxu0 %v630
        %3929 = vmatpush1.bf16.msra.mxu0 %v629
        %3930 = vmatprep.subr.bf16.mxu0 %v632
        %3931 = vmatpush1.bf16.msra.mxu0 %v631
        %3932 = vmatprep.subr.bf16.mxu0 0
        %3933 = vmatpush1.bf16.msra.mxu0 0
        %3934 = vmatprep.subr.bf16.mxu0 0
        %3935 = vmatpush1.bf16.msra.mxu0 0
        %3936 = vmatprep.subr.bf16.mxu0 0
        %3937 = vmatpush1.bf16.msra.mxu0 0
        %3938 = vmatprep.subr.bf16.mxu0 0
        %3939 = vmatpush1.bf16.msra.mxu0 0
        %3940 = vmatprep.subr.bf16.mxu0 0
        %3941 = vmatpush1.bf16.msra.mxu0 0
        %3942 = vmatprep.mubr.bf16.mxu0 %v3902
        %3943 = vmatmul.mubr.bf16.gmra.mrb[0].mxu0 %v3892
        %v3944 = vpop.f32.mrb[0].mxu0
        %v3945 = vadd.f32 0.0, %v3944
        %v3946 = vpop.f32.mrb[0].mxu0
        %v3947 = vadd.f32 0.0, %v3946
        %v3948 = vpop.f32.mrb[0].mxu0
        %v3949 = vadd.f32 0.0, %v3948
        %v3950 = vpop.f32.mrb[0].mxu0
        %v3951 = vadd.f32 0.0, %v3950
        %3952 = vmatprep.mubr.bf16.mxu0 %v3905
        %3953 = vmatmul.mubr.bf16.gmra.mrb[0].mxu0 %v3894
        %v3954 = vpop.f32.mrb[0].mxu0
        %v3955 = vadd.f32 0.0, %v3954
        %v3956 = vpop.f32.mrb[0].mxu0
        %v3957 = vadd.f32 0.0, %v3956
        %v3958 = vpop.f32.mrb[0].mxu0
        %v3959 = vadd.f32 0.0, %v3958
        %v3960 = vpop.f32.mrb[0].mxu0
        %v3961 = vadd.f32 0.0, %v3960
        %3962 = vmatprep.mubr.bf16.mxu0 %v3908
        %3963 = vmatmul.mubr.bf16.gmra.mrb[0].mxu0 %v3896
        %v3964 = vpop.f32.mrb[0].mxu0
        %v3965 = vadd.f32 0.0, %v3964
        %v3966 = vpop.f32.mrb[0].mxu0
        %v3967 = vadd.f32 0.0, %v3966
        %v3968 = vpop.f32.mrb[0].mxu0
        %v3969 = vpop.f32.mrb[0].mxu0
        %3970 = vdwg.mxu0
        %v3971 = vpack.c.bf16 %v3949, %v3945
        %v3972 = vpack.c.bf16 %v3951, %v3947
        %v3973 = vpack.c.bf16 %v3959, %v3955
        %v3974 = vpack.c.bf16 %v3961, %v3957
        %v3975 = vpack.c.bf16 %v3965, %v3965
        %v3976 = vpack.c.bf16 %v3967, %v3967
        %s3977 = scalar_lea.vmem %s2, 1848
        %v3978 = vld [vmem:[%s3977] sm:$0xff]
        %v3979 = vld [vmem:[%s3977 + $0x8] sm:$0xf]
        %v3980 = vld [vmem:[%s3977 + $0xc] sm:$0xff]
        %v3981 = vld [vmem:[%s3977 + $0x14] sm:$0xf]
        %v3982 = vld [vmem:[%s3977 + $0x18] sm:$0xff]
        %v3983 = vld [vmem:[%s3977 + $0x20] sm:$0xf]
        %v3984 = vld [vmem:[%s3977 + $0x24] sm:$0xff]
        %v3985 = vld [vmem:[%s3977 + $0x2c] sm:$0xf]
        %v3986 = vld [vmem:[%s3977 + $0x30] sm:$0xff]
        %v3987 = vld [vmem:[%s3977 + $0x38] sm:$0xf]
        %v3988 = vld [vmem:[%s3977 + $0x3c] sm:$0xff]
        %v3989 = vld [vmem:[%s3977 + $0x44] sm:$0xf]
        %v3990 = vld [vmem:[%s3977 + $0x48] sm:$0xff]
        %v3991 = vld [vmem:[%s3977 + $0x50] sm:$0xf]
        %v3992 = vld [vmem:[%s3977 + $0x54] sm:$0xff]
        %v3993 = vld [vmem:[%s3977 + $0x5c] sm:$0xf]
        %v3994 = vld [vmem:[%s3977 + $0x60] sm:$0xff]
        %v3995 = vld [vmem:[%s3977 + $0x68] sm:$0xf]
        %v3996 = vld [vmem:[%s3977 + $0x6c] sm:$0xff]
        %v3997 = vld [vmem:[%s3977 + $0x74] sm:$0xf]
        %v3998 = vld [vmem:[%s3977 + $0x78] sm:$0xff]
        %v3999 = vld [vmem:[%s3977 + $0x80] sm:$0xf]
        %v4000 = vld [vmem:[%s3977 + $0x84] sm:$0xff]
        %v4001 = vld [vmem:[%s3977 + $0x8c] sm:$0xf]
        %v4002 = vld [vmem:[%s3977 + $0x90] sm:$0xff]
        %v4003 = vld [vmem:[%s3977 + $0x98] sm:$0xf]
        %v4004 = vld [vmem:[%s3977 + $0x9c] sm:$0xff]
        %v4005 = vld [vmem:[%s3977 + $0xa4] sm:$0xf]
        %v4006 = vld [vmem:[%s3977 + $0xa8] sm:$0xff]
        %v4007 = vld [vmem:[%s3977 + $0xb0] sm:$0xf]
        %v4008 = vld [vmem:[%s3977 + $0xb4] sm:$0xff]
        %v4009 = vld [vmem:[%s3977 + $0xbc] sm:$0xf]
        %v4010 = vld [vmem:[%s3977 + $0xc0] sm:$0xff]
        %v4011 = vld [vmem:[%s3977 + $0xc8] sm:$0xf]
        %v4012 = vld [vmem:[%s3977 + $0xcc] sm:$0xff]
        %v4013 = vld [vmem:[%s3977 + $0xd4] sm:$0xf]
        %v4014 = vld [vmem:[%s3977 + $0xd8] sm:$0xff]
        %v4015 = vld [vmem:[%s3977 + $0xe0] sm:$0xf]
        %v4016 = vld [vmem:[%s3977 + $0xe4] sm:$0xff]
        %v4017 = vld [vmem:[%s3977 + $0xec] sm:$0xf]
        %v4018 = vld [vmem:[%s3977 + $0xf0] sm:$0xff]
        %v4019 = vld [vmem:[%s3977 + $0xf8] sm:$0xf]
        %v4020 = vld [vmem:[%s3977 + $0xfc] sm:$0xff]
        %v4021 = vld [vmem:[%s3977 + $0x104] sm:$0xf]
        %v4066 = vunpack.c.l.b16 %v3978
        %v4067 = vunpack.c.h.b16 %v3978
        %v4068 = vunpack.c.l.b16 %v3979
        %v4069 = vunpack.c.l.b16 %v3980
        %v4070 = vunpack.c.h.b16 %v3980
        %v4071 = vunpack.c.l.b16 %v3981
        %v4072 = vunpack.c.l.b16 %v3982
        %v4073 = vunpack.c.h.b16 %v3982
        %v4074 = vunpack.c.l.b16 %v3983
        %v4075 = vunpack.c.l.b16 %v3984
        %v4076 = vunpack.c.h.b16 %v3984
        %v4077 = vunpack.c.l.b16 %v3985
        %v4078 = vunpack.c.l.b16 %v3986
        %v4079 = vunpack.c.h.b16 %v3986
        %v4080 = vunpack.c.l.b16 %v3987
        %v4081 = vunpack.c.l.b16 %v3988
        %v4082 = vunpack.c.h.b16 %v3988
        %v4083 = vunpack.c.l.b16 %v3989
        %v4084 = vunpack.c.l.b16 %v3990
        %v4085 = vunpack.c.h.b16 %v3990
        %v4086 = vunpack.c.l.b16 %v3991
        %v4087 = vunpack.c.l.b16 %v3992
        %v4088 = vunpack.c.h.b16 %v3992
        %v4089 = vunpack.c.l.b16 %v3993
        %v4090 = vunpack.c.l.b16 %v3994
        %v4091 = vunpack.c.h.b16 %v3994
        %v4092 = vunpack.c.l.b16 %v3995
        %v4093 = vunpack.c.l.b16 %v3996
        %v4094 = vunpack.c.h.b16 %v3996
        %v4095 = vunpack.c.l.b16 %v3997
        %v4096 = vunpack.c.l.b16 %v3998
        %v4097 = vunpack.c.h.b16 %v3998
        %v4098 = vunpack.c.l.b16 %v3999
        %v4099 = vunpack.c.l.b16 %v4000
        %v4100 = vunpack.c.h.b16 %v4000
        %v4101 = vunpack.c.l.b16 %v4001
        %v4102 = vunpack.c.l.b16 %v4002
        %v4103 = vunpack.c.h.b16 %v4002
        %v4104 = vunpack.c.l.b16 %v4003
        %v4105 = vunpack.c.l.b16 %v4004
        %v4106 = vunpack.c.h.b16 %v4004
        %v4107 = vunpack.c.l.b16 %v4005
        %v4108 = vunpack.c.l.b16 %v4006
        %v4109 = vunpack.c.h.b16 %v4006
        %v4110 = vunpack.c.l.b16 %v4007
        %v4111 = vunpack.c.l.b16 %v4008
        %v4112 = vunpack.c.h.b16 %v4008
        %v4113 = vunpack.c.l.b16 %v4009
        %v4114 = vunpack.c.l.b16 %v4010
        %v4115 = vunpack.c.h.b16 %v4010
        %v4116 = vunpack.c.l.b16 %v4011
        %v4117 = vunpack.c.l.b16 %v4012
        %v4118 = vunpack.c.h.b16 %v4012
        %v4119 = vunpack.c.l.b16 %v4013
        %v4120 = vunpack.c.l.b16 %v4014
        %v4121 = vunpack.c.h.b16 %v4014
        %v4122 = vunpack.c.l.b16 %v4015
        %v4123 = vunpack.c.l.b16 %v4016
        %v4124 = vunpack.c.h.b16 %v4016
        %v4125 = vunpack.c.l.b16 %v4017
        %v4126 = vunpack.c.l.b16 %v4018
        %v4127 = vunpack.c.h.b16 %v4018
        %v4128 = vunpack.c.l.b16 %v4019
        %v4129 = vunpack.c.l.b16 %v4020
        %v4130 = vunpack.c.h.b16 %v4020
        %v4131 = vunpack.c.l.b16 %v4021
        %v4132 = vpack.c.b16 %v4069, %v4066
        %v4133 = vpack.c.b16 %v4070, %v4067
        %v4134 = vpack.c.b16 %v4071, %v4068
        %v4135 = vpack.c.b16 %v4075, %v4072
        %v4136 = vpack.c.b16 %v4076, %v4073
        %v4137 = vpack.c.b16 %v4077, %v4074
        %v4138 = vpack.c.b16 %v4081, %v4078
        %v4139 = vpack.c.b16 %v4082, %v4079
        %v4140 = vpack.c.b16 %v4083, %v4080
        %v4141 = vpack.c.b16 %v4087, %v4084
        %v4142 = vpack.c.b16 %v4088, %v4085
        %v4143 = vpack.c.b16 %v4089, %v4086
        %v4144 = vpack.c.b16 %v4093, %v4090
        %v4145 = vpack.c.b16 %v4094, %v4091
        %v4146 = vpack.c.b16 %v4095, %v4092
        %v4147 = vpack.c.b16 %v4099, %v4096
        %v4148 = vpack.c.b16 %v4100, %v4097
        %v4149 = vpack.c.b16 %v4101, %v4098
        %v4150 = vpack.c.b16 %v4105, %v4102
        %v4151 = vpack.c.b16 %v4106, %v4103
        %v4152 = vpack.c.b16 %v4107, %v4104
        %v4153 = vpack.c.b16 %v4111, %v4108
        %v4154 = vpack.c.b16 %v4112, %v4109
        %v4155 = vpack.c.b16 %v4113, %v4110
        %v4156 = vpack.c.b16 %v4117, %v4114
        %v4157 = vpack.c.b16 %v4118, %v4115
        %v4158 = vpack.c.b16 %v4119, %v4116
        %v4159 = vpack.c.b16 %v4123, %v4120
        %v4160 = vpack.c.b16 %v4124, %v4121
        %v4161 = vpack.c.b16 %v4125, %v4122
        %v4162 = vpack.c.b16 %v4129, %v4126
        %v4163 = vpack.c.b16 %v4130, %v4127
        %v4164 = vpack.c.b16 %v4131, %v4128
        %v4199 = vsel %vm655, %v3972, 0
        %v4202 = vsel %vm655, %v3974, 0
        %v4205 = vsel %vm655, %v3976, 0
        %4207 = vmatprep.subr.bf16.mxu0 %v4133
        %4208 = vmatpush1.bf16.msra.mxu0 %v4132
        %4209 = vmatprep.subr.bf16.mxu0 %v4136
        %4210 = vmatpush1.bf16.msra.mxu0 %v4135
        %4211 = vmatprep.subr.bf16.mxu0 %v4139
        %4212 = vmatpush1.bf16.msra.mxu0 %v4138
        %4213 = vmatprep.subr.bf16.mxu0 %v4142
        %4214 = vmatpush1.bf16.msra.mxu0 %v4141
        %4215 = vmatprep.subr.bf16.mxu0 %v4145
        %4216 = vmatpush1.bf16.msra.mxu0 %v4144
        %4217 = vmatprep.subr.bf16.mxu0 %v4148
        %4218 = vmatpush1.bf16.msra.mxu0 %v4147
        %4219 = vmatprep.subr.bf16.mxu0 %v4151
        %4220 = vmatpush1.bf16.msra.mxu0 %v4150
        %4221 = vmatprep.subr.bf16.mxu0 %v4154
        %4222 = vmatpush1.bf16.msra.mxu0 %v4153
        %4223 = vmatprep.subr.bf16.mxu0 %v4157
        %4224 = vmatpush1.bf16.msra.mxu0 %v4156
        %4225 = vmatprep.subr.bf16.mxu0 %v4160
        %4226 = vmatpush1.bf16.msra.mxu0 %v4159
        %4227 = vmatprep.subr.bf16.mxu0 %v4163
        %4228 = vmatpush1.bf16.msra.mxu0 %v4162
        %4229 = vmatprep.subr.bf16.mxu0 0
        %4230 = vmatpush1.bf16.msra.mxu0 0
        %4231 = vmatprep.subr.bf16.mxu0 0
        %4232 = vmatpush1.bf16.msra.mxu0 0
        %4233 = vmatprep.subr.bf16.mxu0 0
        %4234 = vmatpush1.bf16.msra.mxu0 0
        %4235 = vmatprep.subr.bf16.mxu0 0
        %4236 = vmatpush1.bf16.msra.mxu0 0
        %4237 = vmatprep.subr.bf16.mxu0 0
        %4238 = vmatpush1.bf16.msra.mxu0 0
        %4239 = vmatprep.mubr.bf16.mxu0 %v4199
        %4240 = vmatmul.mubr.bf16.gmra.mrb[0].mxu0 %v3971
        %v4241 = vpop.f32.mrb[0].mxu0
        %v4242 = vadd.f32 0.0, %v4241
        %v4243 = vpop.f32.mrb[0].mxu0
        %v4244 = vadd.f32 0.0, %v4243
        %v4245 = vpop.f32.mrb[0].mxu0
        %v4246 = vadd.f32 0.0, %v4245
        %v4247 = vpop.f32.mrb[0].mxu0
        %v4248 = vadd.f32 0.0, %v4247
        %4249 = vmatprep.mubr.bf16.mxu0 %v4202
        %4250 = vmatmul.mubr.bf16.gmra.mrb[0].mxu0 %v3973
        %v4251 = vpop.f32.mrb[0].mxu0
        %v4252 = vadd.f32 0.0, %v4251
        %v4253 = vpop.f32.mrb[0].mxu0
        %v4254 = vadd.f32 0.0, %v4253
        %v4255 = vpop.f32.mrb[0].mxu0
        %v4256 = vadd.f32 0.0, %v4255
        %v4257 = vpop.f32.mrb[0].mxu0
        %v4258 = vadd.f32 0.0, %v4257
        %4259 = vmatprep.mubr.bf16.mxu0 %v4205
        %4260 = vmatmul.mubr.bf16.gmra.mrb[0].mxu0 %v3975
        %v4261 = vpop.f32.mrb[0].mxu0
        %v4262 = vadd.f32 0.0, %v4261
        %v4263 = vpop.f32.mrb[0].mxu0
        %v4264 = vadd.f32 0.0, %v4263
        %v4265 = vpop.f32.mrb[0].mxu0
        %v4266 = vpop.f32.mrb[0].mxu0
        %4267 = vdwg.mxu0
        %4268 = vmatprep.subr.bf16.mxu0 0
        %4269 = vmatpush1.bf16.msra.mxu0 %v4134
        %4270 = vmatprep.subr.bf16.mxu0 0
        %4271 = vmatpush1.bf16.msra.mxu0 %v4137
        %4272 = vmatprep.subr.bf16.mxu0 0
        %4273 = vmatpush1.bf16.msra.mxu0 %v4140
        %4274 = vmatprep.subr.bf16.mxu0 0
        %4275 = vmatpush1.bf16.msra.mxu0 %v4143
        %4276 = vmatprep.subr.bf16.mxu0 0
        %4277 = vmatpush1.bf16.msra.mxu0 %v4146
        %4278 = vmatprep.subr.bf16.mxu0 0
        %4279 = vmatpush1.bf16.msra.mxu0 %v4149
        %4280 = vmatprep.subr.bf16.mxu0 0
        %4281 = vmatpush1.bf16.msra.mxu0 %v4152
        %4282 = vmatprep.subr.bf16.mxu0 0
        %4283 = vmatpush1.bf16.msra.mxu0 %v4155
        %4284 = vmatprep.subr.bf16.mxu0 0
        %4285 = vmatpush1.bf16.msra.mxu0 %v4158
        %4286 = vmatprep.subr.bf16.mxu0 0
        %4287 = vmatpush1.bf16.msra.mxu0 %v4161
        %4288 = vmatprep.subr.bf16.mxu0 0
        %4289 = vmatpush1.bf16.msra.mxu0 %v4164
        %4290 = vmatprep.subr.bf16.mxu0 0
        %4291 = vmatpush1.bf16.msra.mxu0 0
        %4292 = vmatprep.subr.bf16.mxu0 0
        %4293 = vmatpush1.bf16.msra.mxu0 0
        %4294 = vmatprep.subr.bf16.mxu0 0
        %4295 = vmatpush1.bf16.msra.mxu0 0
        %4296 = vmatprep.subr.bf16.mxu0 0
        %4297 = vmatpush1.bf16.msra.mxu0 0
        %4298 = vmatprep.subr.bf16.mxu0 0
        %4299 = vmatpush1.bf16.msra.mxu0 0
        %4300 = vmatprep.mubr.bf16.mxu0 %v4199
        %4301 = vmatmul.mubr.bf16.gmra.mrb[0].mxu0 %v3971
        %v4302 = vpop.f32.mrb[0].mxu0
        %v4303 = vadd.f32 0.0, %v4302
        %v4304 = vpop.f32.mrb[0].mxu0
        %v4305 = vpop.f32.mrb[0].mxu0
        %v4306 = vadd.f32 0.0, %v4305
        %v4307 = vpop.f32.mrb[0].mxu0
        %4308 = vmatprep.mubr.bf16.mxu0 %v4202
        %4309 = vmatmul.mubr.bf16.gmra.mrb[0].mxu0 %v3973
        %v4310 = vpop.f32.mrb[0].mxu0
        %v4311 = vadd.f32 0.0, %v4310
        %v4312 = vpop.f32.mrb[0].mxu0
        %v4313 = vpop.f32.mrb[0].mxu0
        %v4314 = vadd.f32 0.0, %v4313
        %v4315 = vpop.f32.mrb[0].mxu0
        %4316 = vmatprep.mubr.bf16.mxu0 %v4205
        %4317 = vmatmul.mubr.bf16.gmra.mrb[0].mxu0 %v3975
        %v4318 = vpop.f32.mrb[0].mxu0
        %v4319 = vadd.f32 0.0, %v4318
        %v4320 = vpop.f32.mrb[0].mxu0
        %v4321 = vpop.f32.mrb[0].mxu0
        %v4322 = vpop.f32.mrb[0].mxu0
        %4323 = vdwg.mxu0
        %v4324 = vadd.f32 %v3856, %v4242
        %v4325 = vadd.f32 %v3857, %v4244
        %v4326 = vadd.f32 %v3858, %v4303
        %v4327 = vadd.f32 %v3859, %v4246
        %v4328 = vadd.f32 %v3860, %v4248
        %v4329 = vadd.f32 %v3861, %v4306
        %v4330 = vadd.f32 %v3862, %v4252
        %v4331 = vadd.f32 %v3863, %v4254
        %v4332 = vadd.f32 %v3864, %v4311
        %v4333 = vadd.f32 %v3865, %v4256
        %v4334 = vadd.f32 %v3866, %v4258
        %v4335 = vadd.f32 %v3867, %v4314
        %v4336 = vadd.f32 %v3868, %v4262
        %v4337 = vadd.f32 %v3869, %v4264
        %v4338 = vadd.f32 %v3870, %v4319
        %v4339 = vld [vmem:[%s3] sm:$0x7]
        %v4341 = vlaneseq
        %v4342 = vshrl.u32 %v4341, 7
        %v4343 = vsub.s32 0, %v4342
        %v4344 = vrot.slane %v4339, %v4343
        %v4345 = vlaneseq
        %v4346 = vshrl.u32 %v4345, 7
        %v4347 = vsub.s32 1, %v4346
        %v4348 = vrot.slane %v4339, %v4347
        %v4349 = vlaneseq
        %v4350 = vshrl.u32 %v4349, 7
        %v4351 = vsub.s32 2, %v4350
        %v4352 = vrot.slane %v4339, %v4351
        %v4356 = vadd.f32 %v4324, %v4344
        %v4357 = vadd.f32 %v4325, %v4348
        %v4358 = vadd.f32 %v4326, %v4352
        %v4359 = vadd.f32 %v4327, %v4344
        %v4360 = vadd.f32 %v4328, %v4348
        %v4361 = vadd.f32 %v4329, %v4352
        %v4362 = vadd.f32 %v4330, %v4344
        %v4363 = vadd.f32 %v4331, %v4348
        %v4364 = vadd.f32 %v4332, %v4352
        %v4365 = vadd.f32 %v4333, %v4344
        %v4366 = vadd.f32 %v4334, %v4348
        %v4367 = vadd.f32 %v4335, %v4352
        %v4368 = vadd.f32 %v4336, %v4344
        %v4369 = vadd.f32 %v4337, %v4348
        %v4370 = vadd.f32 %v4338, %v4352
        %v4371 = vmax.f32 %v4356, 0.0
        %v4372 = vmax.f32 %v4357, 0.0
        %v4373 = vmax.f32 %v4358, 0.0
        %v4374 = vmax.f32 %v4359, 0.0
        %v4375 = vmax.f32 %v4360, 0.0
        %v4376 = vmax.f32 %v4361, 0.0
        %v4377 = vmax.f32 %v4362, 0.0
        %v4378 = vmax.f32 %v4363, 0.0
        %v4379 = vmax.f32 %v4364, 0.0
        %v4380 = vmax.f32 %v4365, 0.0
        %v4381 = vmax.f32 %v4366, 0.0
        %v4382 = vmax.f32 %v4367, 0.0
        %v4383 = vmax.f32 %v4368, 0.0
        %v4384 = vmax.f32 %v4369, 0.0
        %v4385 = vmax.f32 %v4370, 0.0
        %v4386 = vpack.c.bf16 %v4374, %v4371
        %v4387 = vpack.c.bf16 %v4375, %v4372
        %v4388 = vpack.c.bf16 %v4376, %v4373
        %v4389 = vpack.c.bf16 %v4380, %v4377
        %v4390 = vpack.c.bf16 %v4381, %v4378
        %v4391 = vpack.c.bf16 %v4382, %v4379
        %v4392 = vpack.c.bf16 %v4383, %v4383
        %v4393 = vpack.c.bf16 %v4384, %v4384
        %v4394 = vpack.c.bf16 %v4385, %v4385
        %v4395 = vld [vmem:[%s4] sm:$0xf]
        %v4396 = vld [vmem:[%s4 + $0x4] sm:$0xf]
        %v4399 = vunpack.c.l.b16 %v4395
        %v4400 = vunpack.c.l.b16 %v4396
        %v4401 = vpack.c.b16 %v4400, %v4399
        %vm4402 = vcmask 326656
        %v4404 = vsel %vm4402, %v4401, 0
        %vm4406 = vcmask 1043456
        %v4408 = vsel %vm4406, %v4392, 0
        %v4411 = vsel %vm4406, %v4393, 0
        %v4414 = vsel %vm4406, %v4394, 0
        %4416 = vmatprep.subr.bf16.mxu0 %v4387
        %4417 = vmatpush1.bf16.msra.mxu0 %v4386
        %4418 = vmatprep.subr.bf16.mxu0 %v4390
        %4419 = vmatpush1.bf16.msra.mxu0 %v4389
        %4420 = vmatprep.subr.bf16.mxu0 %v4411
        %4421 = vmatpush1.bf16.msra.mxu0 %v4408
        %4422 = vmatprep.subr.bf16.mxu0 0
        %4423 = vmatpush1.bf16.msra.mxu0 0
        %4424 = vmatprep.subr.bf16.mxu0 0
        %4425 = vmatpush1.bf16.msra.mxu0 0
        %4426 = vmatprep.subr.bf16.mxu0 0
        %4427 = vmatpush1.bf16.msra.mxu0 0
        %4428 = vmatprep.subr.bf16.mxu0 0
        %4429 = vmatpush1.bf16.msra.mxu0 0
        %4430 = vmatprep.subr.bf16.mxu0 0
        %4431 = vmatpush1.bf16.msra.mxu0 0
        %4432 = vmatprep.subr.bf16.mxu0 0
        %4433 = vmatpush1.bf16.msra.mxu0 0
        %4434 = vmatprep.subr.bf16.mxu0 0
        %4435 = vmatpush1.bf16.msra.mxu0 0
        %4436 = vmatprep.subr.bf16.mxu0 0
        %4437 = vmatpush1.bf16.msra.mxu0 0
        %4438 = vmatprep.subr.bf16.mxu0 0
        %4439 = vmatpush1.bf16.msra.mxu0 0
        %4440 = vmatprep.subr.bf16.mxu0 0
        %4441 = vmatpush1.bf16.msra.mxu0 0
        %4442 = vmatprep.subr.bf16.mxu0 0
        %4443 = vmatpush1.bf16.msra.mxu0 0
        %4444 = vmatprep.subr.bf16.mxu0 0
        %4445 = vmatpush1.bf16.msra.mxu0 0
        %4446 = vmatprep.subr.bf16.mxu0 0
        %4447 = vmatpush1.bf16.msra.mxu0 0
        %4448 = vmatprep.mubr.bf16.mxu0 0
        %4449 = vmatmul.mubr.bf16.gmra.mrb[0].mxu0 %v4404
        %v4450 = vpop.f32.mrb[0].mxu0
        %v4451 = vadd.f32 0.0, %v4450
        %v4452 = vpop.f32.mrb[0].mxu0
        %v4453 = vadd.f32 0.0, %v4452
        %v4454 = vpop.f32.mrb[0].mxu0
        %v4455 = vadd.f32 0.0, %v4454
        %v4456 = vpop.f32.mrb[0].mxu0
        %v4457 = vadd.f32 0.0, %v4456
        %4458 = vdwg.mxu0
        %4459 = vmatprep.subr.bf16.mxu0 0
        %4460 = vmatpush1.bf16.msra.mxu0 %v4388
        %4461 = vmatprep.subr.bf16.mxu0 0
        %4462 = vmatpush1.bf16.msra.mxu0 %v4391
        %4463 = vmatprep.subr.bf16.mxu0 0
        %4464 = vmatpush1.bf16.msra.mxu0 %v4414
        %4465 = vmatprep.subr.bf16.mxu0 0
        %4466 = vmatpush1.bf16.msra.mxu0 0
        %4467 = vmatprep.subr.bf16.mxu0 0
        %4468 = vmatpush1.bf16.msra.mxu0 0
        %4469 = vmatprep.subr.bf16.mxu0 0
        %4470 = vmatpush1.bf16.msra.mxu0 0
        %4471 = vmatprep.subr.bf16.mxu0 0
        %4472 = vmatpush1.bf16.msra.mxu0 0
        %4473 = vmatprep.subr.bf16.mxu0 0
        %4474 = vmatpush1.bf16.msra.mxu0 0
        %4475 = vmatprep.subr.bf16.mxu0 0
        %4476 = vmatpush1.bf16.msra.mxu0 0
        %4477 = vmatprep.subr.bf16.mxu0 0
        %4478 = vmatpush1.bf16.msra.mxu0 0
        %4479 = vmatprep.subr.bf16.mxu0 0
        %4480 = vmatpush1.bf16.msra.mxu0 0
        %4481 = vmatprep.subr.bf16.mxu0 0
        %4482 = vmatpush1.bf16.msra.mxu0 0
        %4483 = vmatprep.subr.bf16.mxu0 0
        %4484 = vmatpush1.bf16.msra.mxu0 0
        %4485 = vmatprep.subr.bf16.mxu0 0
        %4486 = vmatpush1.bf16.msra.mxu0 0
        %4487 = vmatprep.subr.bf16.mxu0 0
        %4488 = vmatpush1.bf16.msra.mxu0 0
        %4489 = vmatprep.subr.bf16.mxu0 0
        %4490 = vmatpush1.bf16.msra.mxu0 0
        %4491 = vmatprep.mubr.bf16.mxu0 0
        %4492 = vmatmul.mubr.bf16.gmra.mrb[0].mxu0 %v4404
        %v4493 = vpop.f32.mrb[0].mxu0
        %v4494 = vadd.f32 0.0, %v4493
        %v4495 = vpop.f32.mrb[0].mxu0
        %v4496 = vpop.f32.mrb[0].mxu0
        %v4497 = vadd.f32 0.0, %v4496
        %v4498 = vpop.f32.mrb[0].mxu0
        %4499 = vdwg.mxu0
        %v4500 = vpack.c.bf16 %v4455, %v4451
        %v4501 = vpack.c.bf16 %v4457, %v4453
        %v4502 = vpack.c.bf16 %v4497, %v4494
        %v4503 = vld [vmem:[%s5] sm:$0xff]
        %v4504 = vld [vmem:[%s5 + $0x8] sm:$0xff]
        %v4505 = vld [vmem:[%s5 + $0x10] sm:$0xff]
        %v4506 = vld [vmem:[%s5 + $0x18] sm:$0xff]
        %v4507 = vld [vmem:[%s5 + $0x20] sm:$0xff]
        %v4508 = vld [vmem:[%s5 + $0x28] sm:$0xff]
        %v4509 = vld [vmem:[%s5 + $0x30] sm:$0xff]
        %v4510 = vld [vmem:[%s5 + $0x38] sm:$0xff]
        %v4511 = vld [vmem:[%s5 + $0x40] sm:$0xff]
        %v4512 = vld [vmem:[%s5 + $0x48] sm:$0xff]
        %v4513 = vld [vmem:[%s5 + $0x50] sm:$0xff]
        %v4514 = vld [vmem:[%s5 + $0x58] sm:$0xff]
        %v4515 = vld [vmem:[%s5 + $0x60] sm:$0xff]
        %v4516 = vld [vmem:[%s5 + $0x68] sm:$0xff]
        %v4517 = vld [vmem:[%s5 + $0x70] sm:$0xff]
        %v4518 = vld [vmem:[%s5 + $0x78] sm:$0xff]
        %v4519 = vld [vmem:[%s5 + $0x80] sm:$0xff]
        %v4520 = vld [vmem:[%s5 + $0x88] sm:$0xff]
        %v4521 = vld [vmem:[%s5 + $0x90] sm:$0xff]
        %v4522 = vld [vmem:[%s5 + $0x98] sm:$0xff]
        %v4523 = vld [vmem:[%s5 + $0xa0] sm:$0xff]
        %v4524 = vld [vmem:[%s5 + $0xa8] sm:$0xff]
        %v4525 = vld [vmem:[%s5 + $0xb0] sm:$0xff]
        %v4526 = vld [vmem:[%s5 + $0xb8] sm:$0xff]
        %v4527 = vld [vmem:[%s5 + $0xc0] sm:$0xff]
        %v4528 = vld [vmem:[%s5 + $0xc8] sm:$0xff]
        %v4529 = vld [vmem:[%s5 + $0xd0] sm:$0xff]
        %v4530 = vld [vmem:[%s5 + $0xd8] sm:$0xff]
        %v4531 = vld [vmem:[%s5 + $0xe0] sm:$0xff]
        %v4532 = vld [vmem:[%s5 + $0xe8] sm:$0xff]
        %v4533 = vld [vmem:[%s5 + $0xf0] sm:$0xff]
        %v4534 = vld [vmem:[%s5 + $0xf8] sm:$0xff]
        %v4535 = vld [vmem:[%s5 + $0x100] sm:$0xff]
        %v4536 = vld [vmem:[%s5 + $0x108] sm:$0xff]
        %v4537 = vld [vmem:[%s5 + $0x110] sm:$0xff]
        %v4538 = vld [vmem:[%s5 + $0x118] sm:$0xff]
        %v4539 = vld [vmem:[%s5 + $0x120] sm:$0xff]
        %v4540 = vld [vmem:[%s5 + $0x128] sm:$0xff]
        %v4541 = vld [vmem:[%s5 + $0x130] sm:$0xff]
        %v4542 = vld [vmem:[%s5 + $0x138] sm:$0xff]
        %s4543 = scalar_lea.vmem %s4, 8
        %v4544 = vld [vmem:[%s4543] sm:$0xf]
        %v4545 = vld [vmem:[%s4543 + $0x4] sm:$0xf]
        %v4548 = vunpack.c.l.b16 %v4544
        %v4549 = vunpack.c.l.b16 %v4545
        %v4550 = vpack.c.b16 %v4549, %v4548
        %v4552 = vsel %vm4402, %v4550, 0
        %4554 = vmatprep.subr.bf16.mxu0 %v4387
        %4555 = vmatpush1.bf16.msra.mxu0 %v4386
        %4556 = vmatprep.subr.bf16.mxu0 %v4390
        %4557 = vmatpush1.bf16.msra.mxu0 %v4389
        %4558 = vmatprep.subr.bf16.mxu0 %v4411
        %4559 = vmatpush1.bf16.msra.mxu0 %v4408
        %4560 = vmatprep.subr.bf16.mxu0 0
        %4561 = vmatpush1.bf16.msra.mxu0 0
        %4562 = vmatprep.subr.bf16.mxu0 0
        %4563 = vmatpush1.bf16.msra.mxu0 0
        %4564 = vmatprep.subr.bf16.mxu0 0
        %4565 = vmatpush1.bf16.msra.mxu0 0
        %4566 = vmatprep.subr.bf16.mxu0 0
        %4567 = vmatpush1.bf16.msra.mxu0 0
        %4568 = vmatprep.subr.bf16.mxu0 0
        %4569 = vmatpush1.bf16.msra.mxu0 0
        %4570 = vmatprep.subr.bf16.mxu0 0
        %4571 = vmatpush1.bf16.msra.mxu0 0
        %4572 = vmatprep.subr.bf16.mxu0 0
        %4573 = vmatpush1.bf16.msra.mxu0 0
        %4574 = vmatprep.subr.bf16.mxu0 0
        %4575 = vmatpush1.bf16.msra.mxu0 0
        %4576 = vmatprep.subr.bf16.mxu0 0
        %4577 = vmatpush1.bf16.msra.mxu0 0
        %4578 = vmatprep.subr.bf16.mxu0 0
        %4579 = vmatpush1.bf16.msra.mxu0 0
        %4580 = vmatprep.subr.bf16.mxu0 0
        %4581 = vmatpush1.bf16.msra.mxu0 0
        %4582 = vmatprep.subr.bf16.mxu0 0
        %4583 = vmatpush1.bf16.msra.mxu0 0
        %4584 = vmatprep.subr.bf16.mxu0 0
        %4585 = vmatpush1.bf16.msra.mxu0 0
        %4586 = vmatprep.mubr.bf16.mxu0 0
        %4587 = vmatmul.mubr.bf16.gmra.mrb[0].mxu0 %v4552
        %v4588 = vpop.f32.mrb[0].mxu0
        %v4589 = vadd.f32 0.0, %v4588
        %v4590 = vpop.f32.mrb[0].mxu0
        %v4591 = vadd.f32 0.0, %v4590
        %v4592 = vpop.f32.mrb[0].mxu0
        %v4593 = vadd.f32 0.0, %v4592
        %v4594 = vpop.f32.mrb[0].mxu0
        %v4595 = vadd.f32 0.0, %v4594
        %4596 = vdwg.mxu0
        %4597 = vmatprep.subr.bf16.mxu0 0
        %4598 = vmatpush1.bf16.msra.mxu0 %v4388
        %4599 = vmatprep.subr.bf16.mxu0 0
        %4600 = vmatpush1.bf16.msra.mxu0 %v4391
        %4601 = vmatprep.subr.bf16.mxu0 0
        %4602 = vmatpush1.bf16.msra.mxu0 %v4414
        %4603 = vmatprep.subr.bf16.mxu0 0
        %4604 = vmatpush1.bf16.msra.mxu0 0
        %4605 = vmatprep.subr.bf16.mxu0 0
        %4606 = vmatpush1.bf16.msra.mxu0 0
        %4607 = vmatprep.subr.bf16.mxu0 0
        %4608 = vmatpush1.bf16.msra.mxu0 0
        %4609 = vmatprep.subr.bf16.mxu0 0
        %4610 = vmatpush1.bf16.msra.mxu0 0
        %4611 = vmatprep.subr.bf16.mxu0 0
        %4612 = vmatpush1.bf16.msra.mxu0 0
        %4613 = vmatprep.subr.bf16.mxu0 0
        %4614 = vmatpush1.bf16.msra.mxu0 0
        %4615 = vmatprep.subr.bf16.mxu0 0
        %4616 = vmatpush1.bf16.msra.mxu0 0
        %4617 = vmatprep.subr.bf16.mxu0 0
        %4618 = vmatpush1.bf16.msra.mxu0 0
        %4619 = vmatprep.subr.bf16.mxu0 0
        %4620 = vmatpush1.bf16.msra.mxu0 0
        %4621 = vmatprep.subr.bf16.mxu0 0
        %4622 = vmatpush1.bf16.msra.mxu0 0
        %4623 = vmatprep.subr.bf16.mxu0 0
        %4624 = vmatpush1.bf16.msra.mxu0 0
        %4625 = vmatprep.subr.bf16.mxu0 0
        %4626 = vmatpush1.bf16.msra.mxu0 0
        %4627 = vmatprep.subr.bf16.mxu0 0
        %4628 = vmatpush1.bf16.msra.mxu0 0
        %4629 = vmatprep.mubr.bf16.mxu0 0
        %4630 = vmatmul.mubr.bf16.gmra.mrb[0].mxu0 %v4552
        %v4631 = vpop.f32.mrb[0].mxu0
        %v4632 = vadd.f32 0.0, %v4631
        %v4633 = vpop.f32.mrb[0].mxu0
        %v4634 = vpop.f32.mrb[0].mxu0
        %v4635 = vadd.f32 0.0, %v4634
        %v4636 = vpop.f32.mrb[0].mxu0
        %4637 = vdwg.mxu0
        %v4638 = vpack.c.bf16 %v4593, %v4589
        %v4639 = vpack.c.bf16 %v4595, %v4591
        %v4640 = vpack.c.bf16 %v4635, %v4632
        %s4641 = scalar_lea.vmem %s5, 320
        %v4642 = vld [vmem:[%s4641] sm:$0xff]
        %v4643 = vld [vmem:[%s4641 + $0x8] sm:$0xff]
        %v4644 = vld [vmem:[%s4641 + $0x10] sm:$0xff]
        %v4645 = vld [vmem:[%s4641 + $0x18] sm:$0xff]
        %v4646 = vld [vmem:[%s4641 + $0x20] sm:$0xff]
        %v4647 = vld [vmem:[%s4641 + $0x28] sm:$0xff]
        %v4648 = vld [vmem:[%s4641 + $0x30] sm:$0xff]
        %v4649 = vld [vmem:[%s4641 + $0x38] sm:$0xff]
        %v4650 = vld [vmem:[%s4641 + $0x40] sm:$0xff]
        %v4651 = vld [vmem:[%s4641 + $0x48] sm:$0xff]
        %v4652 = vld [vmem:[%s4641 + $0x50] sm:$0xff]
        %v4653 = vld [vmem:[%s4641 + $0x58] sm:$0xff]
        %v4654 = vld [vmem:[%s4641 + $0x60] sm:$0xff]
        %v4655 = vld [vmem:[%s4641 + $0x68] sm:$0xff]
        %v4656 = vld [vmem:[%s4641 + $0x70] sm:$0xff]
        %v4657 = vld [vmem:[%s4641 + $0x78] sm:$0xff]
        %v4658 = vld [vmem:[%s4641 + $0x80] sm:$0xff]
        %v4659 = vld [vmem:[%s4641 + $0x88] sm:$0xff]
        %v4660 = vld [vmem:[%s4641 + $0x90] sm:$0xff]
        %v4661 = vld [vmem:[%s4641 + $0x98] sm:$0xff]
        %v4662 = vld [vmem:[%s4641 + $0xa0] sm:$0xff]
        %v4663 = vld [vmem:[%s4641 + $0xa8] sm:$0xff]
        %v4664 = vld [vmem:[%s4641 + $0xb0] sm:$0xff]
        %v4665 = vld [vmem:[%s4641 + $0xb8] sm:$0xff]
        %v4666 = vld [vmem:[%s4641 + $0xc0] sm:$0xff]
        %v4667 = vld [vmem:[%s4641 + $0xc8] sm:$0xff]
        %v4668 = vld [vmem:[%s4641 + $0xd0] sm:$0xff]
        %v4669 = vld [vmem:[%s4641 + $0xd8] sm:$0xff]
        %v4670 = vld [vmem:[%s4641 + $0xe0] sm:$0xff]
        %v4671 = vld [vmem:[%s4641 + $0xe8] sm:$0xff]
        %v4672 = vld [vmem:[%s4641 + $0xf0] sm:$0xff]
        %v4673 = vld [vmem:[%s4641 + $0xf8] sm:$0xff]
        %v4674 = vld [vmem:[%s4641 + $0x100] sm:$0xff]
        %v4675 = vld [vmem:[%s4641 + $0x108] sm:$0xff]
        %v4676 = vld [vmem:[%s4641 + $0x110] sm:$0xff]
        %v4677 = vld [vmem:[%s4641 + $0x118] sm:$0xff]
        %v4678 = vld [vmem:[%s4641 + $0x120] sm:$0xff]
        %v4679 = vld [vmem:[%s4641 + $0x128] sm:$0xff]
        %v4680 = vld [vmem:[%s4641 + $0x130] sm:$0xff]
        %v4681 = vld [vmem:[%s4641 + $0x138] sm:$0xff]
        %v4722 = vunpack.c.l.b16 %v4642
        %v4723 = vunpack.c.h.b16 %v4642
        %v4724 = vunpack.c.l.b16 %v4643
        %v4725 = vunpack.c.h.b16 %v4643
        %v4726 = vunpack.c.l.b16 %v4644
        %v4727 = vunpack.c.h.b16 %v4644
        %v4728 = vunpack.c.l.b16 %v4645
        %v4729 = vunpack.c.h.b16 %v4645
        %v4730 = vunpack.c.l.b16 %v4646
        %v4731 = vunpack.c.h.b16 %v4646
        %v4732 = vunpack.c.l.b16 %v4647
        %v4733 = vunpack.c.h.b16 %v4647
        %v4734 = vunpack.c.l.b16 %v4648
        %v4735 = vunpack.c.h.b16 %v4648
        %v4736 = vunpack.c.l.b16 %v4649
        %v4737 = vunpack.c.h.b16 %v4649
        %v4738 = vunpack.c.l.b16 %v4650
        %v4739 = vunpack.c.h.b16 %v4650
        %v4740 = vunpack.c.l.b16 %v4651
        %v4741 = vunpack.c.h.b16 %v4651
        %v4742 = vunpack.c.l.b16 %v4652
        %v4743 = vunpack.c.h.b16 %v4652
        %v4744 = vunpack.c.l.b16 %v4653
        %v4745 = vunpack.c.h.b16 %v4653
        %v4746 = vunpack.c.l.b16 %v4654
        %v4747 = vunpack.c.h.b16 %v4654
        %v4748 = vunpack.c.l.b16 %v4655
        %v4749 = vunpack.c.h.b16 %v4655
        %v4750 = vunpack.c.l.b16 %v4656
        %v4751 = vunpack.c.h.b16 %v4656
        %v4752 = vunpack.c.l.b16 %v4657
        %v4753 = vunpack.c.h.b16 %v4657
        %v4754 = vunpack.c.l.b16 %v4658
        %v4755 = vunpack.c.h.b16 %v4658
        %v4756 = vunpack.c.l.b16 %v4659
        %v4757 = vunpack.c.h.b16 %v4659
        %v4758 = vunpack.c.l.b16 %v4660
        %v4759 = vunpack.c.h.b16 %v4660
        %v4760 = vunpack.c.l.b16 %v4661
        %v4761 = vunpack.c.h.b16 %v4661
        %v4762 = vunpack.c.l.b16 %v4662
        %v4763 = vunpack.c.h.b16 %v4662
        %v4764 = vunpack.c.l.b16 %v4663
        %v4765 = vunpack.c.h.b16 %v4663
        %v4766 = vunpack.c.l.b16 %v4664
        %v4767 = vunpack.c.h.b16 %v4664
        %v4768 = vunpack.c.l.b16 %v4665
        %v4769 = vunpack.c.h.b16 %v4665
        %v4770 = vunpack.c.l.b16 %v4666
        %v4771 = vunpack.c.h.b16 %v4666
        %v4772 = vunpack.c.l.b16 %v4667
        %v4773 = vunpack.c.h.b16 %v4667
        %v4774 = vunpack.c.l.b16 %v4668
        %v4775 = vunpack.c.h.b16 %v4668
        %v4776 = vunpack.c.l.b16 %v4669
        %v4777 = vunpack.c.h.b16 %v4669
        %v4778 = vunpack.c.l.b16 %v4670
        %v4779 = vunpack.c.h.b16 %v4670
        %v4780 = vunpack.c.l.b16 %v4671
        %v4781 = vunpack.c.h.b16 %v4671
        %v4782 = vunpack.c.l.b16 %v4672
        %v4783 = vunpack.c.h.b16 %v4672
        %v4784 = vunpack.c.l.b16 %v4673
        %v4785 = vunpack.c.h.b16 %v4673
        %v4786 = vunpack.c.l.b16 %v4674
        %v4787 = vunpack.c.h.b16 %v4674
        %v4788 = vunpack.c.l.b16 %v4675
        %v4789 = vunpack.c.h.b16 %v4675
        %v4790 = vunpack.c.l.b16 %v4676
        %v4791 = vunpack.c.h.b16 %v4676
        %v4792 = vunpack.c.l.b16 %v4677
        %v4793 = vunpack.c.h.b16 %v4677
        %v4794 = vunpack.c.l.b16 %v4678
        %v4795 = vunpack.c.h.b16 %v4678
        %v4796 = vunpack.c.l.b16 %v4679
        %v4797 = vunpack.c.h.b16 %v4679
        %v4798 = vunpack.c.l.b16 %v4680
        %v4799 = vunpack.c.h.b16 %v4680
        %v4800 = vunpack.c.l.b16 %v4681
        %v4801 = vunpack.c.h.b16 %v4681
        %v4802 = vpack.c.b16 %v4724, %v4722
        %v4803 = vpack.c.b16 %v4725, %v4723
        %v4804 = vpack.c.b16 %v4728, %v4726
        %v4805 = vpack.c.b16 %v4729, %v4727
        %v4806 = vpack.c.b16 %v4732, %v4730
        %v4807 = vpack.c.b16 %v4733, %v4731
        %v4808 = vpack.c.b16 %v4736, %v4734
        %v4809 = vpack.c.b16 %v4737, %v4735
        %v4810 = vpack.c.b16 %v4740, %v4738
        %v4811 = vpack.c.b16 %v4741, %v4739
        %v4812 = vpack.c.b16 %v4744, %v4742
        %v4813 = vpack.c.b16 %v4745, %v4743
        %v4814 = vpack.c.b16 %v4748, %v4746
        %v4815 = vpack.c.b16 %v4749, %v4747
        %v4816 = vpack.c.b16 %v4752, %v4750
        %v4817 = vpack.c.b16 %v4753, %v4751
        %v4818 = vpack.c.b16 %v4756, %v4754
        %v4819 = vpack.c.b16 %v4757, %v4755
        %v4820 = vpack.c.b16 %v4760, %v4758
        %v4821 = vpack.c.b16 %v4761, %v4759
        %v4822 = vpack.c.b16 %v4764, %v4762
        %v4823 = vpack.c.b16 %v4765, %v4763
        %v4824 = vpack.c.b16 %v4768, %v4766
        %v4825 = vpack.c.b16 %v4769, %v4767
        %v4826 = vpack.c.b16 %v4772, %v4770
        %v4827 = vpack.c.b16 %v4773, %v4771
        %v4828 = vpack.c.b16 %v4776, %v4774
        %v4829 = vpack.c.b16 %v4777, %v4775
        %v4830 = vpack.c.b16 %v4780, %v4778
        %v4831 = vpack.c.b16 %v4781, %v4779
        %v4832 = vpack.c.b16 %v4784, %v4782
        %v4833 = vpack.c.b16 %v4785, %v4783
        %v4834 = vpack.c.b16 %v4788, %v4786
        %v4835 = vpack.c.b16 %v4789, %v4787
        %v4836 = vpack.c.b16 %v4792, %v4790
        %v4837 = vpack.c.b16 %v4793, %v4791
        %v4838 = vpack.c.b16 %v4796, %v4794
        %v4839 = vpack.c.b16 %v4797, %v4795
        %v4840 = vpack.c.b16 %v4800, %v4798
        %v4841 = vpack.c.b16 %v4801, %v4799
        %vm4882 = vcmask 523264
        %v4884 = vsel %vm4882, %v4640, 0
        %4886 = vmatprep.subr.bf16.mxu0 %v4803
        %4887 = vmatpush1.bf16.msra.mxu0 %v4802
        %4888 = vmatprep.subr.bf16.mxu0 %v4805
        %4889 = vmatpush1.bf16.msra.mxu0 %v4804
        %4890 = vmatprep.subr.bf16.mxu0 %v4807
        %4891 = vmatpush1.bf16.msra.mxu0 %v4806
        %4892 = vmatprep.subr.bf16.mxu0 %v4809
        %4893 = vmatpush1.bf16.msra.mxu0 %v4808
        %4894 = vmatprep.subr.bf16.mxu0 %v4811
        %4895 = vmatpush1.bf16.msra.mxu0 %v4810
        %4896 = vmatprep.subr.bf16.mxu0 %v4813
        %4897 = vmatpush1.bf16.msra.mxu0 %v4812
        %4898 = vmatprep.subr.bf16.mxu0 %v4815
        %4899 = vmatpush1.bf16.msra.mxu0 %v4814
        %4900 = vmatprep.subr.bf16.mxu0 %v4817
        %4901 = vmatpush1.bf16.msra.mxu0 %v4816
        %4902 = vmatprep.subr.bf16.mxu0 %v4819
        %4903 = vmatpush1.bf16.msra.mxu0 %v4818
        %4904 = vmatprep.subr.bf16.mxu0 %v4821
        %4905 = vmatpush1.bf16.msra.mxu0 %v4820
        %4906 = vmatprep.subr.bf16.mxu0 %v4823
        %4907 = vmatpush1.bf16.msra.mxu0 %v4822
        %4908 = vmatprep.subr.bf16.mxu0 %v4825
        %4909 = vmatpush1.bf16.msra.mxu0 %v4824
        %4910 = vmatprep.subr.bf16.mxu0 %v4827
        %4911 = vmatpush1.bf16.msra.mxu0 %v4826
        %4912 = vmatprep.subr.bf16.mxu0 %v4829
        %4913 = vmatpush1.bf16.msra.mxu0 %v4828
        %4914 = vmatprep.subr.bf16.mxu0 %v4831
        %4915 = vmatpush1.bf16.msra.mxu0 %v4830
        %4916 = vmatprep.subr.bf16.mxu0 %v4833
        %4917 = vmatpush1.bf16.msra.mxu0 %v4832
        %4918 = vmatprep.mubr.bf16.mxu0 %v4639
        %4919 = vmatmul.mubr.bf16.gmra.mrb[0].mxu0 %v4638
        %v4920 = vpop.f32.mrb[0].mxu0
        %v4921 = vadd.f32 0.0, %v4920
        %v4922 = vpop.f32.mrb[0].mxu0
        %v4923 = vadd.f32 0.0, %v4922
        %v4924 = vpop.f32.mrb[0].mxu0
        %v4925 = vadd.f32 0.0, %v4924
        %v4926 = vpop.f32.mrb[0].mxu0
        %v4927 = vadd.f32 0.0, %v4926
        %4928 = vdwg.mxu0
        %4929 = vmatprep.subr.bf16.mxu0 %v4835
        %4930 = vmatpush1.bf16.msra.mxu0 %v4834
        %4931 = vmatprep.subr.bf16.mxu0 %v4837
        %4932 = vmatpush1.bf16.msra.mxu0 %v4836
        %4933 = vmatprep.subr.bf16.mxu0 %v4839
        %4934 = vmatpush1.bf16.msra.mxu0 %v4838
        %4935 = vmatprep.subr.bf16.mxu0 %v4841
        %4936 = vmatpush1.bf16.msra.mxu0 %v4840
        %4937 = vmatprep.subr.bf16.mxu0 0
        %4938 = vmatpush1.bf16.msra.mxu0 0
        %4939 = vmatprep.subr.bf16.mxu0 0
        %4940 = vmatpush1.bf16.msra.mxu0 0
        %4941 = vmatprep.subr.bf16.mxu0 0
        %4942 = vmatpush1.bf16.msra.mxu0 0
        %4943 = vmatprep.subr.bf16.mxu0 0
        %4944 = vmatpush1.bf16.msra.mxu0 0
        %4945 = vmatprep.subr.bf16.mxu0 0
        %4946 = vmatpush1.bf16.msra.mxu0 0
        %4947 = vmatprep.subr.bf16.mxu0 0
        %4948 = vmatpush1.bf16.msra.mxu0 0
        %4949 = vmatprep.subr.bf16.mxu0 0
        %4950 = vmatpush1.bf16.msra.mxu0 0
        %4951 = vmatprep.subr.bf16.mxu0 0
        %4952 = vmatpush1.bf16.msra.mxu0 0
        %4953 = vmatprep.subr.bf16.mxu0 0
        %4954 = vmatpush1.bf16.msra.mxu0 0
        %4955 = vmatprep.subr.bf16.mxu0 0
        %4956 = vmatpush1.bf16.msra.mxu0 0
        %4957 = vmatprep.subr.bf16.mxu0 0
        %4958 = vmatpush1.bf16.msra.mxu0 0
        %4959 = vmatprep.subr.bf16.mxu0 0
        %4960 = vmatpush1.bf16.msra.mxu0 0
        %4961 = vmatprep.mubr.bf16.mxu0 0
        %4962 = vmatmul.mubr.bf16.gmra.mrb[0].mxu0 %v4884
        %v4963 = vpop.f32.mrb[0].mxu0
        %v4964 = vadd.f32 %v4921, %v4963
        %v4965 = vpop.f32.mrb[0].mxu0
        %v4966 = vadd.f32 %v4923, %v4965
        %v4967 = vpop.f32.mrb[0].mxu0
        %v4968 = vadd.f32 %v4925, %v4967
        %v4969 = vpop.f32.mrb[0].mxu0
        %v4970 = vadd.f32 %v4927, %v4969
        %4971 = vdwg.mxu0
        %v5012 = vunpack.c.l.b16 %v4503
        %v5013 = vunpack.c.h.b16 %v4503
        %v5014 = vunpack.c.l.b16 %v4504
        %v5015 = vunpack.c.h.b16 %v4504
        %v5016 = vunpack.c.l.b16 %v4505
        %v5017 = vunpack.c.h.b16 %v4505
        %v5018 = vunpack.c.l.b16 %v4506
        %v5019 = vunpack.c.h.b16 %v4506
        %v5020 = vunpack.c.l.b16 %v4507
        %v5021 = vunpack.c.h.b16 %v4507
        %v5022 = vunpack.c.l.b16 %v4508
        %v5023 = vunpack.c.h.b16 %v4508
        %v5024 = vunpack.c.l.b16 %v4509
        %v5025 = vunpack.c.h.b16 %v4509
        %v5026 = vunpack.c.l.b16 %v4510
        %v5027 = vunpack.c.h.b16 %v4510
        %v5028 = vunpack.c.l.b16 %v4511
        %v5029 = vunpack.c.h.b16 %v4511
        %v5030 = vunpack.c.l.b16 %v4512
        %v5031 = vunpack.c.h.b16 %v4512
        %v5032 = vunpack.c.l.b16 %v4513
        %v5033 = vunpack.c.h.b16 %v4513
        %v5034 = vunpack.c.l.b16 %v4514
        %v5035 = vunpack.c.h.b16 %v4514
        %v5036 = vunpack.c.l.b16 %v4515
        %v5037 = vunpack.c.h.b16 %v4515
        %v5038 = vunpack.c.l.b16 %v4516
        %v5039 = vunpack.c.h.b16 %v4516
        %v5040 = vunpack.c.l.b16 %v4517
        %v5041 = vunpack.c.h.b16 %v4517
        %v5042 = vunpack.c.l.b16 %v4518
        %v5043 = vunpack.c.h.b16 %v4518
        %v5044 = vunpack.c.l.b16 %v4519
        %v5045 = vunpack.c.h.b16 %v4519
        %v5046 = vunpack.c.l.b16 %v4520
        %v5047 = vunpack.c.h.b16 %v4520
        %v5048 = vunpack.c.l.b16 %v4521
        %v5049 = vunpack.c.h.b16 %v4521
        %v5050 = vunpack.c.l.b16 %v4522
        %v5051 = vunpack.c.h.b16 %v4522
        %v5052 = vunpack.c.l.b16 %v4523
        %v5053 = vunpack.c.h.b16 %v4523
        %v5054 = vunpack.c.l.b16 %v4524
        %v5055 = vunpack.c.h.b16 %v4524
        %v5056 = vunpack.c.l.b16 %v4525
        %v5057 = vunpack.c.h.b16 %v4525
        %v5058 = vunpack.c.l.b16 %v4526
        %v5059 = vunpack.c.h.b16 %v4526
        %v5060 = vunpack.c.l.b16 %v4527
        %v5061 = vunpack.c.h.b16 %v4527
        %v5062 = vunpack.c.l.b16 %v4528
        %v5063 = vunpack.c.h.b16 %v4528
        %v5064 = vunpack.c.l.b16 %v4529
        %v5065 = vunpack.c.h.b16 %v4529
        %v5066 = vunpack.c.l.b16 %v4530
        %v5067 = vunpack.c.h.b16 %v4530
        %v5068 = vunpack.c.l.b16 %v4531
        %v5069 = vunpack.c.h.b16 %v4531
        %v5070 = vunpack.c.l.b16 %v4532
        %v5071 = vunpack.c.h.b16 %v4532
        %v5072 = vunpack.c.l.b16 %v4533
        %v5073 = vunpack.c.h.b16 %v4533
        %v5074 = vunpack.c.l.b16 %v4534
        %v5075 = vunpack.c.h.b16 %v4534
        %v5076 = vunpack.c.l.b16 %v4535
        %v5077 = vunpack.c.h.b16 %v4535
        %v5078 = vunpack.c.l.b16 %v4536
        %v5079 = vunpack.c.h.b16 %v4536
        %v5080 = vunpack.c.l.b16 %v4537
        %v5081 = vunpack.c.h.b16 %v4537
        %v5082 = vunpack.c.l.b16 %v4538
        %v5083 = vunpack.c.h.b16 %v4538
        %v5084 = vunpack.c.l.b16 %v4539
        %v5085 = vunpack.c.h.b16 %v4539
        %v5086 = vunpack.c.l.b16 %v4540
        %v5087 = vunpack.c.h.b16 %v4540
        %v5088 = vunpack.c.l.b16 %v4541
        %v5089 = vunpack.c.h.b16 %v4541
        %v5090 = vunpack.c.l.b16 %v4542
        %v5091 = vunpack.c.h.b16 %v4542
        %v5092 = vpack.c.b16 %v5014, %v5012
        %v5093 = vpack.c.b16 %v5015, %v5013
        %v5094 = vpack.c.b16 %v5018, %v5016
        %v5095 = vpack.c.b16 %v5019, %v5017
        %v5096 = vpack.c.b16 %v5022, %v5020
        %v5097 = vpack.c.b16 %v5023, %v5021
        %v5098 = vpack.c.b16 %v5026, %v5024
        %v5099 = vpack.c.b16 %v5027, %v5025
        %v5100 = vpack.c.b16 %v5030, %v5028
        %v5101 = vpack.c.b16 %v5031, %v5029
        %v5102 = vpack.c.b16 %v5034, %v5032
        %v5103 = vpack.c.b16 %v5035, %v5033
        %v5104 = vpack.c.b16 %v5038, %v5036
        %v5105 = vpack.c.b16 %v5039, %v5037
        %v5106 = vpack.c.b16 %v5042, %v5040
        %v5107 = vpack.c.b16 %v5043, %v5041
        %v5108 = vpack.c.b16 %v5046, %v5044
        %v5109 = vpack.c.b16 %v5047, %v5045
        %v5110 = vpack.c.b16 %v5050, %v5048
        %v5111 = vpack.c.b16 %v5051, %v5049
        %v5112 = vpack.c.b16 %v5054, %v5052
        %v5113 = vpack.c.b16 %v5055, %v5053
        %v5114 = vpack.c.b16 %v5058, %v5056
        %v5115 = vpack.c.b16 %v5059, %v5057
        %v5116 = vpack.c.b16 %v5062, %v5060
        %v5117 = vpack.c.b16 %v5063, %v5061
        %v5118 = vpack.c.b16 %v5066, %v5064
        %v5119 = vpack.c.b16 %v5067, %v5065
        %v5120 = vpack.c.b16 %v5070, %v5068
        %v5121 = vpack.c.b16 %v5071, %v5069
        %v5122 = vpack.c.b16 %v5074, %v5072
        %v5123 = vpack.c.b16 %v5075, %v5073
        %v5124 = vpack.c.b16 %v5078, %v5076
        %v5125 = vpack.c.b16 %v5079, %v5077
        %v5126 = vpack.c.b16 %v5082, %v5080
        %v5127 = vpack.c.b16 %v5083, %v5081
        %v5128 = vpack.c.b16 %v5086, %v5084
        %v5129 = vpack.c.b16 %v5087, %v5085
        %v5130 = vpack.c.b16 %v5090, %v5088
        %v5131 = vpack.c.b16 %v5091, %v5089
        %v5173 = vsel %vm4882, %v4502, 0
        %5175 = vmatprep.subr.bf16.mxu0 %v5093
        %5176 = vmatpush1.bf16.msra.mxu0 %v5092
        %5177 = vmatprep.subr.bf16.mxu0 %v5095
        %5178 = vmatpush1.bf16.msra.mxu0 %v5094
        %5179 = vmatprep.subr.bf16.mxu0 %v5097
        %5180 = vmatpush1.bf16.msra.mxu0 %v5096
        %5181 = vmatprep.subr.bf16.mxu0 %v5099
        %5182 = vmatpush1.bf16.msra.mxu0 %v5098
        %5183 = vmatprep.subr.bf16.mxu0 %v5101
        %5184 = vmatpush1.bf16.msra.mxu0 %v5100
        %5185 = vmatprep.subr.bf16.mxu0 %v5103
        %5186 = vmatpush1.bf16.msra.mxu0 %v5102
        %5187 = vmatprep.subr.bf16.mxu0 %v5105
        %5188 = vmatpush1.bf16.msra.mxu0 %v5104
        %5189 = vmatprep.subr.bf16.mxu0 %v5107
        %5190 = vmatpush1.bf16.msra.mxu0 %v5106
        %5191 = vmatprep.subr.bf16.mxu0 %v5109
        %5192 = vmatpush1.bf16.msra.mxu0 %v5108
        %5193 = vmatprep.subr.bf16.mxu0 %v5111
        %5194 = vmatpush1.bf16.msra.mxu0 %v5110
        %5195 = vmatprep.subr.bf16.mxu0 %v5113
        %5196 = vmatpush1.bf16.msra.mxu0 %v5112
        %5197 = vmatprep.subr.bf16.mxu0 %v5115
        %5198 = vmatpush1.bf16.msra.mxu0 %v5114
        %5199 = vmatprep.subr.bf16.mxu0 %v5117
        %5200 = vmatpush1.bf16.msra.mxu0 %v5116
        %5201 = vmatprep.subr.bf16.mxu0 %v5119
        %5202 = vmatpush1.bf16.msra.mxu0 %v5118
        %5203 = vmatprep.subr.bf16.mxu0 %v5121
        %5204 = vmatpush1.bf16.msra.mxu0 %v5120
        %5205 = vmatprep.subr.bf16.mxu0 %v5123
        %5206 = vmatpush1.bf16.msra.mxu0 %v5122
        %5207 = vmatprep.mubr.bf16.mxu0 %v4501
        %5208 = vmatmul.mubr.bf16.gmra.mrb[0].mxu0 %v4500
        %v5209 = vpop.f32.mrb[0].mxu0
        %v5210 = vadd.f32 %v4964, %v5209
        %v5211 = vpop.f32.mrb[0].mxu0
        %v5212 = vadd.f32 %v4966, %v5211
        %v5213 = vpop.f32.mrb[0].mxu0
        %v5214 = vadd.f32 %v4968, %v5213
        %v5215 = vpop.f32.mrb[0].mxu0
        %v5216 = vadd.f32 %v4970, %v5215
        %5217 = vdwg.mxu0
        %5218 = vmatprep.subr.bf16.mxu0 %v5125
        %5219 = vmatpush1.bf16.msra.mxu0 %v5124
        %5220 = vmatprep.subr.bf16.mxu0 %v5127
        %5221 = vmatpush1.bf16.msra.mxu0 %v5126
        %5222 = vmatprep.subr.bf16.mxu0 %v5129
        %5223 = vmatpush1.bf16.msra.mxu0 %v5128
        %5224 = vmatprep.subr.bf16.mxu0 %v5131
        %5225 = vmatpush1.bf16.msra.mxu0 %v5130
        %5226 = vmatprep.subr.bf16.mxu0 0
        %5227 = vmatpush1.bf16.msra.mxu0 0
        %5228 = vmatprep.subr.bf16.mxu0 0
        %5229 = vmatpush1.bf16.msra.mxu0 0
        %5230 = vmatprep.subr.bf16.mxu0 0
        %5231 = vmatpush1.bf16.msra.mxu0 0
        %5232 = vmatprep.subr.bf16.mxu0 0
        %5233 = vmatpush1.bf16.msra.mxu0 0
        %5234 = vmatprep.subr.bf16.mxu0 0
        %5235 = vmatpush1.bf16.msra.mxu0 0
        %5236 = vmatprep.subr.bf16.mxu0 0
        %5237 = vmatpush1.bf16.msra.mxu0 0
        %5238 = vmatprep.subr.bf16.mxu0 0
        %5239 = vmatpush1.bf16.msra.mxu0 0
        %5240 = vmatprep.subr.bf16.mxu0 0
        %5241 = vmatpush1.bf16.msra.mxu0 0
        %5242 = vmatprep.subr.bf16.mxu0 0
        %5243 = vmatpush1.bf16.msra.mxu0 0
        %5244 = vmatprep.subr.bf16.mxu0 0
        %5245 = vmatpush1.bf16.msra.mxu0 0
        %5246 = vmatprep.subr.bf16.mxu0 0
        %5247 = vmatpush1.bf16.msra.mxu0 0
        %5248 = vmatprep.subr.bf16.mxu0 0
        %5249 = vmatpush1.bf16.msra.mxu0 0
        %5250 = vmatprep.mubr.bf16.mxu0 0
        %5251 = vmatmul.mubr.bf16.gmra.mrb[0].mxu0 %v5173
        %v5252 = vpop.f32.mrb[0].mxu0
        %v5253 = vadd.f32 %v5210, %v5252
        %v5254 = vpop.f32.mrb[0].mxu0
        %v5255 = vadd.f32 %v5212, %v5254
        %v5256 = vpop.f32.mrb[0].mxu0
        %v5257 = vadd.f32 %v5214, %v5256
        %v5258 = vpop.f32.mrb[0].mxu0
        %v5259 = vadd.f32 %v5216, %v5258
        %5260 = vdwg.mxu0
        %s5261 = scalar_lea.vmem %s4, 16
        %v5262 = vld [vmem:[%s5261] sm:$0xf]
        %v5263 = vld [vmem:[%s5261 + $0x4] sm:$0xf]
        %v5266 = vunpack.c.l.b16 %v5262
        %v5267 = vunpack.c.l.b16 %v5263
        %v5268 = vpack.c.b16 %v5267, %v5266
        %v5270 = vsel %vm4402, %v5268, 0
        %5272 = vmatprep.subr.bf16.mxu0 %v4387
        %5273 = vmatpush1.bf16.msra.mxu0 %v4386
        %5274 = vmatprep.subr.bf16.mxu0 %v4390
        %5275 = vmatpush1.bf16.msra.mxu0 %v4389
        %5276 = vmatprep.subr.bf16.mxu0 %v4411
        %5277 = vmatpush1.bf16.msra.mxu0 %v4408
        %5278 = vmatprep.subr.bf16.mxu0 0
        %5279 = vmatpush1.bf16.msra.mxu0 0
        %5280 = vmatprep.subr.bf16.mxu0 0
        %5281 = vmatpush1.bf16.msra.mxu0 0
        %5282 = vmatprep.subr.bf16.mxu0 0
        %5283 = vmatpush1.bf16.msra.mxu0 0
        %5284 = vmatprep.subr.bf16.mxu0 0
        %5285 = vmatpush1.bf16.msra.mxu0 0
        %5286 = vmatprep.subr.bf16.mxu0 0
        %5287 = vmatpush1.bf16.msra.mxu0 0
        %5288 = vmatprep.subr.bf16.mxu0 0
        %5289 = vmatpush1.bf16.msra.mxu0 0
        %5290 = vmatprep.subr.bf16.mxu0 0
        %5291 = vmatpush1.bf16.msra.mxu0 0
        %5292 = vmatprep.subr.bf16.mxu0 0
        %5293 = vmatpush1.bf16.msra.mxu0 0
        %5294 = vmatprep.subr.bf16.mxu0 0
        %5295 = vmatpush1.bf16.msra.mxu0 0
        %5296 = vmatprep.subr.bf16.mxu0 0
        %5297 = vmatpush1.bf16.msra.mxu0 0
        %5298 = vmatprep.subr.bf16.mxu0 0
        %5299 = vmatpush1.bf16.msra.mxu0 0
        %5300 = vmatprep.subr.bf16.mxu0 0
        %5301 = vmatpush1.bf16.msra.mxu0 0
        %5302 = vmatprep.subr.bf16.mxu0 0
        %5303 = vmatpush1.bf16.msra.mxu0 0
        %5304 = vmatprep.mubr.bf16.mxu0 0
        %5305 = vmatmul.mubr.bf16.gmra.mrb[0].mxu0 %v5270
        %v5306 = vpop.f32.mrb[0].mxu0
        %v5307 = vadd.f32 0.0, %v5306
        %v5308 = vpop.f32.mrb[0].mxu0
        %v5309 = vadd.f32 0.0, %v5308
        %v5310 = vpop.f32.mrb[0].mxu0
        %v5311 = vadd.f32 0.0, %v5310
        %v5312 = vpop.f32.mrb[0].mxu0
        %v5313 = vadd.f32 0.0, %v5312
        %5314 = vdwg.mxu0
        %5315 = vmatprep.subr.bf16.mxu0 0
        %5316 = vmatpush1.bf16.msra.mxu0 %v4388
        %5317 = vmatprep.subr.bf16.mxu0 0
        %5318 = vmatpush1.bf16.msra.mxu0 %v4391
        %5319 = vmatprep.subr.bf16.mxu0 0
        %5320 = vmatpush1.bf16.msra.mxu0 %v4414
        %5321 = vmatprep.subr.bf16.mxu0 0
        %5322 = vmatpush1.bf16.msra.mxu0 0
        %5323 = vmatprep.subr.bf16.mxu0 0
        %5324 = vmatpush1.bf16.msra.mxu0 0
        %5325 = vmatprep.subr.bf16.mxu0 0
        %5326 = vmatpush1.bf16.msra.mxu0 0
        %5327 = vmatprep.subr.bf16.mxu0 0
        %5328 = vmatpush1.bf16.msra.mxu0 0
        %5329 = vmatprep.subr.bf16.mxu0 0
        %5330 = vmatpush1.bf16.msra.mxu0 0
        %5331 = vmatprep.subr.bf16.mxu0 0
        %5332 = vmatpush1.bf16.msra.mxu0 0
        %5333 = vmatprep.subr.bf16.mxu0 0
        %5334 = vmatpush1.bf16.msra.mxu0 0
        %5335 = vmatprep.subr.bf16.mxu0 0
        %5336 = vmatpush1.bf16.msra.mxu0 0
        %5337 = vmatprep.subr.bf16.mxu0 0
        %5338 = vmatpush1.bf16.msra.mxu0 0
        %5339 = vmatprep.subr.bf16.mxu0 0
        %5340 = vmatpush1.bf16.msra.mxu0 0
        %5341 = vmatprep.subr.bf16.mxu0 0
        %5342 = vmatpush1.bf16.msra.mxu0 0
        %5343 = vmatprep.subr.bf16.mxu0 0
        %5344 = vmatpush1.bf16.msra.mxu0 0
        %5345 = vmatprep.subr.bf16.mxu0 0
        %5346 = vmatpush1.bf16.msra.mxu0 0
        %5347 = vmatprep.mubr.bf16.mxu0 0
        %5348 = vmatmul.mubr.bf16.gmra.mrb[0].mxu0 %v5270
        %v5349 = vpop.f32.mrb[0].mxu0
        %v5350 = vadd.f32 0.0, %v5349
        %v5351 = vpop.f32.mrb[0].mxu0
        %v5352 = vpop.f32.mrb[0].mxu0
        %v5353 = vadd.f32 0.0, %v5352
        %v5354 = vpop.f32.mrb[0].mxu0
        %5355 = vdwg.mxu0
        %v5356 = vpack.c.bf16 %v5311, %v5307
        %v5357 = vpack.c.bf16 %v5313, %v5309
        %v5358 = vpack.c.bf16 %v5353, %v5350
        %s5359 = scalar_lea.vmem %s5, 640
        %v5360 = vld [vmem:[%s5359] sm:$0xff]
        %v5361 = vld [vmem:[%s5359 + $0x8] sm:$0xff]
        %v5362 = vld [vmem:[%s5359 + $0x10] sm:$0xff]
        %v5363 = vld [vmem:[%s5359 + $0x18] sm:$0xff]
        %v5364 = vld [vmem:[%s5359 + $0x20] sm:$0xff]
        %v5365 = vld [vmem:[%s5359 + $0x28] sm:$0xff]
        %v5366 = vld [vmem:[%s5359 + $0x30] sm:$0xff]
        %v5367 = vld [vmem:[%s5359 + $0x38] sm:$0xff]
        %v5368 = vld [vmem:[%s5359 + $0x40] sm:$0xff]
        %v5369 = vld [vmem:[%s5359 + $0x48] sm:$0xff]
        %v5370 = vld [vmem:[%s5359 + $0x50] sm:$0xff]
        %v5371 = vld [vmem:[%s5359 + $0x58] sm:$0xff]
        %v5372 = vld [vmem:[%s5359 + $0x60] sm:$0xff]
        %v5373 = vld [vmem:[%s5359 + $0x68] sm:$0xff]
        %v5374 = vld [vmem:[%s5359 + $0x70] sm:$0xff]
        %v5375 = vld [vmem:[%s5359 + $0x78] sm:$0xff]
        %v5376 = vld [vmem:[%s5359 + $0x80] sm:$0xff]
        %v5377 = vld [vmem:[%s5359 + $0x88] sm:$0xff]
        %v5378 = vld [vmem:[%s5359 + $0x90] sm:$0xff]
        %v5379 = vld [vmem:[%s5359 + $0x98] sm:$0xff]
        %v5380 = vld [vmem:[%s5359 + $0xa0] sm:$0xff]
        %v5381 = vld [vmem:[%s5359 + $0xa8] sm:$0xff]
        %v5382 = vld [vmem:[%s5359 + $0xb0] sm:$0xff]
        %v5383 = vld [vmem:[%s5359 + $0xb8] sm:$0xff]
        %v5384 = vld [vmem:[%s5359 + $0xc0] sm:$0xff]
        %v5385 = vld [vmem:[%s5359 + $0xc8] sm:$0xff]
        %v5386 = vld [vmem:[%s5359 + $0xd0] sm:$0xff]
        %v5387 = vld [vmem:[%s5359 + $0xd8] sm:$0xff]
        %v5388 = vld [vmem:[%s5359 + $0xe0] sm:$0xff]
        %v5389 = vld [vmem:[%s5359 + $0xe8] sm:$0xff]
        %v5390 = vld [vmem:[%s5359 + $0xf0] sm:$0xff]
        %v5391 = vld [vmem:[%s5359 + $0xf8] sm:$0xff]
        %v5392 = vld [vmem:[%s5359 + $0x100] sm:$0xff]
        %v5393 = vld [vmem:[%s5359 + $0x108] sm:$0xff]
        %v5394 = vld [vmem:[%s5359 + $0x110] sm:$0xff]
        %v5395 = vld [vmem:[%s5359 + $0x118] sm:$0xff]
        %v5396 = vld [vmem:[%s5359 + $0x120] sm:$0xff]
        %v5397 = vld [vmem:[%s5359 + $0x128] sm:$0xff]
        %v5398 = vld [vmem:[%s5359 + $0x130] sm:$0xff]
        %v5399 = vld [vmem:[%s5359 + $0x138] sm:$0xff]
        %v5440 = vunpack.c.l.b16 %v5360
        %v5441 = vunpack.c.h.b16 %v5360
        %v5442 = vunpack.c.l.b16 %v5361
        %v5443 = vunpack.c.h.b16 %v5361
        %v5444 = vunpack.c.l.b16 %v5362
        %v5445 = vunpack.c.h.b16 %v5362
        %v5446 = vunpack.c.l.b16 %v5363
        %v5447 = vunpack.c.h.b16 %v5363
        %v5448 = vunpack.c.l.b16 %v5364
        %v5449 = vunpack.c.h.b16 %v5364
        %v5450 = vunpack.c.l.b16 %v5365
        %v5451 = vunpack.c.h.b16 %v5365
        %v5452 = vunpack.c.l.b16 %v5366
        %v5453 = vunpack.c.h.b16 %v5366
        %v5454 = vunpack.c.l.b16 %v5367
        %v5455 = vunpack.c.h.b16 %v5367
        %v5456 = vunpack.c.l.b16 %v5368
        %v5457 = vunpack.c.h.b16 %v5368
        %v5458 = vunpack.c.l.b16 %v5369
        %v5459 = vunpack.c.h.b16 %v5369
        %v5460 = vunpack.c.l.b16 %v5370
        %v5461 = vunpack.c.h.b16 %v5370
        %v5462 = vunpack.c.l.b16 %v5371
        %v5463 = vunpack.c.h.b16 %v5371
        %v5464 = vunpack.c.l.b16 %v5372
        %v5465 = vunpack.c.h.b16 %v5372
        %v5466 = vunpack.c.l.b16 %v5373
        %v5467 = vunpack.c.h.b16 %v5373
        %v5468 = vunpack.c.l.b16 %v5374
        %v5469 = vunpack.c.h.b16 %v5374
        %v5470 = vunpack.c.l.b16 %v5375
        %v5471 = vunpack.c.h.b16 %v5375
        %v5472 = vunpack.c.l.b16 %v5376
        %v5473 = vunpack.c.h.b16 %v5376
        %v5474 = vunpack.c.l.b16 %v5377
        %v5475 = vunpack.c.h.b16 %v5377
        %v5476 = vunpack.c.l.b16 %v5378
        %v5477 = vunpack.c.h.b16 %v5378
        %v5478 = vunpack.c.l.b16 %v5379
        %v5479 = vunpack.c.h.b16 %v5379
        %v5480 = vunpack.c.l.b16 %v5380
        %v5481 = vunpack.c.h.b16 %v5380
        %v5482 = vunpack.c.l.b16 %v5381
        %v5483 = vunpack.c.h.b16 %v5381
        %v5484 = vunpack.c.l.b16 %v5382
        %v5485 = vunpack.c.h.b16 %v5382
        %v5486 = vunpack.c.l.b16 %v5383
        %v5487 = vunpack.c.h.b16 %v5383
        %v5488 = vunpack.c.l.b16 %v5384
        %v5489 = vunpack.c.h.b16 %v5384
        %v5490 = vunpack.c.l.b16 %v5385
        %v5491 = vunpack.c.h.b16 %v5385
        %v5492 = vunpack.c.l.b16 %v5386
        %v5493 = vunpack.c.h.b16 %v5386
        %v5494 = vunpack.c.l.b16 %v5387
        %v5495 = vunpack.c.h.b16 %v5387
        %v5496 = vunpack.c.l.b16 %v5388
        %v5497 = vunpack.c.h.b16 %v5388
        %v5498 = vunpack.c.l.b16 %v5389
        %v5499 = vunpack.c.h.b16 %v5389
        %v5500 = vunpack.c.l.b16 %v5390
        %v5501 = vunpack.c.h.b16 %v5390
        %v5502 = vunpack.c.l.b16 %v5391
        %v5503 = vunpack.c.h.b16 %v5391
        %v5504 = vunpack.c.l.b16 %v5392
        %v5505 = vunpack.c.h.b16 %v5392
        %v5506 = vunpack.c.l.b16 %v5393
        %v5507 = vunpack.c.h.b16 %v5393
        %v5508 = vunpack.c.l.b16 %v5394
        %v5509 = vunpack.c.h.b16 %v5394
        %v5510 = vunpack.c.l.b16 %v5395
        %v5511 = vunpack.c.h.b16 %v5395
        %v5512 = vunpack.c.l.b16 %v5396
        %v5513 = vunpack.c.h.b16 %v5396
        %v5514 = vunpack.c.l.b16 %v5397
        %v5515 = vunpack.c.h.b16 %v5397
        %v5516 = vunpack.c.l.b16 %v5398
        %v5517 = vunpack.c.h.b16 %v5398
        %v5518 = vunpack.c.l.b16 %v5399
        %v5519 = vunpack.c.h.b16 %v5399
        %v5520 = vpack.c.b16 %v5442, %v5440
        %v5521 = vpack.c.b16 %v5443, %v5441
        %v5522 = vpack.c.b16 %v5446, %v5444
        %v5523 = vpack.c.b16 %v5447, %v5445
        %v5524 = vpack.c.b16 %v5450, %v5448
        %v5525 = vpack.c.b16 %v5451, %v5449
        %v5526 = vpack.c.b16 %v5454, %v5452
        %v5527 = vpack.c.b16 %v5455, %v5453
        %v5528 = vpack.c.b16 %v5458, %v5456
        %v5529 = vpack.c.b16 %v5459, %v5457
        %v5530 = vpack.c.b16 %v5462, %v5460
        %v5531 = vpack.c.b16 %v5463, %v5461
        %v5532 = vpack.c.b16 %v5466, %v5464
        %v5533 = vpack.c.b16 %v5467, %v5465
        %v5534 = vpack.c.b16 %v5470, %v5468
        %v5535 = vpack.c.b16 %v5471, %v5469
        %v5536 = vpack.c.b16 %v5474, %v5472
        %v5537 = vpack.c.b16 %v5475, %v5473
        %v5538 = vpack.c.b16 %v5478, %v5476
        %v5539 = vpack.c.b16 %v5479, %v5477
        %v5540 = vpack.c.b16 %v5482, %v5480
        %v5541 = vpack.c.b16 %v5483, %v5481
        %v5542 = vpack.c.b16 %v5486, %v5484
        %v5543 = vpack.c.b16 %v5487, %v5485
        %v5544 = vpack.c.b16 %v5490, %v5488
        %v5545 = vpack.c.b16 %v5491, %v5489
        %v5546 = vpack.c.b16 %v5494, %v5492
        %v5547 = vpack.c.b16 %v5495, %v5493
        %v5548 = vpack.c.b16 %v5498, %v5496
        %v5549 = vpack.c.b16 %v5499, %v5497
        %v5550 = vpack.c.b16 %v5502, %v5500
        %v5551 = vpack.c.b16 %v5503, %v5501
        %v5552 = vpack.c.b16 %v5506, %v5504
        %v5553 = vpack.c.b16 %v5507, %v5505
        %v5554 = vpack.c.b16 %v5510, %v5508
        %v5555 = vpack.c.b16 %v5511, %v5509
        %v5556 = vpack.c.b16 %v5514, %v5512
        %v5557 = vpack.c.b16 %v5515, %v5513
        %v5558 = vpack.c.b16 %v5518, %v5516
        %v5559 = vpack.c.b16 %v5519, %v5517
        %v5601 = vsel %vm4882, %v5358, 0
        %5603 = vmatprep.subr.bf16.mxu0 %v5521
        %5604 = vmatpush1.bf16.msra.mxu0 %v5520
        %5605 = vmatprep.subr.bf16.mxu0 %v5523
        %5606 = vmatpush1.bf16.msra.mxu0 %v5522
        %5607 = vmatprep.subr.bf16.mxu0 %v5525
        %5608 = vmatpush1.bf16.msra.mxu0 %v5524
        %5609 = vmatprep.subr.bf16.mxu0 %v5527
        %5610 = vmatpush1.bf16.msra.mxu0 %v5526
        %5611 = vmatprep.subr.bf16.mxu0 %v5529
        %5612 = vmatpush1.bf16.msra.mxu0 %v5528
        %5613 = vmatprep.subr.bf16.mxu0 %v5531
        %5614 = vmatpush1.bf16.msra.mxu0 %v5530
        %5615 = vmatprep.subr.bf16.mxu0 %v5533
        %5616 = vmatpush1.bf16.msra.mxu0 %v5532
        %5617 = vmatprep.subr.bf16.mxu0 %v5535
        %5618 = vmatpush1.bf16.msra.mxu0 %v5534
        %5619 = vmatprep.subr.bf16.mxu0 %v5537
        %5620 = vmatpush1.bf16.msra.mxu0 %v5536
        %5621 = vmatprep.subr.bf16.mxu0 %v5539
        %5622 = vmatpush1.bf16.msra.mxu0 %v5538
        %5623 = vmatprep.subr.bf16.mxu0 %v5541
        %5624 = vmatpush1.bf16.msra.mxu0 %v5540
        %5625 = vmatprep.subr.bf16.mxu0 %v5543
        %5626 = vmatpush1.bf16.msra.mxu0 %v5542
        %5627 = vmatprep.subr.bf16.mxu0 %v5545
        %5628 = vmatpush1.bf16.msra.mxu0 %v5544
        %5629 = vmatprep.subr.bf16.mxu0 %v5547
        %5630 = vmatpush1.bf16.msra.mxu0 %v5546
        %5631 = vmatprep.subr.bf16.mxu0 %v5549
        %5632 = vmatpush1.bf16.msra.mxu0 %v5548
        %5633 = vmatprep.subr.bf16.mxu0 %v5551
        %5634 = vmatpush1.bf16.msra.mxu0 %v5550
        %5635 = vmatprep.mubr.bf16.mxu0 %v5357
        %5636 = vmatmul.mubr.bf16.gmra.mrb[0].mxu0 %v5356
        %v5637 = vpop.f32.mrb[0].mxu0
        %v5638 = vadd.f32 0.0, %v5637
        %v5639 = vpop.f32.mrb[0].mxu0
        %v5640 = vadd.f32 0.0, %v5639
        %v5641 = vpop.f32.mrb[0].mxu0
        %v5642 = vadd.f32 0.0, %v5641
        %v5643 = vpop.f32.mrb[0].mxu0
        %v5644 = vadd.f32 0.0, %v5643
        %5645 = vdwg.mxu0
        %5646 = vmatprep.subr.bf16.mxu0 %v5553
        %5647 = vmatpush1.bf16.msra.mxu0 %v5552
        %5648 = vmatprep.subr.bf16.mxu0 %v5555
        %5649 = vmatpush1.bf16.msra.mxu0 %v5554
        %5650 = vmatprep.subr.bf16.mxu0 %v5557
        %5651 = vmatpush1.bf16.msra.mxu0 %v5556
        %5652 = vmatprep.subr.bf16.mxu0 %v5559
        %5653 = vmatpush1.bf16.msra.mxu0 %v5558
        %5654 = vmatprep.subr.bf16.mxu0 0
        %5655 = vmatpush1.bf16.msra.mxu0 0
        %5656 = vmatprep.subr.bf16.mxu0 0
        %5657 = vmatpush1.bf16.msra.mxu0 0
        %5658 = vmatprep.subr.bf16.mxu0 0
        %5659 = vmatpush1.bf16.msra.mxu0 0
        %5660 = vmatprep.subr.bf16.mxu0 0
        %5661 = vmatpush1.bf16.msra.mxu0 0
        %5662 = vmatprep.subr.bf16.mxu0 0
        %5663 = vmatpush1.bf16.msra.mxu0 0
        %5664 = vmatprep.subr.bf16.mxu0 0
        %5665 = vmatpush1.bf16.msra.mxu0 0
        %5666 = vmatprep.subr.bf16.mxu0 0
        %5667 = vmatpush1.bf16.msra.mxu0 0
        %5668 = vmatprep.subr.bf16.mxu0 0
        %5669 = vmatpush1.bf16.msra.mxu0 0
        %5670 = vmatprep.subr.bf16.mxu0 0
        %5671 = vmatpush1.bf16.msra.mxu0 0
        %5672 = vmatprep.subr.bf16.mxu0 0
        %5673 = vmatpush1.bf16.msra.mxu0 0
        %5674 = vmatprep.subr.bf16.mxu0 0
        %5675 = vmatpush1.bf16.msra.mxu0 0
        %5676 = vmatprep.subr.bf16.mxu0 0
        %5677 = vmatpush1.bf16.msra.mxu0 0
        %5678 = vmatprep.mubr.bf16.mxu0 0
        %5679 = vmatmul.mubr.bf16.gmra.mrb[0].mxu0 %v5601
        %v5680 = vpop.f32.mrb[0].mxu0
        %v5681 = vadd.f32 %v5638, %v5680
        %v5682 = vpop.f32.mrb[0].mxu0
        %v5683 = vadd.f32 %v5640, %v5682
        %v5684 = vpop.f32.mrb[0].mxu0
        %v5685 = vadd.f32 %v5642, %v5684
        %v5686 = vpop.f32.mrb[0].mxu0
        %v5687 = vadd.f32 %v5644, %v5686
        %5688 = vdwg.mxu0
        %v5689 = vadd.f32 %v5253, %v5681
        %v5690 = vadd.f32 %v5255, %v5683
        %v5691 = vadd.f32 %v5257, %v5685
        %v5692 = vadd.f32 %v5259, %v5687
        %s5693 = scalar_lea.vmem %s4, 24
        %v5694 = vld [vmem:[%s5693] sm:$0xf]
        %v5695 = vld [vmem:[%s5693 + $0x4] sm:$0xf]
        %v5698 = vunpack.c.l.b16 %v5694
        %v5699 = vunpack.c.l.b16 %v5695
        %v5700 = vpack.c.b16 %v5699, %v5698
        %v5702 = vsel %vm4402, %v5700, 0
        %5704 = vmatprep.subr.bf16.mxu0 %v4387
        %5705 = vmatpush1.bf16.msra.mxu0 %v4386
        %5706 = vmatprep.subr.bf16.mxu0 %v4390
        %5707 = vmatpush1.bf16.msra.mxu0 %v4389
        %5708 = vmatprep.subr.bf16.mxu0 %v4411
        %5709 = vmatpush1.bf16.msra.mxu0 %v4408
        %5710 = vmatprep.subr.bf16.mxu0 0
        %5711 = vmatpush1.bf16.msra.mxu0 0
        %5712 = vmatprep.subr.bf16.mxu0 0
        %5713 = vmatpush1.bf16.msra.mxu0 0
        %5714 = vmatprep.subr.bf16.mxu0 0
        %5715 = vmatpush1.bf16.msra.mxu0 0
        %5716 = vmatprep.subr.bf16.mxu0 0
        %5717 = vmatpush1.bf16.msra.mxu0 0
        %5718 = vmatprep.subr.bf16.mxu0 0
        %5719 = vmatpush1.bf16.msra.mxu0 0
        %5720 = vmatprep.subr.bf16.mxu0 0
        %5721 = vmatpush1.bf16.msra.mxu0 0
        %5722 = vmatprep.subr.bf16.mxu0 0
        %5723 = vmatpush1.bf16.msra.mxu0 0
        %5724 = vmatprep.subr.bf16.mxu0 0
        %5725 = vmatpush1.bf16.msra.mxu0 0
        %5726 = vmatprep.subr.bf16.mxu0 0
        %5727 = vmatpush1.bf16.msra.mxu0 0
        %5728 = vmatprep.subr.bf16.mxu0 0
        %5729 = vmatpush1.bf16.msra.mxu0 0
        %5730 = vmatprep.subr.bf16.mxu0 0
        %5731 = vmatpush1.bf16.msra.mxu0 0
        %5732 = vmatprep.subr.bf16.mxu0 0
        %5733 = vmatpush1.bf16.msra.mxu0 0
        %5734 = vmatprep.subr.bf16.mxu0 0
        %5735 = vmatpush1.bf16.msra.mxu0 0
        %5736 = vmatprep.mubr.bf16.mxu0 0
        %5737 = vmatmul.mubr.bf16.gmra.mrb[0].mxu0 %v5702
        %v5738 = vpop.f32.mrb[0].mxu0
        %v5739 = vadd.f32 0.0, %v5738
        %v5740 = vpop.f32.mrb[0].mxu0
        %v5741 = vadd.f32 0.0, %v5740
        %v5742 = vpop.f32.mrb[0].mxu0
        %v5743 = vadd.f32 0.0, %v5742
        %v5744 = vpop.f32.mrb[0].mxu0
        %v5745 = vadd.f32 0.0, %v5744
        %5746 = vdwg.mxu0
        %5747 = vmatprep.subr.bf16.mxu0 0
        %5748 = vmatpush1.bf16.msra.mxu0 %v4388
        %5749 = vmatprep.subr.bf16.mxu0 0
        %5750 = vmatpush1.bf16.msra.mxu0 %v4391
        %5751 = vmatprep.subr.bf16.mxu0 0
        %5752 = vmatpush1.bf16.msra.mxu0 %v4414
        %5753 = vmatprep.subr.bf16.mxu0 0
        %5754 = vmatpush1.bf16.msra.mxu0 0
        %5755 = vmatprep.subr.bf16.mxu0 0
        %5756 = vmatpush1.bf16.msra.mxu0 0
        %5757 = vmatprep.subr.bf16.mxu0 0
        %5758 = vmatpush1.bf16.msra.mxu0 0
        %5759 = vmatprep.subr.bf16.mxu0 0
        %5760 = vmatpush1.bf16.msra.mxu0 0
        %5761 = vmatprep.subr.bf16.mxu0 0
        %5762 = vmatpush1.bf16.msra.mxu0 0
        %5763 = vmatprep.subr.bf16.mxu0 0
        %5764 = vmatpush1.bf16.msra.mxu0 0
        %5765 = vmatprep.subr.bf16.mxu0 0
        %5766 = vmatpush1.bf16.msra.mxu0 0
        %5767 = vmatprep.subr.bf16.mxu0 0
        %5768 = vmatpush1.bf16.msra.mxu0 0
        %5769 = vmatprep.subr.bf16.mxu0 0
        %5770 = vmatpush1.bf16.msra.mxu0 0
        %5771 = vmatprep.subr.bf16.mxu0 0
        %5772 = vmatpush1.bf16.msra.mxu0 0
        %5773 = vmatprep.subr.bf16.mxu0 0
        %5774 = vmatpush1.bf16.msra.mxu0 0
        %5775 = vmatprep.subr.bf16.mxu0 0
        %5776 = vmatpush1.bf16.msra.mxu0 0
        %5777 = vmatprep.subr.bf16.mxu0 0
        %5778 = vmatpush1.bf16.msra.mxu0 0
        %5779 = vmatprep.mubr.bf16.mxu0 0
        %5780 = vmatmul.mubr.bf16.gmra.mrb[0].mxu0 %v5702
        %v5781 = vpop.f32.mrb[0].mxu0
        %v5782 = vadd.f32 0.0, %v5781
        %v5783 = vpop.f32.mrb[0].mxu0
        %v5784 = vpop.f32.mrb[0].mxu0
        %v5785 = vadd.f32 0.0, %v5784
        %v5786 = vpop.f32.mrb[0].mxu0
        %5787 = vdwg.mxu0
        %v5788 = vpack.c.bf16 %v5743, %v5739
        %v5789 = vpack.c.bf16 %v5745, %v5741
        %v5790 = vpack.c.bf16 %v5785, %v5782
        %s5791 = scalar_lea.vmem %s5, 960
        %v5792 = vld [vmem:[%s5791] sm:$0xff]
        %v5793 = vld [vmem:[%s5791 + $0x8] sm:$0xff]
        %v5794 = vld [vmem:[%s5791 + $0x10] sm:$0xff]
        %v5795 = vld [vmem:[%s5791 + $0x18] sm:$0xff]
        %v5796 = vld [vmem:[%s5791 + $0x20] sm:$0xff]
        %v5797 = vld [vmem:[%s5791 + $0x28] sm:$0xff]
        %v5798 = vld [vmem:[%s5791 + $0x30] sm:$0xff]
        %v5799 = vld [vmem:[%s5791 + $0x38] sm:$0xff]
        %v5800 = vld [vmem:[%s5791 + $0x40] sm:$0xff]
        %v5801 = vld [vmem:[%s5791 + $0x48] sm:$0xff]
        %v5802 = vld [vmem:[%s5791 + $0x50] sm:$0xff]
        %v5803 = vld [vmem:[%s5791 + $0x58] sm:$0xff]
        %v5804 = vld [vmem:[%s5791 + $0x60] sm:$0xff]
        %v5805 = vld [vmem:[%s5791 + $0x68] sm:$0xff]
        %v5806 = vld [vmem:[%s5791 + $0x70] sm:$0xff]
        %v5807 = vld [vmem:[%s5791 + $0x78] sm:$0xff]
        %v5808 = vld [vmem:[%s5791 + $0x80] sm:$0xff]
        %v5809 = vld [vmem:[%s5791 + $0x88] sm:$0xff]
        %v5810 = vld [vmem:[%s5791 + $0x90] sm:$0xff]
        %v5811 = vld [vmem:[%s5791 + $0x98] sm:$0xff]
        %v5812 = vld [vmem:[%s5791 + $0xa0] sm:$0xff]
        %v5813 = vld [vmem:[%s5791 + $0xa8] sm:$0xff]
        %v5814 = vld [vmem:[%s5791 + $0xb0] sm:$0xff]
        %v5815 = vld [vmem:[%s5791 + $0xb8] sm:$0xff]
        %v5816 = vld [vmem:[%s5791 + $0xc0] sm:$0xff]
        %v5817 = vld [vmem:[%s5791 + $0xc8] sm:$0xff]
        %v5818 = vld [vmem:[%s5791 + $0xd0] sm:$0xff]
        %v5819 = vld [vmem:[%s5791 + $0xd8] sm:$0xff]
        %v5820 = vld [vmem:[%s5791 + $0xe0] sm:$0xff]
        %v5821 = vld [vmem:[%s5791 + $0xe8] sm:$0xff]
        %v5822 = vld [vmem:[%s5791 + $0xf0] sm:$0xff]
        %v5823 = vld [vmem:[%s5791 + $0xf8] sm:$0xff]
        %v5824 = vld [vmem:[%s5791 + $0x100] sm:$0xff]
        %v5825 = vld [vmem:[%s5791 + $0x108] sm:$0xff]
        %v5826 = vld [vmem:[%s5791 + $0x110] sm:$0xff]
        %v5827 = vld [vmem:[%s5791 + $0x118] sm:$0xff]
        %v5828 = vld [vmem:[%s5791 + $0x120] sm:$0xff]
        %v5829 = vld [vmem:[%s5791 + $0x128] sm:$0xff]
        %v5830 = vld [vmem:[%s5791 + $0x130] sm:$0xff]
        %v5831 = vld [vmem:[%s5791 + $0x138] sm:$0xff]
        %v5872 = vunpack.c.l.b16 %v5792
        %v5873 = vunpack.c.h.b16 %v5792
        %v5874 = vunpack.c.l.b16 %v5793
        %v5875 = vunpack.c.h.b16 %v5793
        %v5876 = vunpack.c.l.b16 %v5794
        %v5877 = vunpack.c.h.b16 %v5794
        %v5878 = vunpack.c.l.b16 %v5795
        %v5879 = vunpack.c.h.b16 %v5795
        %v5880 = vunpack.c.l.b16 %v5796
        %v5881 = vunpack.c.h.b16 %v5796
        %v5882 = vunpack.c.l.b16 %v5797
        %v5883 = vunpack.c.h.b16 %v5797
        %v5884 = vunpack.c.l.b16 %v5798
        %v5885 = vunpack.c.h.b16 %v5798
        %v5886 = vunpack.c.l.b16 %v5799
        %v5887 = vunpack.c.h.b16 %v5799
        %v5888 = vunpack.c.l.b16 %v5800
        %v5889 = vunpack.c.h.b16 %v5800
        %v5890 = vunpack.c.l.b16 %v5801
        %v5891 = vunpack.c.h.b16 %v5801
        %v5892 = vunpack.c.l.b16 %v5802
        %v5893 = vunpack.c.h.b16 %v5802
        %v5894 = vunpack.c.l.b16 %v5803
        %v5895 = vunpack.c.h.b16 %v5803
        %v5896 = vunpack.c.l.b16 %v5804
        %v5897 = vunpack.c.h.b16 %v5804
        %v5898 = vunpack.c.l.b16 %v5805
        %v5899 = vunpack.c.h.b16 %v5805
        %v5900 = vunpack.c.l.b16 %v5806
        %v5901 = vunpack.c.h.b16 %v5806
        %v5902 = vunpack.c.l.b16 %v5807
        %v5903 = vunpack.c.h.b16 %v5807
        %v5904 = vunpack.c.l.b16 %v5808
        %v5905 = vunpack.c.h.b16 %v5808
        %v5906 = vunpack.c.l.b16 %v5809
        %v5907 = vunpack.c.h.b16 %v5809
        %v5908 = vunpack.c.l.b16 %v5810
        %v5909 = vunpack.c.h.b16 %v5810
        %v5910 = vunpack.c.l.b16 %v5811
        %v5911 = vunpack.c.h.b16 %v5811
        %v5912 = vunpack.c.l.b16 %v5812
        %v5913 = vunpack.c.h.b16 %v5812
        %v5914 = vunpack.c.l.b16 %v5813
        %v5915 = vunpack.c.h.b16 %v5813
        %v5916 = vunpack.c.l.b16 %v5814
        %v5917 = vunpack.c.h.b16 %v5814
        %v5918 = vunpack.c.l.b16 %v5815
        %v5919 = vunpack.c.h.b16 %v5815
        %v5920 = vunpack.c.l.b16 %v5816
        %v5921 = vunpack.c.h.b16 %v5816
        %v5922 = vunpack.c.l.b16 %v5817
        %v5923 = vunpack.c.h.b16 %v5817
        %v5924 = vunpack.c.l.b16 %v5818
        %v5925 = vunpack.c.h.b16 %v5818
        %v5926 = vunpack.c.l.b16 %v5819
        %v5927 = vunpack.c.h.b16 %v5819
        %v5928 = vunpack.c.l.b16 %v5820
        %v5929 = vunpack.c.h.b16 %v5820
        %v5930 = vunpack.c.l.b16 %v5821
        %v5931 = vunpack.c.h.b16 %v5821
        %v5932 = vunpack.c.l.b16 %v5822
        %v5933 = vunpack.c.h.b16 %v5822
        %v5934 = vunpack.c.l.b16 %v5823
        %v5935 = vunpack.c.h.b16 %v5823
        %v5936 = vunpack.c.l.b16 %v5824
        %v5937 = vunpack.c.h.b16 %v5824
        %v5938 = vunpack.c.l.b16 %v5825
        %v5939 = vunpack.c.h.b16 %v5825
        %v5940 = vunpack.c.l.b16 %v5826
        %v5941 = vunpack.c.h.b16 %v5826
        %v5942 = vunpack.c.l.b16 %v5827
        %v5943 = vunpack.c.h.b16 %v5827
        %v5944 = vunpack.c.l.b16 %v5828
        %v5945 = vunpack.c.h.b16 %v5828
        %v5946 = vunpack.c.l.b16 %v5829
        %v5947 = vunpack.c.h.b16 %v5829
        %v5948 = vunpack.c.l.b16 %v5830
        %v5949 = vunpack.c.h.b16 %v5830
        %v5950 = vunpack.c.l.b16 %v5831
        %v5951 = vunpack.c.h.b16 %v5831
        %v5952 = vpack.c.b16 %v5874, %v5872
        %v5953 = vpack.c.b16 %v5875, %v5873
        %v5954 = vpack.c.b16 %v5878, %v5876
        %v5955 = vpack.c.b16 %v5879, %v5877
        %v5956 = vpack.c.b16 %v5882, %v5880
        %v5957 = vpack.c.b16 %v5883, %v5881
        %v5958 = vpack.c.b16 %v5886, %v5884
        %v5959 = vpack.c.b16 %v5887, %v5885
        %v5960 = vpack.c.b16 %v5890, %v5888
        %v5961 = vpack.c.b16 %v5891, %v5889
        %v5962 = vpack.c.b16 %v5894, %v5892
        %v5963 = vpack.c.b16 %v5895, %v5893
        %v5964 = vpack.c.b16 %v5898, %v5896
        %v5965 = vpack.c.b16 %v5899, %v5897
        %v5966 = vpack.c.b16 %v5902, %v5900
        %v5967 = vpack.c.b16 %v5903, %v5901
        %v5968 = vpack.c.b16 %v5906, %v5904
        %v5969 = vpack.c.b16 %v5907, %v5905
        %v5970 = vpack.c.b16 %v5910, %v5908
        %v5971 = vpack.c.b16 %v5911, %v5909
        %v5972 = vpack.c.b16 %v5914, %v5912
        %v5973 = vpack.c.b16 %v5915, %v5913
        %v5974 = vpack.c.b16 %v5918, %v5916
        %v5975 = vpack.c.b16 %v5919, %v5917
        %v5976 = vpack.c.b16 %v5922, %v5920
        %v5977 = vpack.c.b16 %v5923, %v5921
        %v5978 = vpack.c.b16 %v5926, %v5924
        %v5979 = vpack.c.b16 %v5927, %v5925
        %v5980 = vpack.c.b16 %v5930, %v5928
        %v5981 = vpack.c.b16 %v5931, %v5929
        %v5982 = vpack.c.b16 %v5934, %v5932
        %v5983 = vpack.c.b16 %v5935, %v5933
        %v5984 = vpack.c.b16 %v5938, %v5936
        %v5985 = vpack.c.b16 %v5939, %v5937
        %v5986 = vpack.c.b16 %v5942, %v5940
        %v5987 = vpack.c.b16 %v5943, %v5941
        %v5988 = vpack.c.b16 %v5946, %v5944
        %v5989 = vpack.c.b16 %v5947, %v5945
        %v5990 = vpack.c.b16 %v5950, %v5948
        %v5991 = vpack.c.b16 %v5951, %v5949
        %v6033 = vsel %vm4882, %v5790, 0
        %6035 = vmatprep.subr.bf16.mxu0 %v5953
        %6036 = vmatpush1.bf16.msra.mxu0 %v5952
        %6037 = vmatprep.subr.bf16.mxu0 %v5955
        %6038 = vmatpush1.bf16.msra.mxu0 %v5954
        %6039 = vmatprep.subr.bf16.mxu0 %v5957
        %6040 = vmatpush1.bf16.msra.mxu0 %v5956
        %6041 = vmatprep.subr.bf16.mxu0 %v5959
        %6042 = vmatpush1.bf16.msra.mxu0 %v5958
        %6043 = vmatprep.subr.bf16.mxu0 %v5961
        %6044 = vmatpush1.bf16.msra.mxu0 %v5960
        %6045 = vmatprep.subr.bf16.mxu0 %v5963
        %6046 = vmatpush1.bf16.msra.mxu0 %v5962
        %6047 = vmatprep.subr.bf16.mxu0 %v5965
        %6048 = vmatpush1.bf16.msra.mxu0 %v5964
        %6049 = vmatprep.subr.bf16.mxu0 %v5967
        %6050 = vmatpush1.bf16.msra.mxu0 %v5966
        %6051 = vmatprep.subr.bf16.mxu0 %v5969
        %6052 = vmatpush1.bf16.msra.mxu0 %v5968
        %6053 = vmatprep.subr.bf16.mxu0 %v5971
        %6054 = vmatpush1.bf16.msra.mxu0 %v5970
        %6055 = vmatprep.subr.bf16.mxu0 %v5973
        %6056 = vmatpush1.bf16.msra.mxu0 %v5972
        %6057 = vmatprep.subr.bf16.mxu0 %v5975
        %6058 = vmatpush1.bf16.msra.mxu0 %v5974
        %6059 = vmatprep.subr.bf16.mxu0 %v5977
        %6060 = vmatpush1.bf16.msra.mxu0 %v5976
        %6061 = vmatprep.subr.bf16.mxu0 %v5979
        %6062 = vmatpush1.bf16.msra.mxu0 %v5978
        %6063 = vmatprep.subr.bf16.mxu0 %v5981
        %6064 = vmatpush1.bf16.msra.mxu0 %v5980
        %6065 = vmatprep.subr.bf16.mxu0 %v5983
        %6066 = vmatpush1.bf16.msra.mxu0 %v5982
        %6067 = vmatprep.mubr.bf16.mxu0 %v5789
        %6068 = vmatmul.mubr.bf16.gmra.mrb[0].mxu0 %v5788
        %v6069 = vpop.f32.mrb[0].mxu0
        %v6070 = vadd.f32 0.0, %v6069
        %v6071 = vpop.f32.mrb[0].mxu0
        %v6072 = vadd.f32 0.0, %v6071
        %v6073 = vpop.f32.mrb[0].mxu0
        %v6074 = vadd.f32 0.0, %v6073
        %v6075 = vpop.f32.mrb[0].mxu0
        %v6076 = vadd.f32 0.0, %v6075
        %6077 = vdwg.mxu0
        %6078 = vmatprep.subr.bf16.mxu0 %v5985
        %6079 = vmatpush1.bf16.msra.mxu0 %v5984
        %6080 = vmatprep.subr.bf16.mxu0 %v5987
        %6081 = vmatpush1.bf16.msra.mxu0 %v5986
        %6082 = vmatprep.subr.bf16.mxu0 %v5989
        %6083 = vmatpush1.bf16.msra.mxu0 %v5988
        %6084 = vmatprep.subr.bf16.mxu0 %v5991
        %6085 = vmatpush1.bf16.msra.mxu0 %v5990
        %6086 = vmatprep.subr.bf16.mxu0 0
        %6087 = vmatpush1.bf16.msra.mxu0 0
        %6088 = vmatprep.subr.bf16.mxu0 0
        %6089 = vmatpush1.bf16.msra.mxu0 0
        %6090 = vmatprep.subr.bf16.mxu0 0
        %6091 = vmatpush1.bf16.msra.mxu0 0
        %6092 = vmatprep.subr.bf16.mxu0 0
        %6093 = vmatpush1.bf16.msra.mxu0 0
        %6094 = vmatprep.subr.bf16.mxu0 0
        %6095 = vmatpush1.bf16.msra.mxu0 0
        %6096 = vmatprep.subr.bf16.mxu0 0
        %6097 = vmatpush1.bf16.msra.mxu0 0
        %6098 = vmatprep.subr.bf16.mxu0 0
        %6099 = vmatpush1.bf16.msra.mxu0 0
        %6100 = vmatprep.subr.bf16.mxu0 0
        %6101 = vmatpush1.bf16.msra.mxu0 0
        %6102 = vmatprep.subr.bf16.mxu0 0
        %6103 = vmatpush1.bf16.msra.mxu0 0
        %6104 = vmatprep.subr.bf16.mxu0 0
        %6105 = vmatpush1.bf16.msra.mxu0 0
        %6106 = vmatprep.subr.bf16.mxu0 0
        %6107 = vmatpush1.bf16.msra.mxu0 0
        %6108 = vmatprep.subr.bf16.mxu0 0
        %6109 = vmatpush1.bf16.msra.mxu0 0
        %6110 = vmatprep.mubr.bf16.mxu0 0
        %6111 = vmatmul.mubr.bf16.gmra.mrb[0].mxu0 %v6033
        %v6112 = vpop.f32.mrb[0].mxu0
        %v6113 = vadd.f32 %v6070, %v6112
        %v6114 = vpop.f32.mrb[0].mxu0
        %v6115 = vadd.f32 %v6072, %v6114
        %v6116 = vpop.f32.mrb[0].mxu0
        %v6117 = vadd.f32 %v6074, %v6116
        %v6118 = vpop.f32.mrb[0].mxu0
        %v6119 = vadd.f32 %v6076, %v6118
        %6120 = vdwg.mxu0
        %v6121 = vadd.f32 %v5689, %v6113
        %v6122 = vadd.f32 %v5690, %v6115
        %v6123 = vadd.f32 %v5691, %v6117
        %v6124 = vadd.f32 %v5692, %v6119
        %v6125 = vld [vmem:[%s6] sm:$0x3]
        %v6127 = vlaneseq
        %v6128 = vshrl.u32 %v6127, 7
        %v6129 = vsub.s32 0, %v6128
        %v6130 = vrot.slane %v6125, %v6129
        %v6131 = vlaneseq
        %v6132 = vshrl.u32 %v6131, 7
        %v6133 = vsub.s32 1, %v6132
        %v6134 = vrot.slane %v6125, %v6133
        %v6137 = vadd.f32 %v6121, %v6130
        %v6138 = vadd.f32 %v6122, %v6134
        %v6139 = vadd.f32 %v6123, %v6130
        %v6140 = vadd.f32 %v6124, %v6134
        %v6141 = vmax.f32 %v6137, 0.0
        %v6142 = vmax.f32 %v6138, 0.0
        %v6143 = vmax.f32 %v6139, 0.0
        %v6144 = vmax.f32 %v6140, 0.0
        %v6145 = vpack.c.bf16 %v6143, %v6141
        %v6146 = vpack.c.bf16 %v6144, %v6142
        %v6147 = vld [vmem:[%s7] sm:$0xf]
        %vm6148 = vcmask 130048
        %v6150 = vsel %vm6148, %v6147, 0
        %6152 = vmatprep.subr.bf16.mxu0 %v6146
        %6153 = vmatpush1.bf16.msra.mxu0 %v6145
        %6154 = vmatprep.subr.bf16.mxu0 0
        %6155 = vmatpush1.bf16.msra.mxu0 0
        %6156 = vmatprep.subr.bf16.mxu0 0
        %6157 = vmatpush1.bf16.msra.mxu0 0
        %6158 = vmatprep.subr.bf16.mxu0 0
        %6159 = vmatpush1.bf16.msra.mxu0 0
        %6160 = vmatprep.subr.bf16.mxu0 0
        %6161 = vmatpush1.bf16.msra.mxu0 0
        %6162 = vmatprep.subr.bf16.mxu0 0
        %6163 = vmatpush1.bf16.msra.mxu0 0
        %6164 = vmatprep.subr.bf16.mxu0 0
        %6165 = vmatpush1.bf16.msra.mxu0 0
        %6166 = vmatprep.subr.bf16.mxu0 0
        %6167 = vmatpush1.bf16.msra.mxu0 0
        %6168 = vmatprep.subr.bf16.mxu0 0
        %6169 = vmatpush1.bf16.msra.mxu0 0
        %6170 = vmatprep.subr.bf16.mxu0 0
        %6171 = vmatpush1.bf16.msra.mxu0 0
        %6172 = vmatprep.subr.bf16.mxu0 0
        %6173 = vmatpush1.bf16.msra.mxu0 0
        %6174 = vmatprep.subr.bf16.mxu0 0
        %6175 = vmatpush1.bf16.msra.mxu0 0
        %6176 = vmatprep.subr.bf16.mxu0 0
        %6177 = vmatpush1.bf16.msra.mxu0 0
        %6178 = vmatprep.subr.bf16.mxu0 0
        %6179 = vmatpush1.bf16.msra.mxu0 0
        %6180 = vmatprep.subr.bf16.mxu0 0
        %6181 = vmatpush1.bf16.msra.mxu0 0
        %6182 = vmatprep.subr.bf16.mxu0 0
        %6183 = vmatpush1.bf16.msra.mxu0 0
        %6184 = vmatprep.mubr.bf16.mxu0 0
        %6185 = vmatmul.mubr.bf16.gmra.mrb[0].mxu0 %v6150
        %v6186 = vpop.f32.mrb[0].mxu0
        %v6187 = vadd.f32 0.0, %v6186
        %v6188 = vpop.f32.mrb[0].mxu0
        %v6189 = vadd.f32 0.0, %v6188
        %v6190 = vpop.f32.mrb[0].mxu0
        %v6191 = vpop.f32.mrb[0].mxu0
        %6192 = vdwg.mxu0
        %v6193 = vpack.c.bf16 %v6187, %v6187
        %v6194 = vpack.c.bf16 %v6189, %v6189
        %v6195 = vld [vmem:[%s8] sm:$0xf]
        %v6196 = vld [vmem:[%s8 + $0x4] sm:$0xf]
        %v6197 = vld [vmem:[%s8 + $0x8] sm:$0xf]
        %v6198 = vld [vmem:[%s8 + $0xc] sm:$0xf]
        %v6199 = vld [vmem:[%s8 + $0x10] sm:$0xf]
        %v6200 = vld [vmem:[%s8 + $0x14] sm:$0xf]
        %v6201 = vld [vmem:[%s8 + $0x18] sm:$0xf]
        %v6202 = vld [vmem:[%s8 + $0x1c] sm:$0xf]
        %v6203 = vld [vmem:[%s8 + $0x20] sm:$0xf]
        %v6204 = vld [vmem:[%s8 + $0x24] sm:$0xf]
        %v6205 = vld [vmem:[%s8 + $0x28] sm:$0xf]
        %v6206 = vld [vmem:[%s8 + $0x2c] sm:$0xf]
        %v6207 = vld [vmem:[%s8 + $0x30] sm:$0xf]
        %v6208 = vld [vmem:[%s8 + $0x34] sm:$0xf]
        %v6209 = vld [vmem:[%s8 + $0x38] sm:$0xf]
        %v6210 = vld [vmem:[%s8 + $0x3c] sm:$0xf]
        %v6211 = vld [vmem:[%s8 + $0x40] sm:$0xf]
        %v6212 = vld [vmem:[%s8 + $0x44] sm:$0xf]
        %v6213 = vld [vmem:[%s8 + $0x48] sm:$0xf]
        %v6214 = vld [vmem:[%s8 + $0x4c] sm:$0xf]
        %v6215 = vld [vmem:[%s8 + $0x50] sm:$0xf]
        %v6216 = vld [vmem:[%s8 + $0x54] sm:$0xf]
        %v6217 = vld [vmem:[%s8 + $0x58] sm:$0xf]
        %v6218 = vld [vmem:[%s8 + $0x5c] sm:$0xf]
        %v6219 = vld [vmem:[%s8 + $0x60] sm:$0xf]
        %v6220 = vld [vmem:[%s8 + $0x64] sm:$0xf]
        %v6221 = vld [vmem:[%s8 + $0x68] sm:$0xf]
        %v6222 = vld [vmem:[%s8 + $0x6c] sm:$0xf]
        %v6223 = vld [vmem:[%s8 + $0x70] sm:$0xf]
        %v6224 = vld [vmem:[%s8 + $0x74] sm:$0xf]
        %v6225 = vld [vmem:[%s8 + $0x78] sm:$0xf]
        %v6226 = vld [vmem:[%s8 + $0x7c] sm:$0xf]
        %s6227 = scalar_lea.vmem %s7, 4
        %v6228 = vld [vmem:[%s6227] sm:$0xf]
        %v6230 = vsel %vm6148, %v6228, 0
        %6232 = vmatprep.subr.bf16.mxu0 %v6146
        %6233 = vmatpush1.bf16.msra.mxu0 %v6145
        %6234 = vmatprep.subr.bf16.mxu0 0
        %6235 = vmatpush1.bf16.msra.mxu0 0
        %6236 = vmatprep.subr.bf16.mxu0 0
        %6237 = vmatpush1.bf16.msra.mxu0 0
        %6238 = vmatprep.subr.bf16.mxu0 0
        %6239 = vmatpush1.bf16.msra.mxu0 0
        %6240 = vmatprep.subr.bf16.mxu0 0
        %6241 = vmatpush1.bf16.msra.mxu0 0
        %6242 = vmatprep.subr.bf16.mxu0 0
        %6243 = vmatpush1.bf16.msra.mxu0 0
        %6244 = vmatprep.subr.bf16.mxu0 0
        %6245 = vmatpush1.bf16.msra.mxu0 0
        %6246 = vmatprep.subr.bf16.mxu0 0
        %6247 = vmatpush1.bf16.msra.mxu0 0
        %6248 = vmatprep.subr.bf16.mxu0 0
        %6249 = vmatpush1.bf16.msra.mxu0 0
        %6250 = vmatprep.subr.bf16.mxu0 0
        %6251 = vmatpush1.bf16.msra.mxu0 0
        %6252 = vmatprep.subr.bf16.mxu0 0
        %6253 = vmatpush1.bf16.msra.mxu0 0
        %6254 = vmatprep.subr.bf16.mxu0 0
        %6255 = vmatpush1.bf16.msra.mxu0 0
        %6256 = vmatprep.subr.bf16.mxu0 0
        %6257 = vmatpush1.bf16.msra.mxu0 0
        %6258 = vmatprep.subr.bf16.mxu0 0
        %6259 = vmatpush1.bf16.msra.mxu0 0
        %6260 = vmatprep.subr.bf16.mxu0 0
        %6261 = vmatpush1.bf16.msra.mxu0 0
        %6262 = vmatprep.subr.bf16.mxu0 0
        %6263 = vmatpush1.bf16.msra.mxu0 0
        %6264 = vmatprep.mubr.bf16.mxu0 0
        %6265 = vmatmul.mubr.bf16.gmra.mrb[0].mxu0 %v6230
        %v6266 = vpop.f32.mrb[0].mxu0
        %v6267 = vadd.f32 0.0, %v6266
        %v6268 = vpop.f32.mrb[0].mxu0
        %v6269 = vadd.f32 0.0, %v6268
        %v6270 = vpop.f32.mrb[0].mxu0
        %v6271 = vpop.f32.mrb[0].mxu0
        %6272 = vdwg.mxu0
        %v6273 = vpack.c.bf16 %v6267, %v6267
        %v6274 = vpack.c.bf16 %v6269, %v6269
        %s6275 = scalar_lea.vmem %s8, 128
        %v6276 = vld [vmem:[%s6275] sm:$0xf]
        %v6277 = vld [vmem:[%s6275 + $0x4] sm:$0xf]
        %v6278 = vld [vmem:[%s6275 + $0x8] sm:$0xf]
        %v6279 = vld [vmem:[%s6275 + $0xc] sm:$0xf]
        %v6280 = vld [vmem:[%s6275 + $0x10] sm:$0xf]
        %v6281 = vld [vmem:[%s6275 + $0x14] sm:$0xf]
        %v6282 = vld [vmem:[%s6275 + $0x18] sm:$0xf]
        %v6283 = vld [vmem:[%s6275 + $0x1c] sm:$0xf]
        %v6284 = vld [vmem:[%s6275 + $0x20] sm:$0xf]
        %v6285 = vld [vmem:[%s6275 + $0x24] sm:$0xf]
        %v6286 = vld [vmem:[%s6275 + $0x28] sm:$0xf]
        %v6287 = vld [vmem:[%s6275 + $0x2c] sm:$0xf]
        %v6288 = vld [vmem:[%s6275 + $0x30] sm:$0xf]
        %v6289 = vld [vmem:[%s6275 + $0x34] sm:$0xf]
        %v6290 = vld [vmem:[%s6275 + $0x38] sm:$0xf]
        %v6291 = vld [vmem:[%s6275 + $0x3c] sm:$0xf]
        %v6292 = vld [vmem:[%s6275 + $0x40] sm:$0xf]
        %v6293 = vld [vmem:[%s6275 + $0x44] sm:$0xf]
        %v6294 = vld [vmem:[%s6275 + $0x48] sm:$0xf]
        %v6295 = vld [vmem:[%s6275 + $0x4c] sm:$0xf]
        %v6296 = vld [vmem:[%s6275 + $0x50] sm:$0xf]
        %v6297 = vld [vmem:[%s6275 + $0x54] sm:$0xf]
        %v6298 = vld [vmem:[%s6275 + $0x58] sm:$0xf]
        %v6299 = vld [vmem:[%s6275 + $0x5c] sm:$0xf]
        %v6300 = vld [vmem:[%s6275 + $0x60] sm:$0xf]
        %v6301 = vld [vmem:[%s6275 + $0x64] sm:$0xf]
        %v6302 = vld [vmem:[%s6275 + $0x68] sm:$0xf]
        %v6303 = vld [vmem:[%s6275 + $0x6c] sm:$0xf]
        %v6304 = vld [vmem:[%s6275 + $0x70] sm:$0xf]
        %v6305 = vld [vmem:[%s6275 + $0x74] sm:$0xf]
        %v6306 = vld [vmem:[%s6275 + $0x78] sm:$0xf]
        %v6307 = vld [vmem:[%s6275 + $0x7c] sm:$0xf]
        %v6340 = vunpack.c.l.b16 %v6276
        %v6341 = vunpack.c.l.b16 %v6277
        %v6342 = vunpack.c.l.b16 %v6278
        %v6343 = vunpack.c.l.b16 %v6279
        %v6344 = vunpack.c.l.b16 %v6280
        %v6345 = vunpack.c.l.b16 %v6281
        %v6346 = vunpack.c.l.b16 %v6282
        %v6347 = vunpack.c.l.b16 %v6283
        %v6348 = vunpack.c.l.b16 %v6284
        %v6349 = vunpack.c.l.b16 %v6285
        %v6350 = vunpack.c.l.b16 %v6286
        %v6351 = vunpack.c.l.b16 %v6287
        %v6352 = vunpack.c.l.b16 %v6288
        %v6353 = vunpack.c.l.b16 %v6289
        %v6354 = vunpack.c.l.b16 %v6290
        %v6355 = vunpack.c.l.b16 %v6291
        %v6356 = vunpack.c.l.b16 %v6292
        %v6357 = vunpack.c.l.b16 %v6293
        %v6358 = vunpack.c.l.b16 %v6294
        %v6359 = vunpack.c.l.b16 %v6295
        %v6360 = vunpack.c.l.b16 %v6296
        %v6361 = vunpack.c.l.b16 %v6297
        %v6362 = vunpack.c.l.b16 %v6298
        %v6363 = vunpack.c.l.b16 %v6299
        %v6364 = vunpack.c.l.b16 %v6300
        %v6365 = vunpack.c.l.b16 %v6301
        %v6366 = vunpack.c.l.b16 %v6302
        %v6367 = vunpack.c.l.b16 %v6303
        %v6368 = vunpack.c.l.b16 %v6304
        %v6369 = vunpack.c.l.b16 %v6305
        %v6370 = vunpack.c.l.b16 %v6306
        %v6371 = vunpack.c.l.b16 %v6307
        %v6372 = vpack.c.b16 %v6341, %v6340
        %v6373 = vpack.c.b16 %v6343, %v6342
        %v6374 = vpack.c.b16 %v6345, %v6344
        %v6375 = vpack.c.b16 %v6347, %v6346
        %v6376 = vpack.c.b16 %v6349, %v6348
        %v6377 = vpack.c.b16 %v6351, %v6350
        %v6378 = vpack.c.b16 %v6353, %v6352
        %v6379 = vpack.c.b16 %v6355, %v6354
        %v6380 = vpack.c.b16 %v6357, %v6356
        %v6381 = vpack.c.b16 %v6359, %v6358
        %v6382 = vpack.c.b16 %v6361, %v6360
        %v6383 = vpack.c.b16 %v6363, %v6362
        %v6384 = vpack.c.b16 %v6365, %v6364
        %v6385 = vpack.c.b16 %v6367, %v6366
        %v6386 = vpack.c.b16 %v6369, %v6368
        %v6387 = vpack.c.b16 %v6371, %v6370
        %6404 = vmatprep.subr.bf16.mxu0 0
        %6405 = vmatpush1.bf16.msra.mxu0 %v6372
        %6406 = vmatprep.subr.bf16.mxu0 0
        %6407 = vmatpush1.bf16.msra.mxu0 %v6373
        %6408 = vmatprep.subr.bf16.mxu0 0
        %6409 = vmatpush1.bf16.msra.mxu0 %v6374
        %6410 = vmatprep.subr.bf16.mxu0 0
        %6411 = vmatpush1.bf16.msra.mxu0 %v6375
        %6412 = vmatprep.subr.bf16.mxu0 0
        %6413 = vmatpush1.bf16.msra.mxu0 %v6376
        %6414 = vmatprep.subr.bf16.mxu0 0
        %6415 = vmatpush1.bf16.msra.mxu0 %v6377
        %6416 = vmatprep.subr.bf16.mxu0 0
        %6417 = vmatpush1.bf16.msra.mxu0 %v6378
        %6418 = vmatprep.subr.bf16.mxu0 0
        %6419 = vmatpush1.bf16.msra.mxu0 %v6379
        %6420 = vmatprep.subr.bf16.mxu0 0
        %6421 = vmatpush1.bf16.msra.mxu0 %v6380
        %6422 = vmatprep.subr.bf16.mxu0 0
        %6423 = vmatpush1.bf16.msra.mxu0 %v6381
        %6424 = vmatprep.subr.bf16.mxu0 0
        %6425 = vmatpush1.bf16.msra.mxu0 %v6382
        %6426 = vmatprep.subr.bf16.mxu0 0
        %6427 = vmatpush1.bf16.msra.mxu0 %v6383
        %6428 = vmatprep.subr.bf16.mxu0 0
        %6429 = vmatpush1.bf16.msra.mxu0 %v6384
        %6430 = vmatprep.subr.bf16.mxu0 0
        %6431 = vmatpush1.bf16.msra.mxu0 %v6385
        %6432 = vmatprep.subr.bf16.mxu0 0
        %6433 = vmatpush1.bf16.msra.mxu0 %v6386
        %6434 = vmatprep.subr.bf16.mxu0 0
        %6435 = vmatpush1.bf16.msra.mxu0 %v6387
        %6436 = vmatprep.mubr.bf16.mxu0 %v6274
        %6437 = vmatmul.mubr.bf16.gmra.mrb[0].mxu0 %v6273
        %v6438 = vpop.f32.mrb[0].mxu0
        %v6439 = vadd.f32 0.0, %v6438
        %v6440 = vpop.f32.mrb[0].mxu0
        %v6441 = vpop.f32.mrb[0].mxu0
        %v6442 = vpop.f32.mrb[0].mxu0
        %6443 = vdwg.mxu0
        %v6476 = vunpack.c.l.b16 %v6195
        %v6477 = vunpack.c.l.b16 %v6196
        %v6478 = vunpack.c.l.b16 %v6197
        %v6479 = vunpack.c.l.b16 %v6198
        %v6480 = vunpack.c.l.b16 %v6199
        %v6481 = vunpack.c.l.b16 %v6200
        %v6482 = vunpack.c.l.b16 %v6201
        %v6483 = vunpack.c.l.b16 %v6202
        %v6484 = vunpack.c.l.b16 %v6203
        %v6485 = vunpack.c.l.b16 %v6204
        %v6486 = vunpack.c.l.b16 %v6205
        %v6487 = vunpack.c.l.b16 %v6206
        %v6488 = vunpack.c.l.b16 %v6207
        %v6489 = vunpack.c.l.b16 %v6208
        %v6490 = vunpack.c.l.b16 %v6209
        %v6491 = vunpack.c.l.b16 %v6210
        %v6492 = vunpack.c.l.b16 %v6211
        %v6493 = vunpack.c.l.b16 %v6212
        %v6494 = vunpack.c.l.b16 %v6213
        %v6495 = vunpack.c.l.b16 %v6214
        %v6496 = vunpack.c.l.b16 %v6215
        %v6497 = vunpack.c.l.b16 %v6216
        %v6498 = vunpack.c.l.b16 %v6217
        %v6499 = vunpack.c.l.b16 %v6218
        %v6500 = vunpack.c.l.b16 %v6219
        %v6501 = vunpack.c.l.b16 %v6220
        %v6502 = vunpack.c.l.b16 %v6221
        %v6503 = vunpack.c.l.b16 %v6222
        %v6504 = vunpack.c.l.b16 %v6223
        %v6505 = vunpack.c.l.b16 %v6224
        %v6506 = vunpack.c.l.b16 %v6225
        %v6507 = vunpack.c.l.b16 %v6226
        %v6508 = vpack.c.b16 %v6477, %v6476
        %v6509 = vpack.c.b16 %v6479, %v6478
        %v6510 = vpack.c.b16 %v6481, %v6480
        %v6511 = vpack.c.b16 %v6483, %v6482
        %v6512 = vpack.c.b16 %v6485, %v6484
        %v6513 = vpack.c.b16 %v6487, %v6486
        %v6514 = vpack.c.b16 %v6489, %v6488
        %v6515 = vpack.c.b16 %v6491, %v6490
        %v6516 = vpack.c.b16 %v6493, %v6492
        %v6517 = vpack.c.b16 %v6495, %v6494
        %v6518 = vpack.c.b16 %v6497, %v6496
        %v6519 = vpack.c.b16 %v6499, %v6498
        %v6520 = vpack.c.b16 %v6501, %v6500
        %v6521 = vpack.c.b16 %v6503, %v6502
        %v6522 = vpack.c.b16 %v6505, %v6504
        %v6523 = vpack.c.b16 %v6507, %v6506
        %6540 = vmatprep.subr.bf16.mxu0 0
        %6541 = vmatpush1.bf16.msra.mxu0 %v6508
        %6542 = vmatprep.subr.bf16.mxu0 0
        %6543 = vmatpush1.bf16.msra.mxu0 %v6509
        %6544 = vmatprep.subr.bf16.mxu0 0
        %6545 = vmatpush1.bf16.msra.mxu0 %v6510
        %6546 = vmatprep.subr.bf16.mxu0 0
        %6547 = vmatpush1.bf16.msra.mxu0 %v6511
        %6548 = vmatprep.subr.bf16.mxu0 0
        %6549 = vmatpush1.bf16.msra.mxu0 %v6512
        %6550 = vmatprep.subr.bf16.mxu0 0
        %6551 = vmatpush1.bf16.msra.mxu0 %v6513
        %6552 = vmatprep.subr.bf16.mxu0 0
        %6553 = vmatpush1.bf16.msra.mxu0 %v6514
        %6554 = vmatprep.subr.bf16.mxu0 0
        %6555 = vmatpush1.bf16.msra.mxu0 %v6515
        %6556 = vmatprep.subr.bf16.mxu0 0
        %6557 = vmatpush1.bf16.msra.mxu0 %v6516
        %6558 = vmatprep.subr.bf16.mxu0 0
        %6559 = vmatpush1.bf16.msra.mxu0 %v6517
        %6560 = vmatprep.subr.bf16.mxu0 0
        %6561 = vmatpush1.bf16.msra.mxu0 %v6518
        %6562 = vmatprep.subr.bf16.mxu0 0
        %6563 = vmatpush1.bf16.msra.mxu0 %v6519
        %6564 = vmatprep.subr.bf16.mxu0 0
        %6565 = vmatpush1.bf16.msra.mxu0 %v6520
        %6566 = vmatprep.subr.bf16.mxu0 0
        %6567 = vmatpush1.bf16.msra.mxu0 %v6521
        %6568 = vmatprep.subr.bf16.mxu0 0
        %6569 = vmatpush1.bf16.msra.mxu0 %v6522
        %6570 = vmatprep.subr.bf16.mxu0 0
        %6571 = vmatpush1.bf16.msra.mxu0 %v6523
        %6572 = vmatprep.mubr.bf16.mxu0 %v6194
        %6573 = vmatmul.mubr.bf16.gmra.mrb[0].mxu0 %v6193
        %v6574 = vpop.f32.mrb[0].mxu0
        %v6575 = vadd.f32 %v6439, %v6574
        %v6576 = vpop.f32.mrb[0].mxu0
        %v6577 = vpop.f32.mrb[0].mxu0
        %v6578 = vpop.f32.mrb[0].mxu0
        %6579 = vdwg.mxu0
        %s6580 = scalar_lea.vmem %s7, 8
        %v6581 = vld [vmem:[%s6580] sm:$0xf]
        %v6583 = vsel %vm6148, %v6581, 0
        %6585 = vmatprep.subr.bf16.mxu0 %v6146
        %6586 = vmatpush1.bf16.msra.mxu0 %v6145
        %6587 = vmatprep.subr.bf16.mxu0 0
        %6588 = vmatpush1.bf16.msra.mxu0 0
        %6589 = vmatprep.subr.bf16.mxu0 0
        %6590 = vmatpush1.bf16.msra.mxu0 0
        %6591 = vmatprep.subr.bf16.mxu0 0
        %6592 = vmatpush1.bf16.msra.mxu0 0
        %6593 = vmatprep.subr.bf16.mxu0 0
        %6594 = vmatpush1.bf16.msra.mxu0 0
        %6595 = vmatprep.subr.bf16.mxu0 0
        %6596 = vmatpush1.bf16.msra.mxu0 0
        %6597 = vmatprep.subr.bf16.mxu0 0
        %6598 = vmatpush1.bf16.msra.mxu0 0
        %6599 = vmatprep.subr.bf16.mxu0 0
        %6600 = vmatpush1.bf16.msra.mxu0 0
        %6601 = vmatprep.subr.bf16.mxu0 0
        %6602 = vmatpush1.bf16.msra.mxu0 0
        %6603 = vmatprep.subr.bf16.mxu0 0
        %6604 = vmatpush1.bf16.msra.mxu0 0
        %6605 = vmatprep.subr.bf16.mxu0 0
        %6606 = vmatpush1.bf16.msra.mxu0 0
        %6607 = vmatprep.subr.bf16.mxu0 0
        %6608 = vmatpush1.bf16.msra.mxu0 0
        %6609 = vmatprep.subr.bf16.mxu0 0
        %6610 = vmatpush1.bf16.msra.mxu0 0
        %6611 = vmatprep.subr.bf16.mxu0 0
        %6612 = vmatpush1.bf16.msra.mxu0 0
        %6613 = vmatprep.subr.bf16.mxu0 0
        %6614 = vmatpush1.bf16.msra.mxu0 0
        %6615 = vmatprep.subr.bf16.mxu0 0
        %6616 = vmatpush1.bf16.msra.mxu0 0
        %6617 = vmatprep.mubr.bf16.mxu0 0
        %6618 = vmatmul.mubr.bf16.gmra.mrb[0].mxu0 %v6583
        %v6619 = vpop.f32.mrb[0].mxu0
        %v6620 = vadd.f32 0.0, %v6619
        %v6621 = vpop.f32.mrb[0].mxu0
        %v6622 = vadd.f32 0.0, %v6621
        %v6623 = vpop.f32.mrb[0].mxu0
        %v6624 = vpop.f32.mrb[0].mxu0
        %6625 = vdwg.mxu0
        %v6626 = vpack.c.bf16 %v6620, %v6620
        %v6627 = vpack.c.bf16 %v6622, %v6622
        %s6628 = scalar_lea.vmem %s8, 256
        %v6629 = vld [vmem:[%s6628] sm:$0xf]
        %v6630 = vld [vmem:[%s6628 + $0x4] sm:$0xf]
        %v6631 = vld [vmem:[%s6628 + $0x8] sm:$0xf]
        %v6632 = vld [vmem:[%s6628 + $0xc] sm:$0xf]
        %v6633 = vld [vmem:[%s6628 + $0x10] sm:$0xf]
        %v6634 = vld [vmem:[%s6628 + $0x14] sm:$0xf]
        %v6635 = vld [vmem:[%s6628 + $0x18] sm:$0xf]
        %v6636 = vld [vmem:[%s6628 + $0x1c] sm:$0xf]
        %v6637 = vld [vmem:[%s6628 + $0x20] sm:$0xf]
        %v6638 = vld [vmem:[%s6628 + $0x24] sm:$0xf]
        %v6639 = vld [vmem:[%s6628 + $0x28] sm:$0xf]
        %v6640 = vld [vmem:[%s6628 + $0x2c] sm:$0xf]
        %v6641 = vld [vmem:[%s6628 + $0x30] sm:$0xf]
        %v6642 = vld [vmem:[%s6628 + $0x34] sm:$0xf]
        %v6643 = vld [vmem:[%s6628 + $0x38] sm:$0xf]
        %v6644 = vld [vmem:[%s6628 + $0x3c] sm:$0xf]
        %v6645 = vld [vmem:[%s6628 + $0x40] sm:$0xf]
        %v6646 = vld [vmem:[%s6628 + $0x44] sm:$0xf]
        %v6647 = vld [vmem:[%s6628 + $0x48] sm:$0xf]
        %v6648 = vld [vmem:[%s6628 + $0x4c] sm:$0xf]
        %v6649 = vld [vmem:[%s6628 + $0x50] sm:$0xf]
        %v6650 = vld [vmem:[%s6628 + $0x54] sm:$0xf]
        %v6651 = vld [vmem:[%s6628 + $0x58] sm:$0xf]
        %v6652 = vld [vmem:[%s6628 + $0x5c] sm:$0xf]
        %v6653 = vld [vmem:[%s6628 + $0x60] sm:$0xf]
        %v6654 = vld [vmem:[%s6628 + $0x64] sm:$0xf]
        %v6655 = vld [vmem:[%s6628 + $0x68] sm:$0xf]
        %v6656 = vld [vmem:[%s6628 + $0x6c] sm:$0xf]
        %v6657 = vld [vmem:[%s6628 + $0x70] sm:$0xf]
        %v6658 = vld [vmem:[%s6628 + $0x74] sm:$0xf]
        %v6659 = vld [vmem:[%s6628 + $0x78] sm:$0xf]
        %v6660 = vld [vmem:[%s6628 + $0x7c] sm:$0xf]
        %v6693 = vunpack.c.l.b16 %v6629
        %v6694 = vunpack.c.l.b16 %v6630
        %v6695 = vunpack.c.l.b16 %v6631
        %v6696 = vunpack.c.l.b16 %v6632
        %v6697 = vunpack.c.l.b16 %v6633
        %v6698 = vunpack.c.l.b16 %v6634
        %v6699 = vunpack.c.l.b16 %v6635
        %v6700 = vunpack.c.l.b16 %v6636
        %v6701 = vunpack.c.l.b16 %v6637
        %v6702 = vunpack.c.l.b16 %v6638
        %v6703 = vunpack.c.l.b16 %v6639
        %v6704 = vunpack.c.l.b16 %v6640
        %v6705 = vunpack.c.l.b16 %v6641
        %v6706 = vunpack.c.l.b16 %v6642
        %v6707 = vunpack.c.l.b16 %v6643
        %v6708 = vunpack.c.l.b16 %v6644
        %v6709 = vunpack.c.l.b16 %v6645
        %v6710 = vunpack.c.l.b16 %v6646
        %v6711 = vunpack.c.l.b16 %v6647
        %v6712 = vunpack.c.l.b16 %v6648
        %v6713 = vunpack.c.l.b16 %v6649
        %v6714 = vunpack.c.l.b16 %v6650
        %v6715 = vunpack.c.l.b16 %v6651
        %v6716 = vunpack.c.l.b16 %v6652
        %v6717 = vunpack.c.l.b16 %v6653
        %v6718 = vunpack.c.l.b16 %v6654
        %v6719 = vunpack.c.l.b16 %v6655
        %v6720 = vunpack.c.l.b16 %v6656
        %v6721 = vunpack.c.l.b16 %v6657
        %v6722 = vunpack.c.l.b16 %v6658
        %v6723 = vunpack.c.l.b16 %v6659
        %v6724 = vunpack.c.l.b16 %v6660
        %v6725 = vpack.c.b16 %v6694, %v6693
        %v6726 = vpack.c.b16 %v6696, %v6695
        %v6727 = vpack.c.b16 %v6698, %v6697
        %v6728 = vpack.c.b16 %v6700, %v6699
        %v6729 = vpack.c.b16 %v6702, %v6701
        %v6730 = vpack.c.b16 %v6704, %v6703
        %v6731 = vpack.c.b16 %v6706, %v6705
        %v6732 = vpack.c.b16 %v6708, %v6707
        %v6733 = vpack.c.b16 %v6710, %v6709
        %v6734 = vpack.c.b16 %v6712, %v6711
        %v6735 = vpack.c.b16 %v6714, %v6713
        %v6736 = vpack.c.b16 %v6716, %v6715
        %v6737 = vpack.c.b16 %v6718, %v6717
        %v6738 = vpack.c.b16 %v6720, %v6719
        %v6739 = vpack.c.b16 %v6722, %v6721
        %v6740 = vpack.c.b16 %v6724, %v6723
        %6757 = vmatprep.subr.bf16.mxu0 0
        %6758 = vmatpush1.bf16.msra.mxu0 %v6725
        %6759 = vmatprep.subr.bf16.mxu0 0
        %6760 = vmatpush1.bf16.msra.mxu0 %v6726
        %6761 = vmatprep.subr.bf16.mxu0 0
        %6762 = vmatpush1.bf16.msra.mxu0 %v6727
        %6763 = vmatprep.subr.bf16.mxu0 0
        %6764 = vmatpush1.bf16.msra.mxu0 %v6728
        %6765 = vmatprep.subr.bf16.mxu0 0
        %6766 = vmatpush1.bf16.msra.mxu0 %v6729
        %6767 = vmatprep.subr.bf16.mxu0 0
        %6768 = vmatpush1.bf16.msra.mxu0 %v6730
        %6769 = vmatprep.subr.bf16.mxu0 0
        %6770 = vmatpush1.bf16.msra.mxu0 %v6731
        %6771 = vmatprep.subr.bf16.mxu0 0
        %6772 = vmatpush1.bf16.msra.mxu0 %v6732
        %6773 = vmatprep.subr.bf16.mxu0 0
        %6774 = vmatpush1.bf16.msra.mxu0 %v6733
        %6775 = vmatprep.subr.bf16.mxu0 0
        %6776 = vmatpush1.bf16.msra.mxu0 %v6734
        %6777 = vmatprep.subr.bf16.mxu0 0
        %6778 = vmatpush1.bf16.msra.mxu0 %v6735
        %6779 = vmatprep.subr.bf16.mxu0 0
        %6780 = vmatpush1.bf16.msra.mxu0 %v6736
        %6781 = vmatprep.subr.bf16.mxu0 0
        %6782 = vmatpush1.bf16.msra.mxu0 %v6737
        %6783 = vmatprep.subr.bf16.mxu0 0
        %6784 = vmatpush1.bf16.msra.mxu0 %v6738
        %6785 = vmatprep.subr.bf16.mxu0 0
        %6786 = vmatpush1.bf16.msra.mxu0 %v6739
        %6787 = vmatprep.subr.bf16.mxu0 0
        %6788 = vmatpush1.bf16.msra.mxu0 %v6740
        %6789 = vmatprep.mubr.bf16.mxu0 %v6627
        %6790 = vmatmul.mubr.bf16.gmra.mrb[0].mxu0 %v6626
        %v6791 = vpop.f32.mrb[0].mxu0
        %v6792 = vadd.f32 0.0, %v6791
        %v6793 = vpop.f32.mrb[0].mxu0
        %v6794 = vpop.f32.mrb[0].mxu0
        %v6795 = vpop.f32.mrb[0].mxu0
        %6796 = vdwg.mxu0
        %v6797 = vadd.f32 %v6575, %v6792
        %v6798 = vld [vmem:[%s9] sm:$0x1]
        %v6800 = vlaneseq
        %v6801 = vshrl.u32 %v6800, 7
        %v6802 = vsub.s32 0, %v6801
        %v6803 = vrot.slane %v6798, %v6802
        %v6805 = vadd.f32 %v6797, %v6803
        %v6806 = vmax.f32 %v6805, 0.0
        %v6807 = vpack.c.bf16 %v6806, %v6806
        %v6808 = vld [vmem:[%s12] sm:$0x1]
        %v6809 = vld [vmem:[%s10] sm:$0x3]
        %vm6810 = vcmask 64512
        %v6812 = vsel %vm6810, %v6809, 0
        %v6815 = vsel %vm4406, %v6807, 0
        %6817 = vmatprep.subr.bf16.mxu0 0
        %6818 = vmatpush1.bf16.msra.mxu0 %v6815
        %6819 = vmatprep.subr.bf16.mxu0 0
        %6820 = vmatpush1.bf16.msra.mxu0 0
        %6821 = vmatprep.subr.bf16.mxu0 0
        %6822 = vmatpush1.bf16.msra.mxu0 0
        %6823 = vmatprep.subr.bf16.mxu0 0
        %6824 = vmatpush1.bf16.msra.mxu0 0
        %6825 = vmatprep.subr.bf16.mxu0 0
        %6826 = vmatpush1.bf16.msra.mxu0 0
        %6827 = vmatprep.subr.bf16.mxu0 0
        %6828 = vmatpush1.bf16.msra.mxu0 0
        %6829 = vmatprep.subr.bf16.mxu0 0
        %6830 = vmatpush1.bf16.msra.mxu0 0
        %6831 = vmatprep.subr.bf16.mxu0 0
        %6832 = vmatpush1.bf16.msra.mxu0 0
        %6833 = vmatprep.subr.bf16.mxu0 0
        %6834 = vmatpush1.bf16.msra.mxu0 0
        %6835 = vmatprep.subr.bf16.mxu0 0
        %6836 = vmatpush1.bf16.msra.mxu0 0
        %6837 = vmatprep.subr.bf16.mxu0 0
        %6838 = vmatpush1.bf16.msra.mxu0 0
        %6839 = vmatprep.subr.bf16.mxu0 0
        %6840 = vmatpush1.bf16.msra.mxu0 0
        %6841 = vmatprep.subr.bf16.mxu0 0
        %6842 = vmatpush1.bf16.msra.mxu0 0
        %6843 = vmatprep.subr.bf16.mxu0 0
        %6844 = vmatpush1.bf16.msra.mxu0 0
        %6845 = vmatprep.subr.bf16.mxu0 0
        %6846 = vmatpush1.bf16.msra.mxu0 0
        %6847 = vmatprep.subr.bf16.mxu0 0
        %6848 = vmatpush1.bf16.msra.mxu0 0
        %6849 = vmatprep.mubr.bf16.mxu0 0
        %6850 = vmatmul.mubr.bf16.gmra.mrb[0].mxu0 %v6812
        %v6851 = vpop.f32.mrb[0].mxu0
        %v6852 = vadd.f32 0.0, %v6851
        %v6853 = vpop.f32.mrb[0].mxu0
        %v6854 = vpop.f32.mrb[0].mxu0
        %v6855 = vpop.f32.mrb[0].mxu0
        %6856 = vdwg.mxu0
        %v6857 = vld [vmem:[%s11] sm:$0xff]
        %v6858 = vld [vmem:[%s11 + $0x8] sm:$0xff]
        %v6859 = vld [vmem:[%s11 + $0x10] sm:$0xff]
        %v6860 = vld [vmem:[%s11 + $0x18] sm:$0xff]
        %v6861 = vld [vmem:[%s11 + $0x20] sm:$0xff]
        %v6862 = vld [vmem:[%s11 + $0x28] sm:$0xff]
        %v6863 = vld [vmem:[%s11 + $0x30] sm:$0xff]
        %v6864 = vld [vmem:[%s11 + $0x38] sm:$0xff]
        %v6866 = vsel %vm4882, %v6852, 0
        %6868 = vmatprep.subr.mxu0 0.0
        %6869 = vmatpush1.msra.mxu0 %v6857
        %6870 = vmatprep.subr.mxu0 0.0
        %6871 = vmatpush1.msra.mxu0 %v6858
        %6872 = vmatprep.subr.mxu0 0.0
        %6873 = vmatpush1.msra.mxu0 %v6859
        %6874 = vmatprep.subr.mxu0 0.0
        %6875 = vmatpush1.msra.mxu0 %v6860
        %6876 = vmatprep.subr.mxu0 0.0
        %6877 = vmatpush1.msra.mxu0 %v6861
        %6878 = vmatprep.subr.mxu0 0.0
        %6879 = vmatpush1.msra.mxu0 %v6862
        %6880 = vmatprep.subr.mxu0 0.0
        %6881 = vmatpush1.msra.mxu0 %v6863
        %6882 = vmatprep.subr.mxu0 0.0
        %6883 = vmatpush1.msra.mxu0 %v6864
        %6884 = vmatprep.subr.mxu0 0.0
        %6885 = vmatpush1.msra.mxu0 0.0
        %6886 = vmatprep.subr.mxu0 0.0
        %6887 = vmatpush1.msra.mxu0 0.0
        %6888 = vmatprep.subr.mxu0 0.0
        %6889 = vmatpush1.msra.mxu0 0.0
        %6890 = vmatprep.subr.mxu0 0.0
        %6891 = vmatpush1.msra.mxu0 0.0
        %6892 = vmatprep.subr.mxu0 0.0
        %6893 = vmatpush1.msra.mxu0 0.0
        %6894 = vmatprep.subr.mxu0 0.0
        %6895 = vmatpush1.msra.mxu0 0.0
        %6896 = vmatprep.subr.mxu0 0.0
        %6897 = vmatpush1.msra.mxu0 0.0
        %6898 = vmatprep.subr.mxu0 0.0
        %6899 = vmatpush1.msra.mxu0 0.0
        %6900 = vmatprep.subr.mxu0 0.0
        %6901 = vmatpush1.msra.mxu0 0.0
        %6902 = vmatprep.subr.mxu0 0.0
        %6903 = vmatpush1.msra.mxu0 0.0
        %6904 = vmatprep.subr.mxu0 0.0
        %6905 = vmatpush1.msra.mxu0 0.0
        %6906 = vmatprep.subr.mxu0 0.0
        %6907 = vmatpush1.msra.mxu0 0.0
        %6908 = vmatprep.subr.mxu0 0.0
        %6909 = vmatpush1.msra.mxu0 0.0
        %6910 = vmatprep.subr.mxu0 0.0
        %6911 = vmatpush1.msra.mxu0 0.0
        %6912 = vmatprep.subr.mxu0 0.0
        %6913 = vmatpush1.msra.mxu0 0.0
        %6914 = vmatprep.subr.mxu0 0.0
        %6915 = vmatpush1.msra.mxu0 0.0
        %6916 = vmatprep.subr.mxu0 0.0
        %6917 = vmatpush1.msra.mxu0 0.0
        %6918 = vmatprep.subr.mxu0 0.0
        %6919 = vmatpush1.msra.mxu0 0.0
        %6920 = vmatprep.subr.mxu0 0.0
        %6921 = vmatpush1.msra.mxu0 0.0
        %6922 = vmatprep.subr.mxu0 0.0
        %6923 = vmatpush1.msra.mxu0 0.0
        %6924 = vmatprep.subr.mxu0 0.0
        %6925 = vmatpush1.msra.mxu0 0.0
        %6926 = vmatprep.subr.mxu0 0.0
        %6927 = vmatpush1.msra.mxu0 0.0
        %6928 = vmatprep.subr.mxu0 0.0
        %6929 = vmatpush1.msra.mxu0 0.0
        %6930 = vmatprep.subr.mxu0 0.0
        %6931 = vmatpush1.msra.mxu0 0.0
        %6932 = vmatprep.mubr.f32.mxu0 0.0
        %6933 = vmatmul.mubr.f32.gmra.mrb[0].mxu0 %v6866
        %v6934 = vpop.f32.mrb[0].mxu0
        %v6935 = vadd.f32 0.0, %v6934
        %v6936 = vpop.f32.mrb[0].mxu0
        %6937 = vdwg.mxu0
        %v6939 = vlaneseq
        %v6940 = vshrl.u32 %v6939, 7
        %v6941 = vsub.s32 0, %v6940
        %v6942 = vrot.slane %v6808, %v6941
        %v6944 = vadd.f32 %v6942, %v6935
        %s6945 = scalar_lea.vmem %s10, 2
        %v6946 = vld [vmem:[%s6945] sm:$0x3]
        %v6948 = vsel %vm6810, %v6946, 0
        %6950 = vmatprep.subr.bf16.mxu0 0
        %6951 = vmatpush1.bf16.msra.mxu0 %v6815
        %6952 = vmatprep.subr.bf16.mxu0 0
        %6953 = vmatpush1.bf16.msra.mxu0 0
        %6954 = vmatprep.subr.bf16.mxu0 0
        %6955 = vmatpush1.bf16.msra.mxu0 0
        %6956 = vmatprep.subr.bf16.mxu0 0
        %6957 = vmatpush1.bf16.msra.mxu0 0
        %6958 = vmatprep.subr.bf16.mxu0 0
        %6959 = vmatpush1.bf16.msra.mxu0 0
        %6960 = vmatprep.subr.bf16.mxu0 0
        %6961 = vmatpush1.bf16.msra.mxu0 0
        %6962 = vmatprep.subr.bf16.mxu0 0
        %6963 = vmatpush1.bf16.msra.mxu0 0
        %6964 = vmatprep.subr.bf16.mxu0 0
        %6965 = vmatpush1.bf16.msra.mxu0 0
        %6966 = vmatprep.subr.bf16.mxu0 0
        %6967 = vmatpush1.bf16.msra.mxu0 0
        %6968 = vmatprep.subr.bf16.mxu0 0
        %6969 = vmatpush1.bf16.msra.mxu0 0
        %6970 = vmatprep.subr.bf16.mxu0 0
        %6971 = vmatpush1.bf16.msra.mxu0 0
        %6972 = vmatprep.subr.bf16.mxu0 0
        %6973 = vmatpush1.bf16.msra.mxu0 0
        %6974 = vmatprep.subr.bf16.mxu0 0
        %6975 = vmatpush1.bf16.msra.mxu0 0
        %6976 = vmatprep.subr.bf16.mxu0 0
        %6977 = vmatpush1.bf16.msra.mxu0 0
        %6978 = vmatprep.subr.bf16.mxu0 0
        %6979 = vmatpush1.bf16.msra.mxu0 0
        %6980 = vmatprep.subr.bf16.mxu0 0
        %6981 = vmatpush1.bf16.msra.mxu0 0
        %6982 = vmatprep.mubr.bf16.mxu0 0
        %6983 = vmatmul.mubr.bf16.gmra.mrb[0].mxu0 %v6948
        %v6984 = vpop.f32.mrb[0].mxu0
        %v6985 = vadd.f32 0.0, %v6984
        %v6986 = vpop.f32.mrb[0].mxu0
        %v6987 = vpop.f32.mrb[0].mxu0
        %v6988 = vpop.f32.mrb[0].mxu0
        %6989 = vdwg.mxu0
        %s6990 = scalar_lea.vmem %s11, 64
        %v6991 = vld [vmem:[%s6990] sm:$0xff]
        %v6992 = vld [vmem:[%s6990 + $0x8] sm:$0xff]
        %v6993 = vld [vmem:[%s6990 + $0x10] sm:$0xff]
        %v6994 = vld [vmem:[%s6990 + $0x18] sm:$0xff]
        %v6995 = vld [vmem:[%s6990 + $0x20] sm:$0xff]
        %v6996 = vld [vmem:[%s6990 + $0x28] sm:$0xff]
        %v6997 = vld [vmem:[%s6990 + $0x30] sm:$0xff]
        %v6998 = vld [vmem:[%s6990 + $0x38] sm:$0xff]
        %v7000 = vsel %vm4882, %v6985, 0
        %7002 = vmatprep.subr.mxu0 0.0
        %7003 = vmatpush1.msra.mxu0 %v6991
        %7004 = vmatprep.subr.mxu0 0.0
        %7005 = vmatpush1.msra.mxu0 %v6992
        %7006 = vmatprep.subr.mxu0 0.0
        %7007 = vmatpush1.msra.mxu0 %v6993
        %7008 = vmatprep.subr.mxu0 0.0
        %7009 = vmatpush1.msra.mxu0 %v6994
        %7010 = vmatprep.subr.mxu0 0.0
        %7011 = vmatpush1.msra.mxu0 %v6995
        %7012 = vmatprep.subr.mxu0 0.0
        %7013 = vmatpush1.msra.mxu0 %v6996
        %7014 = vmatprep.subr.mxu0 0.0
        %7015 = vmatpush1.msra.mxu0 %v6997
        %7016 = vmatprep.subr.mxu0 0.0
        %7017 = vmatpush1.msra.mxu0 %v6998
        %7018 = vmatprep.subr.mxu0 0.0
        %7019 = vmatpush1.msra.mxu0 0.0
        %7020 = vmatprep.subr.mxu0 0.0
        %7021 = vmatpush1.msra.mxu0 0.0
        %7022 = vmatprep.subr.mxu0 0.0
        %7023 = vmatpush1.msra.mxu0 0.0
        %7024 = vmatprep.subr.mxu0 0.0
        %7025 = vmatpush1.msra.mxu0 0.0
        %7026 = vmatprep.subr.mxu0 0.0
        %7027 = vmatpush1.msra.mxu0 0.0
        %7028 = vmatprep.subr.mxu0 0.0
        %7029 = vmatpush1.msra.mxu0 0.0
        %7030 = vmatprep.subr.mxu0 0.0
        %7031 = vmatpush1.msra.mxu0 0.0
        %7032 = vmatprep.subr.mxu0 0.0
        %7033 = vmatpush1.msra.mxu0 0.0
        %7034 = vmatprep.subr.mxu0 0.0
        %7035 = vmatpush1.msra.mxu0 0.0
        %7036 = vmatprep.subr.mxu0 0.0
        %7037 = vmatpush1.msra.mxu0 0.0
        %7038 = vmatprep.subr.mxu0 0.0
        %7039 = vmatpush1.msra.mxu0 0.0
        %7040 = vmatprep.subr.mxu0 0.0
        %7041 = vmatpush1.msra.mxu0 0.0
        %7042 = vmatprep.subr.mxu0 0.0
        %7043 = vmatpush1.msra.mxu0 0.0
        %7044 = vmatprep.subr.mxu0 0.0
        %7045 = vmatpush1.msra.mxu0 0.0
        %7046 = vmatprep.subr.mxu0 0.0
        %7047 = vmatpush1.msra.mxu0 0.0
        %7048 = vmatprep.subr.mxu0 0.0
        %7049 = vmatpush1.msra.mxu0 0.0
        %7050 = vmatprep.subr.mxu0 0.0
        %7051 = vmatpush1.msra.mxu0 0.0
        %7052 = vmatprep.subr.mxu0 0.0
        %7053 = vmatpush1.msra.mxu0 0.0
        %7054 = vmatprep.subr.mxu0 0.0
        %7055 = vmatpush1.msra.mxu0 0.0
        %7056 = vmatprep.subr.mxu0 0.0
        %7057 = vmatpush1.msra.mxu0 0.0
        %7058 = vmatprep.subr.mxu0 0.0
        %7059 = vmatpush1.msra.mxu0 0.0
        %7060 = vmatprep.subr.mxu0 0.0
        %7061 = vmatpush1.msra.mxu0 0.0
        %7062 = vmatprep.subr.mxu0 0.0
        %7063 = vmatpush1.msra.mxu0 0.0
        %7064 = vmatprep.subr.mxu0 0.0
        %7065 = vmatpush1.msra.mxu0 0.0
        %7066 = vmatprep.mubr.f32.mxu0 0.0
        %7067 = vmatmul.mubr.f32.gmra.mrb[0].mxu0 %v7000
        %v7068 = vpop.f32.mrb[0].mxu0
        %v7069 = vadd.f32 0.0, %v7068
        %v7070 = vpop.f32.mrb[0].mxu0
        %7071 = vdwg.mxu0
        %v7072 = vadd.f32 %v6944, %v7069
        %vm7073 = vcmask 257024
        %v7074 = vsel %vm7073, %v7072, 0.0
        %7075 = vadd.xlane.f32.xlu0 %v7074
        %v7076 = vpop.xlane.xlu0 %7075
        %v7077 = vmul.f32 %v7076, 0.03125
        %v7078 = vsub.f32 %v7072, %v7077
        %v7079 = vmul.f32 %v7078, %v7078
        %v7080 = vsel %vm7073, %v7079, 0.0
        %7081 = vadd.xlane.f32.xlu0 %v7080
        %v7082 = vpop.xlane.xlu0 %7081
        %v7083 = vmul.f32 %v7082, 0.03125
        %v7084 = vadd.f32 %v7083, 1e-05
        %v7085 = vrsqrt.pop %v7084
        %v7086 = vmul.f32 %v7078, %v7085
        %v7087 = vld [vmem:[%s13] sm:$0x1]
        %v7089 = vlaneseq
        %v7090 = vshrl.u32 %v7089, 7
        %v7091 = vsub.s32 0, %v7090
        %v7092 = vrot.slane %v7087, %v7091
        %v7094 = vmul.f32 %v7086, %v7092
        %v7095 = vld [vmem:[%s14] sm:$0x1]
        %v7097 = vlaneseq
        %v7098 = vshrl.u32 %v7097, 7
        %v7099 = vsub.s32 0, %v7098
        %v7100 = vrot.slane %v7095, %v7099
        %v7102 = vadd.f32 %v7094, %v7100
        %7103 = vst.msk [vmem:[%s487] sm:$0xf] %vm7073, %v7102
        %s7104 = sand.u32 %s357, 1
        %s7105 = scalar_lea.sflag [#allocation3], %s7104
        %s7106 = sand.u32 %s357, 1
        %s7107 = smul.addr %s7106, 4
        %s7108 = scalar_lea.vmem [#allocation2], %s7107
        // Predicated region
        $region81: #{random_cnn_encoder_forward.1} parent=79 // pred_check
          %p7109 = pneg %p367
        $region82: #{random_cnn_encoder_forward.1} parent=79 // pred_check_branch
          %7111 = sbr.rel (%p7109) target = $region84
        $region83: #{random_cnn_encoder_forward.1} parent=79 // pred_region
          %s7113 = ssub.s32 64, 64
          %7114 = vsyncadd %s7105, %s7113
          %s7115 = smul.addr %s29, 64
          %s7116 = scalar_lea.hbm %s15, %s7115
          %s7118 = sshll.u32 %s7108, 4
          %s7119 = int_to_ptr.vmem [resolvable:$true] %s7118
          %7121 = dma.vmem_to_hbm [thread:$0]  %s7119, 64, %s7116, %s7105
        $region84: #{random_cnn_encoder_forward.1} parent=79 // pred_fallthru
          _
      $region80: #{random_cnn_encoder_forward.1} parent=5 // pred_fallthru
        _
      %p7122 = scmp.le.s32.totalorder 2, %s24
      // Predicated region
      $region85: #{random_cnn_encoder_forward.1} parent=5 // pred_check
        %p7123 = pneg %p7122
      $region86: #{random_cnn_encoder_forward.1} parent=5 // pred_check_branch
        %7125 = sbr.rel (%p7123) target = $region88
      $region87: #{random_cnn_encoder_forward.1} parent=5 // pred_region
        %s7126 = ssub.s32 %s24, 2
        // Predicated region
        $region89: #{random_cnn_encoder_forward.1} parent=87 // pred_check
          %p7127 = pneg %p373
        $region90: #{random_cnn_encoder_forward.1} parent=87 // pred_check_branch
          %7129 = sbr.rel (%p7127) target = $region92
        $region91: #{random_cnn_encoder_forward.1} parent=87 // pred_region
          %s7130 = sand.u32 %s358, 1
          %s7131 = scalar_lea.sflag [#allocation3], %s7130
          %s7132 = sand.u32 %s358, 1
          %s7133 = smul.addr %s7132, 4
          %s7134 = scalar_lea.vmem [#allocation2], %s7133
          %7135 = dma.done %s7131, 64
        $region92: #{random_cnn_encoder_forward.1} parent=87 // pred_fallthru
          _
      $region88: #{random_cnn_encoder_forward.1} parent=5 // pred_fallthru
        _
    $region6: #{random_cnn_encoder_forward.1} parent=1 // loop_footer
      %s28 = sadd.s32 1, %s24
    $region7: #{random_cnn_encoder_forward.1} parent=1 // loop_footer_branch
      %23 = sbr.rel target = $region3
    $region8: #{random_cnn_encoder_forward.1} parent=1 // loop_exit
      _
    %7136 = vsyncpa [#allocation3], 1
    %s7137 = scalar_lea.sflag [#allocation3], 1
    %7138 = vsyncpa %s7137, 1

</llo_original>
